<compile_context>
chip_gen: v5e
topology: v5e:2x2
jax: 0.10.0
libtpu: 0.0.40
codegen_flags: <defaults>
</compile_context>

<pallas_src>
import numpy as np

import jax
import jax.numpy as jnp
from jax.experimental import pallas as pl
from jax.experimental.pallas import tpu as pltpu

# ----------------------------------------------------------------------------
# Static model geometry (28x28 input is required: 32*5*5 = 800 -> linear1).
# ----------------------------------------------------------------------------
H0 = 28                 # input spatial size
C1, C2 = 16, 32         # conv channel counts
P1 = 13                 # conv1 (26x26) after 2x2 max pool
P2 = 5                  # conv2 (11x11) after 2x2 avg pool
NPAIR = 14              # input row pairs per image
NR2 = 2 * P2            # conv2 rows actually consumed by the avg pool (10)
G1 = 256                # padded lane-group width for the 4 stage-1 pooling phases
LANE2 = 2 * P2 * C2     # 320 stage-2 lanes = (horiz phase, pooled col, channel)
L1, L1P = 400, 512      # linear1 width, padded to a 128 multiple
L2, L2P = 10, 128       # linear2 width, padded


def _const_spec(shape):
    """Full-array block, constant index_map: operand stays VMEM-resident."""
    return pl.BlockSpec(shape, lambda i: (0,) * len(shape))


# ----------------------------------------------------------------------------
# Fused kernel (one batch tile of `tb` images per grid step)
# ----------------------------------------------------------------------------
def _make_kernel(tb):
    r1 = P1 * tb          # 13*tb rows produced by stage 1 (pooled rows, r-major)
    r2 = NR2 * tb         # 10*tb rows produced by stage 2 (conv2 rows 0..9)

    def kernel(x_ref, wa_ref, wb_ref, b1_ref, w2_ref, b2_ref,
               w1f_ref, b1f_ref, w2f_ref, b2f_ref, o_ref):
        # x_ref: [14, tb, 56] bf16; row pair r holds input rows (2r, 2r+1) in lanes.
        x3 = x_ref[...]
        a = x3[:P1].reshape(r1, 2 * H0)        # pair r   -> input rows 2r,   2r+1
        b = x3[1:].reshape(r1, 2 * H0)         # pair r+1 -> input rows 2r+2, 2r+3

        # ---- conv1 (BN1 scale folded) + bias + ReLU + MaxPool2x2 --------------
        # Output lanes: 4 groups of 256 = (vert phase p, horiz phase q) x (j2, oc).
        z = (jnp.dot(a, wa_ref[...], preferred_element_type=jnp.float32) +
             jnp.dot(b, wb_ref[...], preferred_element_type=jnp.float32))
        z = jnp.maximum(z + b1_ref[...], 0.0)
        y1 = jnp.maximum(jnp.maximum(z[:, 0:G1], z[:, G1:2 * G1]),
                         jnp.maximum(z[:, 2 * G1:3 * G1], z[:, 3 * G1:4 * G1]))
        y1 = y1.astype(jnp.bfloat16)           # [13*tb, 256]; = BN1 scale * pooled

        # ---- conv2 + bias(+BN1 shift) + ReLU ----------------------------------
        # Vertical taps = aligned row-block slices of y1 (r-major layout).
        acc2 = (jnp.dot(y1[0:r2], w2_ref[0], preferred_element_type=jnp.float32) +
                jnp.dot(y1[tb:tb + r2], w2_ref[1], preferred_element_type=jnp.float32) +
                jnp.dot(y1[2 * tb:2 * tb + r2], w2_ref[2],
                        preferred_element_type=jnp.float32))
        h2 = jnp.maximum(acc2 + b2_ref[...], 0.0).astype(jnp.bfloat16)  # [10*tb, 320]

        # ---- head: (BN2 + avgpool + flatten + linear1) folded, ReLU,
        #            (BN1d + dropout(id) + linear2) folded ----------------------
        hacc = jnp.zeros((tb, L1P), jnp.float32)
        for rp in range(NR2):                  # static unroll over the 10 conv2 rows
            hacc = hacc + jnp.dot(h2[rp * tb:(rp + 1) * tb], w1f_ref[rp],
                                  preferred_element_type=jnp.float32)
        hid = jnp.maximum(hacc + b1f_ref[...], 0.0).astype(jnp.bfloat16)
        o_ref[...] = (jnp.dot(hid, w2f_ref[...], preferred_element_type=jnp.float32)
                      + b2f_ref[...])

    return kernel


# ----------------------------------------------------------------------------
# Parameters (torch layouts) and one-time conversion to the fused kernel form
# ----------------------------------------------------------------------------
def _bn_affine(gamma, beta, mean, var, eps=1e-5):
    s = gamma / np.sqrt(var + eps)
    return s, beta - mean * s


def init_params(key):
    ks = jax.random.split(key, 8)
    feat = C2 * P2 * P2

    def _u(k, shape, fan_in):
        bnd = 1.0 / np.sqrt(float(fan_in))
        return jax.random.uniform(k, shape, jnp.float32, -bnd, bnd)

    p = {
        "conv1_w": _u(ks[0], (C1, 1, 3, 3), 9),
        "conv1_b": _u(ks[1], (C1,), 9),
        "conv2_w": _u(ks[2], (C2, C1, 3, 3), C1 * 9),
        "conv2_b": _u(ks[3], (C2,), C1 * 9),
        "l1_w": _u(ks[4], (L1, feat), feat),
        "l1_b": _u(ks[5], (L1,), feat),
        "l2_w": _u(ks[6], (L2, L1), L1),
        "l2_b": _u(ks[7], (L2,), L1),
    }
    for name, c in (("bn1", C1), ("bn2", C2), ("bnl1", L1)):
        p[f"{name}_gamma"] = jnp.ones((c,), jnp.float32)
        p[f"{name}_beta"] = jnp.zeros((c,), jnp.float32)
        p[f"{name}_mean"] = jnp.zeros((c,), jnp.float32)
        p[f"{name}_var"] = jnp.ones((c,), jnp.float32)
    return p


def prepare_params(p):
    """One-time: build the folded Toeplitz / head weights used by the fused kernel."""
    f32 = np.float32
    w1 = np.asarray(p["conv1_w"], f32); b1 = np.asarray(p["conv1_b"], f32)
    w2 = np.asarray(p["conv2_w"], f32); b2 = np.asarray(p["conv2_b"], f32)
    l1w = np.asarray(p["l1_w"], f32); l1b = np.asarray(p["l1_b"], f32)
    l2w = np.asarray(p["l2_w"], f32); l2b = np.asarray(p["l2_b"], f32)
    s1, t1 = _bn_affine(np.asarray(p["bn1_gamma"], f32), np.asarray(p["bn1_beta"], f32),
                        np.asarray(p["bn1_mean"], f32), np.asarray(p["bn1_var"], f32))
    s2, t2 = _bn_affine(np.asarray(p["bn2_gamma"], f32), np.asarray(p["bn2_beta"], f32),
                        np.asarray(p["bn2_mean"], f32), np.asarray(p["bn2_var"], f32))
    sl, tl = _bn_affine(np.asarray(p["bnl1_gamma"], f32), np.asarray(p["bnl1_beta"], f32),
                        np.asarray(p["bnl1_mean"], f32), np.asarray(p["bnl1_var"], f32))
    # BN1 scale is folded across the ReLU/maxpool -> requires positive scale (gamma>0).
    assert np.all(s1 > 0), "BN1 gamma must be positive to fold scale into conv1 weights"

    # --- stage 1: conv1 width-Toeplitz over (pair-lane=56) for the current (wa)
    # and next (wb) row pair; output lanes = (p, q, j2, oc) in 4 groups of 256.
    wa = np.zeros((2 * H0, 4 * G1), f32)
    wb = np.zeros((2 * H0, 4 * G1), f32)
    for pv in range(2):                      # vertical pool phase: conv row = 2*h2 + pv
        for q in range(2):                   # horizontal pool phase: conv col = 2*j2 + q
            grp = 2 * pv + q
            for j2 in range(P1):
                for oc in range(C1):
                    lane = grp * G1 + j2 * C1 + oc
                    for dj in range(3):
                        col = 2 * j2 + q + dj
                        for v in range(2):   # row inside the pair
                            di = v - pv      # supplied by the current pair
                            if 0 <= di <= 2:
                                wa[v * H0 + col, lane] += w1[oc, 0, di, dj] * s1[oc]
                            di = v + 2 - pv  # supplied by the next pair
                            if 0 <= di <= 2:
                                wb[v * H0 + col, lane] += w1[oc, 0, di, dj] * s1[oc]
    b1row = np.zeros((1, 4 * G1), f32)
    for grp in range(4):
        for j2 in range(P1):
            b1row[0, grp * G1 + j2 * C1:grp * G1 + (j2 + 1) * C1] = b1 * s1

    # --- stage 2: conv2 width-Toeplitz per vertical tap di, acting on the
    # (j2, oc) lanes of y1; output lanes = (q', j5, oc2).  BN1 shift -> bias.
    w2s = np.zeros((3, G1, LANE2), f32)
    for di in range(3):
        for q in range(2):
            for j5 in range(P2):
                for oc in range(C2):
                    lane = q * (P2 * C2) + j5 * C2 + oc
                    for dj in range(3):
                        j2 = 2 * j5 + q + dj
                        w2s[di, j2 * C1:(j2 + 1) * C1, lane] = w2[oc, :, di, dj]
    b2_ch = b2 + np.einsum("ocij,c->o", w2, t1)          # conv2 of the BN1 shift
    b2row = np.zeros((1, LANE2), f32)
    for q in range(2):
        for j5 in range(P2):
            b2row[0, q * (P2 * C2) + j5 * C2:q * (P2 * C2) + (j5 + 1) * C2] = b2_ch

    # --- head: fold BN2 + AvgPool2x2 + torch NCHW flatten + linear1 into a
    # per-conv2-row weight [10, 320, 512]; fold BN1d into linear2.
    w1f = np.zeros((NR2, LANE2, L1P), f32)
    for rp in range(NR2):
        h5 = rp // 2
        for q in range(2):
            for j5 in range(P2):
                for oc in range(C2):
                    lane = q * (P2 * C2) + j5 * C2 + oc
                    f = oc * (P2 * P2) + h5 * P2 + j5    # torch x.view(len(x),-1) order
                    w1f[rp, lane, :L1] = 0.25 * s2[oc] * l1w[:, f]
    b1f = np.zeros((1, L1P), f32)
    b1f[0, :L1] = l1b + l1w @ np.repeat(t2, P2 * P2)

    w2f = np.zeros((L1P, L2P), f32)
    w2f[:L1, :L2] = sl[:, None] * l2w.T
    b2out = np.zeros((1, L2P), f32)
    b2out[0, :L2] = l2b + l2w @ tl

    j, bf, jf = jnp.asarray, jnp.bfloat16, jnp.float32
    return {
        "wa": j(wa, bf), "wb": j(wb, bf), "b1": j(b1row, jf),
        "w2": j(w2s, bf), "b2": j(b2row, jf),
        "w1f": j(w1f, bf), "b1f": j(b1f, jf),
        "w2f": j(w2f, bf), "b2f": j(b2out, jf),
    }


# ----------------------------------------------------------------------------
# Forward pass (single fused pallas_call)
# ----------------------------------------------------------------------------
def cnn_forward(x_nchw, prep):
    n = x_nchw.shape[0]
    assert x_nchw.shape[1:] == (1, H0, H0), "CNN_model requires 1x28x28 inputs"

    # Tile size: multiple of 16, capped at 64; >=2 grid programs once n>=32 (v7x dual TC).
    tb = min(64, 16 * max(1, (n + 31) // 32))
    g = -(-n // tb)
    npad = g * tb

    x = x_nchw.reshape(n, H0, H0).astype(jnp.bfloat16)
    if npad != n:
        x = jnp.pad(x, ((0, npad - n), (0, 0), (0, 0)))
    # [14, npad, 56]: leading dim = input row pair, lanes = (row parity, column).
    xp = jnp.transpose(x.reshape(npad, NPAIR, 2 * H0), (1, 0, 2))

    out = pl.pallas_call(
        _make_kernel(tb),
        grid=(g,),
        in_specs=[
            pl.BlockSpec((NPAIR, tb, 2 * H0), lambda i: (0, i, 0)),   # x tile
            _const_spec((2 * H0, 4 * G1)),     # wa
            _const_spec((2 * H0, 4 * G1)),     # wb
            _const_spec((1, 4 * G1)),          # conv1 bias (scaled)
            _const_spec((3, G1, LANE2)),       # conv2 Toeplitz (per vertical tap)
            _const_spec((1, LANE2)),           # conv2 bias (+BN1 shift)
            _const_spec((NR2, LANE2, L1P)),    # folded linear1 weight per conv2 row
            _const_spec((1, L1P)),             # folded linear1 bias
            _const_spec((L1P, L2P)),           # folded linear2 weight
            _const_spec((1, L2P)),             # folded linear2 bias
        ],
        out_specs=pl.BlockSpec((tb, L2P), lambda i: (i, 0)),
        out_shape=jax.ShapeDtypeStruct((npad, L2P), jnp.float32),
        compiler_params=pltpu.CompilerParams(
            dimension_semantics=("parallel",),
            vmem_limit_bytes=32 * 1024 * 1024),
    )(xp, prep["wa"], prep["wb"], prep["b1"], prep["w2"], prep["b2"],
      prep["w1f"], prep["b1f"], prep["w2f"], prep["b2f"])

    return out[:n, :L2]


if __name__ == "__main__":
    key = jax.random.PRNGKey(0)
    k_in, k_p = jax.random.split(key)
    # 28x28 input is required by the module (32*5*5 = 800 features into linear1).
    x = jax.random.normal(k_in, (2, 1, 28, 28), jnp.float32)
    params = init_params(k_p)
    prep = prepare_params(params)

    out = jax.jit(cnn_forward)(x, prep)
    out = jax.block_until_ready(out)
    assert out.shape == (2, 10) and out.dtype == jnp.float32
    print("KERNEL_OK")
</pallas_src>

<mosaic_0001>
module attributes {stable_mosaic.version = 11 : i64} {
  func.func @kernel(%arg0: i32, %arg1: memref<14x16x56xbf16, #tpu.memory_space<vmem>>, %arg2: memref<56x1024xbf16, #tpu.memory_space<vmem>>, %arg3: memref<56x1024xbf16, #tpu.memory_space<vmem>>, %arg4: memref<1x1024xf32, #tpu.memory_space<vmem>>, %arg5: memref<3x256x320xbf16, #tpu.memory_space<vmem>>, %arg6: memref<1x320xf32, #tpu.memory_space<vmem>>, %arg7: memref<10x320x512xbf16, #tpu.memory_space<vmem>>, %arg8: memref<1x512xf32, #tpu.memory_space<vmem>>, %arg9: memref<512x128xbf16, #tpu.memory_space<vmem>>, %arg10: memref<1x128xf32, #tpu.memory_space<vmem>>, %arg11: memref<16x128xf32, #tpu.memory_space<vmem>>) attributes {dimension_semantics = [#tpu.dimension_semantics<parallel>], iteration_bounds = array<i64: 1>, scalar_prefetch = 0 : i64, scratch_operands = 0 : i64, tpu.core_type = #tpu.core_type<tc>, window_params = [{transform_indices = @transform_0, window_bounds = array<i64: 14, 16, 56>}, {pipeline_mode = #tpu.pipeline_mode<synchronous>, transform_indices = @transform_1, window_bounds = array<i64: 56, 1024>}, {pipeline_mode = #tpu.pipeline_mode<synchronous>, transform_indices = @transform_2, window_bounds = array<i64: 56, 1024>}, {pipeline_mode = #tpu.pipeline_mode<synchronous>, transform_indices = @transform_3, window_bounds = array<i64: 1, 1024>}, {pipeline_mode = #tpu.pipeline_mode<synchronous>, transform_indices = @transform_4, window_bounds = array<i64: 3, 256, 320>}, {pipeline_mode = #tpu.pipeline_mode<synchronous>, transform_indices = @transform_5, window_bounds = array<i64: 1, 320>}, {pipeline_mode = #tpu.pipeline_mode<synchronous>, transform_indices = @transform_6, window_bounds = array<i64: 10, 320, 512>}, {pipeline_mode = #tpu.pipeline_mode<synchronous>, transform_indices = @transform_7, window_bounds = array<i64: 1, 512>}, {pipeline_mode = #tpu.pipeline_mode<synchronous>, transform_indices = @transform_8, window_bounds = array<i64: 512, 128>}, {pipeline_mode = #tpu.pipeline_mode<synchronous>, transform_indices = @transform_9, window_bounds = array<i64: 1, 128>}, {transform_indices = @transform_10, window_bounds = array<i64: 16, 128>}]} {
    %c0 = arith.constant 0 : index
    %c0_0 = arith.constant 0 : index
    %c0_1 = arith.constant 0 : index
    %0 = vector.load %arg1[%c0, %c0_0, %c0_1] : memref<14x16x56xbf16, #tpu.memory_space<vmem>>, vector<14x16x56xbf16>
    %1 = vector.extract_strided_slice %0 {offsets = [0, 0, 0], sizes = [13, 16, 56], strides = [1, 1, 1]} : vector<14x16x56xbf16> to vector<13x16x56xbf16>
    %2 = vector.shape_cast %1 : vector<13x16x56xbf16> to vector<208x56xbf16>
    %3 = vector.extract_strided_slice %0 {offsets = [1, 0, 0], sizes = [13, 16, 56], strides = [1, 1, 1]} : vector<14x16x56xbf16> to vector<13x16x56xbf16>
    %4 = vector.shape_cast %3 : vector<13x16x56xbf16> to vector<208x56xbf16>
    %c0_2 = arith.constant 0 : index
    %c0_3 = arith.constant 0 : index
    %5 = vector.load %arg2[%c0_2, %c0_3] : memref<56x1024xbf16, #tpu.memory_space<vmem>>, vector<56x1024xbf16>
    %cst = arith.constant dense<0.000000e+00> : vector<208x1024xf32>
    %6 = tpu.matmul %2, %5, %cst {dimension_numbers = #tpu.dot_dimension_numbers<[1], [0], [0], [1], [0, 0, 1, 1], [], []>} : vector<208x56xbf16>, vector<56x1024xbf16>, vector<208x1024xf32> -> vector<208x1024xf32>
    %c0_4 = arith.constant 0 : index
    %c0_5 = arith.constant 0 : index
    %7 = vector.load %arg3[%c0_4, %c0_5] : memref<56x1024xbf16, #tpu.memory_space<vmem>>, vector<56x1024xbf16>
    %cst_6 = arith.constant dense<0.000000e+00> : vector<208x1024xf32>
    %8 = tpu.matmul %4, %7, %cst_6 {dimension_numbers = #tpu.dot_dimension_numbers<[1], [0], [0], [1], [0, 0, 1, 1], [], []>} : vector<208x56xbf16>, vector<56x1024xbf16>, vector<208x1024xf32> -> vector<208x1024xf32>
    %9 = arith.addf %6, %8 : vector<208x1024xf32>
    %c0_7 = arith.constant 0 : index
    %c0_8 = arith.constant 0 : index
    %10 = vector.load %arg4[%c0_7, %c0_8] : memref<1x1024xf32, #tpu.memory_space<vmem>>, vector<1x1024xf32>
    %11 = vector.broadcast %10 : vector<1x1024xf32> to vector<208x1024xf32>
    %12 = arith.addf %9, %11 : vector<208x1024xf32>
    %cst_9 = arith.constant 0.000000e+00 : f32
    %13 = vector.broadcast %cst_9 : f32 to vector<208x1024xf32>
    %14 = arith.maximumf %12, %13 : vector<208x1024xf32>
    %15 = vector.extract_strided_slice %14 {offsets = [0, 0], sizes = [208, 256], strides = [1, 1]} : vector<208x1024xf32> to vector<208x256xf32>
    %16 = vector.extract_strided_slice %14 {offsets = [0, 256], sizes = [208, 256], strides = [1, 1]} : vector<208x1024xf32> to vector<208x256xf32>
    %17 = arith.maximumf %15, %16 : vector<208x256xf32>
    %18 = vector.extract_strided_slice %14 {offsets = [0, 512], sizes = [208, 256], strides = [1, 1]} : vector<208x1024xf32> to vector<208x256xf32>
    %19 = vector.extract_strided_slice %14 {offsets = [0, 768], sizes = [208, 256], strides = [1, 1]} : vector<208x1024xf32> to vector<208x256xf32>
    %20 = arith.maximumf %18, %19 : vector<208x256xf32>
    %21 = arith.maximumf %17, %20 : vector<208x256xf32>
    %22 = arith.truncf %21 : vector<208x256xf32> to vector<208x256xbf16>
    %23 = vector.extract_strided_slice %22 {offsets = [0, 0], sizes = [160, 256], strides = [1, 1]} : vector<208x256xbf16> to vector<160x256xbf16>
    %c0_10 = arith.constant 0 : index
    %c0_11 = arith.constant 0 : index
    %c0_12 = arith.constant 0 : index
    %24 = vector.load %arg5[%c0_10, %c0_11, %c0_12] : memref<3x256x320xbf16, #tpu.memory_space<vmem>>, vector<1x256x320xbf16>
    %25 = vector.shape_cast %24 : vector<1x256x320xbf16> to vector<256x320xbf16>
    %cst_13 = arith.constant dense<0.000000e+00> : vector<160x320xf32>
    %26 = tpu.matmul %23, %25, %cst_13 {dimension_numbers = #tpu.dot_dimension_numbers<[1], [0], [0], [1], [0, 0, 1, 1], [], []>} : vector<160x256xbf16>, vector<256x320xbf16>, vector<160x320xf32> -> vector<160x320xf32>
    %27 = vector.extract_strided_slice %22 {offsets = [16, 0], sizes = [160, 256], strides = [1, 1]} : vector<208x256xbf16> to vector<160x256xbf16>
    %c1 = arith.constant 1 : index
    %c0_14 = arith.constant 0 : index
    %c0_15 = arith.constant 0 : index
    %28 = vector.load %arg5[%c1, %c0_14, %c0_15] : memref<3x256x320xbf16, #tpu.memory_space<vmem>>, vector<1x256x320xbf16>
    %29 = vector.shape_cast %28 : vector<1x256x320xbf16> to vector<256x320xbf16>
    %cst_16 = arith.constant dense<0.000000e+00> : vector<160x320xf32>
    %30 = tpu.matmul %27, %29, %cst_16 {dimension_numbers = #tpu.dot_dimension_numbers<[1], [0], [0], [1], [0, 0, 1, 1], [], []>} : vector<160x256xbf16>, vector<256x320xbf16>, vector<160x320xf32> -> vector<160x320xf32>
    %31 = arith.addf %26, %30 : vector<160x320xf32>
    %32 = vector.extract_strided_slice %22 {offsets = [32, 0], sizes = [160, 256], strides = [1, 1]} : vector<208x256xbf16> to vector<160x256xbf16>
    %c2 = arith.constant 2 : index
    %c0_17 = arith.constant 0 : index
    %c0_18 = arith.constant 0 : index
    %33 = vector.load %arg5[%c2, %c0_17, %c0_18] : memref<3x256x320xbf16, #tpu.memory_space<vmem>>, vector<1x256x320xbf16>
    %34 = vector.shape_cast %33 : vector<1x256x320xbf16> to vector<256x320xbf16>
    %cst_19 = arith.constant dense<0.000000e+00> : vector<160x320xf32>
    %35 = tpu.matmul %32, %34, %cst_19 {dimension_numbers = #tpu.dot_dimension_numbers<[1], [0], [0], [1], [0, 0, 1, 1], [], []>} : vector<160x256xbf16>, vector<256x320xbf16>, vector<160x320xf32> -> vector<160x320xf32>
    %36 = arith.addf %31, %35 : vector<160x320xf32>
    %c0_20 = arith.constant 0 : index
    %c0_21 = arith.constant 0 : index
    %37 = vector.load %arg6[%c0_20, %c0_21] : memref<1x320xf32, #tpu.memory_space<vmem>>, vector<1x320xf32>
    %38 = vector.broadcast %37 : vector<1x320xf32> to vector<160x320xf32>
    %39 = arith.addf %36, %38 : vector<160x320xf32>
    %cst_22 = arith.constant 0.000000e+00 : f32
    %40 = vector.broadcast %cst_22 : f32 to vector<160x320xf32>
    %41 = arith.maximumf %39, %40 : vector<160x320xf32>
    %42 = arith.truncf %41 : vector<160x320xf32> to vector<160x320xbf16>
    %cst_23 = arith.constant 0.000000e+00 : f32
    %43 = vector.broadcast %cst_23 : f32 to vector<16x512xf32>
    %44 = vector.extract_strided_slice %42 {offsets = [0, 0], sizes = [16, 320], strides = [1, 1]} : vector<160x320xbf16> to vector<16x320xbf16>
    %c0_24 = arith.constant 0 : index
    %c0_25 = arith.constant 0 : index
    %c0_26 = arith.constant 0 : index
    %45 = vector.load %arg7[%c0_24, %c0_25, %c0_26] : memref<10x320x512xbf16, #tpu.memory_space<vmem>>, vector<1x320x512xbf16>
    %46 = vector.shape_cast %45 : vector<1x320x512xbf16> to vector<320x512xbf16>
    %cst_27 = arith.constant dense<0.000000e+00> : vector<16x512xf32>
    %47 = tpu.matmul %44, %46, %cst_27 {dimension_numbers = #tpu.dot_dimension_numbers<[1], [0], [0], [1], [0, 0, 1, 1], [], []>} : vector<16x320xbf16>, vector<320x512xbf16>, vector<16x512xf32> -> vector<16x512xf32>
    %48 = arith.addf %43, %47 : vector<16x512xf32>
    %49 = vector.extract_strided_slice %42 {offsets = [16, 0], sizes = [16, 320], strides = [1, 1]} : vector<160x320xbf16> to vector<16x320xbf16>
    %c1_28 = arith.constant 1 : index
    %c0_29 = arith.constant 0 : index
    %c0_30 = arith.constant 0 : index
    %50 = vector.load %arg7[%c1_28, %c0_29, %c0_30] : memref<10x320x512xbf16, #tpu.memory_space<vmem>>, vector<1x320x512xbf16>
    %51 = vector.shape_cast %50 : vector<1x320x512xbf16> to vector<320x512xbf16>
    %cst_31 = arith.constant dense<0.000000e+00> : vector<16x512xf32>
    %52 = tpu.matmul %49, %51, %cst_31 {dimension_numbers = #tpu.dot_dimension_numbers<[1], [0], [0], [1], [0, 0, 1, 1], [], []>} : vector<16x320xbf16>, vector<320x512xbf16>, vector<16x512xf32> -> vector<16x512xf32>
    %53 = arith.addf %48, %52 : vector<16x512xf32>
    %54 = vector.extract_strided_slice %42 {offsets = [32, 0], sizes = [16, 320], strides = [1, 1]} : vector<160x320xbf16> to vector<16x320xbf16>
    %c2_32 = arith.constant 2 : index
    %c0_33 = arith.constant 0 : index
    %c0_34 = arith.constant 0 : index
    %55 = vector.load %arg7[%c2_32, %c0_33, %c0_34] : memref<10x320x512xbf16, #tpu.memory_space<vmem>>, vector<1x320x512xbf16>
    %56 = vector.shape_cast %55 : vector<1x320x512xbf16> to vector<320x512xbf16>
    %cst_35 = arith.constant dense<0.000000e+00> : vector<16x512xf32>
    %57 = tpu.matmul %54, %56, %cst_35 {dimension_numbers = #tpu.dot_dimension_numbers<[1], [0], [0], [1], [0, 0, 1, 1], [], []>} : vector<16x320xbf16>, vector<320x512xbf16>, vector<16x512xf32> -> vector<16x512xf32>
    %58 = arith.addf %53, %57 : vector<16x512xf32>
    %59 = vector.extract_strided_slice %42 {offsets = [48, 0], sizes = [16, 320], strides = [1, 1]} : vector<160x320xbf16> to vector<16x320xbf16>
    %c3 = arith.constant 3 : index
    %c0_36 = arith.constant 0 : index
    %c0_37 = arith.constant 0 : index
    %60 = vector.load %arg7[%c3, %c0_36, %c0_37] : memref<10x320x512xbf16, #tpu.memory_space<vmem>>, vector<1x320x512xbf16>
    %61 = vector.shape_cast %60 : vector<1x320x512xbf16> to vector<320x512xbf16>
    %cst_38 = arith.constant dense<0.000000e+00> : vector<16x512xf32>
    %62 = tpu.matmul %59, %61, %cst_38 {dimension_numbers = #tpu.dot_dimension_numbers<[1], [0], [0], [1], [0, 0, 1, 1], [], []>} : vector<16x320xbf16>, vector<320x512xbf16>, vector<16x512xf32> -> vector<16x512xf32>
    %63 = arith.addf %58, %62 : vector<16x512xf32>
    %64 = vector.extract_strided_slice %42 {offsets = [64, 0], sizes = [16, 320], strides = [1, 1]} : vector<160x320xbf16> to vector<16x320xbf16>
    %c4 = arith.constant 4 : index
    %c0_39 = arith.constant 0 : index
    %c0_40 = arith.constant 0 : index
    %65 = vector.load %arg7[%c4, %c0_39, %c0_40] : memref<10x320x512xbf16, #tpu.memory_space<vmem>>, vector<1x320x512xbf16>
    %66 = vector.shape_cast %65 : vector<1x320x512xbf16> to vector<320x512xbf16>
    %cst_41 = arith.constant dense<0.000000e+00> : vector<16x512xf32>
    %67 = tpu.matmul %64, %66, %cst_41 {dimension_numbers = #tpu.dot_dimension_numbers<[1], [0], [0], [1], [0, 0, 1, 1], [], []>} : vector<16x320xbf16>, vector<320x512xbf16>, vector<16x512xf32> -> vector<16x512xf32>
    %68 = arith.addf %63, %67 : vector<16x512xf32>
    %69 = vector.extract_strided_slice %42 {offsets = [80, 0], sizes = [16, 320], strides = [1, 1]} : vector<160x320xbf16> to vector<16x320xbf16>
    %c5 = arith.constant 5 : index
    %c0_42 = arith.constant 0 : index
    %c0_43 = arith.constant 0 : index
    %70 = vector.load %arg7[%c5, %c0_42, %c0_43] : memref<10x320x512xbf16, #tpu.memory_space<vmem>>, vector<1x320x512xbf16>
    %71 = vector.shape_cast %70 : vector<1x320x512xbf16> to vector<320x512xbf16>
    %cst_44 = arith.constant dense<0.000000e+00> : vector<16x512xf32>
    %72 = tpu.matmul %69, %71, %cst_44 {dimension_numbers = #tpu.dot_dimension_numbers<[1], [0], [0], [1], [0, 0, 1, 1], [], []>} : vector<16x320xbf16>, vector<320x512xbf16>, vector<16x512xf32> -> vector<16x512xf32>
    %73 = arith.addf %68, %72 : vector<16x512xf32>
    %74 = vector.extract_strided_slice %42 {offsets = [96, 0], sizes = [16, 320], strides = [1, 1]} : vector<160x320xbf16> to vector<16x320xbf16>
    %c6 = arith.constant 6 : index
    %c0_45 = arith.constant 0 : index
    %c0_46 = arith.constant 0 : index
    %75 = vector.load %arg7[%c6, %c0_45, %c0_46] : memref<10x320x512xbf16, #tpu.memory_space<vmem>>, vector<1x320x512xbf16>
    %76 = vector.shape_cast %75 : vector<1x320x512xbf16> to vector<320x512xbf16>
    %cst_47 = arith.constant dense<0.000000e+00> : vector<16x512xf32>
    %77 = tpu.matmul %74, %76, %cst_47 {dimension_numbers = #tpu.dot_dimension_numbers<[1], [0], [0], [1], [0, 0, 1, 1], [], []>} : vector<16x320xbf16>, vector<320x512xbf16>, vector<16x512xf32> -> vector<16x512xf32>
    %78 = arith.addf %73, %77 : vector<16x512xf32>
    %79 = vector.extract_strided_slice %42 {offsets = [112, 0], sizes = [16, 320], strides = [1, 1]} : vector<160x320xbf16> to vector<16x320xbf16>
    %c7 = arith.constant 7 : index
    %c0_48 = arith.constant 0 : index
    %c0_49 = arith.constant 0 : index
    %80 = vector.load %arg7[%c7, %c0_48, %c0_49] : memref<10x320x512xbf16, #tpu.memory_space<vmem>>, vector<1x320x512xbf16>
    %81 = vector.shape_cast %80 : vector<1x320x512xbf16> to vector<320x512xbf16>
    %cst_50 = arith.constant dense<0.000000e+00> : vector<16x512xf32>
    %82 = tpu.matmul %79, %81, %cst_50 {dimension_numbers = #tpu.dot_dimension_numbers<[1], [0], [0], [1], [0, 0, 1, 1], [], []>} : vector<16x320xbf16>, vector<320x512xbf16>, vector<16x512xf32> -> vector<16x512xf32>
    %83 = arith.addf %78, %82 : vector<16x512xf32>
    %84 = vector.extract_strided_slice %42 {offsets = [128, 0], sizes = [16, 320], strides = [1, 1]} : vector<160x320xbf16> to vector<16x320xbf16>
    %c8 = arith.constant 8 : index
    %c0_51 = arith.constant 0 : index
    %c0_52 = arith.constant 0 : index
    %85 = vector.load %arg7[%c8, %c0_51, %c0_52] : memref<10x320x512xbf16, #tpu.memory_space<vmem>>, vector<1x320x512xbf16>
    %86 = vector.shape_cast %85 : vector<1x320x512xbf16> to vector<320x512xbf16>
    %cst_53 = arith.constant dense<0.000000e+00> : vector<16x512xf32>
    %87 = tpu.matmul %84, %86, %cst_53 {dimension_numbers = #tpu.dot_dimension_numbers<[1], [0], [0], [1], [0, 0, 1, 1], [], []>} : vector<16x320xbf16>, vector<320x512xbf16>, vector<16x512xf32> -> vector<16x512xf32>
    %88 = arith.addf %83, %87 : vector<16x512xf32>
    %89 = vector.extract_strided_slice %42 {offsets = [144, 0], sizes = [16, 320], strides = [1, 1]} : vector<160x320xbf16> to vector<16x320xbf16>
    %c9 = arith.constant 9 : index
    %c0_54 = arith.constant 0 : index
    %c0_55 = arith.constant 0 : index
    %90 = vector.load %arg7[%c9, %c0_54, %c0_55] : memref<10x320x512xbf16, #tpu.memory_space<vmem>>, vector<1x320x512xbf16>
    %91 = vector.shape_cast %90 : vector<1x320x512xbf16> to vector<320x512xbf16>
    %cst_56 = arith.constant dense<0.000000e+00> : vector<16x512xf32>
    %92 = tpu.matmul %89, %91, %cst_56 {dimension_numbers = #tpu.dot_dimension_numbers<[1], [0], [0], [1], [0, 0, 1, 1], [], []>} : vector<16x320xbf16>, vector<320x512xbf16>, vector<16x512xf32> -> vector<16x512xf32>
    %93 = arith.addf %88, %92 : vector<16x512xf32>
    %c0_57 = arith.constant 0 : index
    %c0_58 = arith.constant 0 : index
    %94 = vector.load %arg8[%c0_57, %c0_58] : memref<1x512xf32, #tpu.memory_space<vmem>>, vector<1x512xf32>
    %95 = vector.broadcast %94 : vector<1x512xf32> to vector<16x512xf32>
    %96 = arith.addf %93, %95 : vector<16x512xf32>
    %cst_59 = arith.constant 0.000000e+00 : f32
    %97 = vector.broadcast %cst_59 : f32 to vector<16x512xf32>
    %98 = arith.maximumf %96, %97 : vector<16x512xf32>
    %99 = arith.truncf %98 : vector<16x512xf32> to vector<16x512xbf16>
    %c0_60 = arith.constant 0 : index
    %c0_61 = arith.constant 0 : index
    %100 = vector.load %arg9[%c0_60, %c0_61] : memref<512x128xbf16, #tpu.memory_space<vmem>>, vector<512x128xbf16>
    %cst_62 = arith.constant dense<0.000000e+00> : vector<16x128xf32>
    %101 = tpu.matmul %99, %100, %cst_62 {dimension_numbers = #tpu.dot_dimension_numbers<[1], [0], [0], [1], [0, 0, 1, 1], [], []>} : vector<16x512xbf16>, vector<512x128xbf16>, vector<16x128xf32> -> vector<16x128xf32>
    %c0_63 = arith.constant 0 : index
    %c0_64 = arith.constant 0 : index
    %102 = vector.load %arg10[%c0_63, %c0_64] : memref<1x128xf32, #tpu.memory_space<vmem>>, vector<1x128xf32>
    %103 = vector.broadcast %102 : vector<1x128xf32> to vector<16x128xf32>
    %104 = arith.addf %101, %103 : vector<16x128xf32>
    %c0_65 = arith.constant 0 : index
    %c0_66 = arith.constant 0 : index
    %105 = vector.load %arg11[%c0_65, %c0_66] : memref<16x128xf32, #tpu.memory_space<vmem>>, vector<16x128xf32>
    tpu.vector_store %arg11[%c0_65, %c0_66], %104 {strides = array<i32>} : memref<16x128xf32, #tpu.memory_space<vmem>>, vector<16x128xf32>,
    return
  }
  func.func @transform_0(%arg0: i32) -> (i32, i32, i32) {
    %c0_i32 = arith.constant 0 : i32
    %c0_i32_0 = arith.constant 0 : i32
    %c0_i32_1 = arith.constant 0 : i32
    return %c0_i32, %arg0, %c0_i32_0 : i32, i32, i32
  }
  func.func @transform_1(%arg0: i32) -> (i32, i32) {
    %c0_i32 = arith.constant 0 : i32
    %c0_i32_0 = arith.constant 0 : i32
    %c0_i32_1 = arith.constant 0 : i32
    return %c0_i32, %c0_i32_0 : i32, i32
  }
  func.func @transform_2(%arg0: i32) -> (i32, i32) {
    %c0_i32 = arith.constant 0 : i32
    %c0_i32_0 = arith.constant 0 : i32
    %c0_i32_1 = arith.constant 0 : i32
    return %c0_i32, %c0_i32_0 : i32, i32
  }
  func.func @transform_3(%arg0: i32) -> (i32, i32) {
    %c0_i32 = arith.constant 0 : i32
    %c0_i32_0 = arith.constant 0 : i32
    %c0_i32_1 = arith.constant 0 : i32
    return %c0_i32, %c0_i32_0 : i32, i32
  }
  func.func @transform_4(%arg0: i32) -> (i32, i32, i32) {
    %c0_i32 = arith.constant 0 : i32
    %c0_i32_0 = arith.constant 0 : i32
    %c0_i32_1 = arith.constant 0 : i32
    %c0_i32_2 = arith.constant 0 : i32
    return %c0_i32, %c0_i32_0, %c0_i32_1 : i32, i32, i32
  }
  func.func @transform_5(%arg0: i32) -> (i32, i32) {
    %c0_i32 = arith.constant 0 : i32
    %c0_i32_0 = arith.constant 0 : i32
    %c0_i32_1 = arith.constant 0 : i32
    return %c0_i32, %c0_i32_0 : i32, i32
  }
  func.func @transform_6(%arg0: i32) -> (i32, i32, i32) {
    %c0_i32 = arith.constant 0 : i32
    %c0_i32_0 = arith.constant 0 : i32
    %c0_i32_1 = arith.constant 0 : i32
    %c0_i32_2 = arith.constant 0 : i32
    return %c0_i32, %c0_i32_0, %c0_i32_1 : i32, i32, i32
  }
  func.func @transform_7(%arg0: i32) -> (i32, i32) {
    %c0_i32 = arith.constant 0 : i32
    %c0_i32_0 = arith.constant 0 : i32
    %c0_i32_1 = arith.constant 0 : i32
    return %c0_i32, %c0_i32_0 : i32, i32
  }
  func.func @transform_8(%arg0: i32) -> (i32, i32) {
    %c0_i32 = arith.constant 0 : i32
    %c0_i32_0 = arith.constant 0 : i32
    %c0_i32_1 = arith.constant 0 : i32
    return %c0_i32, %c0_i32_0 : i32, i32
  }
  func.func @transform_9(%arg0: i32) -> (i32, i32) {
    %c0_i32 = arith.constant 0 : i32
    %c0_i32_0 = arith.constant 0 : i32
    %c0_i32_1 = arith.constant 0 : i32
    return %c0_i32, %c0_i32_0 : i32, i32
  }
  func.func @transform_10(%arg0: i32) -> (i32, i32) {
    %c0_i32 = arith.constant 0 : i32
    %c0_i32_0 = arith.constant 0 : i32
    return %arg0, %c0_i32 : i32, i32
  }
}

</mosaic_0001>

<llo_original>
// kernel: cnn_forward.1
$region0: #{cnn_forward.1}
  #allocation0 [shape = 'u32[]', space=smem, size = 0x4, offset = 0x4, fixed_abs, tag = 'smem constant byte address 0x4 - core index']
  #allocation1 [shape = 'u32[72,128]{1,0:T(1,128)}', space=vmem, size = 0x9000, scoped, tag = 'internal scratch']
  %s0 = inlined_call_operand.vmem [shape: bf16[14,16,56], index: 0, kind: input, shape index: {}]
  %s1 = inlined_call_operand.hbm [shape: bf16[56,1024], index: 1, kind: input, shape index: {}]
  %s2 = inlined_call_operand.hbm [shape: bf16[56,1024], index: 2, kind: input, shape index: {}]
  %s3 = inlined_call_operand.hbm [shape: f32[1,1024], index: 3, kind: input, shape index: {}]
  %s4 = inlined_call_operand.vmem [shape: bf16[3,256,320], index: 4, kind: input, shape index: {}]
  %s5 = inlined_call_operand.hbm [shape: f32[1,320], index: 5, kind: input, shape index: {}]
  %s6 = inlined_call_operand.hbm [shape: bf16[10,320,512], index: 6, kind: input, shape index: {}]
  %s7 = inlined_call_operand.hbm [shape: f32[1,512], index: 7, kind: input, shape index: {}]
  %s8 = inlined_call_operand.hbm [shape: bf16[512,128], index: 8, kind: input, shape index: {}]
  %s9 = inlined_call_operand.hbm [shape: f32[1,128], index: 9, kind: input, shape index: {}]
  %s10 = inlined_call_operand.vmem [shape: f32[16,128], index: 10, kind: output, shape index: {}]
  %s11 = sld [smem:[#allocation0]]
  $region82: #{cnn_forward.1} parent=0
    _
  %s13 = ssub.s32 1, %s11
  %s14 = scalar_select 0, %s13, %s11
  $region1: #{cnn_forward.1} parent=0
    #allocation2 [shape = 'u8[114688]{0}', space=vmem, size = 0x1c000, scoped, tag = 'input window, operand 1, single buffered']
    #allocation3 [shape = 's32[1]{0}', space=sflag, size = 0x4, scoped, tag = 'scoped memory for cnn_forward.1']
    #allocation4 [shape = 'u8[114688]{0}', space=vmem, size = 0x1c000, scoped, tag = 'input window, operand 2, single buffered']
    #allocation5 [shape = 's32[1]{0}', space=sflag, size = 0x4, scoped, tag = 'scoped memory for cnn_forward.1']
    #allocation6 [shape = 'u8[4096]{0}', space=vmem, size = 0x1000, scoped, tag = 'input window, operand 3, single buffered']
    #allocation7 [shape = 'u8[1536]{0}', space=vmem, size = 0x800, scoped, tag = 'input window, operand 5, single buffered']
    #allocation8 [shape = 's32[1]{0}', space=sflag, size = 0x4, scoped, tag = 'scoped memory for cnn_forward.1']
    #allocation9 [shape = 'u8[3276800]{0}', space=vmem, size = 0x320000, scoped, tag = 'input window, operand 6, single buffered']
    #allocation10 [shape = 'u8[2048]{0}', space=vmem, size = 0x800, scoped, tag = 'input window, operand 7, single buffered']
    #allocation11 [shape = 's32[1]{0}', space=sflag, size = 0x4, scoped, tag = 'scoped memory for cnn_forward.1']
    #allocation12 [shape = 'u8[131072]{0}', space=vmem, size = 0x20000, scoped, tag = 'input window, operand 8, single buffered']
    #allocation13 [shape = 'u8[512]{0}', space=vmem, size = 0x400, scoped, tag = 'input window, operand 9, single buffered']
    #allocation14 [shape = 's32[1]{0}', space=sflag, size = 0x4, scoped, tag = 'scoped memory for cnn_forward.1']
    %15 = vsyncpa [#allocation3], 0
    %16 = vsyncpa [#allocation5], 0
    %17 = vsyncpa [#allocation8], 0
    %18 = vsyncpa [#allocation11], 0
    %19 = vsyncpa [#allocation14], 0
    // Predicated region
    $region2: #{cnn_forward.1} parent=1 // pred_check
      _
    $region3: #{cnn_forward.1} parent=1 // pred_check_branch
      %21 = sbr.rel (0) target = $region5
    $region4: #{cnn_forward.1} parent=1 // pred_region
      _
    $region5: #{cnn_forward.1} parent=1 // pred_fallthru
      _
    // Predicated region
    $region6: #{cnn_forward.1} parent=1 // pred_check
      _
    $region7: #{cnn_forward.1} parent=1 // pred_check_branch
      %23 = sbr.rel (0) target = $region9
    $region8: #{cnn_forward.1} parent=1 // pred_region
      %25 = vsyncadd [#allocation3], 0
      %s26 = sshll.u32 %s1, 4
      %s27 = int_to_ptr.hbm [resolvable:$true] %s26
      %s28 = sshll.u32 [#allocation2], 4
      %s29 = int_to_ptr.vmem [resolvable:$true] %s28
      %34 = dma.hbm_to_vmem [thread:$0]  %s27, 3584, %s29, [#allocation3], 512, 512, 32
    $region9: #{cnn_forward.1} parent=1 // pred_fallthru
      _
    // Predicated region
    $region10: #{cnn_forward.1} parent=1 // pred_check
      _
    $region11: #{cnn_forward.1} parent=1 // pred_check_branch
      %36 = sbr.rel (0) target = $region13
    $region12: #{cnn_forward.1} parent=1 // pred_region
      %38 = vsyncadd [#allocation5], 0
      %s39 = sshll.u32 %s2, 4
      %s40 = int_to_ptr.hbm [resolvable:$true] %s39
      %s41 = sshll.u32 [#allocation4], 4
      %s42 = int_to_ptr.vmem [resolvable:$true] %s41
      %47 = dma.hbm_to_vmem [thread:$0]  %s40, 3584, %s42, [#allocation5], 512, 512, 32
    $region13: #{cnn_forward.1} parent=1 // pred_fallthru
      _
    // Predicated region
    $region14: #{cnn_forward.1} parent=1 // pred_check
      _
    $region15: #{cnn_forward.1} parent=1 // pred_check_branch
      %49 = sbr.rel (0) target = $region17
    $region16: #{cnn_forward.1} parent=1 // pred_region
      %51 = vsyncadd [#allocation5], 0
      %s53 = sshll.u32 %s3, 4
      %s54 = int_to_ptr.hbm [resolvable:$true] %s53
      %s55 = sshll.u32 [#allocation6], 4
      %s56 = int_to_ptr.vmem [resolvable:$true] %s55
      %58 = dma.hbm_to_vmem [thread:$0]  %s54, 128, %s56, [#allocation5]
    $region17: #{cnn_forward.1} parent=1 // pred_fallthru
      _
    // Predicated region
    $region18: #{cnn_forward.1} parent=1 // pred_check
      _
    $region19: #{cnn_forward.1} parent=1 // pred_check_branch
      %60 = sbr.rel (0) target = $region21
    $region20: #{cnn_forward.1} parent=1 // pred_region
      _
    $region21: #{cnn_forward.1} parent=1 // pred_fallthru
      _
    // Predicated region
    $region22: #{cnn_forward.1} parent=1 // pred_check
      _
    $region23: #{cnn_forward.1} parent=1 // pred_check_branch
      %62 = sbr.rel (0) target = $region25
    $region24: #{cnn_forward.1} parent=1 // pred_region
      %64 = vsyncadd [#allocation8], 0
      %s66 = sshll.u32 %s5, 4
      %s67 = int_to_ptr.hbm [resolvable:$true] %s66
      %s68 = sshll.u32 [#allocation7], 4
      %s69 = int_to_ptr.vmem [resolvable:$true] %s68
      %71 = dma.hbm_to_vmem [thread:$0]  %s67, 48, %s69, [#allocation8]
    $region25: #{cnn_forward.1} parent=1 // pred_fallthru
      _
    // Predicated region
    $region26: #{cnn_forward.1} parent=1 // pred_check
      _
    $region27: #{cnn_forward.1} parent=1 // pred_check_branch
      %73 = sbr.rel (0) target = $region29
    $region28: #{cnn_forward.1} parent=1 // pred_region
      %75 = vsyncadd [#allocation8], 0
      %s76 = sshll.u32 %s6, 4
      %s77 = int_to_ptr.hbm [resolvable:$true] %s76
      %s78 = sshll.u32 [#allocation9], 4
      %s79 = int_to_ptr.vmem [resolvable:$true] %s78
      %84 = dma.hbm_to_vmem [thread:$0]  %s77, 102400, %s79, [#allocation8], 256, 256, 16
    $region29: #{cnn_forward.1} parent=1 // pred_fallthru
      _
    // Predicated region
    $region30: #{cnn_forward.1} parent=1 // pred_check
      _
    $region31: #{cnn_forward.1} parent=1 // pred_check_branch
      %86 = sbr.rel (0) target = $region33
    $region32: #{cnn_forward.1} parent=1 // pred_region
      %88 = vsyncadd [#allocation11], 0
      %s90 = sshll.u32 %s7, 4
      %s91 = int_to_ptr.hbm [resolvable:$true] %s90
      %s92 = sshll.u32 [#allocation10], 4
      %s93 = int_to_ptr.vmem [resolvable:$true] %s92
      %95 = dma.hbm_to_vmem [thread:$0]  %s91, 64, %s93, [#allocation11]
    $region33: #{cnn_forward.1} parent=1 // pred_fallthru
      _
    // Predicated region
    $region34: #{cnn_forward.1} parent=1 // pred_check
      _
    $region35: #{cnn_forward.1} parent=1 // pred_check_branch
      %97 = sbr.rel (0) target = $region37
    $region36: #{cnn_forward.1} parent=1 // pred_region
      %99 = vsyncadd [#allocation11], 0
      %s100 = sshll.u32 %s8, 4
      %s101 = int_to_ptr.hbm [resolvable:$true] %s100
      %s102 = sshll.u32 [#allocation12], 4
      %s103 = int_to_ptr.vmem [resolvable:$true] %s102
      %108 = dma.hbm_to_vmem [thread:$0]  %s101, 4096, %s103, [#allocation11], 64, 64, 4
    $region37: #{cnn_forward.1} parent=1 // pred_fallthru
      _
    // Predicated region
    $region38: #{cnn_forward.1} parent=1 // pred_check
      _
    $region39: #{cnn_forward.1} parent=1 // pred_check_branch
      %110 = sbr.rel (0) target = $region41
    $region40: #{cnn_forward.1} parent=1 // pred_region
      %112 = vsyncadd [#allocation14], 0
      %s114 = sshll.u32 %s9, 4
      %s115 = int_to_ptr.hbm [resolvable:$true] %s114
      %s116 = sshll.u32 [#allocation13], 4
      %s117 = int_to_ptr.vmem [resolvable:$true] %s116
      %119 = dma.hbm_to_vmem [thread:$0]  %s115, 16, %s117, [#allocation14]
    $region41: #{cnn_forward.1} parent=1 // pred_fallthru
      _
    // Predicated region
    $region42: #{cnn_forward.1} parent=1 // pred_check
      _
    $region43: #{cnn_forward.1} parent=1 // pred_check_branch
      %121 = sbr.rel (0) target = $region45
    $region44: #{cnn_forward.1} parent=1 // pred_region
      %123 = dma.done [#allocation3], 3584
    $region45: #{cnn_forward.1} parent=1 // pred_fallthru
      _
    // Predicated region
    $region46: #{cnn_forward.1} parent=1 // pred_check
      _
    $region47: #{cnn_forward.1} parent=1 // pred_check_branch
      %125 = sbr.rel (0) target = $region49
    $region48: #{cnn_forward.1} parent=1 // pred_region
      %127 = dma.done [#allocation5], 3584
    $region49: #{cnn_forward.1} parent=1 // pred_fallthru
      _
    // Predicated region
    $region50: #{cnn_forward.1} parent=1 // pred_check
      _
    $region51: #{cnn_forward.1} parent=1 // pred_check_branch
      %129 = sbr.rel (0) target = $region53
    $region52: #{cnn_forward.1} parent=1 // pred_region
      %131 = dma.done [#allocation5], 128
    $region53: #{cnn_forward.1} parent=1 // pred_fallthru
      _
    // Predicated region
    $region54: #{cnn_forward.1} parent=1 // pred_check
      _
    $region55: #{cnn_forward.1} parent=1 // pred_check_branch
      %133 = sbr.rel (0) target = $region57
    $region56: #{cnn_forward.1} parent=1 // pred_region
      %135 = dma.done [#allocation8], 48
    $region57: #{cnn_forward.1} parent=1 // pred_fallthru
      _
    // Predicated region
    $region58: #{cnn_forward.1} parent=1 // pred_check
      _
    $region59: #{cnn_forward.1} parent=1 // pred_check_branch
      %137 = sbr.rel (0) target = $region61
    $region60: #{cnn_forward.1} parent=1 // pred_region
      %139 = dma.done [#allocation8], 102400
    $region61: #{cnn_forward.1} parent=1 // pred_fallthru
      _
    // Predicated region
    $region62: #{cnn_forward.1} parent=1 // pred_check
      _
    $region63: #{cnn_forward.1} parent=1 // pred_check_branch
      %141 = sbr.rel (0) target = $region65
    $region64: #{cnn_forward.1} parent=1 // pred_region
      %143 = dma.done [#allocation11], 64
    $region65: #{cnn_forward.1} parent=1 // pred_fallthru
      _
    // Predicated region
    $region66: #{cnn_forward.1} parent=1 // pred_check
      _
    $region67: #{cnn_forward.1} parent=1 // pred_check_branch
      %145 = sbr.rel (0) target = $region69
    $region68: #{cnn_forward.1} parent=1 // pred_region
      %147 = dma.done [#allocation11], 4096
    $region69: #{cnn_forward.1} parent=1 // pred_fallthru
      _
    // Predicated region
    $region70: #{cnn_forward.1} parent=1 // pred_check
      _
    $region71: #{cnn_forward.1} parent=1 // pred_check_branch
      %149 = sbr.rel (0) target = $region73
    $region72: #{cnn_forward.1} parent=1 // pred_region
      %151 = dma.done [#allocation14], 16
    $region73: #{cnn_forward.1} parent=1 // pred_fallthru
      _
    %v153 = vld [vmem:[%s0] sm:$0xf]
    %v154 = vld [vmem:[%s0 + $0x4] sm:$0xf]
    %v155 = vld [vmem:[%s0 + $0x8] sm:$0xf]
    %v156 = vld [vmem:[%s0 + $0xc] sm:$0xf]
    %v157 = vld [vmem:[%s0 + $0x10] sm:$0xf]
    %v158 = vld [vmem:[%s0 + $0x14] sm:$0xf]
    %v159 = vld [vmem:[%s0 + $0x18] sm:$0xf]
    %v160 = vld [vmem:[%s0 + $0x1c] sm:$0xf]
    %v161 = vld [vmem:[%s0 + $0x20] sm:$0xf]
    %v162 = vld [vmem:[%s0 + $0x24] sm:$0xf]
    %v163 = vld [vmem:[%s0 + $0x28] sm:$0xf]
    %v164 = vld [vmem:[%s0 + $0x2c] sm:$0xf]
    %v165 = vld [vmem:[%s0 + $0x30] sm:$0xf]
    %v166 = vld [vmem:[%s0 + $0x34] sm:$0xf]
    %v167 = vld [vmem:[%s0 + $0x38] sm:$0xf]
    %v168 = vld [vmem:[%s0 + $0x3c] sm:$0xf]
    %v169 = vld [vmem:[%s0 + $0x40] sm:$0xf]
    %v170 = vld [vmem:[%s0 + $0x44] sm:$0xf]
    %v171 = vld [vmem:[%s0 + $0x48] sm:$0xf]
    %v172 = vld [vmem:[%s0 + $0x4c] sm:$0xf]
    %v173 = vld [vmem:[%s0 + $0x50] sm:$0xf]
    %v174 = vld [vmem:[%s0 + $0x54] sm:$0xf]
    %v175 = vld [vmem:[%s0 + $0x58] sm:$0xf]
    %v176 = vld [vmem:[%s0 + $0x5c] sm:$0xf]
    %v177 = vld [vmem:[%s0 + $0x60] sm:$0xf]
    %v178 = vld [vmem:[%s0 + $0x64] sm:$0xf]
    %v179 = vld [vmem:[%s0 + $0x68] sm:$0xf]
    %v180 = vld [vmem:[%s0 + $0x6c] sm:$0xf]
    %v181 = vld [vmem:[#allocation2] sm:$0xff]
    %v182 = vld [vmem:[#allocation2 + $0x8] sm:$0xff]
    %v183 = vld [vmem:[#allocation2 + $0x10] sm:$0xff]
    %v184 = vld [vmem:[#allocation2 + $0x18] sm:$0xff]
    %v185 = vld [vmem:[#allocation2 + $0x20] sm:$0xff]
    %v186 = vld [vmem:[#allocation2 + $0x28] sm:$0xff]
    %v187 = vld [vmem:[#allocation2 + $0x30] sm:$0xff]
    %v188 = vld [vmem:[#allocation2 + $0x38] sm:$0xff]
    %v189 = vld [vmem:[#allocation2 + $0x40] sm:$0xff]
    %v190 = vld [vmem:[#allocation2 + $0x48] sm:$0xff]
    %v191 = vld [vmem:[#allocation2 + $0x50] sm:$0xff]
    %v192 = vld [vmem:[#allocation2 + $0x58] sm:$0xff]
    %v193 = vld [vmem:[#allocation2 + $0x60] sm:$0xff]
    %v194 = vld [vmem:[#allocation2 + $0x68] sm:$0xff]
    %v195 = vld [vmem:[#allocation2 + $0x70] sm:$0xff]
    %v196 = vld [vmem:[#allocation2 + $0x78] sm:$0xff]
    %v197 = vld [vmem:[#allocation2 + $0x80] sm:$0xff]
    %v198 = vld [vmem:[#allocation2 + $0x88] sm:$0xff]
    %v199 = vld [vmem:[#allocation2 + $0x90] sm:$0xff]
    %v200 = vld [vmem:[#allocation2 + $0x98] sm:$0xff]
    %v201 = vld [vmem:[#allocation2 + $0xa0] sm:$0xff]
    %v202 = vld [vmem:[#allocation2 + $0xa8] sm:$0xff]
    %v203 = vld [vmem:[#allocation2 + $0xb0] sm:$0xff]
    %v204 = vld [vmem:[#allocation2 + $0xb8] sm:$0xff]
    %v205 = vld [vmem:[#allocation2 + $0xc0] sm:$0xff]
    %v206 = vld [vmem:[#allocation2 + $0xc8] sm:$0xff]
    %v207 = vld [vmem:[#allocation2 + $0xd0] sm:$0xff]
    %v208 = vld [vmem:[#allocation2 + $0xd8] sm:$0xff]
    %v209 = vld [vmem:[#allocation4] sm:$0xff]
    %v210 = vld [vmem:[#allocation4 + $0x8] sm:$0xff]
    %v211 = vld [vmem:[#allocation4 + $0x10] sm:$0xff]
    %v212 = vld [vmem:[#allocation4 + $0x18] sm:$0xff]
    %v213 = vld [vmem:[#allocation4 + $0x20] sm:$0xff]
    %v214 = vld [vmem:[#allocation4 + $0x28] sm:$0xff]
    %v215 = vld [vmem:[#allocation4 + $0x30] sm:$0xff]
    %v216 = vld [vmem:[#allocation4 + $0x38] sm:$0xff]
    %v217 = vld [vmem:[#allocation4 + $0x40] sm:$0xff]
    %v218 = vld [vmem:[#allocation4 + $0x48] sm:$0xff]
    %v219 = vld [vmem:[#allocation4 + $0x50] sm:$0xff]
    %v220 = vld [vmem:[#allocation4 + $0x58] sm:$0xff]
    %v221 = vld [vmem:[#allocation4 + $0x60] sm:$0xff]
    %v222 = vld [vmem:[#allocation4 + $0x68] sm:$0xff]
    %v223 = vld [vmem:[#allocation4 + $0x70] sm:$0xff]
    %v224 = vld [vmem:[#allocation4 + $0x78] sm:$0xff]
    %v225 = vld [vmem:[#allocation4 + $0x80] sm:$0xff]
    %v226 = vld [vmem:[#allocation4 + $0x88] sm:$0xff]
    %v227 = vld [vmem:[#allocation4 + $0x90] sm:$0xff]
    %v228 = vld [vmem:[#allocation4 + $0x98] sm:$0xff]
    %v229 = vld [vmem:[#allocation4 + $0xa0] sm:$0xff]
    %v230 = vld [vmem:[#allocation4 + $0xa8] sm:$0xff]
    %v231 = vld [vmem:[#allocation4 + $0xb0] sm:$0xff]
    %v232 = vld [vmem:[#allocation4 + $0xb8] sm:$0xff]
    %v233 = vld [vmem:[#allocation4 + $0xc0] sm:$0xff]
    %v234 = vld [vmem:[#allocation4 + $0xc8] sm:$0xff]
    %v235 = vld [vmem:[#allocation4 + $0xd0] sm:$0xff]
    %v236 = vld [vmem:[#allocation4 + $0xd8] sm:$0xff]
    %v263 = vunpack.c.l.b16 %v155
    %v264 = vunpack.c.l.b16 %v156
    %v265 = vunpack.c.l.b16 %v157
    %v266 = vunpack.c.l.b16 %v158
    %v267 = vunpack.c.l.b16 %v159
    %v268 = vunpack.c.l.b16 %v160
    %v269 = vunpack.c.l.b16 %v161
    %v270 = vunpack.c.l.b16 %v162
    %v271 = vunpack.c.l.b16 %v163
    %v272 = vunpack.c.l.b16 %v164
    %v273 = vunpack.c.l.b16 %v165
    %v274 = vunpack.c.l.b16 %v166
    %v275 = vunpack.c.l.b16 %v167
    %v276 = vunpack.c.l.b16 %v168
    %v277 = vunpack.c.l.b16 %v169
    %v278 = vunpack.c.l.b16 %v170
    %v279 = vunpack.c.l.b16 %v171
    %v280 = vunpack.c.l.b16 %v172
    %v281 = vunpack.c.l.b16 %v173
    %v282 = vunpack.c.l.b16 %v174
    %v283 = vunpack.c.l.b16 %v175
    %v284 = vunpack.c.l.b16 %v176
    %v285 = vunpack.c.l.b16 %v177
    %v286 = vunpack.c.l.b16 %v178
    %v287 = vunpack.c.l.b16 %v179
    %v288 = vunpack.c.l.b16 %v180
    %v289 = vpack.c.b16 %v264, %v263
    %v290 = vpack.c.b16 %v266, %v265
    %v291 = vpack.c.b16 %v268, %v267
    %v292 = vpack.c.b16 %v270, %v269
    %v293 = vpack.c.b16 %v272, %v271
    %v294 = vpack.c.b16 %v274, %v273
    %v295 = vpack.c.b16 %v276, %v275
    %v296 = vpack.c.b16 %v278, %v277
    %v297 = vpack.c.b16 %v280, %v279
    %v298 = vpack.c.b16 %v282, %v281
    %v299 = vpack.c.b16 %v284, %v283
    %v300 = vpack.c.b16 %v286, %v285
    %v301 = vpack.c.b16 %v288, %v287
    %v330 = vunpack.c.l.b16 %v209
    %v331 = vunpack.c.h.b16 %v209
    %v332 = vunpack.c.l.b16 %v210
    %v333 = vunpack.c.h.b16 %v210
    %v334 = vunpack.c.l.b16 %v211
    %v335 = vunpack.c.h.b16 %v211
    %v336 = vunpack.c.l.b16 %v212
    %v337 = vunpack.c.h.b16 %v212
    %v338 = vunpack.c.l.b16 %v213
    %v339 = vunpack.c.h.b16 %v213
    %v340 = vunpack.c.l.b16 %v214
    %v341 = vunpack.c.h.b16 %v214
    %v342 = vunpack.c.l.b16 %v215
    %v343 = vunpack.c.h.b16 %v215
    %v344 = vunpack.c.l.b16 %v216
    %v345 = vunpack.c.h.b16 %v216
    %v346 = vunpack.c.l.b16 %v217
    %v347 = vunpack.c.h.b16 %v217
    %v348 = vunpack.c.l.b16 %v218
    %v349 = vunpack.c.h.b16 %v218
    %v350 = vunpack.c.l.b16 %v219
    %v351 = vunpack.c.h.b16 %v219
    %v352 = vunpack.c.l.b16 %v220
    %v353 = vunpack.c.h.b16 %v220
    %v354 = vunpack.c.l.b16 %v221
    %v355 = vunpack.c.h.b16 %v221
    %v356 = vunpack.c.l.b16 %v222
    %v357 = vunpack.c.h.b16 %v222
    %v358 = vunpack.c.l.b16 %v223
    %v359 = vunpack.c.h.b16 %v223
    %v360 = vunpack.c.l.b16 %v224
    %v361 = vunpack.c.h.b16 %v224
    %v362 = vunpack.c.l.b16 %v225
    %v363 = vunpack.c.h.b16 %v225
    %v364 = vunpack.c.l.b16 %v226
    %v365 = vunpack.c.h.b16 %v226
    %v366 = vunpack.c.l.b16 %v227
    %v367 = vunpack.c.h.b16 %v227
    %v368 = vunpack.c.l.b16 %v228
    %v369 = vunpack.c.h.b16 %v228
    %v370 = vunpack.c.l.b16 %v229
    %v371 = vunpack.c.h.b16 %v229
    %v372 = vunpack.c.l.b16 %v230
    %v373 = vunpack.c.h.b16 %v230
    %v374 = vunpack.c.l.b16 %v231
    %v375 = vunpack.c.h.b16 %v231
    %v376 = vunpack.c.l.b16 %v232
    %v377 = vunpack.c.h.b16 %v232
    %v378 = vunpack.c.l.b16 %v233
    %v379 = vunpack.c.h.b16 %v233
    %v380 = vunpack.c.l.b16 %v234
    %v381 = vunpack.c.h.b16 %v234
    %v382 = vunpack.c.l.b16 %v235
    %v383 = vunpack.c.h.b16 %v235
    %v384 = vunpack.c.l.b16 %v236
    %v385 = vunpack.c.h.b16 %v236
    %v386 = vpack.c.b16 %v338, %v330
    %v387 = vpack.c.b16 %v339, %v331
    %v388 = vpack.c.b16 %v340, %v332
    %v389 = vpack.c.b16 %v341, %v333
    %v390 = vpack.c.b16 %v342, %v334
    %v391 = vpack.c.b16 %v343, %v335
    %v392 = vpack.c.b16 %v344, %v336
    %v393 = vpack.c.b16 %v345, %v337
    %v394 = vpack.c.b16 %v354, %v346
    %v395 = vpack.c.b16 %v355, %v347
    %v396 = vpack.c.b16 %v356, %v348
    %v397 = vpack.c.b16 %v357, %v349
    %v398 = vpack.c.b16 %v358, %v350
    %v399 = vpack.c.b16 %v359, %v351
    %v400 = vpack.c.b16 %v360, %v352
    %v401 = vpack.c.b16 %v361, %v353
    %v402 = vpack.c.b16 %v370, %v362
    %v403 = vpack.c.b16 %v371, %v363
    %v404 = vpack.c.b16 %v372, %v364
    %v405 = vpack.c.b16 %v373, %v365
    %v406 = vpack.c.b16 %v374, %v366
    %v407 = vpack.c.b16 %v375, %v367
    %v408 = vpack.c.b16 %v376, %v368
    %v409 = vpack.c.b16 %v377, %v369
    %v410 = vpack.c.b16 %v378, %v378
    %v411 = vpack.c.b16 %v379, %v379
    %v412 = vpack.c.b16 %v380, %v380
    %v413 = vpack.c.b16 %v381, %v381
    %v414 = vpack.c.b16 %v382, %v382
    %v415 = vpack.c.b16 %v383, %v383
    %v416 = vpack.c.b16 %v384, %v384
    %v417 = vpack.c.b16 %v385, %v385
    %vm442 = vcmask 457728
    %v444 = vsel %vm442, %v289, 0
    %v447 = vsel %vm442, %v290, 0
    %v450 = vsel %vm442, %v291, 0
    %v453 = vsel %vm442, %v292, 0
    %v456 = vsel %vm442, %v293, 0
    %v459 = vsel %vm442, %v294, 0
    %v462 = vsel %vm442, %v295, 0
    %v465 = vsel %vm442, %v296, 0
    %v468 = vsel %vm442, %v297, 0
    %v471 = vsel %vm442, %v298, 0
    %v474 = vsel %vm442, %v299, 0
    %v477 = vsel %vm442, %v300, 0
    %v480 = vsel %vm442, %v301, 0
    %vm482 = vcmask 1043456
    %v484 = vsel %vm482, %v410, 0
    %v487 = vsel %vm482, %v411, 0
    %v490 = vsel %vm482, %v412, 0
    %v493 = vsel %vm482, %v413, 0
    %v496 = vsel %vm482, %v414, 0
    %v499 = vsel %vm482, %v415, 0
    %v502 = vsel %vm482, %v416, 0
    %v505 = vsel %vm482, %v417, 0
    %507 = vmatpush.bf16.msra.mxu0 0
    %508 = vmatpush.bf16.msra.mxu0 0
    %509 = vmatpush.bf16.msra.mxu0 0
    %510 = vmatpush.bf16.msra.mxu0 0
    %511 = vmatpush.bf16.msra.mxu0 %v484
    %512 = vmatpush.bf16.msra.mxu0 %v402
    %513 = vmatpush.bf16.msra.mxu0 %v394
    %514 = vmatpush.bf16.msra.mxu0 %v386
    %515 = vmatmul.bf16.gmra.mxu0 %v444
    %v516 = vpop.f32.mrf.mxu0
    %v517 = vadd.f32 0.0, %v516
    %v518 = vpop.f32.mrf.mxu0
    %v519 = vadd.f32 0.0, %v518
    %520 = vmatmul.bf16.gmra.mxu0 %v447
    %v521 = vpop.f32.mrf.mxu0
    %v522 = vadd.f32 0.0, %v521
    %v523 = vpop.f32.mrf.mxu0
    %v524 = vadd.f32 0.0, %v523
    %525 = vmatmul.bf16.gmra.mxu0 %v450
    %v526 = vpop.f32.mrf.mxu0
    %v527 = vadd.f32 0.0, %v526
    %v528 = vpop.f32.mrf.mxu0
    %v529 = vadd.f32 0.0, %v528
    %530 = vmatmul.bf16.gmra.mxu0 %v453
    %v531 = vpop.f32.mrf.mxu0
    %v532 = vadd.f32 0.0, %v531
    %v533 = vpop.f32.mrf.mxu0
    %v534 = vadd.f32 0.0, %v533
    %535 = vmatmul.bf16.gmra.mxu0 %v456
    %v536 = vpop.f32.mrf.mxu0
    %v537 = vadd.f32 0.0, %v536
    %v538 = vpop.f32.mrf.mxu0
    %v539 = vadd.f32 0.0, %v538
    %540 = vmatmul.bf16.gmra.mxu0 %v459
    %v541 = vpop.f32.mrf.mxu0
    %v542 = vadd.f32 0.0, %v541
    %v543 = vpop.f32.mrf.mxu0
    %v544 = vadd.f32 0.0, %v543
    %545 = vmatmul.bf16.gmra.mxu0 %v462
    %v546 = vpop.f32.mrf.mxu0
    %v547 = vadd.f32 0.0, %v546
    %v548 = vpop.f32.mrf.mxu0
    %v549 = vadd.f32 0.0, %v548
    %550 = vmatmul.bf16.gmra.mxu0 %v465
    %v551 = vpop.f32.mrf.mxu0
    %v552 = vadd.f32 0.0, %v551
    %v553 = vpop.f32.mrf.mxu0
    %v554 = vadd.f32 0.0, %v553
    %555 = vmatmul.bf16.gmra.mxu0 %v468
    %v556 = vpop.f32.mrf.mxu0
    %v557 = vadd.f32 0.0, %v556
    %v558 = vpop.f32.mrf.mxu0
    %v559 = vadd.f32 0.0, %v558
    %560 = vmatmul.bf16.gmra.mxu0 %v471
    %v561 = vpop.f32.mrf.mxu0
    %v562 = vadd.f32 0.0, %v561
    %v563 = vpop.f32.mrf.mxu0
    %v564 = vadd.f32 0.0, %v563
    %565 = vmatmul.bf16.gmra.mxu0 %v474
    %v566 = vpop.f32.mrf.mxu0
    %v567 = vadd.f32 0.0, %v566
    %v568 = vpop.f32.mrf.mxu0
    %v569 = vadd.f32 0.0, %v568
    %570 = vmatmul.bf16.gmra.mxu0 %v477
    %v571 = vpop.f32.mrf.mxu0
    %v572 = vadd.f32 0.0, %v571
    %v573 = vpop.f32.mrf.mxu0
    %v574 = vadd.f32 0.0, %v573
    %575 = vmatmul.bf16.gmra.mxu0 %v480
    %v576 = vpop.f32.mrf.mxu0
    %v577 = vpop.f32.mrf.mxu0
    %578 = vdwg.mxu0
    %579 = vmatpush.bf16.msra.mxu0 0
    %580 = vmatpush.bf16.msra.mxu0 0
    %581 = vmatpush.bf16.msra.mxu0 0
    %582 = vmatpush.bf16.msra.mxu0 0
    %583 = vmatpush.bf16.msra.mxu0 %v487
    %584 = vmatpush.bf16.msra.mxu0 %v403
    %585 = vmatpush.bf16.msra.mxu0 %v395
    %586 = vmatpush.bf16.msra.mxu0 %v387
    %587 = vmatmul.bf16.gmra.mxu0 %v444
    %v588 = vpop.f32.mrf.mxu0
    %v589 = vadd.f32 0.0, %v588
    %v590 = vpop.f32.mrf.mxu0
    %v591 = vadd.f32 0.0, %v590
    %592 = vmatmul.bf16.gmra.mxu0 %v447
    %v593 = vpop.f32.mrf.mxu0
    %v594 = vadd.f32 0.0, %v593
    %v595 = vpop.f32.mrf.mxu0
    %v596 = vadd.f32 0.0, %v595
    %597 = vmatmul.bf16.gmra.mxu0 %v450
    %v598 = vpop.f32.mrf.mxu0
    %v599 = vadd.f32 0.0, %v598
    %v600 = vpop.f32.mrf.mxu0
    %v601 = vadd.f32 0.0, %v600
    %602 = vmatmul.bf16.gmra.mxu0 %v453
    %v603 = vpop.f32.mrf.mxu0
    %v604 = vadd.f32 0.0, %v603
    %v605 = vpop.f32.mrf.mxu0
    %v606 = vadd.f32 0.0, %v605
    %607 = vmatmul.bf16.gmra.mxu0 %v456
    %v608 = vpop.f32.mrf.mxu0
    %v609 = vadd.f32 0.0, %v608
    %v610 = vpop.f32.mrf.mxu0
    %v611 = vadd.f32 0.0, %v610
    %612 = vmatmul.bf16.gmra.mxu0 %v459
    %v613 = vpop.f32.mrf.mxu0
    %v614 = vadd.f32 0.0, %v613
    %v615 = vpop.f32.mrf.mxu0
    %v616 = vadd.f32 0.0, %v615
    %617 = vmatmul.bf16.gmra.mxu0 %v462
    %v618 = vpop.f32.mrf.mxu0
    %v619 = vadd.f32 0.0, %v618
    %v620 = vpop.f32.mrf.mxu0
    %v621 = vadd.f32 0.0, %v620
    %622 = vmatmul.bf16.gmra.mxu0 %v465
    %v623 = vpop.f32.mrf.mxu0
    %v624 = vadd.f32 0.0, %v623
    %v625 = vpop.f32.mrf.mxu0
    %v626 = vadd.f32 0.0, %v625
    %627 = vmatmul.bf16.gmra.mxu0 %v468
    %v628 = vpop.f32.mrf.mxu0
    %v629 = vadd.f32 0.0, %v628
    %v630 = vpop.f32.mrf.mxu0
    %v631 = vadd.f32 0.0, %v630
    %632 = vmatmul.bf16.gmra.mxu0 %v471
    %v633 = vpop.f32.mrf.mxu0
    %v634 = vadd.f32 0.0, %v633
    %v635 = vpop.f32.mrf.mxu0
    %v636 = vadd.f32 0.0, %v635
    %637 = vmatmul.bf16.gmra.mxu0 %v474
    %v638 = vpop.f32.mrf.mxu0
    %v639 = vadd.f32 0.0, %v638
    %v640 = vpop.f32.mrf.mxu0
    %v641 = vadd.f32 0.0, %v640
    %642 = vmatmul.bf16.gmra.mxu0 %v477
    %v643 = vpop.f32.mrf.mxu0
    %v644 = vadd.f32 0.0, %v643
    %v645 = vpop.f32.mrf.mxu0
    %v646 = vadd.f32 0.0, %v645
    %647 = vmatmul.bf16.gmra.mxu0 %v480
    %v648 = vpop.f32.mrf.mxu0
    %v649 = vpop.f32.mrf.mxu0
    %650 = vdwg.mxu0
    %651 = vmatpush.bf16.msra.mxu0 0
    %652 = vmatpush.bf16.msra.mxu0 0
    %653 = vmatpush.bf16.msra.mxu0 0
    %654 = vmatpush.bf16.msra.mxu0 0
    %655 = vmatpush.bf16.msra.mxu0 %v490
    %656 = vmatpush.bf16.msra.mxu0 %v404
    %657 = vmatpush.bf16.msra.mxu0 %v396
    %658 = vmatpush.bf16.msra.mxu0 %v388
    %659 = vmatmul.bf16.gmra.mxu0 %v444
    %v660 = vpop.f32.mrf.mxu0
    %v661 = vadd.f32 0.0, %v660
    %v662 = vpop.f32.mrf.mxu0
    %v663 = vadd.f32 0.0, %v662
    %664 = vmatmul.bf16.gmra.mxu0 %v447
    %v665 = vpop.f32.mrf.mxu0
    %v666 = vadd.f32 0.0, %v665
    %v667 = vpop.f32.mrf.mxu0
    %v668 = vadd.f32 0.0, %v667
    %669 = vmatmul.bf16.gmra.mxu0 %v450
    %v670 = vpop.f32.mrf.mxu0
    %v671 = vadd.f32 0.0, %v670
    %v672 = vpop.f32.mrf.mxu0
    %v673 = vadd.f32 0.0, %v672
    %674 = vmatmul.bf16.gmra.mxu0 %v453
    %v675 = vpop.f32.mrf.mxu0
    %v676 = vadd.f32 0.0, %v675
    %v677 = vpop.f32.mrf.mxu0
    %v678 = vadd.f32 0.0, %v677
    %679 = vmatmul.bf16.gmra.mxu0 %v456
    %v680 = vpop.f32.mrf.mxu0
    %v681 = vadd.f32 0.0, %v680
    %v682 = vpop.f32.mrf.mxu0
    %v683 = vadd.f32 0.0, %v682
    %684 = vmatmul.bf16.gmra.mxu0 %v459
    %v685 = vpop.f32.mrf.mxu0
    %v686 = vadd.f32 0.0, %v685
    %v687 = vpop.f32.mrf.mxu0
    %v688 = vadd.f32 0.0, %v687
    %689 = vmatmul.bf16.gmra.mxu0 %v462
    %v690 = vpop.f32.mrf.mxu0
    %v691 = vadd.f32 0.0, %v690
    %v692 = vpop.f32.mrf.mxu0
    %v693 = vadd.f32 0.0, %v692
    %694 = vmatmul.bf16.gmra.mxu0 %v465
    %v695 = vpop.f32.mrf.mxu0
    %v696 = vadd.f32 0.0, %v695
    %v697 = vpop.f32.mrf.mxu0
    %v698 = vadd.f32 0.0, %v697
    %699 = vmatmul.bf16.gmra.mxu0 %v468
    %v700 = vpop.f32.mrf.mxu0
    %v701 = vadd.f32 0.0, %v700
    %v702 = vpop.f32.mrf.mxu0
    %v703 = vadd.f32 0.0, %v702
    %704 = vmatmul.bf16.gmra.mxu0 %v471
    %v705 = vpop.f32.mrf.mxu0
    %v706 = vadd.f32 0.0, %v705
    %v707 = vpop.f32.mrf.mxu0
    %v708 = vadd.f32 0.0, %v707
    %709 = vmatmul.bf16.gmra.mxu0 %v474
    %v710 = vpop.f32.mrf.mxu0
    %v711 = vadd.f32 0.0, %v710
    %v712 = vpop.f32.mrf.mxu0
    %v713 = vadd.f32 0.0, %v712
    %714 = vmatmul.bf16.gmra.mxu0 %v477
    %v715 = vpop.f32.mrf.mxu0
    %v716 = vadd.f32 0.0, %v715
    %v717 = vpop.f32.mrf.mxu0
    %v718 = vadd.f32 0.0, %v717
    %719 = vmatmul.bf16.gmra.mxu0 %v480
    %v720 = vpop.f32.mrf.mxu0
    %v721 = vpop.f32.mrf.mxu0
    %722 = vdwg.mxu0
    %723 = vmatpush.bf16.msra.mxu0 0
    %724 = vmatpush.bf16.msra.mxu0 0
    %725 = vmatpush.bf16.msra.mxu0 0
    %726 = vmatpush.bf16.msra.mxu0 0
    %727 = vmatpush.bf16.msra.mxu0 %v493
    %728 = vmatpush.bf16.msra.mxu0 %v405
    %729 = vmatpush.bf16.msra.mxu0 %v397
    %730 = vmatpush.bf16.msra.mxu0 %v389
    %731 = vmatmul.bf16.gmra.mxu0 %v444
    %v732 = vpop.f32.mrf.mxu0
    %v733 = vadd.f32 0.0, %v732
    %v734 = vpop.f32.mrf.mxu0
    %v735 = vadd.f32 0.0, %v734
    %736 = vmatmul.bf16.gmra.mxu0 %v447
    %v737 = vpop.f32.mrf.mxu0
    %v738 = vadd.f32 0.0, %v737
    %v739 = vpop.f32.mrf.mxu0
    %v740 = vadd.f32 0.0, %v739
    %741 = vmatmul.bf16.gmra.mxu0 %v450
    %v742 = vpop.f32.mrf.mxu0
    %v743 = vadd.f32 0.0, %v742
    %v744 = vpop.f32.mrf.mxu0
    %v745 = vadd.f32 0.0, %v744
    %746 = vmatmul.bf16.gmra.mxu0 %v453
    %v747 = vpop.f32.mrf.mxu0
    %v748 = vadd.f32 0.0, %v747
    %v749 = vpop.f32.mrf.mxu0
    %v750 = vadd.f32 0.0, %v749
    %751 = vmatmul.bf16.gmra.mxu0 %v456
    %v752 = vpop.f32.mrf.mxu0
    %v753 = vadd.f32 0.0, %v752
    %v754 = vpop.f32.mrf.mxu0
    %v755 = vadd.f32 0.0, %v754
    %756 = vmatmul.bf16.gmra.mxu0 %v459
    %v757 = vpop.f32.mrf.mxu0
    %v758 = vadd.f32 0.0, %v757
    %v759 = vpop.f32.mrf.mxu0
    %v760 = vadd.f32 0.0, %v759
    %761 = vmatmul.bf16.gmra.mxu0 %v462
    %v762 = vpop.f32.mrf.mxu0
    %v763 = vadd.f32 0.0, %v762
    %v764 = vpop.f32.mrf.mxu0
    %v765 = vadd.f32 0.0, %v764
    %766 = vmatmul.bf16.gmra.mxu0 %v465
    %v767 = vpop.f32.mrf.mxu0
    %v768 = vadd.f32 0.0, %v767
    %v769 = vpop.f32.mrf.mxu0
    %v770 = vadd.f32 0.0, %v769
    %771 = vmatmul.bf16.gmra.mxu0 %v468
    %v772 = vpop.f32.mrf.mxu0
    %v773 = vadd.f32 0.0, %v772
    %v774 = vpop.f32.mrf.mxu0
    %v775 = vadd.f32 0.0, %v774
    %776 = vmatmul.bf16.gmra.mxu0 %v471
    %v777 = vpop.f32.mrf.mxu0
    %v778 = vadd.f32 0.0, %v777
    %v779 = vpop.f32.mrf.mxu0
    %v780 = vadd.f32 0.0, %v779
    %781 = vmatmul.bf16.gmra.mxu0 %v474
    %v782 = vpop.f32.mrf.mxu0
    %v783 = vadd.f32 0.0, %v782
    %v784 = vpop.f32.mrf.mxu0
    %v785 = vadd.f32 0.0, %v784
    %786 = vmatmul.bf16.gmra.mxu0 %v477
    %v787 = vpop.f32.mrf.mxu0
    %v788 = vadd.f32 0.0, %v787
    %v789 = vpop.f32.mrf.mxu0
    %v790 = vadd.f32 0.0, %v789
    %791 = vmatmul.bf16.gmra.mxu0 %v480
    %v792 = vpop.f32.mrf.mxu0
    %v793 = vpop.f32.mrf.mxu0
    %794 = vdwg.mxu0
    %795 = vmatpush.bf16.msra.mxu0 0
    %796 = vmatpush.bf16.msra.mxu0 0
    %797 = vmatpush.bf16.msra.mxu0 0
    %798 = vmatpush.bf16.msra.mxu0 0
    %799 = vmatpush.bf16.msra.mxu0 %v496
    %800 = vmatpush.bf16.msra.mxu0 %v406
    %801 = vmatpush.bf16.msra.mxu0 %v398
    %802 = vmatpush.bf16.msra.mxu0 %v390
    %803 = vmatmul.bf16.gmra.mxu0 %v444
    %v804 = vpop.f32.mrf.mxu0
    %v805 = vadd.f32 0.0, %v804
    %v806 = vpop.f32.mrf.mxu0
    %v807 = vadd.f32 0.0, %v806
    %808 = vmatmul.bf16.gmra.mxu0 %v447
    %v809 = vpop.f32.mrf.mxu0
    %v810 = vadd.f32 0.0, %v809
    %v811 = vpop.f32.mrf.mxu0
    %v812 = vadd.f32 0.0, %v811
    %813 = vmatmul.bf16.gmra.mxu0 %v450
    %v814 = vpop.f32.mrf.mxu0
    %v815 = vadd.f32 0.0, %v814
    %v816 = vpop.f32.mrf.mxu0
    %v817 = vadd.f32 0.0, %v816
    %818 = vmatmul.bf16.gmra.mxu0 %v453
    %v819 = vpop.f32.mrf.mxu0
    %v820 = vadd.f32 0.0, %v819
    %v821 = vpop.f32.mrf.mxu0
    %v822 = vadd.f32 0.0, %v821
    %823 = vmatmul.bf16.gmra.mxu0 %v456
    %v824 = vpop.f32.mrf.mxu0
    %v825 = vadd.f32 0.0, %v824
    %v826 = vpop.f32.mrf.mxu0
    %v827 = vadd.f32 0.0, %v826
    %828 = vmatmul.bf16.gmra.mxu0 %v459
    %v829 = vpop.f32.mrf.mxu0
    %v830 = vadd.f32 0.0, %v829
    %v831 = vpop.f32.mrf.mxu0
    %v832 = vadd.f32 0.0, %v831
    %833 = vmatmul.bf16.gmra.mxu0 %v462
    %v834 = vpop.f32.mrf.mxu0
    %v835 = vadd.f32 0.0, %v834
    %v836 = vpop.f32.mrf.mxu0
    %v837 = vadd.f32 0.0, %v836
    %838 = vmatmul.bf16.gmra.mxu0 %v465
    %v839 = vpop.f32.mrf.mxu0
    %v840 = vadd.f32 0.0, %v839
    %v841 = vpop.f32.mrf.mxu0
    %v842 = vadd.f32 0.0, %v841
    %843 = vmatmul.bf16.gmra.mxu0 %v468
    %v844 = vpop.f32.mrf.mxu0
    %v845 = vadd.f32 0.0, %v844
    %v846 = vpop.f32.mrf.mxu0
    %v847 = vadd.f32 0.0, %v846
    %848 = vmatmul.bf16.gmra.mxu0 %v471
    %v849 = vpop.f32.mrf.mxu0
    %v850 = vadd.f32 0.0, %v849
    %v851 = vpop.f32.mrf.mxu0
    %v852 = vadd.f32 0.0, %v851
    %853 = vmatmul.bf16.gmra.mxu0 %v474
    %v854 = vpop.f32.mrf.mxu0
    %v855 = vadd.f32 0.0, %v854
    %v856 = vpop.f32.mrf.mxu0
    %v857 = vadd.f32 0.0, %v856
    %858 = vmatmul.bf16.gmra.mxu0 %v477
    %v859 = vpop.f32.mrf.mxu0
    %v860 = vadd.f32 0.0, %v859
    %v861 = vpop.f32.mrf.mxu0
    %v862 = vadd.f32 0.0, %v861
    %863 = vmatmul.bf16.gmra.mxu0 %v480
    %v864 = vpop.f32.mrf.mxu0
    %v865 = vpop.f32.mrf.mxu0
    %866 = vdwg.mxu0
    %867 = vmatpush.bf16.msra.mxu0 0
    %868 = vmatpush.bf16.msra.mxu0 0
    %869 = vmatpush.bf16.msra.mxu0 0
    %870 = vmatpush.bf16.msra.mxu0 0
    %871 = vmatpush.bf16.msra.mxu0 %v499
    %872 = vmatpush.bf16.msra.mxu0 %v407
    %873 = vmatpush.bf16.msra.mxu0 %v399
    %874 = vmatpush.bf16.msra.mxu0 %v391
    %875 = vmatmul.bf16.gmra.mxu0 %v444
    %v876 = vpop.f32.mrf.mxu0
    %v877 = vadd.f32 0.0, %v876
    %v878 = vpop.f32.mrf.mxu0
    %v879 = vadd.f32 0.0, %v878
    %880 = vmatmul.bf16.gmra.mxu0 %v447
    %v881 = vpop.f32.mrf.mxu0
    %v882 = vadd.f32 0.0, %v881
    %v883 = vpop.f32.mrf.mxu0
    %v884 = vadd.f32 0.0, %v883
    %885 = vmatmul.bf16.gmra.mxu0 %v450
    %v886 = vpop.f32.mrf.mxu0
    %v887 = vadd.f32 0.0, %v886
    %v888 = vpop.f32.mrf.mxu0
    %v889 = vadd.f32 0.0, %v888
    %890 = vmatmul.bf16.gmra.mxu0 %v453
    %v891 = vpop.f32.mrf.mxu0
    %v892 = vadd.f32 0.0, %v891
    %v893 = vpop.f32.mrf.mxu0
    %v894 = vadd.f32 0.0, %v893
    %895 = vmatmul.bf16.gmra.mxu0 %v456
    %v896 = vpop.f32.mrf.mxu0
    %v897 = vadd.f32 0.0, %v896
    %v898 = vpop.f32.mrf.mxu0
    %v899 = vadd.f32 0.0, %v898
    %900 = vmatmul.bf16.gmra.mxu0 %v459
    %v901 = vpop.f32.mrf.mxu0
    %v902 = vadd.f32 0.0, %v901
    %v903 = vpop.f32.mrf.mxu0
    %v904 = vadd.f32 0.0, %v903
    %905 = vmatmul.bf16.gmra.mxu0 %v462
    %v906 = vpop.f32.mrf.mxu0
    %v907 = vadd.f32 0.0, %v906
    %v908 = vpop.f32.mrf.mxu0
    %v909 = vadd.f32 0.0, %v908
    %910 = vmatmul.bf16.gmra.mxu0 %v465
    %v911 = vpop.f32.mrf.mxu0
    %v912 = vadd.f32 0.0, %v911
    %v913 = vpop.f32.mrf.mxu0
    %v914 = vadd.f32 0.0, %v913
    %915 = vmatmul.bf16.gmra.mxu0 %v468
    %v916 = vpop.f32.mrf.mxu0
    %v917 = vadd.f32 0.0, %v916
    %v918 = vpop.f32.mrf.mxu0
    %v919 = vadd.f32 0.0, %v918
    %920 = vmatmul.bf16.gmra.mxu0 %v471
    %v921 = vpop.f32.mrf.mxu0
    %v922 = vadd.f32 0.0, %v921
    %v923 = vpop.f32.mrf.mxu0
    %v924 = vadd.f32 0.0, %v923
    %925 = vmatmul.bf16.gmra.mxu0 %v474
    %v926 = vpop.f32.mrf.mxu0
    %v927 = vadd.f32 0.0, %v926
    %v928 = vpop.f32.mrf.mxu0
    %v929 = vadd.f32 0.0, %v928
    %930 = vmatmul.bf16.gmra.mxu0 %v477
    %v931 = vpop.f32.mrf.mxu0
    %v932 = vadd.f32 0.0, %v931
    %v933 = vpop.f32.mrf.mxu0
    %v934 = vadd.f32 0.0, %v933
    %935 = vmatmul.bf16.gmra.mxu0 %v480
    %v936 = vpop.f32.mrf.mxu0
    %v937 = vpop.f32.mrf.mxu0
    %938 = vdwg.mxu0
    %939 = vmatpush.bf16.msra.mxu0 0
    %940 = vmatpush.bf16.msra.mxu0 0
    %941 = vmatpush.bf16.msra.mxu0 0
    %942 = vmatpush.bf16.msra.mxu0 0
    %943 = vmatpush.bf16.msra.mxu0 %v502
    %944 = vmatpush.bf16.msra.mxu0 %v408
    %945 = vmatpush.bf16.msra.mxu0 %v400
    %946 = vmatpush.bf16.msra.mxu0 %v392
    %947 = vmatmul.bf16.gmra.mxu0 %v444
    %v948 = vpop.f32.mrf.mxu0
    %v949 = vadd.f32 0.0, %v948
    %v950 = vpop.f32.mrf.mxu0
    %v951 = vadd.f32 0.0, %v950
    %952 = vmatmul.bf16.gmra.mxu0 %v447
    %v953 = vpop.f32.mrf.mxu0
    %v954 = vadd.f32 0.0, %v953
    %v955 = vpop.f32.mrf.mxu0
    %v956 = vadd.f32 0.0, %v955
    %957 = vmatmul.bf16.gmra.mxu0 %v450
    %v958 = vpop.f32.mrf.mxu0
    %v959 = vadd.f32 0.0, %v958
    %v960 = vpop.f32.mrf.mxu0
    %v961 = vadd.f32 0.0, %v960
    %962 = vmatmul.bf16.gmra.mxu0 %v453
    %v963 = vpop.f32.mrf.mxu0
    %v964 = vadd.f32 0.0, %v963
    %v965 = vpop.f32.mrf.mxu0
    %v966 = vadd.f32 0.0, %v965
    %967 = vmatmul.bf16.gmra.mxu0 %v456
    %v968 = vpop.f32.mrf.mxu0
    %v969 = vadd.f32 0.0, %v968
    %v970 = vpop.f32.mrf.mxu0
    %v971 = vadd.f32 0.0, %v970
    %972 = vmatmul.bf16.gmra.mxu0 %v459
    %v973 = vpop.f32.mrf.mxu0
    %v974 = vadd.f32 0.0, %v973
    %v975 = vpop.f32.mrf.mxu0
    %v976 = vadd.f32 0.0, %v975
    %977 = vmatmul.bf16.gmra.mxu0 %v462
    %v978 = vpop.f32.mrf.mxu0
    %v979 = vadd.f32 0.0, %v978
    %v980 = vpop.f32.mrf.mxu0
    %v981 = vadd.f32 0.0, %v980
    %982 = vmatmul.bf16.gmra.mxu0 %v465
    %v983 = vpop.f32.mrf.mxu0
    %v984 = vadd.f32 0.0, %v983
    %v985 = vpop.f32.mrf.mxu0
    %v986 = vadd.f32 0.0, %v985
    %987 = vmatmul.bf16.gmra.mxu0 %v468
    %v988 = vpop.f32.mrf.mxu0
    %v989 = vadd.f32 0.0, %v988
    %v990 = vpop.f32.mrf.mxu0
    %v991 = vadd.f32 0.0, %v990
    %992 = vmatmul.bf16.gmra.mxu0 %v471
    %v993 = vpop.f32.mrf.mxu0
    %v994 = vadd.f32 0.0, %v993
    %v995 = vpop.f32.mrf.mxu0
    %v996 = vadd.f32 0.0, %v995
    %997 = vmatmul.bf16.gmra.mxu0 %v474
    %v998 = vpop.f32.mrf.mxu0
    %v999 = vadd.f32 0.0, %v998
    %v1000 = vpop.f32.mrf.mxu0
    %v1001 = vadd.f32 0.0, %v1000
    %1002 = vmatmul.bf16.gmra.mxu0 %v477
    %v1003 = vpop.f32.mrf.mxu0
    %v1004 = vadd.f32 0.0, %v1003
    %v1005 = vpop.f32.mrf.mxu0
    %v1006 = vadd.f32 0.0, %v1005
    %1007 = vmatmul.bf16.gmra.mxu0 %v480
    %v1008 = vpop.f32.mrf.mxu0
    %v1009 = vpop.f32.mrf.mxu0
    %1010 = vdwg.mxu0
    %1011 = vmatpush.bf16.msra.mxu0 0
    %1012 = vmatpush.bf16.msra.mxu0 0
    %1013 = vmatpush.bf16.msra.mxu0 0
    %1014 = vmatpush.bf16.msra.mxu0 0
    %1015 = vmatpush.bf16.msra.mxu0 %v505
    %1016 = vmatpush.bf16.msra.mxu0 %v409
    %1017 = vmatpush.bf16.msra.mxu0 %v401
    %1018 = vmatpush.bf16.msra.mxu0 %v393
    %1019 = vmatmul.bf16.gmra.mxu0 %v444
    %v1020 = vpop.f32.mrf.mxu0
    %v1021 = vadd.f32 0.0, %v1020
    %v1022 = vpop.f32.mrf.mxu0
    %v1023 = vadd.f32 0.0, %v1022
    %1024 = vmatmul.bf16.gmra.mxu0 %v447
    %v1025 = vpop.f32.mrf.mxu0
    %v1026 = vadd.f32 0.0, %v1025
    %v1027 = vpop.f32.mrf.mxu0
    %v1028 = vadd.f32 0.0, %v1027
    %1029 = vmatmul.bf16.gmra.mxu0 %v450
    %v1030 = vpop.f32.mrf.mxu0
    %v1031 = vadd.f32 0.0, %v1030
    %v1032 = vpop.f32.mrf.mxu0
    %v1033 = vadd.f32 0.0, %v1032
    %1034 = vmatmul.bf16.gmra.mxu0 %v453
    %v1035 = vpop.f32.mrf.mxu0
    %v1036 = vadd.f32 0.0, %v1035
    %v1037 = vpop.f32.mrf.mxu0
    %v1038 = vadd.f32 0.0, %v1037
    %1039 = vmatmul.bf16.gmra.mxu0 %v456
    %v1040 = vpop.f32.mrf.mxu0
    %v1041 = vadd.f32 0.0, %v1040
    %v1042 = vpop.f32.mrf.mxu0
    %v1043 = vadd.f32 0.0, %v1042
    %1044 = vmatmul.bf16.gmra.mxu0 %v459
    %v1045 = vpop.f32.mrf.mxu0
    %v1046 = vadd.f32 0.0, %v1045
    %v1047 = vpop.f32.mrf.mxu0
    %v1048 = vadd.f32 0.0, %v1047
    %1049 = vmatmul.bf16.gmra.mxu0 %v462
    %v1050 = vpop.f32.mrf.mxu0
    %v1051 = vadd.f32 0.0, %v1050
    %v1052 = vpop.f32.mrf.mxu0
    %v1053 = vadd.f32 0.0, %v1052
    %1054 = vmatmul.bf16.gmra.mxu0 %v465
    %v1055 = vpop.f32.mrf.mxu0
    %v1056 = vadd.f32 0.0, %v1055
    %v1057 = vpop.f32.mrf.mxu0
    %v1058 = vadd.f32 0.0, %v1057
    %1059 = vmatmul.bf16.gmra.mxu0 %v468
    %v1060 = vpop.f32.mrf.mxu0
    %v1061 = vadd.f32 0.0, %v1060
    %v1062 = vpop.f32.mrf.mxu0
    %v1063 = vadd.f32 0.0, %v1062
    %1064 = vmatmul.bf16.gmra.mxu0 %v471
    %v1065 = vpop.f32.mrf.mxu0
    %v1066 = vadd.f32 0.0, %v1065
    %v1067 = vpop.f32.mrf.mxu0
    %v1068 = vadd.f32 0.0, %v1067
    %1069 = vmatmul.bf16.gmra.mxu0 %v474
    %v1070 = vpop.f32.mrf.mxu0
    %v1071 = vadd.f32 0.0, %v1070
    %v1072 = vpop.f32.mrf.mxu0
    %v1073 = vadd.f32 0.0, %v1072
    %1074 = vmatmul.bf16.gmra.mxu0 %v477
    %v1075 = vpop.f32.mrf.mxu0
    %v1076 = vadd.f32 0.0, %v1075
    %v1077 = vpop.f32.mrf.mxu0
    %v1078 = vadd.f32 0.0, %v1077
    %1079 = vmatmul.bf16.gmra.mxu0 %v480
    %v1080 = vpop.f32.mrf.mxu0
    %v1081 = vpop.f32.mrf.mxu0
    %1082 = vdwg.mxu0
    %v1085 = vunpack.c.l.b16 %v153
    %v1086 = vunpack.c.l.b16 %v154
    %v1087 = vpack.c.b16 %v1086, %v1085
    %v1116 = vunpack.c.l.b16 %v181
    %v1117 = vunpack.c.h.b16 %v181
    %v1118 = vunpack.c.l.b16 %v182
    %v1119 = vunpack.c.h.b16 %v182
    %v1120 = vunpack.c.l.b16 %v183
    %v1121 = vunpack.c.h.b16 %v183
    %v1122 = vunpack.c.l.b16 %v184
    %v1123 = vunpack.c.h.b16 %v184
    %v1124 = vunpack.c.l.b16 %v185
    %v1125 = vunpack.c.h.b16 %v185
    %v1126 = vunpack.c.l.b16 %v186
    %v1127 = vunpack.c.h.b16 %v186
    %v1128 = vunpack.c.l.b16 %v187
    %v1129 = vunpack.c.h.b16 %v187
    %v1130 = vunpack.c.l.b16 %v188
    %v1131 = vunpack.c.h.b16 %v188
    %v1132 = vunpack.c.l.b16 %v189
    %v1133 = vunpack.c.h.b16 %v189
    %v1134 = vunpack.c.l.b16 %v190
    %v1135 = vunpack.c.h.b16 %v190
    %v1136 = vunpack.c.l.b16 %v191
    %v1137 = vunpack.c.h.b16 %v191
    %v1138 = vunpack.c.l.b16 %v192
    %v1139 = vunpack.c.h.b16 %v192
    %v1140 = vunpack.c.l.b16 %v193
    %v1141 = vunpack.c.h.b16 %v193
    %v1142 = vunpack.c.l.b16 %v194
    %v1143 = vunpack.c.h.b16 %v194
    %v1144 = vunpack.c.l.b16 %v195
    %v1145 = vunpack.c.h.b16 %v195
    %v1146 = vunpack.c.l.b16 %v196
    %v1147 = vunpack.c.h.b16 %v196
    %v1148 = vunpack.c.l.b16 %v197
    %v1149 = vunpack.c.h.b16 %v197
    %v1150 = vunpack.c.l.b16 %v198
    %v1151 = vunpack.c.h.b16 %v198
    %v1152 = vunpack.c.l.b16 %v199
    %v1153 = vunpack.c.h.b16 %v199
    %v1154 = vunpack.c.l.b16 %v200
    %v1155 = vunpack.c.h.b16 %v200
    %v1156 = vunpack.c.l.b16 %v201
    %v1157 = vunpack.c.h.b16 %v201
    %v1158 = vunpack.c.l.b16 %v202
    %v1159 = vunpack.c.h.b16 %v202
    %v1160 = vunpack.c.l.b16 %v203
    %v1161 = vunpack.c.h.b16 %v203
    %v1162 = vunpack.c.l.b16 %v204
    %v1163 = vunpack.c.h.b16 %v204
    %v1164 = vunpack.c.l.b16 %v205
    %v1165 = vunpack.c.h.b16 %v205
    %v1166 = vunpack.c.l.b16 %v206
    %v1167 = vunpack.c.h.b16 %v206
    %v1168 = vunpack.c.l.b16 %v207
    %v1169 = vunpack.c.h.b16 %v207
    %v1170 = vunpack.c.l.b16 %v208
    %v1171 = vunpack.c.h.b16 %v208
    %v1172 = vpack.c.b16 %v1124, %v1116
    %v1173 = vpack.c.b16 %v1125, %v1117
    %v1174 = vpack.c.b16 %v1126, %v1118
    %v1175 = vpack.c.b16 %v1127, %v1119
    %v1176 = vpack.c.b16 %v1128, %v1120
    %v1177 = vpack.c.b16 %v1129, %v1121
    %v1178 = vpack.c.b16 %v1130, %v1122
    %v1179 = vpack.c.b16 %v1131, %v1123
    %v1180 = vpack.c.b16 %v1140, %v1132
    %v1181 = vpack.c.b16 %v1141, %v1133
    %v1182 = vpack.c.b16 %v1142, %v1134
    %v1183 = vpack.c.b16 %v1143, %v1135
    %v1184 = vpack.c.b16 %v1144, %v1136
    %v1185 = vpack.c.b16 %v1145, %v1137
    %v1186 = vpack.c.b16 %v1146, %v1138
    %v1187 = vpack.c.b16 %v1147, %v1139
    %v1188 = vpack.c.b16 %v1156, %v1148
    %v1189 = vpack.c.b16 %v1157, %v1149
    %v1190 = vpack.c.b16 %v1158, %v1150
    %v1191 = vpack.c.b16 %v1159, %v1151
    %v1192 = vpack.c.b16 %v1160, %v1152
    %v1193 = vpack.c.b16 %v1161, %v1153
    %v1194 = vpack.c.b16 %v1162, %v1154
    %v1195 = vpack.c.b16 %v1163, %v1155
    %v1196 = vpack.c.b16 %v1164, %v1164
    %v1197 = vpack.c.b16 %v1165, %v1165
    %v1198 = vpack.c.b16 %v1166, %v1166
    %v1199 = vpack.c.b16 %v1167, %v1167
    %v1200 = vpack.c.b16 %v1168, %v1168
    %v1201 = vpack.c.b16 %v1169, %v1169
    %v1202 = vpack.c.b16 %v1170, %v1170
    %v1203 = vpack.c.b16 %v1171, %v1171
    %v1229 = vsel %vm442, %v1087, 0
    %v1232 = vsel %vm482, %v1196, 0
    %v1235 = vsel %vm482, %v1197, 0
    %v1238 = vsel %vm482, %v1198, 0
    %v1241 = vsel %vm482, %v1199, 0
    %v1244 = vsel %vm482, %v1200, 0
    %v1247 = vsel %vm482, %v1201, 0
    %v1250 = vsel %vm482, %v1202, 0
    %v1253 = vsel %vm482, %v1203, 0
    %1255 = vmatpush.bf16.msra.mxu0 0
    %1256 = vmatpush.bf16.msra.mxu0 0
    %1257 = vmatpush.bf16.msra.mxu0 0
    %1258 = vmatpush.bf16.msra.mxu0 0
    %1259 = vmatpush.bf16.msra.mxu0 %v1232
    %1260 = vmatpush.bf16.msra.mxu0 %v1188
    %1261 = vmatpush.bf16.msra.mxu0 %v1180
    %1262 = vmatpush.bf16.msra.mxu0 %v1172
    %1263 = vmatmul.bf16.gmra.mxu0 %v1229
    %v1264 = vpop.f32.mrf.mxu0
    %v1265 = vadd.f32 %v517, %v1264
    %v1266 = vpop.f32.mrf.mxu0
    %v1267 = vadd.f32 %v519, %v1266
    %1268 = vmatmul.bf16.gmra.mxu0 %v444
    %v1269 = vpop.f32.mrf.mxu0
    %v1270 = vadd.f32 %v522, %v1269
    %v1271 = vpop.f32.mrf.mxu0
    %v1272 = vadd.f32 %v524, %v1271
    %1273 = vmatmul.bf16.gmra.mxu0 %v447
    %v1274 = vpop.f32.mrf.mxu0
    %v1275 = vadd.f32 %v527, %v1274
    %v1276 = vpop.f32.mrf.mxu0
    %v1277 = vadd.f32 %v529, %v1276
    %1278 = vmatmul.bf16.gmra.mxu0 %v450
    %v1279 = vpop.f32.mrf.mxu0
    %v1280 = vadd.f32 %v532, %v1279
    %v1281 = vpop.f32.mrf.mxu0
    %v1282 = vadd.f32 %v534, %v1281
    %1283 = vmatmul.bf16.gmra.mxu0 %v453
    %v1284 = vpop.f32.mrf.mxu0
    %v1285 = vadd.f32 %v537, %v1284
    %v1286 = vpop.f32.mrf.mxu0
    %v1287 = vadd.f32 %v539, %v1286
    %1288 = vmatmul.bf16.gmra.mxu0 %v456
    %v1289 = vpop.f32.mrf.mxu0
    %v1290 = vadd.f32 %v542, %v1289
    %v1291 = vpop.f32.mrf.mxu0
    %v1292 = vadd.f32 %v544, %v1291
    %1293 = vmatmul.bf16.gmra.mxu0 %v459
    %v1294 = vpop.f32.mrf.mxu0
    %v1295 = vadd.f32 %v547, %v1294
    %v1296 = vpop.f32.mrf.mxu0
    %v1297 = vadd.f32 %v549, %v1296
    %1298 = vmatmul.bf16.gmra.mxu0 %v462
    %v1299 = vpop.f32.mrf.mxu0
    %v1300 = vadd.f32 %v552, %v1299
    %v1301 = vpop.f32.mrf.mxu0
    %v1302 = vadd.f32 %v554, %v1301
    %1303 = vmatmul.bf16.gmra.mxu0 %v465
    %v1304 = vpop.f32.mrf.mxu0
    %v1305 = vadd.f32 %v557, %v1304
    %v1306 = vpop.f32.mrf.mxu0
    %v1307 = vadd.f32 %v559, %v1306
    %1308 = vmatmul.bf16.gmra.mxu0 %v468
    %v1309 = vpop.f32.mrf.mxu0
    %v1310 = vadd.f32 %v562, %v1309
    %v1311 = vpop.f32.mrf.mxu0
    %v1312 = vadd.f32 %v564, %v1311
    %1313 = vmatmul.bf16.gmra.mxu0 %v471
    %v1314 = vpop.f32.mrf.mxu0
    %v1315 = vadd.f32 %v567, %v1314
    %v1316 = vpop.f32.mrf.mxu0
    %v1317 = vadd.f32 %v569, %v1316
    %1318 = vmatmul.bf16.gmra.mxu0 %v474
    %v1319 = vpop.f32.mrf.mxu0
    %v1320 = vadd.f32 %v572, %v1319
    %v1321 = vpop.f32.mrf.mxu0
    %v1322 = vadd.f32 %v574, %v1321
    %1323 = vmatmul.bf16.gmra.mxu0 %v477
    %v1324 = vpop.f32.mrf.mxu0
    %v1325 = vpop.f32.mrf.mxu0
    %1326 = vdwg.mxu0
    %1327 = vmatpush.bf16.msra.mxu0 0
    %1328 = vmatpush.bf16.msra.mxu0 0
    %1329 = vmatpush.bf16.msra.mxu0 0
    %1330 = vmatpush.bf16.msra.mxu0 0
    %1331 = vmatpush.bf16.msra.mxu0 %v1235
    %1332 = vmatpush.bf16.msra.mxu0 %v1189
    %1333 = vmatpush.bf16.msra.mxu0 %v1181
    %1334 = vmatpush.bf16.msra.mxu0 %v1173
    %1335 = vmatmul.bf16.gmra.mxu0 %v1229
    %v1336 = vpop.f32.mrf.mxu0
    %v1337 = vadd.f32 %v589, %v1336
    %v1338 = vpop.f32.mrf.mxu0
    %v1339 = vadd.f32 %v591, %v1338
    %1340 = vmatmul.bf16.gmra.mxu0 %v444
    %v1341 = vpop.f32.mrf.mxu0
    %v1342 = vadd.f32 %v594, %v1341
    %v1343 = vpop.f32.mrf.mxu0
    %v1344 = vadd.f32 %v596, %v1343
    %1345 = vmatmul.bf16.gmra.mxu0 %v447
    %v1346 = vpop.f32.mrf.mxu0
    %v1347 = vadd.f32 %v599, %v1346
    %v1348 = vpop.f32.mrf.mxu0
    %v1349 = vadd.f32 %v601, %v1348
    %1350 = vmatmul.bf16.gmra.mxu0 %v450
    %v1351 = vpop.f32.mrf.mxu0
    %v1352 = vadd.f32 %v604, %v1351
    %v1353 = vpop.f32.mrf.mxu0
    %v1354 = vadd.f32 %v606, %v1353
    %1355 = vmatmul.bf16.gmra.mxu0 %v453
    %v1356 = vpop.f32.mrf.mxu0
    %v1357 = vadd.f32 %v609, %v1356
    %v1358 = vpop.f32.mrf.mxu0
    %v1359 = vadd.f32 %v611, %v1358
    %1360 = vmatmul.bf16.gmra.mxu0 %v456
    %v1361 = vpop.f32.mrf.mxu0
    %v1362 = vadd.f32 %v614, %v1361
    %v1363 = vpop.f32.mrf.mxu0
    %v1364 = vadd.f32 %v616, %v1363
    %1365 = vmatmul.bf16.gmra.mxu0 %v459
    %v1366 = vpop.f32.mrf.mxu0
    %v1367 = vadd.f32 %v619, %v1366
    %v1368 = vpop.f32.mrf.mxu0
    %v1369 = vadd.f32 %v621, %v1368
    %1370 = vmatmul.bf16.gmra.mxu0 %v462
    %v1371 = vpop.f32.mrf.mxu0
    %v1372 = vadd.f32 %v624, %v1371
    %v1373 = vpop.f32.mrf.mxu0
    %v1374 = vadd.f32 %v626, %v1373
    %1375 = vmatmul.bf16.gmra.mxu0 %v465
    %v1376 = vpop.f32.mrf.mxu0
    %v1377 = vadd.f32 %v629, %v1376
    %v1378 = vpop.f32.mrf.mxu0
    %v1379 = vadd.f32 %v631, %v1378
    %1380 = vmatmul.bf16.gmra.mxu0 %v468
    %v1381 = vpop.f32.mrf.mxu0
    %v1382 = vadd.f32 %v634, %v1381
    %v1383 = vpop.f32.mrf.mxu0
    %v1384 = vadd.f32 %v636, %v1383
    %1385 = vmatmul.bf16.gmra.mxu0 %v471
    %v1386 = vpop.f32.mrf.mxu0
    %v1387 = vadd.f32 %v639, %v1386
    %v1388 = vpop.f32.mrf.mxu0
    %v1389 = vadd.f32 %v641, %v1388
    %1390 = vmatmul.bf16.gmra.mxu0 %v474
    %v1391 = vpop.f32.mrf.mxu0
    %v1392 = vadd.f32 %v644, %v1391
    %v1393 = vpop.f32.mrf.mxu0
    %v1394 = vadd.f32 %v646, %v1393
    %1395 = vmatmul.bf16.gmra.mxu0 %v477
    %v1396 = vpop.f32.mrf.mxu0
    %v1397 = vpop.f32.mrf.mxu0
    %1398 = vdwg.mxu0
    %1399 = vmatpush.bf16.msra.mxu0 0
    %1400 = vmatpush.bf16.msra.mxu0 0
    %1401 = vmatpush.bf16.msra.mxu0 0
    %1402 = vmatpush.bf16.msra.mxu0 0
    %1403 = vmatpush.bf16.msra.mxu0 %v1238
    %1404 = vmatpush.bf16.msra.mxu0 %v1190
    %1405 = vmatpush.bf16.msra.mxu0 %v1182
    %1406 = vmatpush.bf16.msra.mxu0 %v1174
    %1407 = vmatmul.bf16.gmra.mxu0 %v1229
    %v1408 = vpop.f32.mrf.mxu0
    %v1409 = vadd.f32 %v661, %v1408
    %v1410 = vpop.f32.mrf.mxu0
    %v1411 = vadd.f32 %v663, %v1410
    %1412 = vmatmul.bf16.gmra.mxu0 %v444
    %v1413 = vpop.f32.mrf.mxu0
    %v1414 = vadd.f32 %v666, %v1413
    %v1415 = vpop.f32.mrf.mxu0
    %v1416 = vadd.f32 %v668, %v1415
    %1417 = vmatmul.bf16.gmra.mxu0 %v447
    %v1418 = vpop.f32.mrf.mxu0
    %v1419 = vadd.f32 %v671, %v1418
    %v1420 = vpop.f32.mrf.mxu0
    %v1421 = vadd.f32 %v673, %v1420
    %1422 = vmatmul.bf16.gmra.mxu0 %v450
    %v1423 = vpop.f32.mrf.mxu0
    %v1424 = vadd.f32 %v676, %v1423
    %v1425 = vpop.f32.mrf.mxu0
    %v1426 = vadd.f32 %v678, %v1425
    %1427 = vmatmul.bf16.gmra.mxu0 %v453
    %v1428 = vpop.f32.mrf.mxu0
    %v1429 = vadd.f32 %v681, %v1428
    %v1430 = vpop.f32.mrf.mxu0
    %v1431 = vadd.f32 %v683, %v1430
    %1432 = vmatmul.bf16.gmra.mxu0 %v456
    %v1433 = vpop.f32.mrf.mxu0
    %v1434 = vadd.f32 %v686, %v1433
    %v1435 = vpop.f32.mrf.mxu0
    %v1436 = vadd.f32 %v688, %v1435
    %1437 = vmatmul.bf16.gmra.mxu0 %v459
    %v1438 = vpop.f32.mrf.mxu0
    %v1439 = vadd.f32 %v691, %v1438
    %v1440 = vpop.f32.mrf.mxu0
    %v1441 = vadd.f32 %v693, %v1440
    %1442 = vmatmul.bf16.gmra.mxu0 %v462
    %v1443 = vpop.f32.mrf.mxu0
    %v1444 = vadd.f32 %v696, %v1443
    %v1445 = vpop.f32.mrf.mxu0
    %v1446 = vadd.f32 %v698, %v1445
    %1447 = vmatmul.bf16.gmra.mxu0 %v465
    %v1448 = vpop.f32.mrf.mxu0
    %v1449 = vadd.f32 %v701, %v1448
    %v1450 = vpop.f32.mrf.mxu0
    %v1451 = vadd.f32 %v703, %v1450
    %1452 = vmatmul.bf16.gmra.mxu0 %v468
    %v1453 = vpop.f32.mrf.mxu0
    %v1454 = vadd.f32 %v706, %v1453
    %v1455 = vpop.f32.mrf.mxu0
    %v1456 = vadd.f32 %v708, %v1455
    %1457 = vmatmul.bf16.gmra.mxu0 %v471
    %v1458 = vpop.f32.mrf.mxu0
    %v1459 = vadd.f32 %v711, %v1458
    %v1460 = vpop.f32.mrf.mxu0
    %v1461 = vadd.f32 %v713, %v1460
    %1462 = vmatmul.bf16.gmra.mxu0 %v474
    %v1463 = vpop.f32.mrf.mxu0
    %v1464 = vadd.f32 %v716, %v1463
    %v1465 = vpop.f32.mrf.mxu0
    %v1466 = vadd.f32 %v718, %v1465
    %1467 = vmatmul.bf16.gmra.mxu0 %v477
    %v1468 = vpop.f32.mrf.mxu0
    %v1469 = vpop.f32.mrf.mxu0
    %1470 = vdwg.mxu0
    %1471 = vmatpush.bf16.msra.mxu0 0
    %1472 = vmatpush.bf16.msra.mxu0 0
    %1473 = vmatpush.bf16.msra.mxu0 0
    %1474 = vmatpush.bf16.msra.mxu0 0
    %1475 = vmatpush.bf16.msra.mxu0 %v1241
    %1476 = vmatpush.bf16.msra.mxu0 %v1191
    %1477 = vmatpush.bf16.msra.mxu0 %v1183
    %1478 = vmatpush.bf16.msra.mxu0 %v1175
    %1479 = vmatmul.bf16.gmra.mxu0 %v1229
    %v1480 = vpop.f32.mrf.mxu0
    %v1481 = vadd.f32 %v733, %v1480
    %v1482 = vpop.f32.mrf.mxu0
    %v1483 = vadd.f32 %v735, %v1482
    %1484 = vmatmul.bf16.gmra.mxu0 %v444
    %v1485 = vpop.f32.mrf.mxu0
    %v1486 = vadd.f32 %v738, %v1485
    %v1487 = vpop.f32.mrf.mxu0
    %v1488 = vadd.f32 %v740, %v1487
    %1489 = vmatmul.bf16.gmra.mxu0 %v447
    %v1490 = vpop.f32.mrf.mxu0
    %v1491 = vadd.f32 %v743, %v1490
    %v1492 = vpop.f32.mrf.mxu0
    %v1493 = vadd.f32 %v745, %v1492
    %1494 = vmatmul.bf16.gmra.mxu0 %v450
    %v1495 = vpop.f32.mrf.mxu0
    %v1496 = vadd.f32 %v748, %v1495
    %v1497 = vpop.f32.mrf.mxu0
    %v1498 = vadd.f32 %v750, %v1497
    %1499 = vmatmul.bf16.gmra.mxu0 %v453
    %v1500 = vpop.f32.mrf.mxu0
    %v1501 = vadd.f32 %v753, %v1500
    %v1502 = vpop.f32.mrf.mxu0
    %v1503 = vadd.f32 %v755, %v1502
    %1504 = vmatmul.bf16.gmra.mxu0 %v456
    %v1505 = vpop.f32.mrf.mxu0
    %v1506 = vadd.f32 %v758, %v1505
    %v1507 = vpop.f32.mrf.mxu0
    %v1508 = vadd.f32 %v760, %v1507
    %1509 = vmatmul.bf16.gmra.mxu0 %v459
    %v1510 = vpop.f32.mrf.mxu0
    %v1511 = vadd.f32 %v763, %v1510
    %v1512 = vpop.f32.mrf.mxu0
    %v1513 = vadd.f32 %v765, %v1512
    %1514 = vmatmul.bf16.gmra.mxu0 %v462
    %v1515 = vpop.f32.mrf.mxu0
    %v1516 = vadd.f32 %v768, %v1515
    %v1517 = vpop.f32.mrf.mxu0
    %v1518 = vadd.f32 %v770, %v1517
    %1519 = vmatmul.bf16.gmra.mxu0 %v465
    %v1520 = vpop.f32.mrf.mxu0
    %v1521 = vadd.f32 %v773, %v1520
    %v1522 = vpop.f32.mrf.mxu0
    %v1523 = vadd.f32 %v775, %v1522
    %1524 = vmatmul.bf16.gmra.mxu0 %v468
    %v1525 = vpop.f32.mrf.mxu0
    %v1526 = vadd.f32 %v778, %v1525
    %v1527 = vpop.f32.mrf.mxu0
    %v1528 = vadd.f32 %v780, %v1527
    %1529 = vmatmul.bf16.gmra.mxu0 %v471
    %v1530 = vpop.f32.mrf.mxu0
    %v1531 = vadd.f32 %v783, %v1530
    %v1532 = vpop.f32.mrf.mxu0
    %v1533 = vadd.f32 %v785, %v1532
    %1534 = vmatmul.bf16.gmra.mxu0 %v474
    %v1535 = vpop.f32.mrf.mxu0
    %v1536 = vadd.f32 %v788, %v1535
    %v1537 = vpop.f32.mrf.mxu0
    %v1538 = vadd.f32 %v790, %v1537
    %1539 = vmatmul.bf16.gmra.mxu0 %v477
    %v1540 = vpop.f32.mrf.mxu0
    %v1541 = vpop.f32.mrf.mxu0
    %1542 = vdwg.mxu0
    %1543 = vmatpush.bf16.msra.mxu0 0
    %1544 = vmatpush.bf16.msra.mxu0 0
    %1545 = vmatpush.bf16.msra.mxu0 0
    %1546 = vmatpush.bf16.msra.mxu0 0
    %1547 = vmatpush.bf16.msra.mxu0 %v1244
    %1548 = vmatpush.bf16.msra.mxu0 %v1192
    %1549 = vmatpush.bf16.msra.mxu0 %v1184
    %1550 = vmatpush.bf16.msra.mxu0 %v1176
    %1551 = vmatmul.bf16.gmra.mxu0 %v1229
    %v1552 = vpop.f32.mrf.mxu0
    %v1553 = vadd.f32 %v805, %v1552
    %v1554 = vpop.f32.mrf.mxu0
    %v1555 = vadd.f32 %v807, %v1554
    %1556 = vmatmul.bf16.gmra.mxu0 %v444
    %v1557 = vpop.f32.mrf.mxu0
    %v1558 = vadd.f32 %v810, %v1557
    %v1559 = vpop.f32.mrf.mxu0
    %v1560 = vadd.f32 %v812, %v1559
    %1561 = vmatmul.bf16.gmra.mxu0 %v447
    %v1562 = vpop.f32.mrf.mxu0
    %v1563 = vadd.f32 %v815, %v1562
    %v1564 = vpop.f32.mrf.mxu0
    %v1565 = vadd.f32 %v817, %v1564
    %1566 = vmatmul.bf16.gmra.mxu0 %v450
    %v1567 = vpop.f32.mrf.mxu0
    %v1568 = vadd.f32 %v820, %v1567
    %v1569 = vpop.f32.mrf.mxu0
    %v1570 = vadd.f32 %v822, %v1569
    %1571 = vmatmul.bf16.gmra.mxu0 %v453
    %v1572 = vpop.f32.mrf.mxu0
    %v1573 = vadd.f32 %v825, %v1572
    %v1574 = vpop.f32.mrf.mxu0
    %v1575 = vadd.f32 %v827, %v1574
    %1576 = vmatmul.bf16.gmra.mxu0 %v456
    %v1577 = vpop.f32.mrf.mxu0
    %v1578 = vadd.f32 %v830, %v1577
    %v1579 = vpop.f32.mrf.mxu0
    %v1580 = vadd.f32 %v832, %v1579
    %1581 = vmatmul.bf16.gmra.mxu0 %v459
    %v1582 = vpop.f32.mrf.mxu0
    %v1583 = vadd.f32 %v835, %v1582
    %v1584 = vpop.f32.mrf.mxu0
    %v1585 = vadd.f32 %v837, %v1584
    %1586 = vmatmul.bf16.gmra.mxu0 %v462
    %v1587 = vpop.f32.mrf.mxu0
    %v1588 = vadd.f32 %v840, %v1587
    %v1589 = vpop.f32.mrf.mxu0
    %v1590 = vadd.f32 %v842, %v1589
    %1591 = vmatmul.bf16.gmra.mxu0 %v465
    %v1592 = vpop.f32.mrf.mxu0
    %v1593 = vadd.f32 %v845, %v1592
    %v1594 = vpop.f32.mrf.mxu0
    %v1595 = vadd.f32 %v847, %v1594
    %1596 = vmatmul.bf16.gmra.mxu0 %v468
    %v1597 = vpop.f32.mrf.mxu0
    %v1598 = vadd.f32 %v850, %v1597
    %v1599 = vpop.f32.mrf.mxu0
    %v1600 = vadd.f32 %v852, %v1599
    %1601 = vmatmul.bf16.gmra.mxu0 %v471
    %v1602 = vpop.f32.mrf.mxu0
    %v1603 = vadd.f32 %v855, %v1602
    %v1604 = vpop.f32.mrf.mxu0
    %v1605 = vadd.f32 %v857, %v1604
    %1606 = vmatmul.bf16.gmra.mxu0 %v474
    %v1607 = vpop.f32.mrf.mxu0
    %v1608 = vadd.f32 %v860, %v1607
    %v1609 = vpop.f32.mrf.mxu0
    %v1610 = vadd.f32 %v862, %v1609
    %1611 = vmatmul.bf16.gmra.mxu0 %v477
    %v1612 = vpop.f32.mrf.mxu0
    %v1613 = vpop.f32.mrf.mxu0
    %1614 = vdwg.mxu0
    %1615 = vmatpush.bf16.msra.mxu0 0
    %1616 = vmatpush.bf16.msra.mxu0 0
    %1617 = vmatpush.bf16.msra.mxu0 0
    %1618 = vmatpush.bf16.msra.mxu0 0
    %1619 = vmatpush.bf16.msra.mxu0 %v1247
    %1620 = vmatpush.bf16.msra.mxu0 %v1193
    %1621 = vmatpush.bf16.msra.mxu0 %v1185
    %1622 = vmatpush.bf16.msra.mxu0 %v1177
    %1623 = vmatmul.bf16.gmra.mxu0 %v1229
    %v1624 = vpop.f32.mrf.mxu0
    %v1625 = vadd.f32 %v877, %v1624
    %v1626 = vpop.f32.mrf.mxu0
    %v1627 = vadd.f32 %v879, %v1626
    %1628 = vmatmul.bf16.gmra.mxu0 %v444
    %v1629 = vpop.f32.mrf.mxu0
    %v1630 = vadd.f32 %v882, %v1629
    %v1631 = vpop.f32.mrf.mxu0
    %v1632 = vadd.f32 %v884, %v1631
    %1633 = vmatmul.bf16.gmra.mxu0 %v447
    %v1634 = vpop.f32.mrf.mxu0
    %v1635 = vadd.f32 %v887, %v1634
    %v1636 = vpop.f32.mrf.mxu0
    %v1637 = vadd.f32 %v889, %v1636
    %1638 = vmatmul.bf16.gmra.mxu0 %v450
    %v1639 = vpop.f32.mrf.mxu0
    %v1640 = vadd.f32 %v892, %v1639
    %v1641 = vpop.f32.mrf.mxu0
    %v1642 = vadd.f32 %v894, %v1641
    %1643 = vmatmul.bf16.gmra.mxu0 %v453
    %v1644 = vpop.f32.mrf.mxu0
    %v1645 = vadd.f32 %v897, %v1644
    %v1646 = vpop.f32.mrf.mxu0
    %v1647 = vadd.f32 %v899, %v1646
    %1648 = vmatmul.bf16.gmra.mxu0 %v456
    %v1649 = vpop.f32.mrf.mxu0
    %v1650 = vadd.f32 %v902, %v1649
    %v1651 = vpop.f32.mrf.mxu0
    %v1652 = vadd.f32 %v904, %v1651
    %1653 = vmatmul.bf16.gmra.mxu0 %v459
    %v1654 = vpop.f32.mrf.mxu0
    %v1655 = vadd.f32 %v907, %v1654
    %v1656 = vpop.f32.mrf.mxu0
    %v1657 = vadd.f32 %v909, %v1656
    %1658 = vmatmul.bf16.gmra.mxu0 %v462
    %v1659 = vpop.f32.mrf.mxu0
    %v1660 = vadd.f32 %v912, %v1659
    %v1661 = vpop.f32.mrf.mxu0
    %v1662 = vadd.f32 %v914, %v1661
    %1663 = vmatmul.bf16.gmra.mxu0 %v465
    %v1664 = vpop.f32.mrf.mxu0
    %v1665 = vadd.f32 %v917, %v1664
    %v1666 = vpop.f32.mrf.mxu0
    %v1667 = vadd.f32 %v919, %v1666
    %1668 = vmatmul.bf16.gmra.mxu0 %v468
    %v1669 = vpop.f32.mrf.mxu0
    %v1670 = vadd.f32 %v922, %v1669
    %v1671 = vpop.f32.mrf.mxu0
    %v1672 = vadd.f32 %v924, %v1671
    %1673 = vmatmul.bf16.gmra.mxu0 %v471
    %v1674 = vpop.f32.mrf.mxu0
    %v1675 = vadd.f32 %v927, %v1674
    %v1676 = vpop.f32.mrf.mxu0
    %v1677 = vadd.f32 %v929, %v1676
    %1678 = vmatmul.bf16.gmra.mxu0 %v474
    %v1679 = vpop.f32.mrf.mxu0
    %v1680 = vadd.f32 %v932, %v1679
    %v1681 = vpop.f32.mrf.mxu0
    %v1682 = vadd.f32 %v934, %v1681
    %1683 = vmatmul.bf16.gmra.mxu0 %v477
    %v1684 = vpop.f32.mrf.mxu0
    %v1685 = vpop.f32.mrf.mxu0
    %1686 = vdwg.mxu0
    %1687 = vmatpush.bf16.msra.mxu0 0
    %1688 = vmatpush.bf16.msra.mxu0 0
    %1689 = vmatpush.bf16.msra.mxu0 0
    %1690 = vmatpush.bf16.msra.mxu0 0
    %1691 = vmatpush.bf16.msra.mxu0 %v1250
    %1692 = vmatpush.bf16.msra.mxu0 %v1194
    %1693 = vmatpush.bf16.msra.mxu0 %v1186
    %1694 = vmatpush.bf16.msra.mxu0 %v1178
    %1695 = vmatmul.bf16.gmra.mxu0 %v1229
    %v1696 = vpop.f32.mrf.mxu0
    %v1697 = vadd.f32 %v949, %v1696
    %v1698 = vpop.f32.mrf.mxu0
    %v1699 = vadd.f32 %v951, %v1698
    %1700 = vmatmul.bf16.gmra.mxu0 %v444
    %v1701 = vpop.f32.mrf.mxu0
    %v1702 = vadd.f32 %v954, %v1701
    %v1703 = vpop.f32.mrf.mxu0
    %v1704 = vadd.f32 %v956, %v1703
    %1705 = vmatmul.bf16.gmra.mxu0 %v447
    %v1706 = vpop.f32.mrf.mxu0
    %v1707 = vadd.f32 %v959, %v1706
    %v1708 = vpop.f32.mrf.mxu0
    %v1709 = vadd.f32 %v961, %v1708
    %1710 = vmatmul.bf16.gmra.mxu0 %v450
    %v1711 = vpop.f32.mrf.mxu0
    %v1712 = vadd.f32 %v964, %v1711
    %v1713 = vpop.f32.mrf.mxu0
    %v1714 = vadd.f32 %v966, %v1713
    %1715 = vmatmul.bf16.gmra.mxu0 %v453
    %v1716 = vpop.f32.mrf.mxu0
    %v1717 = vadd.f32 %v969, %v1716
    %v1718 = vpop.f32.mrf.mxu0
    %v1719 = vadd.f32 %v971, %v1718
    %1720 = vmatmul.bf16.gmra.mxu0 %v456
    %v1721 = vpop.f32.mrf.mxu0
    %v1722 = vadd.f32 %v974, %v1721
    %v1723 = vpop.f32.mrf.mxu0
    %v1724 = vadd.f32 %v976, %v1723
    %1725 = vmatmul.bf16.gmra.mxu0 %v459
    %v1726 = vpop.f32.mrf.mxu0
    %v1727 = vadd.f32 %v979, %v1726
    %v1728 = vpop.f32.mrf.mxu0
    %v1729 = vadd.f32 %v981, %v1728
    %1730 = vmatmul.bf16.gmra.mxu0 %v462
    %v1731 = vpop.f32.mrf.mxu0
    %v1732 = vadd.f32 %v984, %v1731
    %v1733 = vpop.f32.mrf.mxu0
    %v1734 = vadd.f32 %v986, %v1733
    %1735 = vmatmul.bf16.gmra.mxu0 %v465
    %v1736 = vpop.f32.mrf.mxu0
    %v1737 = vadd.f32 %v989, %v1736
    %v1738 = vpop.f32.mrf.mxu0
    %v1739 = vadd.f32 %v991, %v1738
    %1740 = vmatmul.bf16.gmra.mxu0 %v468
    %v1741 = vpop.f32.mrf.mxu0
    %v1742 = vadd.f32 %v994, %v1741
    %v1743 = vpop.f32.mrf.mxu0
    %v1744 = vadd.f32 %v996, %v1743
    %1745 = vmatmul.bf16.gmra.mxu0 %v471
    %v1746 = vpop.f32.mrf.mxu0
    %v1747 = vadd.f32 %v999, %v1746
    %v1748 = vpop.f32.mrf.mxu0
    %v1749 = vadd.f32 %v1001, %v1748
    %1750 = vmatmul.bf16.gmra.mxu0 %v474
    %v1751 = vpop.f32.mrf.mxu0
    %v1752 = vadd.f32 %v1004, %v1751
    %v1753 = vpop.f32.mrf.mxu0
    %v1754 = vadd.f32 %v1006, %v1753
    %1755 = vmatmul.bf16.gmra.mxu0 %v477
    %v1756 = vpop.f32.mrf.mxu0
    %v1757 = vpop.f32.mrf.mxu0
    %1758 = vdwg.mxu0
    %1759 = vmatpush.bf16.msra.mxu0 0
    %1760 = vmatpush.bf16.msra.mxu0 0
    %1761 = vmatpush.bf16.msra.mxu0 0
    %1762 = vmatpush.bf16.msra.mxu0 0
    %1763 = vmatpush.bf16.msra.mxu0 %v1253
    %1764 = vmatpush.bf16.msra.mxu0 %v1195
    %1765 = vmatpush.bf16.msra.mxu0 %v1187
    %1766 = vmatpush.bf16.msra.mxu0 %v1179
    %1767 = vmatmul.bf16.gmra.mxu0 %v1229
    %v1768 = vpop.f32.mrf.mxu0
    %v1769 = vadd.f32 %v1021, %v1768
    %v1770 = vpop.f32.mrf.mxu0
    %v1771 = vadd.f32 %v1023, %v1770
    %1772 = vmatmul.bf16.gmra.mxu0 %v444
    %v1773 = vpop.f32.mrf.mxu0
    %v1774 = vadd.f32 %v1026, %v1773
    %v1775 = vpop.f32.mrf.mxu0
    %v1776 = vadd.f32 %v1028, %v1775
    %1777 = vmatmul.bf16.gmra.mxu0 %v447
    %v1778 = vpop.f32.mrf.mxu0
    %v1779 = vadd.f32 %v1031, %v1778
    %v1780 = vpop.f32.mrf.mxu0
    %v1781 = vadd.f32 %v1033, %v1780
    %1782 = vmatmul.bf16.gmra.mxu0 %v450
    %v1783 = vpop.f32.mrf.mxu0
    %v1784 = vadd.f32 %v1036, %v1783
    %v1785 = vpop.f32.mrf.mxu0
    %v1786 = vadd.f32 %v1038, %v1785
    %1787 = vmatmul.bf16.gmra.mxu0 %v453
    %v1788 = vpop.f32.mrf.mxu0
    %v1789 = vadd.f32 %v1041, %v1788
    %v1790 = vpop.f32.mrf.mxu0
    %v1791 = vadd.f32 %v1043, %v1790
    %1792 = vmatmul.bf16.gmra.mxu0 %v456
    %v1793 = vpop.f32.mrf.mxu0
    %v1794 = vadd.f32 %v1046, %v1793
    %v1795 = vpop.f32.mrf.mxu0
    %v1796 = vadd.f32 %v1048, %v1795
    %1797 = vmatmul.bf16.gmra.mxu0 %v459
    %v1798 = vpop.f32.mrf.mxu0
    %v1799 = vadd.f32 %v1051, %v1798
    %v1800 = vpop.f32.mrf.mxu0
    %v1801 = vadd.f32 %v1053, %v1800
    %1802 = vmatmul.bf16.gmra.mxu0 %v462
    %v1803 = vpop.f32.mrf.mxu0
    %v1804 = vadd.f32 %v1056, %v1803
    %v1805 = vpop.f32.mrf.mxu0
    %v1806 = vadd.f32 %v1058, %v1805
    %1807 = vmatmul.bf16.gmra.mxu0 %v465
    %v1808 = vpop.f32.mrf.mxu0
    %v1809 = vadd.f32 %v1061, %v1808
    %v1810 = vpop.f32.mrf.mxu0
    %v1811 = vadd.f32 %v1063, %v1810
    %1812 = vmatmul.bf16.gmra.mxu0 %v468
    %v1813 = vpop.f32.mrf.mxu0
    %v1814 = vadd.f32 %v1066, %v1813
    %v1815 = vpop.f32.mrf.mxu0
    %v1816 = vadd.f32 %v1068, %v1815
    %1817 = vmatmul.bf16.gmra.mxu0 %v471
    %v1818 = vpop.f32.mrf.mxu0
    %v1819 = vadd.f32 %v1071, %v1818
    %v1820 = vpop.f32.mrf.mxu0
    %v1821 = vadd.f32 %v1073, %v1820
    %1822 = vmatmul.bf16.gmra.mxu0 %v474
    %v1823 = vpop.f32.mrf.mxu0
    %v1824 = vadd.f32 %v1076, %v1823
    %v1825 = vpop.f32.mrf.mxu0
    %v1826 = vadd.f32 %v1078, %v1825
    %1827 = vmatmul.bf16.gmra.mxu0 %v477
    %v1828 = vpop.f32.mrf.mxu0
    %v1829 = vpop.f32.mrf.mxu0
    %1830 = vdwg.mxu0
    %v1831 = vld [vmem:[#allocation6] sm:$0xff]
    %v1833 = vperm.slane %v1831, 0
    %v1834 = vperm.slane %v1831, 1
    %v1835 = vperm.slane %v1831, 2
    %v1836 = vperm.slane %v1831, 3
    %v1837 = vperm.slane %v1831, 4
    %v1838 = vperm.slane %v1831, 5
    %v1839 = vperm.slane %v1831, 6
    %v1840 = vperm.slane %v1831, 7
    %v1849 = vadd.f32 %v1265, %v1833
    %v1850 = vadd.f32 %v1337, %v1834
    %v1851 = vadd.f32 %v1409, %v1835
    %v1852 = vadd.f32 %v1481, %v1836
    %v1853 = vadd.f32 %v1553, %v1837
    %v1854 = vadd.f32 %v1625, %v1838
    %v1855 = vadd.f32 %v1697, %v1839
    %v1856 = vadd.f32 %v1769, %v1840
    %v1857 = vadd.f32 %v1267, %v1833
    %v1858 = vadd.f32 %v1339, %v1834
    %v1859 = vadd.f32 %v1411, %v1835
    %v1860 = vadd.f32 %v1483, %v1836
    %v1861 = vadd.f32 %v1555, %v1837
    %v1862 = vadd.f32 %v1627, %v1838
    %v1863 = vadd.f32 %v1699, %v1839
    %v1864 = vadd.f32 %v1771, %v1840
    %v1865 = vadd.f32 %v1270, %v1833
    %v1866 = vadd.f32 %v1342, %v1834
    %v1867 = vadd.f32 %v1414, %v1835
    %v1868 = vadd.f32 %v1486, %v1836
    %v1869 = vadd.f32 %v1558, %v1837
    %v1870 = vadd.f32 %v1630, %v1838
    %v1871 = vadd.f32 %v1702, %v1839
    %v1872 = vadd.f32 %v1774, %v1840
    %v1873 = vadd.f32 %v1272, %v1833
    %v1874 = vadd.f32 %v1344, %v1834
    %v1875 = vadd.f32 %v1416, %v1835
    %v1876 = vadd.f32 %v1488, %v1836
    %v1877 = vadd.f32 %v1560, %v1837
    %v1878 = vadd.f32 %v1632, %v1838
    %v1879 = vadd.f32 %v1704, %v1839
    %v1880 = vadd.f32 %v1776, %v1840
    %v1881 = vadd.f32 %v1275, %v1833
    %v1882 = vadd.f32 %v1347, %v1834
    %v1883 = vadd.f32 %v1419, %v1835
    %v1884 = vadd.f32 %v1491, %v1836
    %v1885 = vadd.f32 %v1563, %v1837
    %v1886 = vadd.f32 %v1635, %v1838
    %v1887 = vadd.f32 %v1707, %v1839
    %v1888 = vadd.f32 %v1779, %v1840
    %v1889 = vadd.f32 %v1277, %v1833
    %v1890 = vadd.f32 %v1349, %v1834
    %v1891 = vadd.f32 %v1421, %v1835
    %v1892 = vadd.f32 %v1493, %v1836
    %v1893 = vadd.f32 %v1565, %v1837
    %v1894 = vadd.f32 %v1637, %v1838
    %v1895 = vadd.f32 %v1709, %v1839
    %v1896 = vadd.f32 %v1781, %v1840
    %v1897 = vadd.f32 %v1280, %v1833
    %v1898 = vadd.f32 %v1352, %v1834
    %v1899 = vadd.f32 %v1424, %v1835
    %v1900 = vadd.f32 %v1496, %v1836
    %v1901 = vadd.f32 %v1568, %v1837
    %v1902 = vadd.f32 %v1640, %v1838
    %v1903 = vadd.f32 %v1712, %v1839
    %v1904 = vadd.f32 %v1784, %v1840
    %v1905 = vadd.f32 %v1282, %v1833
    %v1906 = vadd.f32 %v1354, %v1834
    %v1907 = vadd.f32 %v1426, %v1835
    %v1908 = vadd.f32 %v1498, %v1836
    %v1909 = vadd.f32 %v1570, %v1837
    %v1910 = vadd.f32 %v1642, %v1838
    %v1911 = vadd.f32 %v1714, %v1839
    %v1912 = vadd.f32 %v1786, %v1840
    %v1913 = vadd.f32 %v1285, %v1833
    %v1914 = vadd.f32 %v1357, %v1834
    %v1915 = vadd.f32 %v1429, %v1835
    %v1916 = vadd.f32 %v1501, %v1836
    %v1917 = vadd.f32 %v1573, %v1837
    %v1918 = vadd.f32 %v1645, %v1838
    %v1919 = vadd.f32 %v1717, %v1839
    %v1920 = vadd.f32 %v1789, %v1840
    %v1921 = vadd.f32 %v1287, %v1833
    %v1922 = vadd.f32 %v1359, %v1834
    %v1923 = vadd.f32 %v1431, %v1835
    %v1924 = vadd.f32 %v1503, %v1836
    %v1925 = vadd.f32 %v1575, %v1837
    %v1926 = vadd.f32 %v1647, %v1838
    %v1927 = vadd.f32 %v1719, %v1839
    %v1928 = vadd.f32 %v1791, %v1840
    %v1929 = vadd.f32 %v1290, %v1833
    %v1930 = vadd.f32 %v1362, %v1834
    %v1931 = vadd.f32 %v1434, %v1835
    %v1932 = vadd.f32 %v1506, %v1836
    %v1933 = vadd.f32 %v1578, %v1837
    %v1934 = vadd.f32 %v1650, %v1838
    %v1935 = vadd.f32 %v1722, %v1839
    %v1936 = vadd.f32 %v1794, %v1840
    %v1937 = vadd.f32 %v1292, %v1833
    %v1938 = vadd.f32 %v1364, %v1834
    %v1939 = vadd.f32 %v1436, %v1835
    %v1940 = vadd.f32 %v1508, %v1836
    %v1941 = vadd.f32 %v1580, %v1837
    %v1942 = vadd.f32 %v1652, %v1838
    %v1943 = vadd.f32 %v1724, %v1839
    %v1944 = vadd.f32 %v1796, %v1840
    %v1945 = vadd.f32 %v1295, %v1833
    %v1946 = vadd.f32 %v1367, %v1834
    %v1947 = vadd.f32 %v1439, %v1835
    %v1948 = vadd.f32 %v1511, %v1836
    %v1949 = vadd.f32 %v1583, %v1837
    %v1950 = vadd.f32 %v1655, %v1838
    %v1951 = vadd.f32 %v1727, %v1839
    %v1952 = vadd.f32 %v1799, %v1840
    %v1953 = vadd.f32 %v1297, %v1833
    %v1954 = vadd.f32 %v1369, %v1834
    %v1955 = vadd.f32 %v1441, %v1835
    %v1956 = vadd.f32 %v1513, %v1836
    %v1957 = vadd.f32 %v1585, %v1837
    %v1958 = vadd.f32 %v1657, %v1838
    %v1959 = vadd.f32 %v1729, %v1839
    %v1960 = vadd.f32 %v1801, %v1840
    %v1961 = vadd.f32 %v1300, %v1833
    %v1962 = vadd.f32 %v1372, %v1834
    %v1963 = vadd.f32 %v1444, %v1835
    %v1964 = vadd.f32 %v1516, %v1836
    %v1965 = vadd.f32 %v1588, %v1837
    %v1966 = vadd.f32 %v1660, %v1838
    %v1967 = vadd.f32 %v1732, %v1839
    %v1968 = vadd.f32 %v1804, %v1840
    %v1969 = vadd.f32 %v1302, %v1833
    %v1970 = vadd.f32 %v1374, %v1834
    %v1971 = vadd.f32 %v1446, %v1835
    %v1972 = vadd.f32 %v1518, %v1836
    %v1973 = vadd.f32 %v1590, %v1837
    %v1974 = vadd.f32 %v1662, %v1838
    %v1975 = vadd.f32 %v1734, %v1839
    %v1976 = vadd.f32 %v1806, %v1840
    %v1977 = vadd.f32 %v1305, %v1833
    %v1978 = vadd.f32 %v1377, %v1834
    %v1979 = vadd.f32 %v1449, %v1835
    %v1980 = vadd.f32 %v1521, %v1836
    %v1981 = vadd.f32 %v1593, %v1837
    %v1982 = vadd.f32 %v1665, %v1838
    %v1983 = vadd.f32 %v1737, %v1839
    %v1984 = vadd.f32 %v1809, %v1840
    %v1985 = vadd.f32 %v1307, %v1833
    %v1986 = vadd.f32 %v1379, %v1834
    %v1987 = vadd.f32 %v1451, %v1835
    %v1988 = vadd.f32 %v1523, %v1836
    %v1989 = vadd.f32 %v1595, %v1837
    %v1990 = vadd.f32 %v1667, %v1838
    %v1991 = vadd.f32 %v1739, %v1839
    %v1992 = vadd.f32 %v1811, %v1840
    %v1993 = vadd.f32 %v1310, %v1833
    %v1994 = vadd.f32 %v1382, %v1834
    %v1995 = vadd.f32 %v1454, %v1835
    %v1996 = vadd.f32 %v1526, %v1836
    %v1997 = vadd.f32 %v1598, %v1837
    %v1998 = vadd.f32 %v1670, %v1838
    %v1999 = vadd.f32 %v1742, %v1839
    %v2000 = vadd.f32 %v1814, %v1840
    %v2001 = vadd.f32 %v1312, %v1833
    %v2002 = vadd.f32 %v1384, %v1834
    %v2003 = vadd.f32 %v1456, %v1835
    %v2004 = vadd.f32 %v1528, %v1836
    %v2005 = vadd.f32 %v1600, %v1837
    %v2006 = vadd.f32 %v1672, %v1838
    %v2007 = vadd.f32 %v1744, %v1839
    %v2008 = vadd.f32 %v1816, %v1840
    %v2009 = vadd.f32 %v1315, %v1833
    %v2010 = vadd.f32 %v1387, %v1834
    %v2011 = vadd.f32 %v1459, %v1835
    %v2012 = vadd.f32 %v1531, %v1836
    %v2013 = vadd.f32 %v1603, %v1837
    %v2014 = vadd.f32 %v1675, %v1838
    %v2015 = vadd.f32 %v1747, %v1839
    %v2016 = vadd.f32 %v1819, %v1840
    %v2017 = vadd.f32 %v1317, %v1833
    %v2018 = vadd.f32 %v1389, %v1834
    %v2019 = vadd.f32 %v1461, %v1835
    %v2020 = vadd.f32 %v1533, %v1836
    %v2021 = vadd.f32 %v1605, %v1837
    %v2022 = vadd.f32 %v1677, %v1838
    %v2023 = vadd.f32 %v1749, %v1839
    %v2024 = vadd.f32 %v1821, %v1840
    %v2025 = vadd.f32 %v1320, %v1833
    %v2026 = vadd.f32 %v1392, %v1834
    %v2027 = vadd.f32 %v1464, %v1835
    %v2028 = vadd.f32 %v1536, %v1836
    %v2029 = vadd.f32 %v1608, %v1837
    %v2030 = vadd.f32 %v1680, %v1838
    %v2031 = vadd.f32 %v1752, %v1839
    %v2032 = vadd.f32 %v1824, %v1840
    %v2033 = vadd.f32 %v1322, %v1833
    %v2034 = vadd.f32 %v1394, %v1834
    %v2035 = vadd.f32 %v1466, %v1835
    %v2036 = vadd.f32 %v1538, %v1836
    %v2037 = vadd.f32 %v1610, %v1837
    %v2038 = vadd.f32 %v1682, %v1838
    %v2039 = vadd.f32 %v1754, %v1839
    %v2040 = vadd.f32 %v1826, %v1840
    %v2041 = vmax.f32 %v1849, 0.0
    %v2042 = vmax.f32 %v1850, 0.0
    %v2043 = vmax.f32 %v1851, 0.0
    %v2044 = vmax.f32 %v1852, 0.0
    %v2045 = vmax.f32 %v1853, 0.0
    %v2046 = vmax.f32 %v1854, 0.0
    %v2047 = vmax.f32 %v1855, 0.0
    %v2048 = vmax.f32 %v1856, 0.0
    %v2049 = vmax.f32 %v1857, 0.0
    %v2050 = vmax.f32 %v1858, 0.0
    %v2051 = vmax.f32 %v1859, 0.0
    %v2052 = vmax.f32 %v1860, 0.0
    %v2053 = vmax.f32 %v1861, 0.0
    %v2054 = vmax.f32 %v1862, 0.0
    %v2055 = vmax.f32 %v1863, 0.0
    %v2056 = vmax.f32 %v1864, 0.0
    %v2057 = vmax.f32 %v1865, 0.0
    %v2058 = vmax.f32 %v1866, 0.0
    %v2059 = vmax.f32 %v1867, 0.0
    %v2060 = vmax.f32 %v1868, 0.0
    %v2061 = vmax.f32 %v1869, 0.0
    %v2062 = vmax.f32 %v1870, 0.0
    %v2063 = vmax.f32 %v1871, 0.0
    %v2064 = vmax.f32 %v1872, 0.0
    %v2065 = vmax.f32 %v1873, 0.0
    %v2066 = vmax.f32 %v1874, 0.0
    %v2067 = vmax.f32 %v1875, 0.0
    %v2068 = vmax.f32 %v1876, 0.0
    %v2069 = vmax.f32 %v1877, 0.0
    %v2070 = vmax.f32 %v1878, 0.0
    %v2071 = vmax.f32 %v1879, 0.0
    %v2072 = vmax.f32 %v1880, 0.0
    %v2073 = vmax.f32 %v1881, 0.0
    %v2074 = vmax.f32 %v1882, 0.0
    %v2075 = vmax.f32 %v1883, 0.0
    %v2076 = vmax.f32 %v1884, 0.0
    %v2077 = vmax.f32 %v1885, 0.0
    %v2078 = vmax.f32 %v1886, 0.0
    %v2079 = vmax.f32 %v1887, 0.0
    %v2080 = vmax.f32 %v1888, 0.0
    %v2081 = vmax.f32 %v1889, 0.0
    %v2082 = vmax.f32 %v1890, 0.0
    %v2083 = vmax.f32 %v1891, 0.0
    %v2084 = vmax.f32 %v1892, 0.0
    %v2085 = vmax.f32 %v1893, 0.0
    %v2086 = vmax.f32 %v1894, 0.0
    %v2087 = vmax.f32 %v1895, 0.0
    %v2088 = vmax.f32 %v1896, 0.0
    %v2089 = vmax.f32 %v1897, 0.0
    %v2090 = vmax.f32 %v1898, 0.0
    %v2091 = vmax.f32 %v1899, 0.0
    %v2092 = vmax.f32 %v1900, 0.0
    %v2093 = vmax.f32 %v1901, 0.0
    %v2094 = vmax.f32 %v1902, 0.0
    %v2095 = vmax.f32 %v1903, 0.0
    %v2096 = vmax.f32 %v1904, 0.0
    %v2097 = vmax.f32 %v1905, 0.0
    %v2098 = vmax.f32 %v1906, 0.0
    %v2099 = vmax.f32 %v1907, 0.0
    %v2100 = vmax.f32 %v1908, 0.0
    %v2101 = vmax.f32 %v1909, 0.0
    %v2102 = vmax.f32 %v1910, 0.0
    %v2103 = vmax.f32 %v1911, 0.0
    %v2104 = vmax.f32 %v1912, 0.0
    %v2105 = vmax.f32 %v1913, 0.0
    %v2106 = vmax.f32 %v1914, 0.0
    %v2107 = vmax.f32 %v1915, 0.0
    %v2108 = vmax.f32 %v1916, 0.0
    %v2109 = vmax.f32 %v1917, 0.0
    %v2110 = vmax.f32 %v1918, 0.0
    %v2111 = vmax.f32 %v1919, 0.0
    %v2112 = vmax.f32 %v1920, 0.0
    %v2113 = vmax.f32 %v1921, 0.0
    %v2114 = vmax.f32 %v1922, 0.0
    %v2115 = vmax.f32 %v1923, 0.0
    %v2116 = vmax.f32 %v1924, 0.0
    %v2117 = vmax.f32 %v1925, 0.0
    %v2118 = vmax.f32 %v1926, 0.0
    %v2119 = vmax.f32 %v1927, 0.0
    %v2120 = vmax.f32 %v1928, 0.0
    %v2121 = vmax.f32 %v1929, 0.0
    %v2122 = vmax.f32 %v1930, 0.0
    %v2123 = vmax.f32 %v1931, 0.0
    %v2124 = vmax.f32 %v1932, 0.0
    %v2125 = vmax.f32 %v1933, 0.0
    %v2126 = vmax.f32 %v1934, 0.0
    %v2127 = vmax.f32 %v1935, 0.0
    %v2128 = vmax.f32 %v1936, 0.0
    %v2129 = vmax.f32 %v1937, 0.0
    %v2130 = vmax.f32 %v1938, 0.0
    %v2131 = vmax.f32 %v1939, 0.0
    %v2132 = vmax.f32 %v1940, 0.0
    %v2133 = vmax.f32 %v1941, 0.0
    %v2134 = vmax.f32 %v1942, 0.0
    %v2135 = vmax.f32 %v1943, 0.0
    %v2136 = vmax.f32 %v1944, 0.0
    %v2137 = vmax.f32 %v1945, 0.0
    %v2138 = vmax.f32 %v1946, 0.0
    %v2139 = vmax.f32 %v1947, 0.0
    %v2140 = vmax.f32 %v1948, 0.0
    %v2141 = vmax.f32 %v1949, 0.0
    %v2142 = vmax.f32 %v1950, 0.0
    %v2143 = vmax.f32 %v1951, 0.0
    %v2144 = vmax.f32 %v1952, 0.0
    %v2145 = vmax.f32 %v1953, 0.0
    %v2146 = vmax.f32 %v1954, 0.0
    %v2147 = vmax.f32 %v1955, 0.0
    %v2148 = vmax.f32 %v1956, 0.0
    %v2149 = vmax.f32 %v1957, 0.0
    %v2150 = vmax.f32 %v1958, 0.0
    %v2151 = vmax.f32 %v1959, 0.0
    %v2152 = vmax.f32 %v1960, 0.0
    %v2153 = vmax.f32 %v1961, 0.0
    %v2154 = vmax.f32 %v1962, 0.0
    %v2155 = vmax.f32 %v1963, 0.0
    %v2156 = vmax.f32 %v1964, 0.0
    %v2157 = vmax.f32 %v1965, 0.0
    %v2158 = vmax.f32 %v1966, 0.0
    %v2159 = vmax.f32 %v1967, 0.0
    %v2160 = vmax.f32 %v1968, 0.0
    %v2161 = vmax.f32 %v1969, 0.0
    %v2162 = vmax.f32 %v1970, 0.0
    %v2163 = vmax.f32 %v1971, 0.0
    %v2164 = vmax.f32 %v1972, 0.0
    %v2165 = vmax.f32 %v1973, 0.0
    %v2166 = vmax.f32 %v1974, 0.0
    %v2167 = vmax.f32 %v1975, 0.0
    %v2168 = vmax.f32 %v1976, 0.0
    %v2169 = vmax.f32 %v1977, 0.0
    %v2170 = vmax.f32 %v1978, 0.0
    %v2171 = vmax.f32 %v1979, 0.0
    %v2172 = vmax.f32 %v1980, 0.0
    %v2173 = vmax.f32 %v1981, 0.0
    %v2174 = vmax.f32 %v1982, 0.0
    %v2175 = vmax.f32 %v1983, 0.0
    %v2176 = vmax.f32 %v1984, 0.0
    %v2177 = vmax.f32 %v1985, 0.0
    %v2178 = vmax.f32 %v1986, 0.0
    %v2179 = vmax.f32 %v1987, 0.0
    %v2180 = vmax.f32 %v1988, 0.0
    %v2181 = vmax.f32 %v1989, 0.0
    %v2182 = vmax.f32 %v1990, 0.0
    %v2183 = vmax.f32 %v1991, 0.0
    %v2184 = vmax.f32 %v1992, 0.0
    %v2185 = vmax.f32 %v1993, 0.0
    %v2186 = vmax.f32 %v1994, 0.0
    %v2187 = vmax.f32 %v1995, 0.0
    %v2188 = vmax.f32 %v1996, 0.0
    %v2189 = vmax.f32 %v1997, 0.0
    %v2190 = vmax.f32 %v1998, 0.0
    %v2191 = vmax.f32 %v1999, 0.0
    %v2192 = vmax.f32 %v2000, 0.0
    %v2193 = vmax.f32 %v2001, 0.0
    %v2194 = vmax.f32 %v2002, 0.0
    %v2195 = vmax.f32 %v2003, 0.0
    %v2196 = vmax.f32 %v2004, 0.0
    %v2197 = vmax.f32 %v2005, 0.0
    %v2198 = vmax.f32 %v2006, 0.0
    %v2199 = vmax.f32 %v2007, 0.0
    %v2200 = vmax.f32 %v2008, 0.0
    %v2201 = vmax.f32 %v2009, 0.0
    %v2202 = vmax.f32 %v2010, 0.0
    %v2203 = vmax.f32 %v2011, 0.0
    %v2204 = vmax.f32 %v2012, 0.0
    %v2205 = vmax.f32 %v2013, 0.0
    %v2206 = vmax.f32 %v2014, 0.0
    %v2207 = vmax.f32 %v2015, 0.0
    %v2208 = vmax.f32 %v2016, 0.0
    %v2209 = vmax.f32 %v2017, 0.0
    %v2210 = vmax.f32 %v2018, 0.0
    %v2211 = vmax.f32 %v2019, 0.0
    %v2212 = vmax.f32 %v2020, 0.0
    %v2213 = vmax.f32 %v2021, 0.0
    %v2214 = vmax.f32 %v2022, 0.0
    %v2215 = vmax.f32 %v2023, 0.0
    %v2216 = vmax.f32 %v2024, 0.0
    %v2217 = vmax.f32 %v2025, 0.0
    %v2218 = vmax.f32 %v2026, 0.0
    %v2219 = vmax.f32 %v2027, 0.0
    %v2220 = vmax.f32 %v2028, 0.0
    %v2221 = vmax.f32 %v2029, 0.0
    %v2222 = vmax.f32 %v2030, 0.0
    %v2223 = vmax.f32 %v2031, 0.0
    %v2224 = vmax.f32 %v2032, 0.0
    %v2225 = vmax.f32 %v2033, 0.0
    %v2226 = vmax.f32 %v2034, 0.0
    %v2227 = vmax.f32 %v2035, 0.0
    %v2228 = vmax.f32 %v2036, 0.0
    %v2229 = vmax.f32 %v2037, 0.0
    %v2230 = vmax.f32 %v2038, 0.0
    %v2231 = vmax.f32 %v2039, 0.0
    %v2232 = vmax.f32 %v2040, 0.0
    %v2233 = vmax.f32 %v2041, %v2043
    %v2234 = vmax.f32 %v2042, %v2044
    %v2235 = vmax.f32 %v2049, %v2051
    %v2236 = vmax.f32 %v2050, %v2052
    %v2237 = vmax.f32 %v2057, %v2059
    %v2238 = vmax.f32 %v2058, %v2060
    %v2239 = vmax.f32 %v2065, %v2067
    %v2240 = vmax.f32 %v2066, %v2068
    %v2241 = vmax.f32 %v2073, %v2075
    %v2242 = vmax.f32 %v2074, %v2076
    %v2243 = vmax.f32 %v2081, %v2083
    %v2244 = vmax.f32 %v2082, %v2084
    %v2245 = vmax.f32 %v2089, %v2091
    %v2246 = vmax.f32 %v2090, %v2092
    %v2247 = vmax.f32 %v2097, %v2099
    %v2248 = vmax.f32 %v2098, %v2100
    %v2249 = vmax.f32 %v2105, %v2107
    %v2250 = vmax.f32 %v2106, %v2108
    %v2251 = vmax.f32 %v2113, %v2115
    %v2252 = vmax.f32 %v2114, %v2116
    %v2253 = vmax.f32 %v2121, %v2123
    %v2254 = vmax.f32 %v2122, %v2124
    %v2255 = vmax.f32 %v2129, %v2131
    %v2256 = vmax.f32 %v2130, %v2132
    %v2257 = vmax.f32 %v2137, %v2139
    %v2258 = vmax.f32 %v2138, %v2140
    %v2259 = vmax.f32 %v2145, %v2147
    %v2260 = vmax.f32 %v2146, %v2148
    %v2261 = vmax.f32 %v2153, %v2155
    %v2262 = vmax.f32 %v2154, %v2156
    %v2263 = vmax.f32 %v2161, %v2163
    %v2264 = vmax.f32 %v2162, %v2164
    %v2265 = vmax.f32 %v2169, %v2171
    %v2266 = vmax.f32 %v2170, %v2172
    %v2267 = vmax.f32 %v2177, %v2179
    %v2268 = vmax.f32 %v2178, %v2180
    %v2269 = vmax.f32 %v2185, %v2187
    %v2270 = vmax.f32 %v2186, %v2188
    %v2271 = vmax.f32 %v2193, %v2195
    %v2272 = vmax.f32 %v2194, %v2196
    %v2273 = vmax.f32 %v2201, %v2203
    %v2274 = vmax.f32 %v2202, %v2204
    %v2275 = vmax.f32 %v2209, %v2211
    %v2276 = vmax.f32 %v2210, %v2212
    %v2277 = vmax.f32 %v2217, %v2219
    %v2278 = vmax.f32 %v2218, %v2220
    %v2279 = vmax.f32 %v2225, %v2227
    %v2280 = vmax.f32 %v2226, %v2228
    %v2281 = vmax.f32 %v2045, %v2047
    %v2282 = vmax.f32 %v2046, %v2048
    %v2283 = vmax.f32 %v2053, %v2055
    %v2284 = vmax.f32 %v2054, %v2056
    %v2285 = vmax.f32 %v2061, %v2063
    %v2286 = vmax.f32 %v2062, %v2064
    %v2287 = vmax.f32 %v2069, %v2071
    %v2288 = vmax.f32 %v2070, %v2072
    %v2289 = vmax.f32 %v2077, %v2079
    %v2290 = vmax.f32 %v2078, %v2080
    %v2291 = vmax.f32 %v2085, %v2087
    %v2292 = vmax.f32 %v2086, %v2088
    %v2293 = vmax.f32 %v2093, %v2095
    %v2294 = vmax.f32 %v2094, %v2096
    %v2295 = vmax.f32 %v2101, %v2103
    %v2296 = vmax.f32 %v2102, %v2104
    %v2297 = vmax.f32 %v2109, %v2111
    %v2298 = vmax.f32 %v2110, %v2112
    %v2299 = vmax.f32 %v2117, %v2119
    %v2300 = vmax.f32 %v2118, %v2120
    %v2301 = vmax.f32 %v2125, %v2127
    %v2302 = vmax.f32 %v2126, %v2128
    %v2303 = vmax.f32 %v2133, %v2135
    %v2304 = vmax.f32 %v2134, %v2136
    %v2305 = vmax.f32 %v2141, %v2143
    %v2306 = vmax.f32 %v2142, %v2144
    %v2307 = vmax.f32 %v2149, %v2151
    %v2308 = vmax.f32 %v2150, %v2152
    %v2309 = vmax.f32 %v2157, %v2159
    %v2310 = vmax.f32 %v2158, %v2160
    %v2311 = vmax.f32 %v2165, %v2167
    %v2312 = vmax.f32 %v2166, %v2168
    %v2313 = vmax.f32 %v2173, %v2175
    %v2314 = vmax.f32 %v2174, %v2176
    %v2315 = vmax.f32 %v2181, %v2183
    %v2316 = vmax.f32 %v2182, %v2184
    %v2317 = vmax.f32 %v2189, %v2191
    %v2318 = vmax.f32 %v2190, %v2192
    %v2319 = vmax.f32 %v2197, %v2199
    %v2320 = vmax.f32 %v2198, %v2200
    %v2321 = vmax.f32 %v2205, %v2207
    %v2322 = vmax.f32 %v2206, %v2208
    %v2323 = vmax.f32 %v2213, %v2215
    %v2324 = vmax.f32 %v2214, %v2216
    %v2325 = vmax.f32 %v2221, %v2223
    %v2326 = vmax.f32 %v2222, %v2224
    %v2327 = vmax.f32 %v2229, %v2231
    %v2328 = vmax.f32 %v2230, %v2232
    %v2329 = vmax.f32 %v2233, %v2281
    %v2330 = vmax.f32 %v2234, %v2282
    %v2331 = vmax.f32 %v2235, %v2283
    %v2332 = vmax.f32 %v2236, %v2284
    %v2333 = vmax.f32 %v2237, %v2285
    %v2334 = vmax.f32 %v2238, %v2286
    %v2335 = vmax.f32 %v2239, %v2287
    %v2336 = vmax.f32 %v2240, %v2288
    %v2337 = vmax.f32 %v2241, %v2289
    %v2338 = vmax.f32 %v2242, %v2290
    %v2339 = vmax.f32 %v2243, %v2291
    %v2340 = vmax.f32 %v2244, %v2292
    %v2341 = vmax.f32 %v2245, %v2293
    %v2342 = vmax.f32 %v2246, %v2294
    %v2343 = vmax.f32 %v2247, %v2295
    %v2344 = vmax.f32 %v2248, %v2296
    %v2345 = vmax.f32 %v2249, %v2297
    %v2346 = vmax.f32 %v2250, %v2298
    %v2347 = vmax.f32 %v2251, %v2299
    %v2348 = vmax.f32 %v2252, %v2300
    %v2349 = vmax.f32 %v2253, %v2301
    %v2350 = vmax.f32 %v2254, %v2302
    %v2351 = vmax.f32 %v2255, %v2303
    %v2352 = vmax.f32 %v2256, %v2304
    %v2353 = vmax.f32 %v2257, %v2305
    %v2354 = vmax.f32 %v2258, %v2306
    %v2355 = vmax.f32 %v2259, %v2307
    %v2356 = vmax.f32 %v2260, %v2308
    %v2357 = vmax.f32 %v2261, %v2309
    %v2358 = vmax.f32 %v2262, %v2310
    %v2359 = vmax.f32 %v2263, %v2311
    %v2360 = vmax.f32 %v2264, %v2312
    %v2361 = vmax.f32 %v2265, %v2313
    %v2362 = vmax.f32 %v2266, %v2314
    %v2363 = vmax.f32 %v2267, %v2315
    %v2364 = vmax.f32 %v2268, %v2316
    %v2365 = vmax.f32 %v2269, %v2317
    %v2366 = vmax.f32 %v2270, %v2318
    %v2367 = vmax.f32 %v2271, %v2319
    %v2368 = vmax.f32 %v2272, %v2320
    %v2369 = vmax.f32 %v2273, %v2321
    %v2370 = vmax.f32 %v2274, %v2322
    %v2371 = vmax.f32 %v2275, %v2323
    %v2372 = vmax.f32 %v2276, %v2324
    %v2373 = vmax.f32 %v2277, %v2325
    %v2374 = vmax.f32 %v2278, %v2326
    %v2375 = vmax.f32 %v2279, %v2327
    %v2376 = vmax.f32 %v2280, %v2328
    %v2377 = vpack.c.bf16 %v2330, %v2329
    %v2378 = vpack.c.bf16 %v2332, %v2331
    %v2379 = vpack.c.bf16 %v2334, %v2333
    %v2380 = vpack.c.bf16 %v2336, %v2335
    %v2381 = vpack.c.bf16 %v2338, %v2337
    %v2382 = vpack.c.bf16 %v2340, %v2339
    %v2383 = vpack.c.bf16 %v2342, %v2341
    %v2384 = vpack.c.bf16 %v2344, %v2343
    %v2385 = vpack.c.bf16 %v2346, %v2345
    %v2386 = vpack.c.bf16 %v2348, %v2347
    %v2387 = vpack.c.bf16 %v2350, %v2349
    %v2388 = vpack.c.bf16 %v2352, %v2351
    %v2389 = vpack.c.bf16 %v2354, %v2353
    %v2390 = vpack.c.bf16 %v2356, %v2355
    %v2391 = vpack.c.bf16 %v2358, %v2357
    %v2392 = vpack.c.bf16 %v2360, %v2359
    %v2393 = vpack.c.bf16 %v2362, %v2361
    %v2394 = vpack.c.bf16 %v2364, %v2363
    %v2395 = vpack.c.bf16 %v2366, %v2365
    %v2396 = vpack.c.bf16 %v2368, %v2367
    %v2397 = vpack.c.bf16 %v2370, %v2369
    %v2398 = vpack.c.bf16 %v2372, %v2371
    %v2399 = vpack.c.bf16 %v2374, %v2373
    %v2400 = vpack.c.bf16 %v2376, %v2375
    %v2401 = vld [vmem:[%s4] sm:$0xff]
    %v2402 = vld [vmem:[%s4 + $0x8] sm:$0xf]
    %v2403 = vld [vmem:[%s4 + $0xc] sm:$0xff]
    %v2404 = vld [vmem:[%s4 + $0x14] sm:$0xf]
    %v2405 = vld [vmem:[%s4 + $0x18] sm:$0xff]
    %v2406 = vld [vmem:[%s4 + $0x20] sm:$0xf]
    %v2407 = vld [vmem:[%s4 + $0x24] sm:$0xff]
    %v2408 = vld [vmem:[%s4 + $0x2c] sm:$0xf]
    %v2409 = vld [vmem:[%s4 + $0x30] sm:$0xff]
    %v2410 = vld [vmem:[%s4 + $0x38] sm:$0xf]
    %v2411 = vld [vmem:[%s4 + $0x3c] sm:$0xff]
    %v2412 = vld [vmem:[%s4 + $0x44] sm:$0xf]
    %v2413 = vld [vmem:[%s4 + $0x48] sm:$0xff]
    %v2414 = vld [vmem:[%s4 + $0x50] sm:$0xf]
    %v2415 = vld [vmem:[%s4 + $0x54] sm:$0xff]
    %v2416 = vld [vmem:[%s4 + $0x5c] sm:$0xf]
    %v2417 = vld [vmem:[%s4 + $0x60] sm:$0xff]
    %v2418 = vld [vmem:[%s4 + $0x68] sm:$0xf]
    %v2419 = vld [vmem:[%s4 + $0x6c] sm:$0xff]
    %v2420 = vld [vmem:[%s4 + $0x74] sm:$0xf]
    %v2421 = vld [vmem:[%s4 + $0x78] sm:$0xff]
    %v2422 = vld [vmem:[%s4 + $0x80] sm:$0xf]
    %v2423 = vld [vmem:[%s4 + $0x84] sm:$0xff]
    %v2424 = vld [vmem:[%s4 + $0x8c] sm:$0xf]
    %v2425 = vld [vmem:[%s4 + $0x90] sm:$0xff]
    %v2426 = vld [vmem:[%s4 + $0x98] sm:$0xf]
    %v2427 = vld [vmem:[%s4 + $0x9c] sm:$0xff]
    %v2428 = vld [vmem:[%s4 + $0xa4] sm:$0xf]
    %v2429 = vld [vmem:[%s4 + $0xa8] sm:$0xff]
    %v2430 = vld [vmem:[%s4 + $0xb0] sm:$0xf]
    %v2431 = vld [vmem:[%s4 + $0xb4] sm:$0xff]
    %v2432 = vld [vmem:[%s4 + $0xbc] sm:$0xf]
    %v2433 = vld [vmem:[%s4 + $0xc0] sm:$0xff]
    %v2434 = vld [vmem:[%s4 + $0xc8] sm:$0xf]
    %v2435 = vld [vmem:[%s4 + $0xcc] sm:$0xff]
    %v2436 = vld [vmem:[%s4 + $0xd4] sm:$0xf]
    %v2437 = vld [vmem:[%s4 + $0xd8] sm:$0xff]
    %v2438 = vld [vmem:[%s4 + $0xe0] sm:$0xf]
    %v2439 = vld [vmem:[%s4 + $0xe4] sm:$0xff]
    %v2440 = vld [vmem:[%s4 + $0xec] sm:$0xf]
    %v2441 = vld [vmem:[%s4 + $0xf0] sm:$0xff]
    %v2442 = vld [vmem:[%s4 + $0xf8] sm:$0xf]
    %v2443 = vld [vmem:[%s4 + $0xfc] sm:$0xff]
    %v2444 = vld [vmem:[%s4 + $0x104] sm:$0xf]
    %v2445 = vld [vmem:[%s4 + $0x108] sm:$0xff]
    %v2446 = vld [vmem:[%s4 + $0x110] sm:$0xf]
    %v2447 = vld [vmem:[%s4 + $0x114] sm:$0xff]
    %v2448 = vld [vmem:[%s4 + $0x11c] sm:$0xf]
    %v2449 = vld [vmem:[%s4 + $0x120] sm:$0xff]
    %v2450 = vld [vmem:[%s4 + $0x128] sm:$0xf]
    %v2451 = vld [vmem:[%s4 + $0x12c] sm:$0xff]
    %v2452 = vld [vmem:[%s4 + $0x134] sm:$0xf]
    %v2453 = vld [vmem:[%s4 + $0x138] sm:$0xff]
    %v2454 = vld [vmem:[%s4 + $0x140] sm:$0xf]
    %v2455 = vld [vmem:[%s4 + $0x144] sm:$0xff]
    %v2456 = vld [vmem:[%s4 + $0x14c] sm:$0xf]
    %v2457 = vld [vmem:[%s4 + $0x150] sm:$0xff]
    %v2458 = vld [vmem:[%s4 + $0x158] sm:$0xf]
    %v2459 = vld [vmem:[%s4 + $0x15c] sm:$0xff]
    %v2460 = vld [vmem:[%s4 + $0x164] sm:$0xf]
    %v2461 = vld [vmem:[%s4 + $0x168] sm:$0xff]
    %v2462 = vld [vmem:[%s4 + $0x170] sm:$0xf]
    %v2463 = vld [vmem:[%s4 + $0x174] sm:$0xff]
    %v2464 = vld [vmem:[%s4 + $0x17c] sm:$0xf]
    %s2465 = scalar_lea.vmem %s4, 384
    %v2466 = vld [vmem:[%s2465] sm:$0xff]
    %v2467 = vld [vmem:[%s2465 + $0x8] sm:$0xf]
    %v2468 = vld [vmem:[%s2465 + $0xc] sm:$0xff]
    %v2469 = vld [vmem:[%s2465 + $0x14] sm:$0xf]
    %v2470 = vld [vmem:[%s2465 + $0x18] sm:$0xff]
    %v2471 = vld [vmem:[%s2465 + $0x20] sm:$0xf]
    %v2472 = vld [vmem:[%s2465 + $0x24] sm:$0xff]
    %v2473 = vld [vmem:[%s2465 + $0x2c] sm:$0xf]
    %v2474 = vld [vmem:[%s2465 + $0x30] sm:$0xff]
    %v2475 = vld [vmem:[%s2465 + $0x38] sm:$0xf]
    %v2476 = vld [vmem:[%s2465 + $0x3c] sm:$0xff]
    %v2477 = vld [vmem:[%s2465 + $0x44] sm:$0xf]
    %v2478 = vld [vmem:[%s2465 + $0x48] sm:$0xff]
    %v2479 = vld [vmem:[%s2465 + $0x50] sm:$0xf]
    %v2480 = vld [vmem:[%s2465 + $0x54] sm:$0xff]
    %v2481 = vld [vmem:[%s2465 + $0x5c] sm:$0xf]
    %v2482 = vld [vmem:[%s2465 + $0x60] sm:$0xff]
    %v2483 = vld [vmem:[%s2465 + $0x68] sm:$0xf]
    %v2484 = vld [vmem:[%s2465 + $0x6c] sm:$0xff]
    %v2485 = vld [vmem:[%s2465 + $0x74] sm:$0xf]
    %v2486 = vld [vmem:[%s2465 + $0x78] sm:$0xff]
    %v2487 = vld [vmem:[%s2465 + $0x80] sm:$0xf]
    %v2488 = vld [vmem:[%s2465 + $0x84] sm:$0xff]
    %v2489 = vld [vmem:[%s2465 + $0x8c] sm:$0xf]
    %v2490 = vld [vmem:[%s2465 + $0x90] sm:$0xff]
    %v2491 = vld [vmem:[%s2465 + $0x98] sm:$0xf]
    %v2492 = vld [vmem:[%s2465 + $0x9c] sm:$0xff]
    %v2493 = vld [vmem:[%s2465 + $0xa4] sm:$0xf]
    %v2494 = vld [vmem:[%s2465 + $0xa8] sm:$0xff]
    %v2495 = vld [vmem:[%s2465 + $0xb0] sm:$0xf]
    %v2496 = vld [vmem:[%s2465 + $0xb4] sm:$0xff]
    %v2497 = vld [vmem:[%s2465 + $0xbc] sm:$0xf]
    %v2498 = vld [vmem:[%s2465 + $0xc0] sm:$0xff]
    %v2499 = vld [vmem:[%s2465 + $0xc8] sm:$0xf]
    %v2500 = vld [vmem:[%s2465 + $0xcc] sm:$0xff]
    %v2501 = vld [vmem:[%s2465 + $0xd4] sm:$0xf]
    %v2502 = vld [vmem:[%s2465 + $0xd8] sm:$0xff]
    %v2503 = vld [vmem:[%s2465 + $0xe0] sm:$0xf]
    %v2504 = vld [vmem:[%s2465 + $0xe4] sm:$0xff]
    %v2505 = vld [vmem:[%s2465 + $0xec] sm:$0xf]
    %v2506 = vld [vmem:[%s2465 + $0xf0] sm:$0xff]
    %v2507 = vld [vmem:[%s2465 + $0xf8] sm:$0xf]
    %v2508 = vld [vmem:[%s2465 + $0xfc] sm:$0xff]
    %v2509 = vld [vmem:[%s2465 + $0x104] sm:$0xf]
    %v2510 = vld [vmem:[%s2465 + $0x108] sm:$0xff]
    %v2511 = vld [vmem:[%s2465 + $0x110] sm:$0xf]
    %v2512 = vld [vmem:[%s2465 + $0x114] sm:$0xff]
    %v2513 = vld [vmem:[%s2465 + $0x11c] sm:$0xf]
    %v2514 = vld [vmem:[%s2465 + $0x120] sm:$0xff]
    %v2515 = vld [vmem:[%s2465 + $0x128] sm:$0xf]
    %v2516 = vld [vmem:[%s2465 + $0x12c] sm:$0xff]
    %v2517 = vld [vmem:[%s2465 + $0x134] sm:$0xf]
    %v2518 = vld [vmem:[%s2465 + $0x138] sm:$0xff]
    %v2519 = vld [vmem:[%s2465 + $0x140] sm:$0xf]
    %v2520 = vld [vmem:[%s2465 + $0x144] sm:$0xff]
    %v2521 = vld [vmem:[%s2465 + $0x14c] sm:$0xf]
    %v2522 = vld [vmem:[%s2465 + $0x150] sm:$0xff]
    %v2523 = vld [vmem:[%s2465 + $0x158] sm:$0xf]
    %v2524 = vld [vmem:[%s2465 + $0x15c] sm:$0xff]
    %v2525 = vld [vmem:[%s2465 + $0x164] sm:$0xf]
    %v2526 = vld [vmem:[%s2465 + $0x168] sm:$0xff]
    %v2527 = vld [vmem:[%s2465 + $0x170] sm:$0xf]
    %v2528 = vld [vmem:[%s2465 + $0x174] sm:$0xff]
    %v2529 = vld [vmem:[%s2465 + $0x17c] sm:$0xf]
    %v2550 = vunpack.c.l.b16 %v2379
    %v2551 = vunpack.c.h.b16 %v2379
    %v2552 = vunpack.c.l.b16 %v2380
    %v2553 = vunpack.c.h.b16 %v2380
    %v2554 = vunpack.c.l.b16 %v2381
    %v2555 = vunpack.c.h.b16 %v2381
    %v2556 = vunpack.c.l.b16 %v2382
    %v2557 = vunpack.c.h.b16 %v2382
    %v2558 = vunpack.c.l.b16 %v2383
    %v2559 = vunpack.c.h.b16 %v2383
    %v2560 = vunpack.c.l.b16 %v2384
    %v2561 = vunpack.c.h.b16 %v2384
    %v2562 = vunpack.c.l.b16 %v2385
    %v2563 = vunpack.c.h.b16 %v2385
    %v2564 = vunpack.c.l.b16 %v2386
    %v2565 = vunpack.c.h.b16 %v2386
    %v2566 = vunpack.c.l.b16 %v2387
    %v2567 = vunpack.c.h.b16 %v2387
    %v2568 = vunpack.c.l.b16 %v2388
    %v2569 = vunpack.c.h.b16 %v2388
    %v2570 = vunpack.c.l.b16 %v2389
    %v2571 = vunpack.c.h.b16 %v2389
    %v2572 = vunpack.c.l.b16 %v2390
    %v2573 = vunpack.c.h.b16 %v2390
    %v2574 = vunpack.c.l.b16 %v2391
    %v2575 = vunpack.c.h.b16 %v2391
    %v2576 = vunpack.c.l.b16 %v2392
    %v2577 = vunpack.c.h.b16 %v2392
    %v2578 = vunpack.c.l.b16 %v2393
    %v2579 = vunpack.c.h.b16 %v2393
    %v2580 = vunpack.c.l.b16 %v2394
    %v2581 = vunpack.c.h.b16 %v2394
    %v2582 = vunpack.c.l.b16 %v2395
    %v2583 = vunpack.c.h.b16 %v2395
    %v2584 = vunpack.c.l.b16 %v2396
    %v2585 = vunpack.c.h.b16 %v2396
    %v2586 = vunpack.c.l.b16 %v2397
    %v2587 = vunpack.c.h.b16 %v2397
    %v2588 = vunpack.c.l.b16 %v2398
    %v2589 = vunpack.c.h.b16 %v2398
    %v2590 = vpack.c.b16 %v2552, %v2550
    %v2591 = vpack.c.b16 %v2553, %v2551
    %v2592 = vpack.c.b16 %v2556, %v2554
    %v2593 = vpack.c.b16 %v2557, %v2555
    %v2594 = vpack.c.b16 %v2560, %v2558
    %v2595 = vpack.c.b16 %v2561, %v2559
    %v2596 = vpack.c.b16 %v2564, %v2562
    %v2597 = vpack.c.b16 %v2565, %v2563
    %v2598 = vpack.c.b16 %v2568, %v2566
    %v2599 = vpack.c.b16 %v2569, %v2567
    %v2600 = vpack.c.b16 %v2572, %v2570
    %v2601 = vpack.c.b16 %v2573, %v2571
    %v2602 = vpack.c.b16 %v2576, %v2574
    %v2603 = vpack.c.b16 %v2577, %v2575
    %v2604 = vpack.c.b16 %v2580, %v2578
    %v2605 = vpack.c.b16 %v2581, %v2579
    %v2606 = vpack.c.b16 %v2584, %v2582
    %v2607 = vpack.c.b16 %v2585, %v2583
    %v2608 = vpack.c.b16 %v2588, %v2586
    %v2609 = vpack.c.b16 %v2589, %v2587
    %v2694 = vunpack.c.l.b16 %v2466
    %v2695 = vunpack.c.h.b16 %v2466
    %v2696 = vunpack.c.l.b16 %v2467
    %v2697 = vunpack.c.l.b16 %v2468
    %v2698 = vunpack.c.h.b16 %v2468
    %v2699 = vunpack.c.l.b16 %v2469
    %v2700 = vunpack.c.l.b16 %v2470
    %v2701 = vunpack.c.h.b16 %v2470
    %v2702 = vunpack.c.l.b16 %v2471
    %v2703 = vunpack.c.l.b16 %v2472
    %v2704 = vunpack.c.h.b16 %v2472
    %v2705 = vunpack.c.l.b16 %v2473
    %v2706 = vunpack.c.l.b16 %v2474
    %v2707 = vunpack.c.h.b16 %v2474
    %v2708 = vunpack.c.l.b16 %v2475
    %v2709 = vunpack.c.l.b16 %v2476
    %v2710 = vunpack.c.h.b16 %v2476
    %v2711 = vunpack.c.l.b16 %v2477
    %v2712 = vunpack.c.l.b16 %v2478
    %v2713 = vunpack.c.h.b16 %v2478
    %v2714 = vunpack.c.l.b16 %v2479
    %v2715 = vunpack.c.l.b16 %v2480
    %v2716 = vunpack.c.h.b16 %v2480
    %v2717 = vunpack.c.l.b16 %v2481
    %v2718 = vunpack.c.l.b16 %v2482
    %v2719 = vunpack.c.h.b16 %v2482
    %v2720 = vunpack.c.l.b16 %v2483
    %v2721 = vunpack.c.l.b16 %v2484
    %v2722 = vunpack.c.h.b16 %v2484
    %v2723 = vunpack.c.l.b16 %v2485
    %v2724 = vunpack.c.l.b16 %v2486
    %v2725 = vunpack.c.h.b16 %v2486
    %v2726 = vunpack.c.l.b16 %v2487
    %v2727 = vunpack.c.l.b16 %v2488
    %v2728 = vunpack.c.h.b16 %v2488
    %v2729 = vunpack.c.l.b16 %v2489
    %v2730 = vunpack.c.l.b16 %v2490
    %v2731 = vunpack.c.h.b16 %v2490
    %v2732 = vunpack.c.l.b16 %v2491
    %v2733 = vunpack.c.l.b16 %v2492
    %v2734 = vunpack.c.h.b16 %v2492
    %v2735 = vunpack.c.l.b16 %v2493
    %v2736 = vunpack.c.l.b16 %v2494
    %v2737 = vunpack.c.h.b16 %v2494
    %v2738 = vunpack.c.l.b16 %v2495
    %v2739 = vunpack.c.l.b16 %v2496
    %v2740 = vunpack.c.h.b16 %v2496
    %v2741 = vunpack.c.l.b16 %v2497
    %v2742 = vunpack.c.l.b16 %v2498
    %v2743 = vunpack.c.h.b16 %v2498
    %v2744 = vunpack.c.l.b16 %v2499
    %v2745 = vunpack.c.l.b16 %v2500
    %v2746 = vunpack.c.h.b16 %v2500
    %v2747 = vunpack.c.l.b16 %v2501
    %v2748 = vunpack.c.l.b16 %v2502
    %v2749 = vunpack.c.h.b16 %v2502
    %v2750 = vunpack.c.l.b16 %v2503
    %v2751 = vunpack.c.l.b16 %v2504
    %v2752 = vunpack.c.h.b16 %v2504
    %v2753 = vunpack.c.l.b16 %v2505
    %v2754 = vunpack.c.l.b16 %v2506
    %v2755 = vunpack.c.h.b16 %v2506
    %v2756 = vunpack.c.l.b16 %v2507
    %v2757 = vunpack.c.l.b16 %v2508
    %v2758 = vunpack.c.h.b16 %v2508
    %v2759 = vunpack.c.l.b16 %v2509
    %v2760 = vunpack.c.l.b16 %v2510
    %v2761 = vunpack.c.h.b16 %v2510
    %v2762 = vunpack.c.l.b16 %v2511
    %v2763 = vunpack.c.l.b16 %v2512
    %v2764 = vunpack.c.h.b16 %v2512
    %v2765 = vunpack.c.l.b16 %v2513
    %v2766 = vunpack.c.l.b16 %v2514
    %v2767 = vunpack.c.h.b16 %v2514
    %v2768 = vunpack.c.l.b16 %v2515
    %v2769 = vunpack.c.l.b16 %v2516
    %v2770 = vunpack.c.h.b16 %v2516
    %v2771 = vunpack.c.l.b16 %v2517
    %v2772 = vunpack.c.l.b16 %v2518
    %v2773 = vunpack.c.h.b16 %v2518
    %v2774 = vunpack.c.l.b16 %v2519
    %v2775 = vunpack.c.l.b16 %v2520
    %v2776 = vunpack.c.h.b16 %v2520
    %v2777 = vunpack.c.l.b16 %v2521
    %v2778 = vunpack.c.l.b16 %v2522
    %v2779 = vunpack.c.h.b16 %v2522
    %v2780 = vunpack.c.l.b16 %v2523
    %v2781 = vunpack.c.l.b16 %v2524
    %v2782 = vunpack.c.h.b16 %v2524
    %v2783 = vunpack.c.l.b16 %v2525
    %v2784 = vunpack.c.l.b16 %v2526
    %v2785 = vunpack.c.h.b16 %v2526
    %v2786 = vunpack.c.l.b16 %v2527
    %v2787 = vunpack.c.l.b16 %v2528
    %v2788 = vunpack.c.h.b16 %v2528
    %v2789 = vunpack.c.l.b16 %v2529
    %v2790 = vpack.c.b16 %v2697, %v2694
    %v2791 = vpack.c.b16 %v2698, %v2695
    %v2792 = vpack.c.b16 %v2699, %v2696
    %v2793 = vpack.c.b16 %v2703, %v2700
    %v2794 = vpack.c.b16 %v2704, %v2701
    %v2795 = vpack.c.b16 %v2705, %v2702
    %v2796 = vpack.c.b16 %v2709, %v2706
    %v2797 = vpack.c.b16 %v2710, %v2707
    %v2798 = vpack.c.b16 %v2711, %v2708
    %v2799 = vpack.c.b16 %v2715, %v2712
    %v2800 = vpack.c.b16 %v2716, %v2713
    %v2801 = vpack.c.b16 %v2717, %v2714
    %v2802 = vpack.c.b16 %v2721, %v2718
    %v2803 = vpack.c.b16 %v2722, %v2719
    %v2804 = vpack.c.b16 %v2723, %v2720
    %v2805 = vpack.c.b16 %v2727, %v2724
    %v2806 = vpack.c.b16 %v2728, %v2725
    %v2807 = vpack.c.b16 %v2729, %v2726
    %v2808 = vpack.c.b16 %v2733, %v2730
    %v2809 = vpack.c.b16 %v2734, %v2731
    %v2810 = vpack.c.b16 %v2735, %v2732
    %v2811 = vpack.c.b16 %v2739, %v2736
    %v2812 = vpack.c.b16 %v2740, %v2737
    %v2813 = vpack.c.b16 %v2741, %v2738
    %v2814 = vpack.c.b16 %v2745, %v2742
    %v2815 = vpack.c.b16 %v2746, %v2743
    %v2816 = vpack.c.b16 %v2747, %v2744
    %v2817 = vpack.c.b16 %v2751, %v2748
    %v2818 = vpack.c.b16 %v2752, %v2749
    %v2819 = vpack.c.b16 %v2753, %v2750
    %v2820 = vpack.c.b16 %v2757, %v2754
    %v2821 = vpack.c.b16 %v2758, %v2755
    %v2822 = vpack.c.b16 %v2759, %v2756
    %v2823 = vpack.c.b16 %v2763, %v2760
    %v2824 = vpack.c.b16 %v2764, %v2761
    %v2825 = vpack.c.b16 %v2765, %v2762
    %v2826 = vpack.c.b16 %v2769, %v2766
    %v2827 = vpack.c.b16 %v2770, %v2767
    %v2828 = vpack.c.b16 %v2771, %v2768
    %v2829 = vpack.c.b16 %v2775, %v2772
    %v2830 = vpack.c.b16 %v2776, %v2773
    %v2831 = vpack.c.b16 %v2777, %v2774
    %v2832 = vpack.c.b16 %v2781, %v2778
    %v2833 = vpack.c.b16 %v2782, %v2779
    %v2834 = vpack.c.b16 %v2783, %v2780
    %v2835 = vpack.c.b16 %v2787, %v2784
    %v2836 = vpack.c.b16 %v2788, %v2785
    %v2837 = vpack.c.b16 %v2789, %v2786
    %2886 = vmatpush.bf16.msra.mxu0 %v2811
    %2887 = vmatpush.bf16.msra.mxu0 %v2808
    %2888 = vmatpush.bf16.msra.mxu0 %v2805
    %2889 = vmatpush.bf16.msra.mxu0 %v2802
    %2890 = vmatpush.bf16.msra.mxu0 %v2799
    %2891 = vmatpush.bf16.msra.mxu0 %v2796
    %2892 = vmatpush.bf16.msra.mxu0 %v2793
    %2893 = vmatpush.bf16.msra.mxu0 %v2790
    %2894 = vmatmul.bf16.gmra.mxu0 %v2590
    %v2895 = vpop.f32.mrf.mxu0
    %v2896 = vadd.f32 0.0, %v2895
    %v2897 = vpop.f32.mrf.mxu0
    %v2898 = vadd.f32 0.0, %v2897
    %2899 = vmatmul.bf16.gmra.mxu0 %v2592
    %v2900 = vpop.f32.mrf.mxu0
    %v2901 = vadd.f32 0.0, %v2900
    %v2902 = vpop.f32.mrf.mxu0
    %v2903 = vadd.f32 0.0, %v2902
    %2904 = vmatmul.bf16.gmra.mxu0 %v2594
    %v2905 = vpop.f32.mrf.mxu0
    %v2906 = vadd.f32 0.0, %v2905
    %v2907 = vpop.f32.mrf.mxu0
    %v2908 = vadd.f32 0.0, %v2907
    %2909 = vmatmul.bf16.gmra.mxu0 %v2596
    %v2910 = vpop.f32.mrf.mxu0
    %v2911 = vadd.f32 0.0, %v2910
    %v2912 = vpop.f32.mrf.mxu0
    %v2913 = vadd.f32 0.0, %v2912
    %2914 = vmatmul.bf16.gmra.mxu0 %v2598
    %v2915 = vpop.f32.mrf.mxu0
    %v2916 = vadd.f32 0.0, %v2915
    %v2917 = vpop.f32.mrf.mxu0
    %v2918 = vadd.f32 0.0, %v2917
    %2919 = vmatmul.bf16.gmra.mxu0 %v2600
    %v2920 = vpop.f32.mrf.mxu0
    %v2921 = vadd.f32 0.0, %v2920
    %v2922 = vpop.f32.mrf.mxu0
    %v2923 = vadd.f32 0.0, %v2922
    %2924 = vmatmul.bf16.gmra.mxu0 %v2602
    %v2925 = vpop.f32.mrf.mxu0
    %v2926 = vadd.f32 0.0, %v2925
    %v2927 = vpop.f32.mrf.mxu0
    %v2928 = vadd.f32 0.0, %v2927
    %2929 = vmatmul.bf16.gmra.mxu0 %v2604
    %v2930 = vpop.f32.mrf.mxu0
    %v2931 = vadd.f32 0.0, %v2930
    %v2932 = vpop.f32.mrf.mxu0
    %v2933 = vadd.f32 0.0, %v2932
    %2934 = vmatmul.bf16.gmra.mxu0 %v2606
    %v2935 = vpop.f32.mrf.mxu0
    %v2936 = vadd.f32 0.0, %v2935
    %v2937 = vpop.f32.mrf.mxu0
    %v2938 = vadd.f32 0.0, %v2937
    %2939 = vmatmul.bf16.gmra.mxu0 %v2608
    %v2940 = vpop.f32.mrf.mxu0
    %v2941 = vadd.f32 0.0, %v2940
    %v2942 = vpop.f32.mrf.mxu0
    %v2943 = vadd.f32 0.0, %v2942
    %2944 = vdwg.mxu0
    %2945 = vmatpush.bf16.msra.mxu0 %v2835
    %2946 = vmatpush.bf16.msra.mxu0 %v2832
    %2947 = vmatpush.bf16.msra.mxu0 %v2829
    %2948 = vmatpush.bf16.msra.mxu0 %v2826
    %2949 = vmatpush.bf16.msra.mxu0 %v2823
    %2950 = vmatpush.bf16.msra.mxu0 %v2820
    %2951 = vmatpush.bf16.msra.mxu0 %v2817
    %2952 = vmatpush.bf16.msra.mxu0 %v2814
    %2953 = vmatmul.bf16.gmra.mxu0 %v2591
    %v2954 = vpop.f32.mrf.mxu0
    %v2955 = vadd.f32 %v2896, %v2954
    %v2956 = vpop.f32.mrf.mxu0
    %v2957 = vadd.f32 %v2898, %v2956
    %2958 = vmatmul.bf16.gmra.mxu0 %v2593
    %v2959 = vpop.f32.mrf.mxu0
    %v2960 = vadd.f32 %v2901, %v2959
    %v2961 = vpop.f32.mrf.mxu0
    %v2962 = vadd.f32 %v2903, %v2961
    %2963 = vmatmul.bf16.gmra.mxu0 %v2595
    %v2964 = vpop.f32.mrf.mxu0
    %v2965 = vadd.f32 %v2906, %v2964
    %v2966 = vpop.f32.mrf.mxu0
    %v2967 = vadd.f32 %v2908, %v2966
    %2968 = vmatmul.bf16.gmra.mxu0 %v2597
    %v2969 = vpop.f32.mrf.mxu0
    %v2970 = vadd.f32 %v2911, %v2969
    %v2971 = vpop.f32.mrf.mxu0
    %v2972 = vadd.f32 %v2913, %v2971
    %2973 = vmatmul.bf16.gmra.mxu0 %v2599
    %v2974 = vpop.f32.mrf.mxu0
    %v2975 = vadd.f32 %v2916, %v2974
    %v2976 = vpop.f32.mrf.mxu0
    %v2977 = vadd.f32 %v2918, %v2976
    %2978 = vmatmul.bf16.gmra.mxu0 %v2601
    %v2979 = vpop.f32.mrf.mxu0
    %v2980 = vadd.f32 %v2921, %v2979
    %v2981 = vpop.f32.mrf.mxu0
    %v2982 = vadd.f32 %v2923, %v2981
    %2983 = vmatmul.bf16.gmra.mxu0 %v2603
    %v2984 = vpop.f32.mrf.mxu0
    %v2985 = vadd.f32 %v2926, %v2984
    %v2986 = vpop.f32.mrf.mxu0
    %v2987 = vadd.f32 %v2928, %v2986
    %2988 = vmatmul.bf16.gmra.mxu0 %v2605
    %v2989 = vpop.f32.mrf.mxu0
    %v2990 = vadd.f32 %v2931, %v2989
    %v2991 = vpop.f32.mrf.mxu0
    %v2992 = vadd.f32 %v2933, %v2991
    %2993 = vmatmul.bf16.gmra.mxu0 %v2607
    %v2994 = vpop.f32.mrf.mxu0
    %v2995 = vadd.f32 %v2936, %v2994
    %v2996 = vpop.f32.mrf.mxu0
    %v2997 = vadd.f32 %v2938, %v2996
    %2998 = vmatmul.bf16.gmra.mxu0 %v2609
    %v2999 = vpop.f32.mrf.mxu0
    %v3000 = vadd.f32 %v2941, %v2999
    %v3001 = vpop.f32.mrf.mxu0
    %v3002 = vadd.f32 %v2943, %v3001
    %3003 = vdwg.mxu0
    %3004 = vmatpush.bf16.msra.mxu0 %v2812
    %3005 = vmatpush.bf16.msra.mxu0 %v2809
    %3006 = vmatpush.bf16.msra.mxu0 %v2806
    %3007 = vmatpush.bf16.msra.mxu0 %v2803
    %3008 = vmatpush.bf16.msra.mxu0 %v2800
    %3009 = vmatpush.bf16.msra.mxu0 %v2797
    %3010 = vmatpush.bf16.msra.mxu0 %v2794
    %3011 = vmatpush.bf16.msra.mxu0 %v2791
    %3012 = vmatmul.bf16.gmra.mxu0 %v2590
    %v3013 = vpop.f32.mrf.mxu0
    %v3014 = vadd.f32 0.0, %v3013
    %v3015 = vpop.f32.mrf.mxu0
    %v3016 = vadd.f32 0.0, %v3015
    %3017 = vmatmul.bf16.gmra.mxu0 %v2592
    %v3018 = vpop.f32.mrf.mxu0
    %v3019 = vadd.f32 0.0, %v3018
    %v3020 = vpop.f32.mrf.mxu0
    %v3021 = vadd.f32 0.0, %v3020
    %3022 = vmatmul.bf16.gmra.mxu0 %v2594
    %v3023 = vpop.f32.mrf.mxu0
    %v3024 = vadd.f32 0.0, %v3023
    %v3025 = vpop.f32.mrf.mxu0
    %v3026 = vadd.f32 0.0, %v3025
    %3027 = vmatmul.bf16.gmra.mxu0 %v2596
    %v3028 = vpop.f32.mrf.mxu0
    %v3029 = vadd.f32 0.0, %v3028
    %v3030 = vpop.f32.mrf.mxu0
    %v3031 = vadd.f32 0.0, %v3030
    %3032 = vmatmul.bf16.gmra.mxu0 %v2598
    %v3033 = vpop.f32.mrf.mxu0
    %v3034 = vadd.f32 0.0, %v3033
    %v3035 = vpop.f32.mrf.mxu0
    %v3036 = vadd.f32 0.0, %v3035
    %3037 = vmatmul.bf16.gmra.mxu0 %v2600
    %v3038 = vpop.f32.mrf.mxu0
    %v3039 = vadd.f32 0.0, %v3038
    %v3040 = vpop.f32.mrf.mxu0
    %v3041 = vadd.f32 0.0, %v3040
    %3042 = vmatmul.bf16.gmra.mxu0 %v2602
    %v3043 = vpop.f32.mrf.mxu0
    %v3044 = vadd.f32 0.0, %v3043
    %v3045 = vpop.f32.mrf.mxu0
    %v3046 = vadd.f32 0.0, %v3045
    %3047 = vmatmul.bf16.gmra.mxu0 %v2604
    %v3048 = vpop.f32.mrf.mxu0
    %v3049 = vadd.f32 0.0, %v3048
    %v3050 = vpop.f32.mrf.mxu0
    %v3051 = vadd.f32 0.0, %v3050
    %3052 = vmatmul.bf16.gmra.mxu0 %v2606
    %v3053 = vpop.f32.mrf.mxu0
    %v3054 = vadd.f32 0.0, %v3053
    %v3055 = vpop.f32.mrf.mxu0
    %v3056 = vadd.f32 0.0, %v3055
    %3057 = vmatmul.bf16.gmra.mxu0 %v2608
    %v3058 = vpop.f32.mrf.mxu0
    %v3059 = vadd.f32 0.0, %v3058
    %v3060 = vpop.f32.mrf.mxu0
    %v3061 = vadd.f32 0.0, %v3060
    %3062 = vdwg.mxu0
    %3063 = vmatpush.bf16.msra.mxu0 %v2836
    %3064 = vmatpush.bf16.msra.mxu0 %v2833
    %3065 = vmatpush.bf16.msra.mxu0 %v2830
    %3066 = vmatpush.bf16.msra.mxu0 %v2827
    %3067 = vmatpush.bf16.msra.mxu0 %v2824
    %3068 = vmatpush.bf16.msra.mxu0 %v2821
    %3069 = vmatpush.bf16.msra.mxu0 %v2818
    %3070 = vmatpush.bf16.msra.mxu0 %v2815
    %3071 = vmatmul.bf16.gmra.mxu0 %v2591
    %v3072 = vpop.f32.mrf.mxu0
    %v3073 = vadd.f32 %v3014, %v3072
    %v3074 = vpop.f32.mrf.mxu0
    %v3075 = vadd.f32 %v3016, %v3074
    %3076 = vmatmul.bf16.gmra.mxu0 %v2593
    %v3077 = vpop.f32.mrf.mxu0
    %v3078 = vadd.f32 %v3019, %v3077
    %v3079 = vpop.f32.mrf.mxu0
    %v3080 = vadd.f32 %v3021, %v3079
    %3081 = vmatmul.bf16.gmra.mxu0 %v2595
    %v3082 = vpop.f32.mrf.mxu0
    %v3083 = vadd.f32 %v3024, %v3082
    %v3084 = vpop.f32.mrf.mxu0
    %v3085 = vadd.f32 %v3026, %v3084
    %3086 = vmatmul.bf16.gmra.mxu0 %v2597
    %v3087 = vpop.f32.mrf.mxu0
    %v3088 = vadd.f32 %v3029, %v3087
    %v3089 = vpop.f32.mrf.mxu0
    %v3090 = vadd.f32 %v3031, %v3089
    %3091 = vmatmul.bf16.gmra.mxu0 %v2599
    %v3092 = vpop.f32.mrf.mxu0
    %v3093 = vadd.f32 %v3034, %v3092
    %v3094 = vpop.f32.mrf.mxu0
    %v3095 = vadd.f32 %v3036, %v3094
    %3096 = vmatmul.bf16.gmra.mxu0 %v2601
    %v3097 = vpop.f32.mrf.mxu0
    %v3098 = vadd.f32 %v3039, %v3097
    %v3099 = vpop.f32.mrf.mxu0
    %v3100 = vadd.f32 %v3041, %v3099
    %3101 = vmatmul.bf16.gmra.mxu0 %v2603
    %v3102 = vpop.f32.mrf.mxu0
    %v3103 = vadd.f32 %v3044, %v3102
    %v3104 = vpop.f32.mrf.mxu0
    %v3105 = vadd.f32 %v3046, %v3104
    %3106 = vmatmul.bf16.gmra.mxu0 %v2605
    %v3107 = vpop.f32.mrf.mxu0
    %v3108 = vadd.f32 %v3049, %v3107
    %v3109 = vpop.f32.mrf.mxu0
    %v3110 = vadd.f32 %v3051, %v3109
    %3111 = vmatmul.bf16.gmra.mxu0 %v2607
    %v3112 = vpop.f32.mrf.mxu0
    %v3113 = vadd.f32 %v3054, %v3112
    %v3114 = vpop.f32.mrf.mxu0
    %v3115 = vadd.f32 %v3056, %v3114
    %3116 = vmatmul.bf16.gmra.mxu0 %v2609
    %v3117 = vpop.f32.mrf.mxu0
    %v3118 = vadd.f32 %v3059, %v3117
    %v3119 = vpop.f32.mrf.mxu0
    %v3120 = vadd.f32 %v3061, %v3119
    %3121 = vdwg.mxu0
    %3122 = vmatpush.bf16.msra.mxu0 %v2813
    %3123 = vmatpush.bf16.msra.mxu0 %v2810
    %3124 = vmatpush.bf16.msra.mxu0 %v2807
    %3125 = vmatpush.bf16.msra.mxu0 %v2804
    %3126 = vmatpush.bf16.msra.mxu0 %v2801
    %3127 = vmatpush.bf16.msra.mxu0 %v2798
    %3128 = vmatpush.bf16.msra.mxu0 %v2795
    %3129 = vmatpush.bf16.msra.mxu0 %v2792
    %3130 = vmatmul.bf16.gmra.mxu0 %v2590
    %v3131 = vpop.f32.mrf.mxu0
    %v3132 = vadd.f32 0.0, %v3131
    %v3133 = vpop.f32.mrf.mxu0
    %v3134 = vadd.f32 0.0, %v3133
    %3135 = vmatmul.bf16.gmra.mxu0 %v2592
    %v3136 = vpop.f32.mrf.mxu0
    %v3137 = vadd.f32 0.0, %v3136
    %v3138 = vpop.f32.mrf.mxu0
    %v3139 = vadd.f32 0.0, %v3138
    %3140 = vmatmul.bf16.gmra.mxu0 %v2594
    %v3141 = vpop.f32.mrf.mxu0
    %v3142 = vadd.f32 0.0, %v3141
    %v3143 = vpop.f32.mrf.mxu0
    %v3144 = vadd.f32 0.0, %v3143
    %3145 = vmatmul.bf16.gmra.mxu0 %v2596
    %v3146 = vpop.f32.mrf.mxu0
    %v3147 = vadd.f32 0.0, %v3146
    %v3148 = vpop.f32.mrf.mxu0
    %v3149 = vadd.f32 0.0, %v3148
    %3150 = vmatmul.bf16.gmra.mxu0 %v2598
    %v3151 = vpop.f32.mrf.mxu0
    %v3152 = vadd.f32 0.0, %v3151
    %v3153 = vpop.f32.mrf.mxu0
    %v3154 = vadd.f32 0.0, %v3153
    %3155 = vmatmul.bf16.gmra.mxu0 %v2600
    %v3156 = vpop.f32.mrf.mxu0
    %v3157 = vadd.f32 0.0, %v3156
    %v3158 = vpop.f32.mrf.mxu0
    %v3159 = vadd.f32 0.0, %v3158
    %3160 = vmatmul.bf16.gmra.mxu0 %v2602
    %v3161 = vpop.f32.mrf.mxu0
    %v3162 = vadd.f32 0.0, %v3161
    %v3163 = vpop.f32.mrf.mxu0
    %v3164 = vadd.f32 0.0, %v3163
    %3165 = vmatmul.bf16.gmra.mxu0 %v2604
    %v3166 = vpop.f32.mrf.mxu0
    %v3167 = vadd.f32 0.0, %v3166
    %v3168 = vpop.f32.mrf.mxu0
    %v3169 = vadd.f32 0.0, %v3168
    %3170 = vmatmul.bf16.gmra.mxu0 %v2606
    %v3171 = vpop.f32.mrf.mxu0
    %v3172 = vadd.f32 0.0, %v3171
    %v3173 = vpop.f32.mrf.mxu0
    %v3174 = vadd.f32 0.0, %v3173
    %3175 = vmatmul.bf16.gmra.mxu0 %v2608
    %v3176 = vpop.f32.mrf.mxu0
    %v3177 = vadd.f32 0.0, %v3176
    %v3178 = vpop.f32.mrf.mxu0
    %v3179 = vadd.f32 0.0, %v3178
    %3180 = vdwg.mxu0
    %3181 = vmatpush.bf16.msra.mxu0 %v2837
    %3182 = vmatpush.bf16.msra.mxu0 %v2834
    %3183 = vmatpush.bf16.msra.mxu0 %v2831
    %3184 = vmatpush.bf16.msra.mxu0 %v2828
    %3185 = vmatpush.bf16.msra.mxu0 %v2825
    %3186 = vmatpush.bf16.msra.mxu0 %v2822
    %3187 = vmatpush.bf16.msra.mxu0 %v2819
    %3188 = vmatpush.bf16.msra.mxu0 %v2816
    %3189 = vmatmul.bf16.gmra.mxu0 %v2591
    %v3190 = vpop.f32.mrf.mxu0
    %v3191 = vadd.f32 %v3132, %v3190
    %v3192 = vpop.f32.mrf.mxu0
    %v3193 = vadd.f32 %v3134, %v3192
    %3194 = vmatmul.bf16.gmra.mxu0 %v2593
    %v3195 = vpop.f32.mrf.mxu0
    %v3196 = vadd.f32 %v3137, %v3195
    %v3197 = vpop.f32.mrf.mxu0
    %v3198 = vadd.f32 %v3139, %v3197
    %3199 = vmatmul.bf16.gmra.mxu0 %v2595
    %v3200 = vpop.f32.mrf.mxu0
    %v3201 = vadd.f32 %v3142, %v3200
    %v3202 = vpop.f32.mrf.mxu0
    %v3203 = vadd.f32 %v3144, %v3202
    %3204 = vmatmul.bf16.gmra.mxu0 %v2597
    %v3205 = vpop.f32.mrf.mxu0
    %v3206 = vadd.f32 %v3147, %v3205
    %v3207 = vpop.f32.mrf.mxu0
    %v3208 = vadd.f32 %v3149, %v3207
    %3209 = vmatmul.bf16.gmra.mxu0 %v2599
    %v3210 = vpop.f32.mrf.mxu0
    %v3211 = vadd.f32 %v3152, %v3210
    %v3212 = vpop.f32.mrf.mxu0
    %v3213 = vadd.f32 %v3154, %v3212
    %3214 = vmatmul.bf16.gmra.mxu0 %v2601
    %v3215 = vpop.f32.mrf.mxu0
    %v3216 = vadd.f32 %v3157, %v3215
    %v3217 = vpop.f32.mrf.mxu0
    %v3218 = vadd.f32 %v3159, %v3217
    %3219 = vmatmul.bf16.gmra.mxu0 %v2603
    %v3220 = vpop.f32.mrf.mxu0
    %v3221 = vadd.f32 %v3162, %v3220
    %v3222 = vpop.f32.mrf.mxu0
    %v3223 = vadd.f32 %v3164, %v3222
    %3224 = vmatmul.bf16.gmra.mxu0 %v2605
    %v3225 = vpop.f32.mrf.mxu0
    %v3226 = vadd.f32 %v3167, %v3225
    %v3227 = vpop.f32.mrf.mxu0
    %v3228 = vadd.f32 %v3169, %v3227
    %3229 = vmatmul.bf16.gmra.mxu0 %v2607
    %v3230 = vpop.f32.mrf.mxu0
    %v3231 = vadd.f32 %v3172, %v3230
    %v3232 = vpop.f32.mrf.mxu0
    %v3233 = vadd.f32 %v3174, %v3232
    %3234 = vmatmul.bf16.gmra.mxu0 %v2609
    %v3235 = vpop.f32.mrf.mxu0
    %v3236 = vadd.f32 %v3177, %v3235
    %v3237 = vpop.f32.mrf.mxu0
    %v3238 = vadd.f32 %v3179, %v3237
    %3239 = vdwg.mxu0
    %v3242 = vunpack.c.l.b16 %v2377
    %v3243 = vunpack.c.h.b16 %v2377
    %v3244 = vunpack.c.l.b16 %v2378
    %v3245 = vunpack.c.h.b16 %v2378
    %v3246 = vpack.c.b16 %v3244, %v3242
    %v3247 = vpack.c.b16 %v3245, %v3243
    %v3314 = vunpack.c.l.b16 %v2401
    %v3315 = vunpack.c.h.b16 %v2401
    %v3316 = vunpack.c.l.b16 %v2402
    %v3317 = vunpack.c.l.b16 %v2403
    %v3318 = vunpack.c.h.b16 %v2403
    %v3319 = vunpack.c.l.b16 %v2404
    %v3320 = vunpack.c.l.b16 %v2405
    %v3321 = vunpack.c.h.b16 %v2405
    %v3322 = vunpack.c.l.b16 %v2406
    %v3323 = vunpack.c.l.b16 %v2407
    %v3324 = vunpack.c.h.b16 %v2407
    %v3325 = vunpack.c.l.b16 %v2408
    %v3326 = vunpack.c.l.b16 %v2409
    %v3327 = vunpack.c.h.b16 %v2409
    %v3328 = vunpack.c.l.b16 %v2410
    %v3329 = vunpack.c.l.b16 %v2411
    %v3330 = vunpack.c.h.b16 %v2411
    %v3331 = vunpack.c.l.b16 %v2412
    %v3332 = vunpack.c.l.b16 %v2413
    %v3333 = vunpack.c.h.b16 %v2413
    %v3334 = vunpack.c.l.b16 %v2414
    %v3335 = vunpack.c.l.b16 %v2415
    %v3336 = vunpack.c.h.b16 %v2415
    %v3337 = vunpack.c.l.b16 %v2416
    %v3338 = vunpack.c.l.b16 %v2417
    %v3339 = vunpack.c.h.b16 %v2417
    %v3340 = vunpack.c.l.b16 %v2418
    %v3341 = vunpack.c.l.b16 %v2419
    %v3342 = vunpack.c.h.b16 %v2419
    %v3343 = vunpack.c.l.b16 %v2420
    %v3344 = vunpack.c.l.b16 %v2421
    %v3345 = vunpack.c.h.b16 %v2421
    %v3346 = vunpack.c.l.b16 %v2422
    %v3347 = vunpack.c.l.b16 %v2423
    %v3348 = vunpack.c.h.b16 %v2423
    %v3349 = vunpack.c.l.b16 %v2424
    %v3350 = vunpack.c.l.b16 %v2425
    %v3351 = vunpack.c.h.b16 %v2425
    %v3352 = vunpack.c.l.b16 %v2426
    %v3353 = vunpack.c.l.b16 %v2427
    %v3354 = vunpack.c.h.b16 %v2427
    %v3355 = vunpack.c.l.b16 %v2428
    %v3356 = vunpack.c.l.b16 %v2429
    %v3357 = vunpack.c.h.b16 %v2429
    %v3358 = vunpack.c.l.b16 %v2430
    %v3359 = vunpack.c.l.b16 %v2431
    %v3360 = vunpack.c.h.b16 %v2431
    %v3361 = vunpack.c.l.b16 %v2432
    %v3362 = vunpack.c.l.b16 %v2433
    %v3363 = vunpack.c.h.b16 %v2433
    %v3364 = vunpack.c.l.b16 %v2434
    %v3365 = vunpack.c.l.b16 %v2435
    %v3366 = vunpack.c.h.b16 %v2435
    %v3367 = vunpack.c.l.b16 %v2436
    %v3368 = vunpack.c.l.b16 %v2437
    %v3369 = vunpack.c.h.b16 %v2437
    %v3370 = vunpack.c.l.b16 %v2438
    %v3371 = vunpack.c.l.b16 %v2439
    %v3372 = vunpack.c.h.b16 %v2439
    %v3373 = vunpack.c.l.b16 %v2440
    %v3374 = vunpack.c.l.b16 %v2441
    %v3375 = vunpack.c.h.b16 %v2441
    %v3376 = vunpack.c.l.b16 %v2442
    %v3377 = vunpack.c.l.b16 %v2443
    %v3378 = vunpack.c.h.b16 %v2443
    %v3379 = vunpack.c.l.b16 %v2444
    %v3380 = vunpack.c.l.b16 %v2445
    %v3381 = vunpack.c.h.b16 %v2445
    %v3382 = vunpack.c.l.b16 %v2446
    %v3383 = vunpack.c.l.b16 %v2447
    %v3384 = vunpack.c.h.b16 %v2447
    %v3385 = vunpack.c.l.b16 %v2448
    %v3386 = vunpack.c.l.b16 %v2449
    %v3387 = vunpack.c.h.b16 %v2449
    %v3388 = vunpack.c.l.b16 %v2450
    %v3389 = vunpack.c.l.b16 %v2451
    %v3390 = vunpack.c.h.b16 %v2451
    %v3391 = vunpack.c.l.b16 %v2452
    %v3392 = vunpack.c.l.b16 %v2453
    %v3393 = vunpack.c.h.b16 %v2453
    %v3394 = vunpack.c.l.b16 %v2454
    %v3395 = vunpack.c.l.b16 %v2455
    %v3396 = vunpack.c.h.b16 %v2455
    %v3397 = vunpack.c.l.b16 %v2456
    %v3398 = vunpack.c.l.b16 %v2457
    %v3399 = vunpack.c.h.b16 %v2457
    %v3400 = vunpack.c.l.b16 %v2458
    %v3401 = vunpack.c.l.b16 %v2459
    %v3402 = vunpack.c.h.b16 %v2459
    %v3403 = vunpack.c.l.b16 %v2460
    %v3404 = vunpack.c.l.b16 %v2461
    %v3405 = vunpack.c.h.b16 %v2461
    %v3406 = vunpack.c.l.b16 %v2462
    %v3407 = vunpack.c.l.b16 %v2463
    %v3408 = vunpack.c.h.b16 %v2463
    %v3409 = vunpack.c.l.b16 %v2464
    %v3410 = vpack.c.b16 %v3317, %v3314
    %v3411 = vpack.c.b16 %v3318, %v3315
    %v3412 = vpack.c.b16 %v3319, %v3316
    %v3413 = vpack.c.b16 %v3323, %v3320
    %v3414 = vpack.c.b16 %v3324, %v3321
    %v3415 = vpack.c.b16 %v3325, %v3322
    %v3416 = vpack.c.b16 %v3329, %v3326
    %v3417 = vpack.c.b16 %v3330, %v3327
    %v3418 = vpack.c.b16 %v3331, %v3328
    %v3419 = vpack.c.b16 %v3335, %v3332
    %v3420 = vpack.c.b16 %v3336, %v3333
    %v3421 = vpack.c.b16 %v3337, %v3334
    %v3422 = vpack.c.b16 %v3341, %v3338
    %v3423 = vpack.c.b16 %v3342, %v3339
    %v3424 = vpack.c.b16 %v3343, %v3340
    %v3425 = vpack.c.b16 %v3347, %v3344
    %v3426 = vpack.c.b16 %v3348, %v3345
    %v3427 = vpack.c.b16 %v3349, %v3346
    %v3428 = vpack.c.b16 %v3353, %v3350
    %v3429 = vpack.c.b16 %v3354, %v3351
    %v3430 = vpack.c.b16 %v3355, %v3352
    %v3431 = vpack.c.b16 %v3359, %v3356
    %v3432 = vpack.c.b16 %v3360, %v3357
    %v3433 = vpack.c.b16 %v3361, %v3358
    %v3434 = vpack.c.b16 %v3365, %v3362
    %v3435 = vpack.c.b16 %v3366, %v3363
    %v3436 = vpack.c.b16 %v3367, %v3364
    %v3437 = vpack.c.b16 %v3371, %v3368
    %v3438 = vpack.c.b16 %v3372, %v3369
    %v3439 = vpack.c.b16 %v3373, %v3370
    %v3440 = vpack.c.b16 %v3377, %v3374
    %v3441 = vpack.c.b16 %v3378, %v3375
    %v3442 = vpack.c.b16 %v3379, %v3376
    %v3443 = vpack.c.b16 %v3383, %v3380
    %v3444 = vpack.c.b16 %v3384, %v3381
    %v3445 = vpack.c.b16 %v3385, %v3382
    %v3446 = vpack.c.b16 %v3389, %v3386
    %v3447 = vpack.c.b16 %v3390, %v3387
    %v3448 = vpack.c.b16 %v3391, %v3388
    %v3449 = vpack.c.b16 %v3395, %v3392
    %v3450 = vpack.c.b16 %v3396, %v3393
    %v3451 = vpack.c.b16 %v3397, %v3394
    %v3452 = vpack.c.b16 %v3401, %v3398
    %v3453 = vpack.c.b16 %v3402, %v3399
    %v3454 = vpack.c.b16 %v3403, %v3400
    %v3455 = vpack.c.b16 %v3407, %v3404
    %v3456 = vpack.c.b16 %v3408, %v3405
    %v3457 = vpack.c.b16 %v3409, %v3406
    %3506 = vmatpush.bf16.msra.mxu0 %v3431
    %3507 = vmatpush.bf16.msra.mxu0 %v3428
    %3508 = vmatpush.bf16.msra.mxu0 %v3425
    %3509 = vmatpush.bf16.msra.mxu0 %v3422
    %3510 = vmatpush.bf16.msra.mxu0 %v3419
    %3511 = vmatpush.bf16.msra.mxu0 %v3416
    %3512 = vmatpush.bf16.msra.mxu0 %v3413
    %3513 = vmatpush.bf16.msra.mxu0 %v3410
    %3514 = vmatmul.bf16.gmra.mxu0 %v3246
    %v3515 = vpop.f32.mrf.mxu0
    %v3516 = vadd.f32 %v2955, %v3515
    %v3517 = vpop.f32.mrf.mxu0
    %v3518 = vadd.f32 %v2957, %v3517
    %3519 = vmatmul.bf16.gmra.mxu0 %v2590
    %v3520 = vpop.f32.mrf.mxu0
    %v3521 = vadd.f32 %v2960, %v3520
    %v3522 = vpop.f32.mrf.mxu0
    %v3523 = vadd.f32 %v2962, %v3522
    %3524 = vmatmul.bf16.gmra.mxu0 %v2592
    %v3525 = vpop.f32.mrf.mxu0
    %v3526 = vadd.f32 %v2965, %v3525
    %v3527 = vpop.f32.mrf.mxu0
    %v3528 = vadd.f32 %v2967, %v3527
    %3529 = vmatmul.bf16.gmra.mxu0 %v2594
    %v3530 = vpop.f32.mrf.mxu0
    %v3531 = vadd.f32 %v2970, %v3530
    %v3532 = vpop.f32.mrf.mxu0
    %v3533 = vadd.f32 %v2972, %v3532
    %3534 = vmatmul.bf16.gmra.mxu0 %v2596
    %v3535 = vpop.f32.mrf.mxu0
    %v3536 = vadd.f32 %v2975, %v3535
    %v3537 = vpop.f32.mrf.mxu0
    %v3538 = vadd.f32 %v2977, %v3537
    %3539 = vmatmul.bf16.gmra.mxu0 %v2598
    %v3540 = vpop.f32.mrf.mxu0
    %v3541 = vadd.f32 %v2980, %v3540
    %v3542 = vpop.f32.mrf.mxu0
    %v3543 = vadd.f32 %v2982, %v3542
    %3544 = vmatmul.bf16.gmra.mxu0 %v2600
    %v3545 = vpop.f32.mrf.mxu0
    %v3546 = vadd.f32 %v2985, %v3545
    %v3547 = vpop.f32.mrf.mxu0
    %v3548 = vadd.f32 %v2987, %v3547
    %3549 = vmatmul.bf16.gmra.mxu0 %v2602
    %v3550 = vpop.f32.mrf.mxu0
    %v3551 = vadd.f32 %v2990, %v3550
    %v3552 = vpop.f32.mrf.mxu0
    %v3553 = vadd.f32 %v2992, %v3552
    %3554 = vmatmul.bf16.gmra.mxu0 %v2604
    %v3555 = vpop.f32.mrf.mxu0
    %v3556 = vadd.f32 %v2995, %v3555
    %v3557 = vpop.f32.mrf.mxu0
    %v3558 = vadd.f32 %v2997, %v3557
    %3559 = vmatmul.bf16.gmra.mxu0 %v2606
    %v3560 = vpop.f32.mrf.mxu0
    %v3561 = vadd.f32 %v3000, %v3560
    %v3562 = vpop.f32.mrf.mxu0
    %v3563 = vadd.f32 %v3002, %v3562
    %3564 = vdwg.mxu0
    %3565 = vmatpush.bf16.msra.mxu0 %v3455
    %3566 = vmatpush.bf16.msra.mxu0 %v3452
    %3567 = vmatpush.bf16.msra.mxu0 %v3449
    %3568 = vmatpush.bf16.msra.mxu0 %v3446
    %3569 = vmatpush.bf16.msra.mxu0 %v3443
    %3570 = vmatpush.bf16.msra.mxu0 %v3440
    %3571 = vmatpush.bf16.msra.mxu0 %v3437
    %3572 = vmatpush.bf16.msra.mxu0 %v3434
    %3573 = vmatmul.bf16.gmra.mxu0 %v3247
    %v3574 = vpop.f32.mrf.mxu0
    %v3575 = vadd.f32 %v3516, %v3574
    %v3576 = vpop.f32.mrf.mxu0
    %v3577 = vadd.f32 %v3518, %v3576
    %3578 = vmatmul.bf16.gmra.mxu0 %v2591
    %v3579 = vpop.f32.mrf.mxu0
    %v3580 = vadd.f32 %v3521, %v3579
    %v3581 = vpop.f32.mrf.mxu0
    %v3582 = vadd.f32 %v3523, %v3581
    %3583 = vmatmul.bf16.gmra.mxu0 %v2593
    %v3584 = vpop.f32.mrf.mxu0
    %v3585 = vadd.f32 %v3526, %v3584
    %v3586 = vpop.f32.mrf.mxu0
    %v3587 = vadd.f32 %v3528, %v3586
    %3588 = vmatmul.bf16.gmra.mxu0 %v2595
    %v3589 = vpop.f32.mrf.mxu0
    %v3590 = vadd.f32 %v3531, %v3589
    %v3591 = vpop.f32.mrf.mxu0
    %v3592 = vadd.f32 %v3533, %v3591
    %3593 = vmatmul.bf16.gmra.mxu0 %v2597
    %v3594 = vpop.f32.mrf.mxu0
    %v3595 = vadd.f32 %v3536, %v3594
    %v3596 = vpop.f32.mrf.mxu0
    %v3597 = vadd.f32 %v3538, %v3596
    %3598 = vmatmul.bf16.gmra.mxu0 %v2599
    %v3599 = vpop.f32.mrf.mxu0
    %v3600 = vadd.f32 %v3541, %v3599
    %v3601 = vpop.f32.mrf.mxu0
    %v3602 = vadd.f32 %v3543, %v3601
    %3603 = vmatmul.bf16.gmra.mxu0 %v2601
    %v3604 = vpop.f32.mrf.mxu0
    %v3605 = vadd.f32 %v3546, %v3604
    %v3606 = vpop.f32.mrf.mxu0
    %v3607 = vadd.f32 %v3548, %v3606
    %3608 = vmatmul.bf16.gmra.mxu0 %v2603
    %v3609 = vpop.f32.mrf.mxu0
    %v3610 = vadd.f32 %v3551, %v3609
    %v3611 = vpop.f32.mrf.mxu0
    %v3612 = vadd.f32 %v3553, %v3611
    %3613 = vmatmul.bf16.gmra.mxu0 %v2605
    %v3614 = vpop.f32.mrf.mxu0
    %v3615 = vadd.f32 %v3556, %v3614
    %v3616 = vpop.f32.mrf.mxu0
    %v3617 = vadd.f32 %v3558, %v3616
    %3618 = vmatmul.bf16.gmra.mxu0 %v2607
    %v3619 = vpop.f32.mrf.mxu0
    %v3620 = vadd.f32 %v3561, %v3619
    %v3621 = vpop.f32.mrf.mxu0
    %v3622 = vadd.f32 %v3563, %v3621
    %3623 = vdwg.mxu0
    %3624 = vmatpush.bf16.msra.mxu0 %v3432
    %3625 = vmatpush.bf16.msra.mxu0 %v3429
    %3626 = vmatpush.bf16.msra.mxu0 %v3426
    %3627 = vmatpush.bf16.msra.mxu0 %v3423
    %3628 = vmatpush.bf16.msra.mxu0 %v3420
    %3629 = vmatpush.bf16.msra.mxu0 %v3417
    %3630 = vmatpush.bf16.msra.mxu0 %v3414
    %3631 = vmatpush.bf16.msra.mxu0 %v3411
    %3632 = vmatmul.bf16.gmra.mxu0 %v3246
    %v3633 = vpop.f32.mrf.mxu0
    %v3634 = vadd.f32 %v3073, %v3633
    %v3635 = vpop.f32.mrf.mxu0
    %v3636 = vadd.f32 %v3075, %v3635
    %3637 = vmatmul.bf16.gmra.mxu0 %v2590
    %v3638 = vpop.f32.mrf.mxu0
    %v3639 = vadd.f32 %v3078, %v3638
    %v3640 = vpop.f32.mrf.mxu0
    %v3641 = vadd.f32 %v3080, %v3640
    %3642 = vmatmul.bf16.gmra.mxu0 %v2592
    %v3643 = vpop.f32.mrf.mxu0
    %v3644 = vadd.f32 %v3083, %v3643
    %v3645 = vpop.f32.mrf.mxu0
    %v3646 = vadd.f32 %v3085, %v3645
    %3647 = vmatmul.bf16.gmra.mxu0 %v2594
    %v3648 = vpop.f32.mrf.mxu0
    %v3649 = vadd.f32 %v3088, %v3648
    %v3650 = vpop.f32.mrf.mxu0
    %v3651 = vadd.f32 %v3090, %v3650
    %3652 = vmatmul.bf16.gmra.mxu0 %v2596
    %v3653 = vpop.f32.mrf.mxu0
    %v3654 = vadd.f32 %v3093, %v3653
    %v3655 = vpop.f32.mrf.mxu0
    %v3656 = vadd.f32 %v3095, %v3655
    %3657 = vmatmul.bf16.gmra.mxu0 %v2598
    %v3658 = vpop.f32.mrf.mxu0
    %v3659 = vadd.f32 %v3098, %v3658
    %v3660 = vpop.f32.mrf.mxu0
    %v3661 = vadd.f32 %v3100, %v3660
    %3662 = vmatmul.bf16.gmra.mxu0 %v2600
    %v3663 = vpop.f32.mrf.mxu0
    %v3664 = vadd.f32 %v3103, %v3663
    %v3665 = vpop.f32.mrf.mxu0
    %v3666 = vadd.f32 %v3105, %v3665
    %3667 = vmatmul.bf16.gmra.mxu0 %v2602
    %v3668 = vpop.f32.mrf.mxu0
    %v3669 = vadd.f32 %v3108, %v3668
    %v3670 = vpop.f32.mrf.mxu0
    %v3671 = vadd.f32 %v3110, %v3670
    %3672 = vmatmul.bf16.gmra.mxu0 %v2604
    %v3673 = vpop.f32.mrf.mxu0
    %v3674 = vadd.f32 %v3113, %v3673
    %v3675 = vpop.f32.mrf.mxu0
    %v3676 = vadd.f32 %v3115, %v3675
    %3677 = vmatmul.bf16.gmra.mxu0 %v2606
    %v3678 = vpop.f32.mrf.mxu0
    %v3679 = vadd.f32 %v3118, %v3678
    %v3680 = vpop.f32.mrf.mxu0
    %v3681 = vadd.f32 %v3120, %v3680
    %3682 = vdwg.mxu0
    %3683 = vmatpush.bf16.msra.mxu0 %v3456
    %3684 = vmatpush.bf16.msra.mxu0 %v3453
    %3685 = vmatpush.bf16.msra.mxu0 %v3450
    %3686 = vmatpush.bf16.msra.mxu0 %v3447
    %3687 = vmatpush.bf16.msra.mxu0 %v3444
    %3688 = vmatpush.bf16.msra.mxu0 %v3441
    %3689 = vmatpush.bf16.msra.mxu0 %v3438
    %3690 = vmatpush.bf16.msra.mxu0 %v3435
    %3691 = vmatmul.bf16.gmra.mxu0 %v3247
    %v3692 = vpop.f32.mrf.mxu0
    %v3693 = vadd.f32 %v3634, %v3692
    %v3694 = vpop.f32.mrf.mxu0
    %v3695 = vadd.f32 %v3636, %v3694
    %3696 = vmatmul.bf16.gmra.mxu0 %v2591
    %v3697 = vpop.f32.mrf.mxu0
    %v3698 = vadd.f32 %v3639, %v3697
    %v3699 = vpop.f32.mrf.mxu0
    %v3700 = vadd.f32 %v3641, %v3699
    %3701 = vmatmul.bf16.gmra.mxu0 %v2593
    %v3702 = vpop.f32.mrf.mxu0
    %v3703 = vadd.f32 %v3644, %v3702
    %v3704 = vpop.f32.mrf.mxu0
    %v3705 = vadd.f32 %v3646, %v3704
    %3706 = vmatmul.bf16.gmra.mxu0 %v2595
    %v3707 = vpop.f32.mrf.mxu0
    %v3708 = vadd.f32 %v3649, %v3707
    %v3709 = vpop.f32.mrf.mxu0
    %v3710 = vadd.f32 %v3651, %v3709
    %3711 = vmatmul.bf16.gmra.mxu0 %v2597
    %v3712 = vpop.f32.mrf.mxu0
    %v3713 = vadd.f32 %v3654, %v3712
    %v3714 = vpop.f32.mrf.mxu0
    %v3715 = vadd.f32 %v3656, %v3714
    %3716 = vmatmul.bf16.gmra.mxu0 %v2599
    %v3717 = vpop.f32.mrf.mxu0
    %v3718 = vadd.f32 %v3659, %v3717
    %v3719 = vpop.f32.mrf.mxu0
    %v3720 = vadd.f32 %v3661, %v3719
    %3721 = vmatmul.bf16.gmra.mxu0 %v2601
    %v3722 = vpop.f32.mrf.mxu0
    %v3723 = vadd.f32 %v3664, %v3722
    %v3724 = vpop.f32.mrf.mxu0
    %v3725 = vadd.f32 %v3666, %v3724
    %3726 = vmatmul.bf16.gmra.mxu0 %v2603
    %v3727 = vpop.f32.mrf.mxu0
    %v3728 = vadd.f32 %v3669, %v3727
    %v3729 = vpop.f32.mrf.mxu0
    %v3730 = vadd.f32 %v3671, %v3729
    %3731 = vmatmul.bf16.gmra.mxu0 %v2605
    %v3732 = vpop.f32.mrf.mxu0
    %v3733 = vadd.f32 %v3674, %v3732
    %v3734 = vpop.f32.mrf.mxu0
    %v3735 = vadd.f32 %v3676, %v3734
    %3736 = vmatmul.bf16.gmra.mxu0 %v2607
    %v3737 = vpop.f32.mrf.mxu0
    %v3738 = vadd.f32 %v3679, %v3737
    %v3739 = vpop.f32.mrf.mxu0
    %v3740 = vadd.f32 %v3681, %v3739
    %3741 = vdwg.mxu0
    %3742 = vmatpush.bf16.msra.mxu0 %v3433
    %3743 = vmatpush.bf16.msra.mxu0 %v3430
    %3744 = vmatpush.bf16.msra.mxu0 %v3427
    %3745 = vmatpush.bf16.msra.mxu0 %v3424
    %3746 = vmatpush.bf16.msra.mxu0 %v3421
    %3747 = vmatpush.bf16.msra.mxu0 %v3418
    %3748 = vmatpush.bf16.msra.mxu0 %v3415
    %3749 = vmatpush.bf16.msra.mxu0 %v3412
    %3750 = vmatmul.bf16.gmra.mxu0 %v3246
    %v3751 = vpop.f32.mrf.mxu0
    %v3752 = vadd.f32 %v3191, %v3751
    %v3753 = vpop.f32.mrf.mxu0
    %v3754 = vadd.f32 %v3193, %v3753
    %3755 = vmatmul.bf16.gmra.mxu0 %v2590
    %v3756 = vpop.f32.mrf.mxu0
    %v3757 = vadd.f32 %v3196, %v3756
    %v3758 = vpop.f32.mrf.mxu0
    %v3759 = vadd.f32 %v3198, %v3758
    %3760 = vmatmul.bf16.gmra.mxu0 %v2592
    %v3761 = vpop.f32.mrf.mxu0
    %v3762 = vadd.f32 %v3201, %v3761
    %v3763 = vpop.f32.mrf.mxu0
    %v3764 = vadd.f32 %v3203, %v3763
    %3765 = vmatmul.bf16.gmra.mxu0 %v2594
    %v3766 = vpop.f32.mrf.mxu0
    %v3767 = vadd.f32 %v3206, %v3766
    %v3768 = vpop.f32.mrf.mxu0
    %v3769 = vadd.f32 %v3208, %v3768
    %3770 = vmatmul.bf16.gmra.mxu0 %v2596
    %v3771 = vpop.f32.mrf.mxu0
    %v3772 = vadd.f32 %v3211, %v3771
    %v3773 = vpop.f32.mrf.mxu0
    %v3774 = vadd.f32 %v3213, %v3773
    %3775 = vmatmul.bf16.gmra.mxu0 %v2598
    %v3776 = vpop.f32.mrf.mxu0
    %v3777 = vadd.f32 %v3216, %v3776
    %v3778 = vpop.f32.mrf.mxu0
    %v3779 = vadd.f32 %v3218, %v3778
    %3780 = vmatmul.bf16.gmra.mxu0 %v2600
    %v3781 = vpop.f32.mrf.mxu0
    %v3782 = vadd.f32 %v3221, %v3781
    %v3783 = vpop.f32.mrf.mxu0
    %v3784 = vadd.f32 %v3223, %v3783
    %3785 = vmatmul.bf16.gmra.mxu0 %v2602
    %v3786 = vpop.f32.mrf.mxu0
    %v3787 = vadd.f32 %v3226, %v3786
    %v3788 = vpop.f32.mrf.mxu0
    %v3789 = vadd.f32 %v3228, %v3788
    %3790 = vmatmul.bf16.gmra.mxu0 %v2604
    %v3791 = vpop.f32.mrf.mxu0
    %v3792 = vadd.f32 %v3231, %v3791
    %v3793 = vpop.f32.mrf.mxu0
    %v3794 = vadd.f32 %v3233, %v3793
    %3795 = vmatmul.bf16.gmra.mxu0 %v2606
    %v3796 = vpop.f32.mrf.mxu0
    %v3797 = vadd.f32 %v3236, %v3796
    %v3798 = vpop.f32.mrf.mxu0
    %v3799 = vadd.f32 %v3238, %v3798
    %3800 = vdwg.mxu0
    %3801 = vmatpush.bf16.msra.mxu0 %v3457
    %3802 = vmatpush.bf16.msra.mxu0 %v3454
    %3803 = vmatpush.bf16.msra.mxu0 %v3451
    %3804 = vmatpush.bf16.msra.mxu0 %v3448
    %3805 = vmatpush.bf16.msra.mxu0 %v3445
    %3806 = vmatpush.bf16.msra.mxu0 %v3442
    %3807 = vmatpush.bf16.msra.mxu0 %v3439
    %3808 = vmatpush.bf16.msra.mxu0 %v3436
    %3809 = vmatmul.bf16.gmra.mxu0 %v3247
    %v3810 = vpop.f32.mrf.mxu0
    %v3811 = vadd.f32 %v3752, %v3810
    %v3812 = vpop.f32.mrf.mxu0
    %v3813 = vadd.f32 %v3754, %v3812
    %3814 = vmatmul.bf16.gmra.mxu0 %v2591
    %v3815 = vpop.f32.mrf.mxu0
    %v3816 = vadd.f32 %v3757, %v3815
    %v3817 = vpop.f32.mrf.mxu0
    %v3818 = vadd.f32 %v3759, %v3817
    %3819 = vmatmul.bf16.gmra.mxu0 %v2593
    %v3820 = vpop.f32.mrf.mxu0
    %v3821 = vadd.f32 %v3762, %v3820
    %v3822 = vpop.f32.mrf.mxu0
    %v3823 = vadd.f32 %v3764, %v3822
    %3824 = vmatmul.bf16.gmra.mxu0 %v2595
    %v3825 = vpop.f32.mrf.mxu0
    %v3826 = vadd.f32 %v3767, %v3825
    %v3827 = vpop.f32.mrf.mxu0
    %v3828 = vadd.f32 %v3769, %v3827
    %3829 = vmatmul.bf16.gmra.mxu0 %v2597
    %v3830 = vpop.f32.mrf.mxu0
    %v3831 = vadd.f32 %v3772, %v3830
    %v3832 = vpop.f32.mrf.mxu0
    %v3833 = vadd.f32 %v3774, %v3832
    %3834 = vmatmul.bf16.gmra.mxu0 %v2599
    %v3835 = vpop.f32.mrf.mxu0
    %v3836 = vadd.f32 %v3777, %v3835
    %v3837 = vpop.f32.mrf.mxu0
    %v3838 = vadd.f32 %v3779, %v3837
    %3839 = vmatmul.bf16.gmra.mxu0 %v2601
    %v3840 = vpop.f32.mrf.mxu0
    %v3841 = vadd.f32 %v3782, %v3840
    %v3842 = vpop.f32.mrf.mxu0
    %v3843 = vadd.f32 %v3784, %v3842
    %3844 = vmatmul.bf16.gmra.mxu0 %v2603
    %v3845 = vpop.f32.mrf.mxu0
    %v3846 = vadd.f32 %v3787, %v3845
    %v3847 = vpop.f32.mrf.mxu0
    %v3848 = vadd.f32 %v3789, %v3847
    %3849 = vmatmul.bf16.gmra.mxu0 %v2605
    %v3850 = vpop.f32.mrf.mxu0
    %v3851 = vadd.f32 %v3792, %v3850
    %v3852 = vpop.f32.mrf.mxu0
    %v3853 = vadd.f32 %v3794, %v3852
    %3854 = vmatmul.bf16.gmra.mxu0 %v2607
    %v3855 = vpop.f32.mrf.mxu0
    %v3856 = vadd.f32 %v3797, %v3855
    %v3857 = vpop.f32.mrf.mxu0
    %v3858 = vadd.f32 %v3799, %v3857
    %3859 = vdwg.mxu0
    %s3860 = scalar_lea.vmem %s4, 768
    %v3861 = vld [vmem:[%s3860] sm:$0xff]
    %v3862 = vld [vmem:[%s3860 + $0x8] sm:$0xf]
    %v3863 = vld [vmem:[%s3860 + $0xc] sm:$0xff]
    %v3864 = vld [vmem:[%s3860 + $0x14] sm:$0xf]
    %v3865 = vld [vmem:[%s3860 + $0x18] sm:$0xff]
    %v3866 = vld [vmem:[%s3860 + $0x20] sm:$0xf]
    %v3867 = vld [vmem:[%s3860 + $0x24] sm:$0xff]
    %v3868 = vld [vmem:[%s3860 + $0x2c] sm:$0xf]
    %v3869 = vld [vmem:[%s3860 + $0x30] sm:$0xff]
    %v3870 = vld [vmem:[%s3860 + $0x38] sm:$0xf]
    %v3871 = vld [vmem:[%s3860 + $0x3c] sm:$0xff]
    %v3872 = vld [vmem:[%s3860 + $0x44] sm:$0xf]
    %v3873 = vld [vmem:[%s3860 + $0x48] sm:$0xff]
    %v3874 = vld [vmem:[%s3860 + $0x50] sm:$0xf]
    %v3875 = vld [vmem:[%s3860 + $0x54] sm:$0xff]
    %v3876 = vld [vmem:[%s3860 + $0x5c] sm:$0xf]
    %v3877 = vld [vmem:[%s3860 + $0x60] sm:$0xff]
    %v3878 = vld [vmem:[%s3860 + $0x68] sm:$0xf]
    %v3879 = vld [vmem:[%s3860 + $0x6c] sm:$0xff]
    %v3880 = vld [vmem:[%s3860 + $0x74] sm:$0xf]
    %v3881 = vld [vmem:[%s3860 + $0x78] sm:$0xff]
    %v3882 = vld [vmem:[%s3860 + $0x80] sm:$0xf]
    %v3883 = vld [vmem:[%s3860 + $0x84] sm:$0xff]
    %v3884 = vld [vmem:[%s3860 + $0x8c] sm:$0xf]
    %v3885 = vld [vmem:[%s3860 + $0x90] sm:$0xff]
    %v3886 = vld [vmem:[%s3860 + $0x98] sm:$0xf]
    %v3887 = vld [vmem:[%s3860 + $0x9c] sm:$0xff]
    %v3888 = vld [vmem:[%s3860 + $0xa4] sm:$0xf]
    %v3889 = vld [vmem:[%s3860 + $0xa8] sm:$0xff]
    %v3890 = vld [vmem:[%s3860 + $0xb0] sm:$0xf]
    %v3891 = vld [vmem:[%s3860 + $0xb4] sm:$0xff]
    %v3892 = vld [vmem:[%s3860 + $0xbc] sm:$0xf]
    %v3893 = vld [vmem:[%s3860 + $0xc0] sm:$0xff]
    %v3894 = vld [vmem:[%s3860 + $0xc8] sm:$0xf]
    %v3895 = vld [vmem:[%s3860 + $0xcc] sm:$0xff]
    %v3896 = vld [vmem:[%s3860 + $0xd4] sm:$0xf]
    %v3897 = vld [vmem:[%s3860 + $0xd8] sm:$0xff]
    %v3898 = vld [vmem:[%s3860 + $0xe0] sm:$0xf]
    %v3899 = vld [vmem:[%s3860 + $0xe4] sm:$0xff]
    %v3900 = vld [vmem:[%s3860 + $0xec] sm:$0xf]
    %v3901 = vld [vmem:[%s3860 + $0xf0] sm:$0xff]
    %v3902 = vld [vmem:[%s3860 + $0xf8] sm:$0xf]
    %v3903 = vld [vmem:[%s3860 + $0xfc] sm:$0xff]
    %v3904 = vld [vmem:[%s3860 + $0x104] sm:$0xf]
    %v3905 = vld [vmem:[%s3860 + $0x108] sm:$0xff]
    %v3906 = vld [vmem:[%s3860 + $0x110] sm:$0xf]
    %v3907 = vld [vmem:[%s3860 + $0x114] sm:$0xff]
    %v3908 = vld [vmem:[%s3860 + $0x11c] sm:$0xf]
    %v3909 = vld [vmem:[%s3860 + $0x120] sm:$0xff]
    %v3910 = vld [vmem:[%s3860 + $0x128] sm:$0xf]
    %v3911 = vld [vmem:[%s3860 + $0x12c] sm:$0xff]
    %v3912 = vld [vmem:[%s3860 + $0x134] sm:$0xf]
    %v3913 = vld [vmem:[%s3860 + $0x138] sm:$0xff]
    %v3914 = vld [vmem:[%s3860 + $0x140] sm:$0xf]
    %v3915 = vld [vmem:[%s3860 + $0x144] sm:$0xff]
    %v3916 = vld [vmem:[%s3860 + $0x14c] sm:$0xf]
    %v3917 = vld [vmem:[%s3860 + $0x150] sm:$0xff]
    %v3918 = vld [vmem:[%s3860 + $0x158] sm:$0xf]
    %v3919 = vld [vmem:[%s3860 + $0x15c] sm:$0xff]
    %v3920 = vld [vmem:[%s3860 + $0x164] sm:$0xf]
    %v3921 = vld [vmem:[%s3860 + $0x168] sm:$0xff]
    %v3922 = vld [vmem:[%s3860 + $0x170] sm:$0xf]
    %v3923 = vld [vmem:[%s3860 + $0x174] sm:$0xff]
    %v3924 = vld [vmem:[%s3860 + $0x17c] sm:$0xf]
    %v3927 = vunpack.c.l.b16 %v2399
    %v3928 = vunpack.c.h.b16 %v2399
    %v3929 = vunpack.c.l.b16 %v2400
    %v3930 = vunpack.c.h.b16 %v2400
    %v3931 = vpack.c.b16 %v3929, %v3927
    %v3932 = vpack.c.b16 %v3930, %v3928
    %v3999 = vunpack.c.l.b16 %v3861
    %v4000 = vunpack.c.h.b16 %v3861
    %v4001 = vunpack.c.l.b16 %v3862
    %v4002 = vunpack.c.l.b16 %v3863
    %v4003 = vunpack.c.h.b16 %v3863
    %v4004 = vunpack.c.l.b16 %v3864
    %v4005 = vunpack.c.l.b16 %v3865
    %v4006 = vunpack.c.h.b16 %v3865
    %v4007 = vunpack.c.l.b16 %v3866
    %v4008 = vunpack.c.l.b16 %v3867
    %v4009 = vunpack.c.h.b16 %v3867
    %v4010 = vunpack.c.l.b16 %v3868
    %v4011 = vunpack.c.l.b16 %v3869
    %v4012 = vunpack.c.h.b16 %v3869
    %v4013 = vunpack.c.l.b16 %v3870
    %v4014 = vunpack.c.l.b16 %v3871
    %v4015 = vunpack.c.h.b16 %v3871
    %v4016 = vunpack.c.l.b16 %v3872
    %v4017 = vunpack.c.l.b16 %v3873
    %v4018 = vunpack.c.h.b16 %v3873
    %v4019 = vunpack.c.l.b16 %v3874
    %v4020 = vunpack.c.l.b16 %v3875
    %v4021 = vunpack.c.h.b16 %v3875
    %v4022 = vunpack.c.l.b16 %v3876
    %v4023 = vunpack.c.l.b16 %v3877
    %v4024 = vunpack.c.h.b16 %v3877
    %v4025 = vunpack.c.l.b16 %v3878
    %v4026 = vunpack.c.l.b16 %v3879
    %v4027 = vunpack.c.h.b16 %v3879
    %v4028 = vunpack.c.l.b16 %v3880
    %v4029 = vunpack.c.l.b16 %v3881
    %v4030 = vunpack.c.h.b16 %v3881
    %v4031 = vunpack.c.l.b16 %v3882
    %v4032 = vunpack.c.l.b16 %v3883
    %v4033 = vunpack.c.h.b16 %v3883
    %v4034 = vunpack.c.l.b16 %v3884
    %v4035 = vunpack.c.l.b16 %v3885
    %v4036 = vunpack.c.h.b16 %v3885
    %v4037 = vunpack.c.l.b16 %v3886
    %v4038 = vunpack.c.l.b16 %v3887
    %v4039 = vunpack.c.h.b16 %v3887
    %v4040 = vunpack.c.l.b16 %v3888
    %v4041 = vunpack.c.l.b16 %v3889
    %v4042 = vunpack.c.h.b16 %v3889
    %v4043 = vunpack.c.l.b16 %v3890
    %v4044 = vunpack.c.l.b16 %v3891
    %v4045 = vunpack.c.h.b16 %v3891
    %v4046 = vunpack.c.l.b16 %v3892
    %v4047 = vunpack.c.l.b16 %v3893
    %v4048 = vunpack.c.h.b16 %v3893
    %v4049 = vunpack.c.l.b16 %v3894
    %v4050 = vunpack.c.l.b16 %v3895
    %v4051 = vunpack.c.h.b16 %v3895
    %v4052 = vunpack.c.l.b16 %v3896
    %v4053 = vunpack.c.l.b16 %v3897
    %v4054 = vunpack.c.h.b16 %v3897
    %v4055 = vunpack.c.l.b16 %v3898
    %v4056 = vunpack.c.l.b16 %v3899
    %v4057 = vunpack.c.h.b16 %v3899
    %v4058 = vunpack.c.l.b16 %v3900
    %v4059 = vunpack.c.l.b16 %v3901
    %v4060 = vunpack.c.h.b16 %v3901
    %v4061 = vunpack.c.l.b16 %v3902
    %v4062 = vunpack.c.l.b16 %v3903
    %v4063 = vunpack.c.h.b16 %v3903
    %v4064 = vunpack.c.l.b16 %v3904
    %v4065 = vunpack.c.l.b16 %v3905
    %v4066 = vunpack.c.h.b16 %v3905
    %v4067 = vunpack.c.l.b16 %v3906
    %v4068 = vunpack.c.l.b16 %v3907
    %v4069 = vunpack.c.h.b16 %v3907
    %v4070 = vunpack.c.l.b16 %v3908
    %v4071 = vunpack.c.l.b16 %v3909
    %v4072 = vunpack.c.h.b16 %v3909
    %v4073 = vunpack.c.l.b16 %v3910
    %v4074 = vunpack.c.l.b16 %v3911
    %v4075 = vunpack.c.h.b16 %v3911
    %v4076 = vunpack.c.l.b16 %v3912
    %v4077 = vunpack.c.l.b16 %v3913
    %v4078 = vunpack.c.h.b16 %v3913
    %v4079 = vunpack.c.l.b16 %v3914
    %v4080 = vunpack.c.l.b16 %v3915
    %v4081 = vunpack.c.h.b16 %v3915
    %v4082 = vunpack.c.l.b16 %v3916
    %v4083 = vunpack.c.l.b16 %v3917
    %v4084 = vunpack.c.h.b16 %v3917
    %v4085 = vunpack.c.l.b16 %v3918
    %v4086 = vunpack.c.l.b16 %v3919
    %v4087 = vunpack.c.h.b16 %v3919
    %v4088 = vunpack.c.l.b16 %v3920
    %v4089 = vunpack.c.l.b16 %v3921
    %v4090 = vunpack.c.h.b16 %v3921
    %v4091 = vunpack.c.l.b16 %v3922
    %v4092 = vunpack.c.l.b16 %v3923
    %v4093 = vunpack.c.h.b16 %v3923
    %v4094 = vunpack.c.l.b16 %v3924
    %v4095 = vpack.c.b16 %v4002, %v3999
    %v4096 = vpack.c.b16 %v4003, %v4000
    %v4097 = vpack.c.b16 %v4004, %v4001
    %v4098 = vpack.c.b16 %v4008, %v4005
    %v4099 = vpack.c.b16 %v4009, %v4006
    %v4100 = vpack.c.b16 %v4010, %v4007
    %v4101 = vpack.c.b16 %v4014, %v4011
    %v4102 = vpack.c.b16 %v4015, %v4012
    %v4103 = vpack.c.b16 %v4016, %v4013
    %v4104 = vpack.c.b16 %v4020, %v4017
    %v4105 = vpack.c.b16 %v4021, %v4018
    %v4106 = vpack.c.b16 %v4022, %v4019
    %v4107 = vpack.c.b16 %v4026, %v4023
    %v4108 = vpack.c.b16 %v4027, %v4024
    %v4109 = vpack.c.b16 %v4028, %v4025
    %v4110 = vpack.c.b16 %v4032, %v4029
    %v4111 = vpack.c.b16 %v4033, %v4030
    %v4112 = vpack.c.b16 %v4034, %v4031
    %v4113 = vpack.c.b16 %v4038, %v4035
    %v4114 = vpack.c.b16 %v4039, %v4036
    %v4115 = vpack.c.b16 %v4040, %v4037
    %v4116 = vpack.c.b16 %v4044, %v4041
    %v4117 = vpack.c.b16 %v4045, %v4042
    %v4118 = vpack.c.b16 %v4046, %v4043
    %v4119 = vpack.c.b16 %v4050, %v4047
    %v4120 = vpack.c.b16 %v4051, %v4048
    %v4121 = vpack.c.b16 %v4052, %v4049
    %v4122 = vpack.c.b16 %v4056, %v4053
    %v4123 = vpack.c.b16 %v4057, %v4054
    %v4124 = vpack.c.b16 %v4058, %v4055
    %v4125 = vpack.c.b16 %v4062, %v4059
    %v4126 = vpack.c.b16 %v4063, %v4060
    %v4127 = vpack.c.b16 %v4064, %v4061
    %v4128 = vpack.c.b16 %v4068, %v4065
    %v4129 = vpack.c.b16 %v4069, %v4066
    %v4130 = vpack.c.b16 %v4070, %v4067
    %v4131 = vpack.c.b16 %v4074, %v4071
    %v4132 = vpack.c.b16 %v4075, %v4072
    %v4133 = vpack.c.b16 %v4076, %v4073
    %v4134 = vpack.c.b16 %v4080, %v4077
    %v4135 = vpack.c.b16 %v4081, %v4078
    %v4136 = vpack.c.b16 %v4082, %v4079
    %v4137 = vpack.c.b16 %v4086, %v4083
    %v4138 = vpack.c.b16 %v4087, %v4084
    %v4139 = vpack.c.b16 %v4088, %v4085
    %v4140 = vpack.c.b16 %v4092, %v4089
    %v4141 = vpack.c.b16 %v4093, %v4090
    %v4142 = vpack.c.b16 %v4094, %v4091
    %4191 = vmatpush.bf16.msra.mxu0 %v4116
    %4192 = vmatpush.bf16.msra.mxu0 %v4113
    %4193 = vmatpush.bf16.msra.mxu0 %v4110
    %4194 = vmatpush.bf16.msra.mxu0 %v4107
    %4195 = vmatpush.bf16.msra.mxu0 %v4104
    %4196 = vmatpush.bf16.msra.mxu0 %v4101
    %4197 = vmatpush.bf16.msra.mxu0 %v4098
    %4198 = vmatpush.bf16.msra.mxu0 %v4095
    %4199 = vmatmul.bf16.gmra.mxu0 %v2592
    %v4200 = vpop.f32.mrf.mxu0
    %v4201 = vadd.f32 0.0, %v4200
    %v4202 = vpop.f32.mrf.mxu0
    %v4203 = vadd.f32 0.0, %v4202
    %4204 = vmatmul.bf16.gmra.mxu0 %v2594
    %v4205 = vpop.f32.mrf.mxu0
    %v4206 = vadd.f32 0.0, %v4205
    %v4207 = vpop.f32.mrf.mxu0
    %v4208 = vadd.f32 0.0, %v4207
    %4209 = vmatmul.bf16.gmra.mxu0 %v2596
    %v4210 = vpop.f32.mrf.mxu0
    %v4211 = vadd.f32 0.0, %v4210
    %v4212 = vpop.f32.mrf.mxu0
    %v4213 = vadd.f32 0.0, %v4212
    %4214 = vmatmul.bf16.gmra.mxu0 %v2598
    %v4215 = vpop.f32.mrf.mxu0
    %v4216 = vadd.f32 0.0, %v4215
    %v4217 = vpop.f32.mrf.mxu0
    %v4218 = vadd.f32 0.0, %v4217
    %4219 = vmatmul.bf16.gmra.mxu0 %v2600
    %v4220 = vpop.f32.mrf.mxu0
    %v4221 = vadd.f32 0.0, %v4220
    %v4222 = vpop.f32.mrf.mxu0
    %v4223 = vadd.f32 0.0, %v4222
    %4224 = vmatmul.bf16.gmra.mxu0 %v2602
    %v4225 = vpop.f32.mrf.mxu0
    %v4226 = vadd.f32 0.0, %v4225
    %v4227 = vpop.f32.mrf.mxu0
    %v4228 = vadd.f32 0.0, %v4227
    %4229 = vmatmul.bf16.gmra.mxu0 %v2604
    %v4230 = vpop.f32.mrf.mxu0
    %v4231 = vadd.f32 0.0, %v4230
    %v4232 = vpop.f32.mrf.mxu0
    %v4233 = vadd.f32 0.0, %v4232
    %4234 = vmatmul.bf16.gmra.mxu0 %v2606
    %v4235 = vpop.f32.mrf.mxu0
    %v4236 = vadd.f32 0.0, %v4235
    %v4237 = vpop.f32.mrf.mxu0
    %v4238 = vadd.f32 0.0, %v4237
    %4239 = vmatmul.bf16.gmra.mxu0 %v2608
    %v4240 = vpop.f32.mrf.mxu0
    %v4241 = vadd.f32 0.0, %v4240
    %v4242 = vpop.f32.mrf.mxu0
    %v4243 = vadd.f32 0.0, %v4242
    %4244 = vmatmul.bf16.gmra.mxu0 %v3931
    %v4245 = vpop.f32.mrf.mxu0
    %v4246 = vadd.f32 0.0, %v4245
    %v4247 = vpop.f32.mrf.mxu0
    %v4248 = vadd.f32 0.0, %v4247
    %4249 = vdwg.mxu0
    %4250 = vmatpush.bf16.msra.mxu0 %v4140
    %4251 = vmatpush.bf16.msra.mxu0 %v4137
    %4252 = vmatpush.bf16.msra.mxu0 %v4134
    %4253 = vmatpush.bf16.msra.mxu0 %v4131
    %4254 = vmatpush.bf16.msra.mxu0 %v4128
    %4255 = vmatpush.bf16.msra.mxu0 %v4125
    %4256 = vmatpush.bf16.msra.mxu0 %v4122
    %4257 = vmatpush.bf16.msra.mxu0 %v4119
    %4258 = vmatmul.bf16.gmra.mxu0 %v2593
    %v4259 = vpop.f32.mrf.mxu0
    %v4260 = vadd.f32 %v4201, %v4259
    %v4261 = vpop.f32.mrf.mxu0
    %v4262 = vadd.f32 %v4203, %v4261
    %4263 = vmatmul.bf16.gmra.mxu0 %v2595
    %v4264 = vpop.f32.mrf.mxu0
    %v4265 = vadd.f32 %v4206, %v4264
    %v4266 = vpop.f32.mrf.mxu0
    %v4267 = vadd.f32 %v4208, %v4266
    %4268 = vmatmul.bf16.gmra.mxu0 %v2597
    %v4269 = vpop.f32.mrf.mxu0
    %v4270 = vadd.f32 %v4211, %v4269
    %v4271 = vpop.f32.mrf.mxu0
    %v4272 = vadd.f32 %v4213, %v4271
    %4273 = vmatmul.bf16.gmra.mxu0 %v2599
    %v4274 = vpop.f32.mrf.mxu0
    %v4275 = vadd.f32 %v4216, %v4274
    %v4276 = vpop.f32.mrf.mxu0
    %v4277 = vadd.f32 %v4218, %v4276
    %4278 = vmatmul.bf16.gmra.mxu0 %v2601
    %v4279 = vpop.f32.mrf.mxu0
    %v4280 = vadd.f32 %v4221, %v4279
    %v4281 = vpop.f32.mrf.mxu0
    %v4282 = vadd.f32 %v4223, %v4281
    %4283 = vmatmul.bf16.gmra.mxu0 %v2603
    %v4284 = vpop.f32.mrf.mxu0
    %v4285 = vadd.f32 %v4226, %v4284
    %v4286 = vpop.f32.mrf.mxu0
    %v4287 = vadd.f32 %v4228, %v4286
    %4288 = vmatmul.bf16.gmra.mxu0 %v2605
    %v4289 = vpop.f32.mrf.mxu0
    %v4290 = vadd.f32 %v4231, %v4289
    %v4291 = vpop.f32.mrf.mxu0
    %v4292 = vadd.f32 %v4233, %v4291
    %4293 = vmatmul.bf16.gmra.mxu0 %v2607
    %v4294 = vpop.f32.mrf.mxu0
    %v4295 = vadd.f32 %v4236, %v4294
    %v4296 = vpop.f32.mrf.mxu0
    %v4297 = vadd.f32 %v4238, %v4296
    %4298 = vmatmul.bf16.gmra.mxu0 %v2609
    %v4299 = vpop.f32.mrf.mxu0
    %v4300 = vadd.f32 %v4241, %v4299
    %v4301 = vpop.f32.mrf.mxu0
    %v4302 = vadd.f32 %v4243, %v4301
    %4303 = vmatmul.bf16.gmra.mxu0 %v3932
    %v4304 = vpop.f32.mrf.mxu0
    %v4305 = vadd.f32 %v4246, %v4304
    %v4306 = vpop.f32.mrf.mxu0
    %v4307 = vadd.f32 %v4248, %v4306
    %4308 = vdwg.mxu0
    %4309 = vmatpush.bf16.msra.mxu0 %v4117
    %4310 = vmatpush.bf16.msra.mxu0 %v4114
    %4311 = vmatpush.bf16.msra.mxu0 %v4111
    %4312 = vmatpush.bf16.msra.mxu0 %v4108
    %4313 = vmatpush.bf16.msra.mxu0 %v4105
    %4314 = vmatpush.bf16.msra.mxu0 %v4102
    %4315 = vmatpush.bf16.msra.mxu0 %v4099
    %4316 = vmatpush.bf16.msra.mxu0 %v4096
    %4317 = vmatmul.bf16.gmra.mxu0 %v2592
    %v4318 = vpop.f32.mrf.mxu0
    %v4319 = vadd.f32 0.0, %v4318
    %v4320 = vpop.f32.mrf.mxu0
    %v4321 = vadd.f32 0.0, %v4320
    %4322 = vmatmul.bf16.gmra.mxu0 %v2594
    %v4323 = vpop.f32.mrf.mxu0
    %v4324 = vadd.f32 0.0, %v4323
    %v4325 = vpop.f32.mrf.mxu0
    %v4326 = vadd.f32 0.0, %v4325
    %4327 = vmatmul.bf16.gmra.mxu0 %v2596
    %v4328 = vpop.f32.mrf.mxu0
    %v4329 = vadd.f32 0.0, %v4328
    %v4330 = vpop.f32.mrf.mxu0
    %v4331 = vadd.f32 0.0, %v4330
    %4332 = vmatmul.bf16.gmra.mxu0 %v2598
    %v4333 = vpop.f32.mrf.mxu0
    %v4334 = vadd.f32 0.0, %v4333
    %v4335 = vpop.f32.mrf.mxu0
    %v4336 = vadd.f32 0.0, %v4335
    %4337 = vmatmul.bf16.gmra.mxu0 %v2600
    %v4338 = vpop.f32.mrf.mxu0
    %v4339 = vadd.f32 0.0, %v4338
    %v4340 = vpop.f32.mrf.mxu0
    %v4341 = vadd.f32 0.0, %v4340
    %4342 = vmatmul.bf16.gmra.mxu0 %v2602
    %v4343 = vpop.f32.mrf.mxu0
    %v4344 = vadd.f32 0.0, %v4343
    %v4345 = vpop.f32.mrf.mxu0
    %v4346 = vadd.f32 0.0, %v4345
    %4347 = vmatmul.bf16.gmra.mxu0 %v2604
    %v4348 = vpop.f32.mrf.mxu0
    %v4349 = vadd.f32 0.0, %v4348
    %v4350 = vpop.f32.mrf.mxu0
    %v4351 = vadd.f32 0.0, %v4350
    %4352 = vmatmul.bf16.gmra.mxu0 %v2606
    %v4353 = vpop.f32.mrf.mxu0
    %v4354 = vadd.f32 0.0, %v4353
    %v4355 = vpop.f32.mrf.mxu0
    %v4356 = vadd.f32 0.0, %v4355
    %4357 = vmatmul.bf16.gmra.mxu0 %v2608
    %v4358 = vpop.f32.mrf.mxu0
    %v4359 = vadd.f32 0.0, %v4358
    %v4360 = vpop.f32.mrf.mxu0
    %v4361 = vadd.f32 0.0, %v4360
    %4362 = vmatmul.bf16.gmra.mxu0 %v3931
    %v4363 = vpop.f32.mrf.mxu0
    %v4364 = vadd.f32 0.0, %v4363
    %v4365 = vpop.f32.mrf.mxu0
    %v4366 = vadd.f32 0.0, %v4365
    %4367 = vdwg.mxu0
    %4368 = vmatpush.bf16.msra.mxu0 %v4141
    %4369 = vmatpush.bf16.msra.mxu0 %v4138
    %4370 = vmatpush.bf16.msra.mxu0 %v4135
    %4371 = vmatpush.bf16.msra.mxu0 %v4132
    %4372 = vmatpush.bf16.msra.mxu0 %v4129
    %4373 = vmatpush.bf16.msra.mxu0 %v4126
    %4374 = vmatpush.bf16.msra.mxu0 %v4123
    %4375 = vmatpush.bf16.msra.mxu0 %v4120
    %4376 = vmatmul.bf16.gmra.mxu0 %v2593
    %v4377 = vpop.f32.mrf.mxu0
    %v4378 = vadd.f32 %v4319, %v4377
    %v4379 = vpop.f32.mrf.mxu0
    %v4380 = vadd.f32 %v4321, %v4379
    %4381 = vmatmul.bf16.gmra.mxu0 %v2595
    %v4382 = vpop.f32.mrf.mxu0
    %v4383 = vadd.f32 %v4324, %v4382
    %v4384 = vpop.f32.mrf.mxu0
    %v4385 = vadd.f32 %v4326, %v4384
    %4386 = vmatmul.bf16.gmra.mxu0 %v2597
    %v4387 = vpop.f32.mrf.mxu0
    %v4388 = vadd.f32 %v4329, %v4387
    %v4389 = vpop.f32.mrf.mxu0
    %v4390 = vadd.f32 %v4331, %v4389
    %4391 = vmatmul.bf16.gmra.mxu0 %v2599
    %v4392 = vpop.f32.mrf.mxu0
    %v4393 = vadd.f32 %v4334, %v4392
    %v4394 = vpop.f32.mrf.mxu0
    %v4395 = vadd.f32 %v4336, %v4394
    %4396 = vmatmul.bf16.gmra.mxu0 %v2601
    %v4397 = vpop.f32.mrf.mxu0
    %v4398 = vadd.f32 %v4339, %v4397
    %v4399 = vpop.f32.mrf.mxu0
    %v4400 = vadd.f32 %v4341, %v4399
    %4401 = vmatmul.bf16.gmra.mxu0 %v2603
    %v4402 = vpop.f32.mrf.mxu0
    %v4403 = vadd.f32 %v4344, %v4402
    %v4404 = vpop.f32.mrf.mxu0
    %v4405 = vadd.f32 %v4346, %v4404
    %4406 = vmatmul.bf16.gmra.mxu0 %v2605
    %v4407 = vpop.f32.mrf.mxu0
    %v4408 = vadd.f32 %v4349, %v4407
    %v4409 = vpop.f32.mrf.mxu0
    %v4410 = vadd.f32 %v4351, %v4409
    %4411 = vmatmul.bf16.gmra.mxu0 %v2607
    %v4412 = vpop.f32.mrf.mxu0
    %v4413 = vadd.f32 %v4354, %v4412
    %v4414 = vpop.f32.mrf.mxu0
    %v4415 = vadd.f32 %v4356, %v4414
    %4416 = vmatmul.bf16.gmra.mxu0 %v2609
    %v4417 = vpop.f32.mrf.mxu0
    %v4418 = vadd.f32 %v4359, %v4417
    %v4419 = vpop.f32.mrf.mxu0
    %v4420 = vadd.f32 %v4361, %v4419
    %4421 = vmatmul.bf16.gmra.mxu0 %v3932
    %v4422 = vpop.f32.mrf.mxu0
    %v4423 = vadd.f32 %v4364, %v4422
    %v4424 = vpop.f32.mrf.mxu0
    %v4425 = vadd.f32 %v4366, %v4424
    %4426 = vdwg.mxu0
    %4427 = vmatpush.bf16.msra.mxu0 %v4118
    %4428 = vmatpush.bf16.msra.mxu0 %v4115
    %4429 = vmatpush.bf16.msra.mxu0 %v4112
    %4430 = vmatpush.bf16.msra.mxu0 %v4109
    %4431 = vmatpush.bf16.msra.mxu0 %v4106
    %4432 = vmatpush.bf16.msra.mxu0 %v4103
    %4433 = vmatpush.bf16.msra.mxu0 %v4100
    %4434 = vmatpush.bf16.msra.mxu0 %v4097
    %4435 = vmatmul.bf16.gmra.mxu0 %v2592
    %v4436 = vpop.f32.mrf.mxu0
    %v4437 = vadd.f32 0.0, %v4436
    %v4438 = vpop.f32.mrf.mxu0
    %v4439 = vadd.f32 0.0, %v4438
    %4440 = vmatmul.bf16.gmra.mxu0 %v2594
    %v4441 = vpop.f32.mrf.mxu0
    %v4442 = vadd.f32 0.0, %v4441
    %v4443 = vpop.f32.mrf.mxu0
    %v4444 = vadd.f32 0.0, %v4443
    %4445 = vmatmul.bf16.gmra.mxu0 %v2596
    %v4446 = vpop.f32.mrf.mxu0
    %v4447 = vadd.f32 0.0, %v4446
    %v4448 = vpop.f32.mrf.mxu0
    %v4449 = vadd.f32 0.0, %v4448
    %4450 = vmatmul.bf16.gmra.mxu0 %v2598
    %v4451 = vpop.f32.mrf.mxu0
    %v4452 = vadd.f32 0.0, %v4451
    %v4453 = vpop.f32.mrf.mxu0
    %v4454 = vadd.f32 0.0, %v4453
    %4455 = vmatmul.bf16.gmra.mxu0 %v2600
    %v4456 = vpop.f32.mrf.mxu0
    %v4457 = vadd.f32 0.0, %v4456
    %v4458 = vpop.f32.mrf.mxu0
    %v4459 = vadd.f32 0.0, %v4458
    %4460 = vmatmul.bf16.gmra.mxu0 %v2602
    %v4461 = vpop.f32.mrf.mxu0
    %v4462 = vadd.f32 0.0, %v4461
    %v4463 = vpop.f32.mrf.mxu0
    %v4464 = vadd.f32 0.0, %v4463
    %4465 = vmatmul.bf16.gmra.mxu0 %v2604
    %v4466 = vpop.f32.mrf.mxu0
    %v4467 = vadd.f32 0.0, %v4466
    %v4468 = vpop.f32.mrf.mxu0
    %v4469 = vadd.f32 0.0, %v4468
    %4470 = vmatmul.bf16.gmra.mxu0 %v2606
    %v4471 = vpop.f32.mrf.mxu0
    %v4472 = vadd.f32 0.0, %v4471
    %v4473 = vpop.f32.mrf.mxu0
    %v4474 = vadd.f32 0.0, %v4473
    %4475 = vmatmul.bf16.gmra.mxu0 %v2608
    %v4476 = vpop.f32.mrf.mxu0
    %v4477 = vadd.f32 0.0, %v4476
    %v4478 = vpop.f32.mrf.mxu0
    %v4479 = vadd.f32 0.0, %v4478
    %4480 = vmatmul.bf16.gmra.mxu0 %v3931
    %v4481 = vpop.f32.mrf.mxu0
    %v4482 = vadd.f32 0.0, %v4481
    %v4483 = vpop.f32.mrf.mxu0
    %v4484 = vadd.f32 0.0, %v4483
    %4485 = vdwg.mxu0
    %4486 = vmatpush.bf16.msra.mxu0 %v4142
    %4487 = vmatpush.bf16.msra.mxu0 %v4139
    %4488 = vmatpush.bf16.msra.mxu0 %v4136
    %4489 = vmatpush.bf16.msra.mxu0 %v4133
    %4490 = vmatpush.bf16.msra.mxu0 %v4130
    %4491 = vmatpush.bf16.msra.mxu0 %v4127
    %4492 = vmatpush.bf16.msra.mxu0 %v4124
    %4493 = vmatpush.bf16.msra.mxu0 %v4121
    %4494 = vmatmul.bf16.gmra.mxu0 %v2593
    %v4495 = vpop.f32.mrf.mxu0
    %v4496 = vadd.f32 %v4437, %v4495
    %v4497 = vpop.f32.mrf.mxu0
    %v4498 = vadd.f32 %v4439, %v4497
    %4499 = vmatmul.bf16.gmra.mxu0 %v2595
    %v4500 = vpop.f32.mrf.mxu0
    %v4501 = vadd.f32 %v4442, %v4500
    %v4502 = vpop.f32.mrf.mxu0
    %v4503 = vadd.f32 %v4444, %v4502
    %4504 = vmatmul.bf16.gmra.mxu0 %v2597
    %v4505 = vpop.f32.mrf.mxu0
    %v4506 = vadd.f32 %v4447, %v4505
    %v4507 = vpop.f32.mrf.mxu0
    %v4508 = vadd.f32 %v4449, %v4507
    %4509 = vmatmul.bf16.gmra.mxu0 %v2599
    %v4510 = vpop.f32.mrf.mxu0
    %v4511 = vadd.f32 %v4452, %v4510
    %v4512 = vpop.f32.mrf.mxu0
    %v4513 = vadd.f32 %v4454, %v4512
    %4514 = vmatmul.bf16.gmra.mxu0 %v2601
    %v4515 = vpop.f32.mrf.mxu0
    %v4516 = vadd.f32 %v4457, %v4515
    %v4517 = vpop.f32.mrf.mxu0
    %v4518 = vadd.f32 %v4459, %v4517
    %4519 = vmatmul.bf16.gmra.mxu0 %v2603
    %v4520 = vpop.f32.mrf.mxu0
    %v4521 = vadd.f32 %v4462, %v4520
    %v4522 = vpop.f32.mrf.mxu0
    %v4523 = vadd.f32 %v4464, %v4522
    %4524 = vmatmul.bf16.gmra.mxu0 %v2605
    %v4525 = vpop.f32.mrf.mxu0
    %v4526 = vadd.f32 %v4467, %v4525
    %v4527 = vpop.f32.mrf.mxu0
    %v4528 = vadd.f32 %v4469, %v4527
    %4529 = vmatmul.bf16.gmra.mxu0 %v2607
    %v4530 = vpop.f32.mrf.mxu0
    %v4531 = vadd.f32 %v4472, %v4530
    %v4532 = vpop.f32.mrf.mxu0
    %v4533 = vadd.f32 %v4474, %v4532
    %4534 = vmatmul.bf16.gmra.mxu0 %v2609
    %v4535 = vpop.f32.mrf.mxu0
    %v4536 = vadd.f32 %v4477, %v4535
    %v4537 = vpop.f32.mrf.mxu0
    %v4538 = vadd.f32 %v4479, %v4537
    %4539 = vmatmul.bf16.gmra.mxu0 %v3932
    %v4540 = vpop.f32.mrf.mxu0
    %v4541 = vadd.f32 %v4482, %v4540
    %v4542 = vpop.f32.mrf.mxu0
    %v4543 = vadd.f32 %v4484, %v4542
    %4544 = vdwg.mxu0
    %v4545 = vadd.f32 %v3575, %v4260
    %v4546 = vadd.f32 %v3693, %v4378
    %v4547 = vadd.f32 %v3811, %v4496
    %v4548 = vadd.f32 %v3577, %v4262
    %v4549 = vadd.f32 %v3695, %v4380
    %v4550 = vadd.f32 %v3813, %v4498
    %v4551 = vadd.f32 %v3580, %v4265
    %v4552 = vadd.f32 %v3698, %v4383
    %v4553 = vadd.f32 %v3816, %v4501
    %v4554 = vadd.f32 %v3582, %v4267
    %v4555 = vadd.f32 %v3700, %v4385
    %v4556 = vadd.f32 %v3818, %v4503
    %v4557 = vadd.f32 %v3585, %v4270
    %v4558 = vadd.f32 %v3703, %v4388
    %v4559 = vadd.f32 %v3821, %v4506
    %v4560 = vadd.f32 %v3587, %v4272
    %v4561 = vadd.f32 %v3705, %v4390
    %v4562 = vadd.f32 %v3823, %v4508
    %v4563 = vadd.f32 %v3590, %v4275
    %v4564 = vadd.f32 %v3708, %v4393
    %v4565 = vadd.f32 %v3826, %v4511
    %v4566 = vadd.f32 %v3592, %v4277
    %v4567 = vadd.f32 %v3710, %v4395
    %v4568 = vadd.f32 %v3828, %v4513
    %v4569 = vadd.f32 %v3595, %v4280
    %v4570 = vadd.f32 %v3713, %v4398
    %v4571 = vadd.f32 %v3831, %v4516
    %v4572 = vadd.f32 %v3597, %v4282
    %v4573 = vadd.f32 %v3715, %v4400
    %v4574 = vadd.f32 %v3833, %v4518
    %v4575 = vadd.f32 %v3600, %v4285
    %v4576 = vadd.f32 %v3718, %v4403
    %v4577 = vadd.f32 %v3836, %v4521
    %v4578 = vadd.f32 %v3602, %v4287
    %v4579 = vadd.f32 %v3720, %v4405
    %v4580 = vadd.f32 %v3838, %v4523
    %v4581 = vadd.f32 %v3605, %v4290
    %v4582 = vadd.f32 %v3723, %v4408
    %v4583 = vadd.f32 %v3841, %v4526
    %v4584 = vadd.f32 %v3607, %v4292
    %v4585 = vadd.f32 %v3725, %v4410
    %v4586 = vadd.f32 %v3843, %v4528
    %v4587 = vadd.f32 %v3610, %v4295
    %v4588 = vadd.f32 %v3728, %v4413
    %v4589 = vadd.f32 %v3846, %v4531
    %v4590 = vadd.f32 %v3612, %v4297
    %v4591 = vadd.f32 %v3730, %v4415
    %v4592 = vadd.f32 %v3848, %v4533
    %v4593 = vadd.f32 %v3615, %v4300
    %v4594 = vadd.f32 %v3733, %v4418
    %v4595 = vadd.f32 %v3851, %v4536
    %v4596 = vadd.f32 %v3617, %v4302
    %v4597 = vadd.f32 %v3735, %v4420
    %v4598 = vadd.f32 %v3853, %v4538
    %v4599 = vadd.f32 %v3620, %v4305
    %v4600 = vadd.f32 %v3738, %v4423
    %v4601 = vadd.f32 %v3856, %v4541
    %v4602 = vadd.f32 %v3622, %v4307
    %v4603 = vadd.f32 %v3740, %v4425
    %v4604 = vadd.f32 %v3858, %v4543
    %v4605 = vld [vmem:[#allocation7] sm:$0x7]
    %v4607 = vperm.slane %v4605, 0
    %v4608 = vperm.slane %v4605, 1
    %v4609 = vperm.slane %v4605, 2
    %v4613 = vadd.f32 %v4545, %v4607
    %v4614 = vadd.f32 %v4546, %v4608
    %v4615 = vadd.f32 %v4547, %v4609
    %v4616 = vadd.f32 %v4548, %v4607
    %v4617 = vadd.f32 %v4549, %v4608
    %v4618 = vadd.f32 %v4550, %v4609
    %v4619 = vadd.f32 %v4551, %v4607
    %v4620 = vadd.f32 %v4552, %v4608
    %v4621 = vadd.f32 %v4553, %v4609
    %v4622 = vadd.f32 %v4554, %v4607
    %v4623 = vadd.f32 %v4555, %v4608
    %v4624 = vadd.f32 %v4556, %v4609
    %v4625 = vadd.f32 %v4557, %v4607
    %v4626 = vadd.f32 %v4558, %v4608
    %v4627 = vadd.f32 %v4559, %v4609
    %v4628 = vadd.f32 %v4560, %v4607
    %v4629 = vadd.f32 %v4561, %v4608
    %v4630 = vadd.f32 %v4562, %v4609
    %v4631 = vadd.f32 %v4563, %v4607
    %v4632 = vadd.f32 %v4564, %v4608
    %v4633 = vadd.f32 %v4565, %v4609
    %v4634 = vadd.f32 %v4566, %v4607
    %v4635 = vadd.f32 %v4567, %v4608
    %v4636 = vadd.f32 %v4568, %v4609
    %v4637 = vadd.f32 %v4569, %v4607
    %v4638 = vadd.f32 %v4570, %v4608
    %v4639 = vadd.f32 %v4571, %v4609
    %v4640 = vadd.f32 %v4572, %v4607
    %v4641 = vadd.f32 %v4573, %v4608
    %v4642 = vadd.f32 %v4574, %v4609
    %v4643 = vadd.f32 %v4575, %v4607
    %v4644 = vadd.f32 %v4576, %v4608
    %v4645 = vadd.f32 %v4577, %v4609
    %v4646 = vadd.f32 %v4578, %v4607
    %v4647 = vadd.f32 %v4579, %v4608
    %v4648 = vadd.f32 %v4580, %v4609
    %v4649 = vadd.f32 %v4581, %v4607
    %v4650 = vadd.f32 %v4582, %v4608
    %v4651 = vadd.f32 %v4583, %v4609
    %v4652 = vadd.f32 %v4584, %v4607
    %v4653 = vadd.f32 %v4585, %v4608
    %v4654 = vadd.f32 %v4586, %v4609
    %v4655 = vadd.f32 %v4587, %v4607
    %v4656 = vadd.f32 %v4588, %v4608
    %v4657 = vadd.f32 %v4589, %v4609
    %v4658 = vadd.f32 %v4590, %v4607
    %v4659 = vadd.f32 %v4591, %v4608
    %v4660 = vadd.f32 %v4592, %v4609
    %v4661 = vadd.f32 %v4593, %v4607
    %v4662 = vadd.f32 %v4594, %v4608
    %v4663 = vadd.f32 %v4595, %v4609
    %v4664 = vadd.f32 %v4596, %v4607
    %v4665 = vadd.f32 %v4597, %v4608
    %v4666 = vadd.f32 %v4598, %v4609
    %v4667 = vadd.f32 %v4599, %v4607
    %v4668 = vadd.f32 %v4600, %v4608
    %v4669 = vadd.f32 %v4601, %v4609
    %v4670 = vadd.f32 %v4602, %v4607
    %v4671 = vadd.f32 %v4603, %v4608
    %v4672 = vadd.f32 %v4604, %v4609
    %v4673 = vmax.f32 %v4613, 0.0
    %v4674 = vmax.f32 %v4614, 0.0
    %v4675 = vmax.f32 %v4615, 0.0
    %v4676 = vmax.f32 %v4616, 0.0
    %v4677 = vmax.f32 %v4617, 0.0
    %v4678 = vmax.f32 %v4618, 0.0
    %v4679 = vmax.f32 %v4619, 0.0
    %v4680 = vmax.f32 %v4620, 0.0
    %v4681 = vmax.f32 %v4621, 0.0
    %v4682 = vmax.f32 %v4622, 0.0
    %v4683 = vmax.f32 %v4623, 0.0
    %v4684 = vmax.f32 %v4624, 0.0
    %v4685 = vmax.f32 %v4625, 0.0
    %v4686 = vmax.f32 %v4626, 0.0
    %v4687 = vmax.f32 %v4627, 0.0
    %v4688 = vmax.f32 %v4628, 0.0
    %v4689 = vmax.f32 %v4629, 0.0
    %v4690 = vmax.f32 %v4630, 0.0
    %v4691 = vmax.f32 %v4631, 0.0
    %v4692 = vmax.f32 %v4632, 0.0
    %v4693 = vmax.f32 %v4633, 0.0
    %v4694 = vmax.f32 %v4634, 0.0
    %v4695 = vmax.f32 %v4635, 0.0
    %v4696 = vmax.f32 %v4636, 0.0
    %v4697 = vmax.f32 %v4637, 0.0
    %v4698 = vmax.f32 %v4638, 0.0
    %v4699 = vmax.f32 %v4639, 0.0
    %v4700 = vmax.f32 %v4640, 0.0
    %v4701 = vmax.f32 %v4641, 0.0
    %v4702 = vmax.f32 %v4642, 0.0
    %v4703 = vmax.f32 %v4643, 0.0
    %v4704 = vmax.f32 %v4644, 0.0
    %v4705 = vmax.f32 %v4645, 0.0
    %v4706 = vmax.f32 %v4646, 0.0
    %v4707 = vmax.f32 %v4647, 0.0
    %v4708 = vmax.f32 %v4648, 0.0
    %v4709 = vmax.f32 %v4649, 0.0
    %v4710 = vmax.f32 %v4650, 0.0
    %v4711 = vmax.f32 %v4651, 0.0
    %v4712 = vmax.f32 %v4652, 0.0
    %v4713 = vmax.f32 %v4653, 0.0
    %v4714 = vmax.f32 %v4654, 0.0
    %v4715 = vmax.f32 %v4655, 0.0
    %v4716 = vmax.f32 %v4656, 0.0
    %v4717 = vmax.f32 %v4657, 0.0
    %v4718 = vmax.f32 %v4658, 0.0
    %v4719 = vmax.f32 %v4659, 0.0
    %v4720 = vmax.f32 %v4660, 0.0
    %v4721 = vmax.f32 %v4661, 0.0
    %v4722 = vmax.f32 %v4662, 0.0
    %v4723 = vmax.f32 %v4663, 0.0
    %v4724 = vmax.f32 %v4664, 0.0
    %v4725 = vmax.f32 %v4665, 0.0
    %v4726 = vmax.f32 %v4666, 0.0
    %v4727 = vmax.f32 %v4667, 0.0
    %v4728 = vmax.f32 %v4668, 0.0
    %v4729 = vmax.f32 %v4669, 0.0
    %v4730 = vmax.f32 %v4670, 0.0
    %v4731 = vmax.f32 %v4671, 0.0
    %v4732 = vmax.f32 %v4672, 0.0
    %v4733 = vpack.c.bf16 %v4674, %v4673
    %v4734 = vpack.c.bf16 %v4675, %v4675
    %v4735 = vpack.c.bf16 %v4677, %v4676
    %v4736 = vpack.c.bf16 %v4678, %v4678
    %v4737 = vpack.c.bf16 %v4680, %v4679
    %v4738 = vpack.c.bf16 %v4681, %v4681
    %v4739 = vpack.c.bf16 %v4683, %v4682
    %v4740 = vpack.c.bf16 %v4684, %v4684
    %v4741 = vpack.c.bf16 %v4686, %v4685
    %v4742 = vpack.c.bf16 %v4687, %v4687
    %v4743 = vpack.c.bf16 %v4689, %v4688
    %v4744 = vpack.c.bf16 %v4690, %v4690
    %v4745 = vpack.c.bf16 %v4692, %v4691
    %v4746 = vpack.c.bf16 %v4693, %v4693
    %v4747 = vpack.c.bf16 %v4695, %v4694
    %v4748 = vpack.c.bf16 %v4696, %v4696
    %v4749 = vpack.c.bf16 %v4698, %v4697
    %v4750 = vpack.c.bf16 %v4699, %v4699
    %v4751 = vpack.c.bf16 %v4701, %v4700
    %v4752 = vpack.c.bf16 %v4702, %v4702
    %v4753 = vpack.c.bf16 %v4704, %v4703
    %v4754 = vpack.c.bf16 %v4705, %v4705
    %v4755 = vpack.c.bf16 %v4707, %v4706
    %v4756 = vpack.c.bf16 %v4708, %v4708
    %v4757 = vpack.c.bf16 %v4710, %v4709
    %v4758 = vpack.c.bf16 %v4711, %v4711
    %v4759 = vpack.c.bf16 %v4713, %v4712
    %v4760 = vpack.c.bf16 %v4714, %v4714
    %v4761 = vpack.c.bf16 %v4716, %v4715
    %v4762 = vpack.c.bf16 %v4717, %v4717
    %v4763 = vpack.c.bf16 %v4719, %v4718
    %v4764 = vpack.c.bf16 %v4720, %v4720
    %v4765 = vpack.c.bf16 %v4722, %v4721
    %v4766 = vpack.c.bf16 %v4723, %v4723
    %v4767 = vpack.c.bf16 %v4725, %v4724
    %v4768 = vpack.c.bf16 %v4726, %v4726
    %v4769 = vpack.c.bf16 %v4728, %v4727
    %v4770 = vpack.c.bf16 %v4729, %v4729
    %v4771 = vpack.c.bf16 %v4731, %v4730
    %v4772 = vpack.c.bf16 %v4732, %v4732
    %v4773 = vld [vmem:[#allocation9] sm:$0xff]
    %v4774 = vld [vmem:[#allocation9 + $0x8] sm:$0xff]
    %v4775 = vld [vmem:[#allocation9 + $0x10] sm:$0xff]
    %v4776 = vld [vmem:[#allocation9 + $0x18] sm:$0xff]
    %v4777 = vld [vmem:[#allocation9 + $0x20] sm:$0xff]
    %v4778 = vld [vmem:[#allocation9 + $0x28] sm:$0xff]
    %v4779 = vld [vmem:[#allocation9 + $0x30] sm:$0xff]
    %v4780 = vld [vmem:[#allocation9 + $0x38] sm:$0xff]
    %v4781 = vld [vmem:[#allocation9 + $0x40] sm:$0xff]
    %v4782 = vld [vmem:[#allocation9 + $0x48] sm:$0xff]
    %v4783 = vld [vmem:[#allocation9 + $0x50] sm:$0xff]
    %v4784 = vld [vmem:[#allocation9 + $0x58] sm:$0xff]
    %v4785 = vld [vmem:[#allocation9 + $0x60] sm:$0xff]
    %v4786 = vld [vmem:[#allocation9 + $0x68] sm:$0xff]
    %v4787 = vld [vmem:[#allocation9 + $0x70] sm:$0xff]
    %v4788 = vld [vmem:[#allocation9 + $0x78] sm:$0xff]
    %v4789 = vld [vmem:[#allocation9 + $0x80] sm:$0xff]
    %v4790 = vld [vmem:[#allocation9 + $0x88] sm:$0xff]
    %v4791 = vld [vmem:[#allocation9 + $0x90] sm:$0xff]
    %v4792 = vld [vmem:[#allocation9 + $0x98] sm:$0xff]
    %v4793 = vld [vmem:[#allocation9 + $0xa0] sm:$0xff]
    %v4794 = vld [vmem:[#allocation9 + $0xa8] sm:$0xff]
    %v4795 = vld [vmem:[#allocation9 + $0xb0] sm:$0xff]
    %v4796 = vld [vmem:[#allocation9 + $0xb8] sm:$0xff]
    %v4797 = vld [vmem:[#allocation9 + $0xc0] sm:$0xff]
    %v4798 = vld [vmem:[#allocation9 + $0xc8] sm:$0xff]
    %v4799 = vld [vmem:[#allocation9 + $0xd0] sm:$0xff]
    %v4800 = vld [vmem:[#allocation9 + $0xd8] sm:$0xff]
    %v4801 = vld [vmem:[#allocation9 + $0xe0] sm:$0xff]
    %v4802 = vld [vmem:[#allocation9 + $0xe8] sm:$0xff]
    %v4803 = vld [vmem:[#allocation9 + $0xf0] sm:$0xff]
    %v4804 = vld [vmem:[#allocation9 + $0xf8] sm:$0xff]
    %v4805 = vld [vmem:[#allocation9 + $0x100] sm:$0xff]
    %v4806 = vld [vmem:[#allocation9 + $0x108] sm:$0xff]
    %v4807 = vld [vmem:[#allocation9 + $0x110] sm:$0xff]
    %v4808 = vld [vmem:[#allocation9 + $0x118] sm:$0xff]
    %v4809 = vld [vmem:[#allocation9 + $0x120] sm:$0xff]
    %v4810 = vld [vmem:[#allocation9 + $0x128] sm:$0xff]
    %v4811 = vld [vmem:[#allocation9 + $0x130] sm:$0xff]
    %v4812 = vld [vmem:[#allocation9 + $0x138] sm:$0xff]
    %v4813 = vld [vmem:[#allocation9 + $0x140] sm:$0xff]
    %v4814 = vld [vmem:[#allocation9 + $0x148] sm:$0xff]
    %v4815 = vld [vmem:[#allocation9 + $0x150] sm:$0xff]
    %v4816 = vld [vmem:[#allocation9 + $0x158] sm:$0xff]
    %v4817 = vld [vmem:[#allocation9 + $0x160] sm:$0xff]
    %v4818 = vld [vmem:[#allocation9 + $0x168] sm:$0xff]
    %v4819 = vld [vmem:[#allocation9 + $0x170] sm:$0xff]
    %v4820 = vld [vmem:[#allocation9 + $0x178] sm:$0xff]
    %v4821 = vld [vmem:[#allocation9 + $0x180] sm:$0xff]
    %v4822 = vld [vmem:[#allocation9 + $0x188] sm:$0xff]
    %v4823 = vld [vmem:[#allocation9 + $0x190] sm:$0xff]
    %v4824 = vld [vmem:[#allocation9 + $0x198] sm:$0xff]
    %v4825 = vld [vmem:[#allocation9 + $0x1a0] sm:$0xff]
    %v4826 = vld [vmem:[#allocation9 + $0x1a8] sm:$0xff]
    %v4827 = vld [vmem:[#allocation9 + $0x1b0] sm:$0xff]
    %v4828 = vld [vmem:[#allocation9 + $0x1b8] sm:$0xff]
    %v4829 = vld [vmem:[#allocation9 + $0x1c0] sm:$0xff]
    %v4830 = vld [vmem:[#allocation9 + $0x1c8] sm:$0xff]
    %v4831 = vld [vmem:[#allocation9 + $0x1d0] sm:$0xff]
    %v4832 = vld [vmem:[#allocation9 + $0x1d8] sm:$0xff]
    %v4833 = vld [vmem:[#allocation9 + $0x1e0] sm:$0xff]
    %v4834 = vld [vmem:[#allocation9 + $0x1e8] sm:$0xff]
    %v4835 = vld [vmem:[#allocation9 + $0x1f0] sm:$0xff]
    %v4836 = vld [vmem:[#allocation9 + $0x1f8] sm:$0xff]
    %v4837 = vld [vmem:[#allocation9 + $0x200] sm:$0xff]
    %v4838 = vld [vmem:[#allocation9 + $0x208] sm:$0xff]
    %v4839 = vld [vmem:[#allocation9 + $0x210] sm:$0xff]
    %v4840 = vld [vmem:[#allocation9 + $0x218] sm:$0xff]
    %v4841 = vld [vmem:[#allocation9 + $0x220] sm:$0xff]
    %v4842 = vld [vmem:[#allocation9 + $0x228] sm:$0xff]
    %v4843 = vld [vmem:[#allocation9 + $0x230] sm:$0xff]
    %v4844 = vld [vmem:[#allocation9 + $0x238] sm:$0xff]
    %v4845 = vld [vmem:[#allocation9 + $0x240] sm:$0xff]
    %v4846 = vld [vmem:[#allocation9 + $0x248] sm:$0xff]
    %v4847 = vld [vmem:[#allocation9 + $0x250] sm:$0xff]
    %v4848 = vld [vmem:[#allocation9 + $0x258] sm:$0xff]
    %v4849 = vld [vmem:[#allocation9 + $0x260] sm:$0xff]
    %v4850 = vld [vmem:[#allocation9 + $0x268] sm:$0xff]
    %v4851 = vld [vmem:[#allocation9 + $0x270] sm:$0xff]
    %v4852 = vld [vmem:[#allocation9 + $0x278] sm:$0xff]
    %s4853 = scalar_lea.vmem [#allocation9], 640
    %v4854 = vld [vmem:[%s4853] sm:$0xff]
    %v4855 = vld [vmem:[%s4853 + $0x8] sm:$0xff]
    %v4856 = vld [vmem:[%s4853 + $0x10] sm:$0xff]
    %v4857 = vld [vmem:[%s4853 + $0x18] sm:$0xff]
    %v4858 = vld [vmem:[%s4853 + $0x20] sm:$0xff]
    %v4859 = vld [vmem:[%s4853 + $0x28] sm:$0xff]
    %v4860 = vld [vmem:[%s4853 + $0x30] sm:$0xff]
    %v4861 = vld [vmem:[%s4853 + $0x38] sm:$0xff]
    %v4862 = vld [vmem:[%s4853 + $0x40] sm:$0xff]
    %v4863 = vld [vmem:[%s4853 + $0x48] sm:$0xff]
    %v4864 = vld [vmem:[%s4853 + $0x50] sm:$0xff]
    %v4865 = vld [vmem:[%s4853 + $0x58] sm:$0xff]
    %v4866 = vld [vmem:[%s4853 + $0x60] sm:$0xff]
    %v4867 = vld [vmem:[%s4853 + $0x68] sm:$0xff]
    %v4868 = vld [vmem:[%s4853 + $0x70] sm:$0xff]
    %v4869 = vld [vmem:[%s4853 + $0x78] sm:$0xff]
    %v4870 = vld [vmem:[%s4853 + $0x80] sm:$0xff]
    %v4871 = vld [vmem:[%s4853 + $0x88] sm:$0xff]
    %v4872 = vld [vmem:[%s4853 + $0x90] sm:$0xff]
    %v4873 = vld [vmem:[%s4853 + $0x98] sm:$0xff]
    %v4874 = vld [vmem:[%s4853 + $0xa0] sm:$0xff]
    %v4875 = vld [vmem:[%s4853 + $0xa8] sm:$0xff]
    %v4876 = vld [vmem:[%s4853 + $0xb0] sm:$0xff]
    %v4877 = vld [vmem:[%s4853 + $0xb8] sm:$0xff]
    %v4878 = vld [vmem:[%s4853 + $0xc0] sm:$0xff]
    %v4879 = vld [vmem:[%s4853 + $0xc8] sm:$0xff]
    %v4880 = vld [vmem:[%s4853 + $0xd0] sm:$0xff]
    %v4881 = vld [vmem:[%s4853 + $0xd8] sm:$0xff]
    %v4882 = vld [vmem:[%s4853 + $0xe0] sm:$0xff]
    %v4883 = vld [vmem:[%s4853 + $0xe8] sm:$0xff]
    %v4884 = vld [vmem:[%s4853 + $0xf0] sm:$0xff]
    %v4885 = vld [vmem:[%s4853 + $0xf8] sm:$0xff]
    %v4886 = vld [vmem:[%s4853 + $0x100] sm:$0xff]
    %v4887 = vld [vmem:[%s4853 + $0x108] sm:$0xff]
    %v4888 = vld [vmem:[%s4853 + $0x110] sm:$0xff]
    %v4889 = vld [vmem:[%s4853 + $0x118] sm:$0xff]
    %v4890 = vld [vmem:[%s4853 + $0x120] sm:$0xff]
    %v4891 = vld [vmem:[%s4853 + $0x128] sm:$0xff]
    %v4892 = vld [vmem:[%s4853 + $0x130] sm:$0xff]
    %v4893 = vld [vmem:[%s4853 + $0x138] sm:$0xff]
    %v4894 = vld [vmem:[%s4853 + $0x140] sm:$0xff]
    %v4895 = vld [vmem:[%s4853 + $0x148] sm:$0xff]
    %v4896 = vld [vmem:[%s4853 + $0x150] sm:$0xff]
    %v4897 = vld [vmem:[%s4853 + $0x158] sm:$0xff]
    %v4898 = vld [vmem:[%s4853 + $0x160] sm:$0xff]
    %v4899 = vld [vmem:[%s4853 + $0x168] sm:$0xff]
    %v4900 = vld [vmem:[%s4853 + $0x170] sm:$0xff]
    %v4901 = vld [vmem:[%s4853 + $0x178] sm:$0xff]
    %v4902 = vld [vmem:[%s4853 + $0x180] sm:$0xff]
    %v4903 = vld [vmem:[%s4853 + $0x188] sm:$0xff]
    %v4904 = vld [vmem:[%s4853 + $0x190] sm:$0xff]
    %v4905 = vld [vmem:[%s4853 + $0x198] sm:$0xff]
    %v4906 = vld [vmem:[%s4853 + $0x1a0] sm:$0xff]
    %v4907 = vld [vmem:[%s4853 + $0x1a8] sm:$0xff]
    %v4908 = vld [vmem:[%s4853 + $0x1b0] sm:$0xff]
    %v4909 = vld [vmem:[%s4853 + $0x1b8] sm:$0xff]
    %v4910 = vld [vmem:[%s4853 + $0x1c0] sm:$0xff]
    %v4911 = vld [vmem:[%s4853 + $0x1c8] sm:$0xff]
    %v4912 = vld [vmem:[%s4853 + $0x1d0] sm:$0xff]
    %v4913 = vld [vmem:[%s4853 + $0x1d8] sm:$0xff]
    %v4914 = vld [vmem:[%s4853 + $0x1e0] sm:$0xff]
    %v4915 = vld [vmem:[%s4853 + $0x1e8] sm:$0xff]
    %v4916 = vld [vmem:[%s4853 + $0x1f0] sm:$0xff]
    %v4917 = vld [vmem:[%s4853 + $0x1f8] sm:$0xff]
    %v4918 = vld [vmem:[%s4853 + $0x200] sm:$0xff]
    %v4919 = vld [vmem:[%s4853 + $0x208] sm:$0xff]
    %v4920 = vld [vmem:[%s4853 + $0x210] sm:$0xff]
    %v4921 = vld [vmem:[%s4853 + $0x218] sm:$0xff]
    %v4922 = vld [vmem:[%s4853 + $0x220] sm:$0xff]
    %v4923 = vld [vmem:[%s4853 + $0x228] sm:$0xff]
    %v4924 = vld [vmem:[%s4853 + $0x230] sm:$0xff]
    %v4925 = vld [vmem:[%s4853 + $0x238] sm:$0xff]
    %v4926 = vld [vmem:[%s4853 + $0x240] sm:$0xff]
    %v4927 = vld [vmem:[%s4853 + $0x248] sm:$0xff]
    %v4928 = vld [vmem:[%s4853 + $0x250] sm:$0xff]
    %v4929 = vld [vmem:[%s4853 + $0x258] sm:$0xff]
    %v4930 = vld [vmem:[%s4853 + $0x260] sm:$0xff]
    %v4931 = vld [vmem:[%s4853 + $0x268] sm:$0xff]
    %v4932 = vld [vmem:[%s4853 + $0x270] sm:$0xff]
    %v4933 = vld [vmem:[%s4853 + $0x278] sm:$0xff]
    %v4938 = vunpack.c.l.b16 %v4737
    %v4939 = vunpack.c.h.b16 %v4737
    %v4940 = vunpack.c.l.b16 %v4738
    %v4941 = vunpack.c.l.b16 %v4739
    %v4942 = vunpack.c.h.b16 %v4739
    %v4943 = vunpack.c.l.b16 %v4740
    %v4944 = vpack.c.b16 %v4941, %v4938
    %v4945 = vpack.c.b16 %v4942, %v4939
    %v4946 = vpack.c.b16 %v4943, %v4940
    %v5029 = vunpack.c.l.b16 %v4854
    %v5030 = vunpack.c.h.b16 %v4854
    %v5031 = vunpack.c.l.b16 %v4855
    %v5032 = vunpack.c.h.b16 %v4855
    %v5033 = vunpack.c.l.b16 %v4856
    %v5034 = vunpack.c.h.b16 %v4856
    %v5035 = vunpack.c.l.b16 %v4857
    %v5036 = vunpack.c.h.b16 %v4857
    %v5037 = vunpack.c.l.b16 %v4858
    %v5038 = vunpack.c.h.b16 %v4858
    %v5039 = vunpack.c.l.b16 %v4859
    %v5040 = vunpack.c.h.b16 %v4859
    %v5041 = vunpack.c.l.b16 %v4860
    %v5042 = vunpack.c.h.b16 %v4860
    %v5043 = vunpack.c.l.b16 %v4861
    %v5044 = vunpack.c.h.b16 %v4861
    %v5045 = vunpack.c.l.b16 %v4862
    %v5046 = vunpack.c.h.b16 %v4862
    %v5047 = vunpack.c.l.b16 %v4863
    %v5048 = vunpack.c.h.b16 %v4863
    %v5049 = vunpack.c.l.b16 %v4864
    %v5050 = vunpack.c.h.b16 %v4864
    %v5051 = vunpack.c.l.b16 %v4865
    %v5052 = vunpack.c.h.b16 %v4865
    %v5053 = vunpack.c.l.b16 %v4866
    %v5054 = vunpack.c.h.b16 %v4866
    %v5055 = vunpack.c.l.b16 %v4867
    %v5056 = vunpack.c.h.b16 %v4867
    %v5057 = vunpack.c.l.b16 %v4868
    %v5058 = vunpack.c.h.b16 %v4868
    %v5059 = vunpack.c.l.b16 %v4869
    %v5060 = vunpack.c.h.b16 %v4869
    %v5061 = vunpack.c.l.b16 %v4870
    %v5062 = vunpack.c.h.b16 %v4870
    %v5063 = vunpack.c.l.b16 %v4871
    %v5064 = vunpack.c.h.b16 %v4871
    %v5065 = vunpack.c.l.b16 %v4872
    %v5066 = vunpack.c.h.b16 %v4872
    %v5067 = vunpack.c.l.b16 %v4873
    %v5068 = vunpack.c.h.b16 %v4873
    %v5069 = vunpack.c.l.b16 %v4874
    %v5070 = vunpack.c.h.b16 %v4874
    %v5071 = vunpack.c.l.b16 %v4875
    %v5072 = vunpack.c.h.b16 %v4875
    %v5073 = vunpack.c.l.b16 %v4876
    %v5074 = vunpack.c.h.b16 %v4876
    %v5075 = vunpack.c.l.b16 %v4877
    %v5076 = vunpack.c.h.b16 %v4877
    %v5077 = vunpack.c.l.b16 %v4878
    %v5078 = vunpack.c.h.b16 %v4878
    %v5079 = vunpack.c.l.b16 %v4879
    %v5080 = vunpack.c.h.b16 %v4879
    %v5081 = vunpack.c.l.b16 %v4880
    %v5082 = vunpack.c.h.b16 %v4880
    %v5083 = vunpack.c.l.b16 %v4881
    %v5084 = vunpack.c.h.b16 %v4881
    %v5085 = vunpack.c.l.b16 %v4882
    %v5086 = vunpack.c.h.b16 %v4882
    %v5087 = vunpack.c.l.b16 %v4883
    %v5088 = vunpack.c.h.b16 %v4883
    %v5089 = vunpack.c.l.b16 %v4884
    %v5090 = vunpack.c.h.b16 %v4884
    %v5091 = vunpack.c.l.b16 %v4885
    %v5092 = vunpack.c.h.b16 %v4885
    %v5093 = vunpack.c.l.b16 %v4886
    %v5094 = vunpack.c.h.b16 %v4886
    %v5095 = vunpack.c.l.b16 %v4887
    %v5096 = vunpack.c.h.b16 %v4887
    %v5097 = vunpack.c.l.b16 %v4888
    %v5098 = vunpack.c.h.b16 %v4888
    %v5099 = vunpack.c.l.b16 %v4889
    %v5100 = vunpack.c.h.b16 %v4889
    %v5101 = vunpack.c.l.b16 %v4890
    %v5102 = vunpack.c.h.b16 %v4890
    %v5103 = vunpack.c.l.b16 %v4891
    %v5104 = vunpack.c.h.b16 %v4891
    %v5105 = vunpack.c.l.b16 %v4892
    %v5106 = vunpack.c.h.b16 %v4892
    %v5107 = vunpack.c.l.b16 %v4893
    %v5108 = vunpack.c.h.b16 %v4893
    %v5109 = vunpack.c.l.b16 %v4894
    %v5110 = vunpack.c.h.b16 %v4894
    %v5111 = vunpack.c.l.b16 %v4895
    %v5112 = vunpack.c.h.b16 %v4895
    %v5113 = vunpack.c.l.b16 %v4896
    %v5114 = vunpack.c.h.b16 %v4896
    %v5115 = vunpack.c.l.b16 %v4897
    %v5116 = vunpack.c.h.b16 %v4897
    %v5117 = vunpack.c.l.b16 %v4898
    %v5118 = vunpack.c.h.b16 %v4898
    %v5119 = vunpack.c.l.b16 %v4899
    %v5120 = vunpack.c.h.b16 %v4899
    %v5121 = vunpack.c.l.b16 %v4900
    %v5122 = vunpack.c.h.b16 %v4900
    %v5123 = vunpack.c.l.b16 %v4901
    %v5124 = vunpack.c.h.b16 %v4901
    %v5125 = vunpack.c.l.b16 %v4902
    %v5126 = vunpack.c.h.b16 %v4902
    %v5127 = vunpack.c.l.b16 %v4903
    %v5128 = vunpack.c.h.b16 %v4903
    %v5129 = vunpack.c.l.b16 %v4904
    %v5130 = vunpack.c.h.b16 %v4904
    %v5131 = vunpack.c.l.b16 %v4905
    %v5132 = vunpack.c.h.b16 %v4905
    %v5133 = vunpack.c.l.b16 %v4906
    %v5134 = vunpack.c.h.b16 %v4906
    %v5135 = vunpack.c.l.b16 %v4907
    %v5136 = vunpack.c.h.b16 %v4907
    %v5137 = vunpack.c.l.b16 %v4908
    %v5138 = vunpack.c.h.b16 %v4908
    %v5139 = vunpack.c.l.b16 %v4909
    %v5140 = vunpack.c.h.b16 %v4909
    %v5141 = vunpack.c.l.b16 %v4910
    %v5142 = vunpack.c.h.b16 %v4910
    %v5143 = vunpack.c.l.b16 %v4911
    %v5144 = vunpack.c.h.b16 %v4911
    %v5145 = vunpack.c.l.b16 %v4912
    %v5146 = vunpack.c.h.b16 %v4912
    %v5147 = vunpack.c.l.b16 %v4913
    %v5148 = vunpack.c.h.b16 %v4913
    %v5149 = vunpack.c.l.b16 %v4914
    %v5150 = vunpack.c.h.b16 %v4914
    %v5151 = vunpack.c.l.b16 %v4915
    %v5152 = vunpack.c.h.b16 %v4915
    %v5153 = vunpack.c.l.b16 %v4916
    %v5154 = vunpack.c.h.b16 %v4916
    %v5155 = vunpack.c.l.b16 %v4917
    %v5156 = vunpack.c.h.b16 %v4917
    %v5157 = vunpack.c.l.b16 %v4918
    %v5158 = vunpack.c.h.b16 %v4918
    %v5159 = vunpack.c.l.b16 %v4919
    %v5160 = vunpack.c.h.b16 %v4919
    %v5161 = vunpack.c.l.b16 %v4920
    %v5162 = vunpack.c.h.b16 %v4920
    %v5163 = vunpack.c.l.b16 %v4921
    %v5164 = vunpack.c.h.b16 %v4921
    %v5165 = vunpack.c.l.b16 %v4922
    %v5166 = vunpack.c.h.b16 %v4922
    %v5167 = vunpack.c.l.b16 %v4923
    %v5168 = vunpack.c.h.b16 %v4923
    %v5169 = vunpack.c.l.b16 %v4924
    %v5170 = vunpack.c.h.b16 %v4924
    %v5171 = vunpack.c.l.b16 %v4925
    %v5172 = vunpack.c.h.b16 %v4925
    %v5173 = vunpack.c.l.b16 %v4926
    %v5174 = vunpack.c.h.b16 %v4926
    %v5175 = vunpack.c.l.b16 %v4927
    %v5176 = vunpack.c.h.b16 %v4927
    %v5177 = vunpack.c.l.b16 %v4928
    %v5178 = vunpack.c.h.b16 %v4928
    %v5179 = vunpack.c.l.b16 %v4929
    %v5180 = vunpack.c.h.b16 %v4929
    %v5181 = vunpack.c.l.b16 %v4930
    %v5182 = vunpack.c.h.b16 %v4930
    %v5183 = vunpack.c.l.b16 %v4931
    %v5184 = vunpack.c.h.b16 %v4931
    %v5185 = vunpack.c.l.b16 %v4932
    %v5186 = vunpack.c.h.b16 %v4932
    %v5187 = vunpack.c.l.b16 %v4933
    %v5188 = vunpack.c.h.b16 %v4933
    %v5189 = vpack.c.b16 %v5033, %v5029
    %v5190 = vpack.c.b16 %v5034, %v5030
    %v5191 = vpack.c.b16 %v5035, %v5031
    %v5192 = vpack.c.b16 %v5036, %v5032
    %v5193 = vpack.c.b16 %v5041, %v5037
    %v5194 = vpack.c.b16 %v5042, %v5038
    %v5195 = vpack.c.b16 %v5043, %v5039
    %v5196 = vpack.c.b16 %v5044, %v5040
    %v5197 = vpack.c.b16 %v5049, %v5045
    %v5198 = vpack.c.b16 %v5050, %v5046
    %v5199 = vpack.c.b16 %v5051, %v5047
    %v5200 = vpack.c.b16 %v5052, %v5048
    %v5201 = vpack.c.b16 %v5057, %v5053
    %v5202 = vpack.c.b16 %v5058, %v5054
    %v5203 = vpack.c.b16 %v5059, %v5055
    %v5204 = vpack.c.b16 %v5060, %v5056
    %v5205 = vpack.c.b16 %v5065, %v5061
    %v5206 = vpack.c.b16 %v5066, %v5062
    %v5207 = vpack.c.b16 %v5067, %v5063
    %v5208 = vpack.c.b16 %v5068, %v5064
    %v5209 = vpack.c.b16 %v5073, %v5069
    %v5210 = vpack.c.b16 %v5074, %v5070
    %v5211 = vpack.c.b16 %v5075, %v5071
    %v5212 = vpack.c.b16 %v5076, %v5072
    %v5213 = vpack.c.b16 %v5081, %v5077
    %v5214 = vpack.c.b16 %v5082, %v5078
    %v5215 = vpack.c.b16 %v5083, %v5079
    %v5216 = vpack.c.b16 %v5084, %v5080
    %v5217 = vpack.c.b16 %v5089, %v5085
    %v5218 = vpack.c.b16 %v5090, %v5086
    %v5219 = vpack.c.b16 %v5091, %v5087
    %v5220 = vpack.c.b16 %v5092, %v5088
    %v5221 = vpack.c.b16 %v5097, %v5093
    %v5222 = vpack.c.b16 %v5098, %v5094
    %v5223 = vpack.c.b16 %v5099, %v5095
    %v5224 = vpack.c.b16 %v5100, %v5096
    %v5225 = vpack.c.b16 %v5105, %v5101
    %v5226 = vpack.c.b16 %v5106, %v5102
    %v5227 = vpack.c.b16 %v5107, %v5103
    %v5228 = vpack.c.b16 %v5108, %v5104
    %v5229 = vpack.c.b16 %v5113, %v5109
    %v5230 = vpack.c.b16 %v5114, %v5110
    %v5231 = vpack.c.b16 %v5115, %v5111
    %v5232 = vpack.c.b16 %v5116, %v5112
    %v5233 = vpack.c.b16 %v5121, %v5117
    %v5234 = vpack.c.b16 %v5122, %v5118
    %v5235 = vpack.c.b16 %v5123, %v5119
    %v5236 = vpack.c.b16 %v5124, %v5120
    %v5237 = vpack.c.b16 %v5129, %v5125
    %v5238 = vpack.c.b16 %v5130, %v5126
    %v5239 = vpack.c.b16 %v5131, %v5127
    %v5240 = vpack.c.b16 %v5132, %v5128
    %v5241 = vpack.c.b16 %v5137, %v5133
    %v5242 = vpack.c.b16 %v5138, %v5134
    %v5243 = vpack.c.b16 %v5139, %v5135
    %v5244 = vpack.c.b16 %v5140, %v5136
    %v5245 = vpack.c.b16 %v5145, %v5141
    %v5246 = vpack.c.b16 %v5146, %v5142
    %v5247 = vpack.c.b16 %v5147, %v5143
    %v5248 = vpack.c.b16 %v5148, %v5144
    %v5249 = vpack.c.b16 %v5153, %v5149
    %v5250 = vpack.c.b16 %v5154, %v5150
    %v5251 = vpack.c.b16 %v5155, %v5151
    %v5252 = vpack.c.b16 %v5156, %v5152
    %v5253 = vpack.c.b16 %v5161, %v5157
    %v5254 = vpack.c.b16 %v5162, %v5158
    %v5255 = vpack.c.b16 %v5163, %v5159
    %v5256 = vpack.c.b16 %v5164, %v5160
    %v5257 = vpack.c.b16 %v5169, %v5165
    %v5258 = vpack.c.b16 %v5170, %v5166
    %v5259 = vpack.c.b16 %v5171, %v5167
    %v5260 = vpack.c.b16 %v5172, %v5168
    %v5261 = vpack.c.b16 %v5177, %v5173
    %v5262 = vpack.c.b16 %v5178, %v5174
    %v5263 = vpack.c.b16 %v5179, %v5175
    %v5264 = vpack.c.b16 %v5180, %v5176
    %v5265 = vpack.c.b16 %v5185, %v5181
    %v5266 = vpack.c.b16 %v5186, %v5182
    %v5267 = vpack.c.b16 %v5187, %v5183
    %v5268 = vpack.c.b16 %v5188, %v5184
    %vm5349 = vcmask 523264
    %v5351 = vsel %vm5349, %v4946, 0
    %5353 = vmatpush.bf16.msra.mxu0 %v5217
    %5354 = vmatpush.bf16.msra.mxu0 %v5213
    %5355 = vmatpush.bf16.msra.mxu0 %v5209
    %5356 = vmatpush.bf16.msra.mxu0 %v5205
    %5357 = vmatpush.bf16.msra.mxu0 %v5201
    %5358 = vmatpush.bf16.msra.mxu0 %v5197
    %5359 = vmatpush.bf16.msra.mxu0 %v5193
    %5360 = vmatpush.bf16.msra.mxu0 %v5189
    %5361 = vmatmul.bf16.gmra.mxu0 %v4944
    %v5362 = vpop.f32.mrf.mxu0
    %v5363 = vadd.f32 0.0, %v5362
    %v5364 = vpop.f32.mrf.mxu0
    %v5365 = vadd.f32 0.0, %v5364
    %5366 = vdwg.mxu0
    %5367 = vmatpush.bf16.msra.mxu0 %v5249
    %5368 = vmatpush.bf16.msra.mxu0 %v5245
    %5369 = vmatpush.bf16.msra.mxu0 %v5241
    %5370 = vmatpush.bf16.msra.mxu0 %v5237
    %5371 = vmatpush.bf16.msra.mxu0 %v5233
    %5372 = vmatpush.bf16.msra.mxu0 %v5229
    %5373 = vmatpush.bf16.msra.mxu0 %v5225
    %5374 = vmatpush.bf16.msra.mxu0 %v5221
    %5375 = vmatmul.bf16.gmra.mxu0 %v4945
    %v5376 = vpop.f32.mrf.mxu0
    %v5377 = vadd.f32 %v5363, %v5376
    %v5378 = vpop.f32.mrf.mxu0
    %v5379 = vadd.f32 %v5365, %v5378
    %5380 = vdwg.mxu0
    %5381 = vmatpush.bf16.msra.mxu0 0
    %5382 = vmatpush.bf16.msra.mxu0 0
    %5383 = vmatpush.bf16.msra.mxu0 0
    %5384 = vmatpush.bf16.msra.mxu0 0
    %5385 = vmatpush.bf16.msra.mxu0 %v5265
    %5386 = vmatpush.bf16.msra.mxu0 %v5261
    %5387 = vmatpush.bf16.msra.mxu0 %v5257
    %5388 = vmatpush.bf16.msra.mxu0 %v5253
    %5389 = vmatmul.bf16.gmra.mxu0 %v5351
    %v5390 = vpop.f32.mrf.mxu0
    %v5391 = vadd.f32 %v5377, %v5390
    %v5392 = vpop.f32.mrf.mxu0
    %v5393 = vadd.f32 %v5379, %v5392
    %5394 = vdwg.mxu0
    %5395 = vmatpush.bf16.msra.mxu0 %v5218
    %5396 = vmatpush.bf16.msra.mxu0 %v5214
    %5397 = vmatpush.bf16.msra.mxu0 %v5210
    %5398 = vmatpush.bf16.msra.mxu0 %v5206
    %5399 = vmatpush.bf16.msra.mxu0 %v5202
    %5400 = vmatpush.bf16.msra.mxu0 %v5198
    %5401 = vmatpush.bf16.msra.mxu0 %v5194
    %5402 = vmatpush.bf16.msra.mxu0 %v5190
    %5403 = vmatmul.bf16.gmra.mxu0 %v4944
    %v5404 = vpop.f32.mrf.mxu0
    %v5405 = vadd.f32 0.0, %v5404
    %v5406 = vpop.f32.mrf.mxu0
    %v5407 = vadd.f32 0.0, %v5406
    %5408 = vdwg.mxu0
    %5409 = vmatpush.bf16.msra.mxu0 %v5250
    %5410 = vmatpush.bf16.msra.mxu0 %v5246
    %5411 = vmatpush.bf16.msra.mxu0 %v5242
    %5412 = vmatpush.bf16.msra.mxu0 %v5238
    %5413 = vmatpush.bf16.msra.mxu0 %v5234
    %5414 = vmatpush.bf16.msra.mxu0 %v5230
    %5415 = vmatpush.bf16.msra.mxu0 %v5226
    %5416 = vmatpush.bf16.msra.mxu0 %v5222
    %5417 = vmatmul.bf16.gmra.mxu0 %v4945
    %v5418 = vpop.f32.mrf.mxu0
    %v5419 = vadd.f32 %v5405, %v5418
    %v5420 = vpop.f32.mrf.mxu0
    %v5421 = vadd.f32 %v5407, %v5420
    %5422 = vdwg.mxu0
    %5423 = vmatpush.bf16.msra.mxu0 0
    %5424 = vmatpush.bf16.msra.mxu0 0
    %5425 = vmatpush.bf16.msra.mxu0 0
    %5426 = vmatpush.bf16.msra.mxu0 0
    %5427 = vmatpush.bf16.msra.mxu0 %v5266
    %5428 = vmatpush.bf16.msra.mxu0 %v5262
    %5429 = vmatpush.bf16.msra.mxu0 %v5258
    %5430 = vmatpush.bf16.msra.mxu0 %v5254
    %5431 = vmatmul.bf16.gmra.mxu0 %v5351
    %v5432 = vpop.f32.mrf.mxu0
    %v5433 = vadd.f32 %v5419, %v5432
    %v5434 = vpop.f32.mrf.mxu0
    %v5435 = vadd.f32 %v5421, %v5434
    %5436 = vdwg.mxu0
    %5437 = vmatpush.bf16.msra.mxu0 %v5219
    %5438 = vmatpush.bf16.msra.mxu0 %v5215
    %5439 = vmatpush.bf16.msra.mxu0 %v5211
    %5440 = vmatpush.bf16.msra.mxu0 %v5207
    %5441 = vmatpush.bf16.msra.mxu0 %v5203
    %5442 = vmatpush.bf16.msra.mxu0 %v5199
    %5443 = vmatpush.bf16.msra.mxu0 %v5195
    %5444 = vmatpush.bf16.msra.mxu0 %v5191
    %5445 = vmatmul.bf16.gmra.mxu0 %v4944
    %v5446 = vpop.f32.mrf.mxu0
    %v5447 = vadd.f32 0.0, %v5446
    %v5448 = vpop.f32.mrf.mxu0
    %v5449 = vadd.f32 0.0, %v5448
    %5450 = vdwg.mxu0
    %5451 = vmatpush.bf16.msra.mxu0 %v5251
    %5452 = vmatpush.bf16.msra.mxu0 %v5247
    %5453 = vmatpush.bf16.msra.mxu0 %v5243
    %5454 = vmatpush.bf16.msra.mxu0 %v5239
    %5455 = vmatpush.bf16.msra.mxu0 %v5235
    %5456 = vmatpush.bf16.msra.mxu0 %v5231
    %5457 = vmatpush.bf16.msra.mxu0 %v5227
    %5458 = vmatpush.bf16.msra.mxu0 %v5223
    %5459 = vmatmul.bf16.gmra.mxu0 %v4945
    %v5460 = vpop.f32.mrf.mxu0
    %v5461 = vadd.f32 %v5447, %v5460
    %v5462 = vpop.f32.mrf.mxu0
    %v5463 = vadd.f32 %v5449, %v5462
    %5464 = vdwg.mxu0
    %5465 = vmatpush.bf16.msra.mxu0 0
    %5466 = vmatpush.bf16.msra.mxu0 0
    %5467 = vmatpush.bf16.msra.mxu0 0
    %5468 = vmatpush.bf16.msra.mxu0 0
    %5469 = vmatpush.bf16.msra.mxu0 %v5267
    %5470 = vmatpush.bf16.msra.mxu0 %v5263
    %5471 = vmatpush.bf16.msra.mxu0 %v5259
    %5472 = vmatpush.bf16.msra.mxu0 %v5255
    %5473 = vmatmul.bf16.gmra.mxu0 %v5351
    %v5474 = vpop.f32.mrf.mxu0
    %v5475 = vadd.f32 %v5461, %v5474
    %v5476 = vpop.f32.mrf.mxu0
    %v5477 = vadd.f32 %v5463, %v5476
    %5478 = vdwg.mxu0
    %5479 = vmatpush.bf16.msra.mxu0 %v5220
    %5480 = vmatpush.bf16.msra.mxu0 %v5216
    %5481 = vmatpush.bf16.msra.mxu0 %v5212
    %5482 = vmatpush.bf16.msra.mxu0 %v5208
    %5483 = vmatpush.bf16.msra.mxu0 %v5204
    %5484 = vmatpush.bf16.msra.mxu0 %v5200
    %5485 = vmatpush.bf16.msra.mxu0 %v5196
    %5486 = vmatpush.bf16.msra.mxu0 %v5192
    %5487 = vmatmul.bf16.gmra.mxu0 %v4944
    %v5488 = vpop.f32.mrf.mxu0
    %v5489 = vadd.f32 0.0, %v5488
    %v5490 = vpop.f32.mrf.mxu0
    %v5491 = vadd.f32 0.0, %v5490
    %5492 = vdwg.mxu0
    %5493 = vmatpush.bf16.msra.mxu0 %v5252
    %5494 = vmatpush.bf16.msra.mxu0 %v5248
    %5495 = vmatpush.bf16.msra.mxu0 %v5244
    %5496 = vmatpush.bf16.msra.mxu0 %v5240
    %5497 = vmatpush.bf16.msra.mxu0 %v5236
    %5498 = vmatpush.bf16.msra.mxu0 %v5232
    %5499 = vmatpush.bf16.msra.mxu0 %v5228
    %5500 = vmatpush.bf16.msra.mxu0 %v5224
    %5501 = vmatmul.bf16.gmra.mxu0 %v4945
    %v5502 = vpop.f32.mrf.mxu0
    %v5503 = vadd.f32 %v5489, %v5502
    %v5504 = vpop.f32.mrf.mxu0
    %v5505 = vadd.f32 %v5491, %v5504
    %5506 = vdwg.mxu0
    %5507 = vmatpush.bf16.msra.mxu0 0
    %5508 = vmatpush.bf16.msra.mxu0 0
    %5509 = vmatpush.bf16.msra.mxu0 0
    %5510 = vmatpush.bf16.msra.mxu0 0
    %5511 = vmatpush.bf16.msra.mxu0 %v5268
    %5512 = vmatpush.bf16.msra.mxu0 %v5264
    %5513 = vmatpush.bf16.msra.mxu0 %v5260
    %5514 = vmatpush.bf16.msra.mxu0 %v5256
    %5515 = vmatmul.bf16.gmra.mxu0 %v5351
    %v5516 = vpop.f32.mrf.mxu0
    %v5517 = vadd.f32 %v5503, %v5516
    %v5518 = vpop.f32.mrf.mxu0
    %v5519 = vadd.f32 %v5505, %v5518
    %5520 = vdwg.mxu0
    %v5525 = vunpack.c.l.b16 %v4733
    %v5526 = vunpack.c.h.b16 %v4733
    %v5527 = vunpack.c.l.b16 %v4734
    %v5528 = vunpack.c.l.b16 %v4735
    %v5529 = vunpack.c.h.b16 %v4735
    %v5530 = vunpack.c.l.b16 %v4736
    %v5531 = vpack.c.b16 %v5528, %v5525
    %v5532 = vpack.c.b16 %v5529, %v5526
    %v5533 = vpack.c.b16 %v5530, %v5527
    %v5616 = vunpack.c.l.b16 %v4773
    %v5617 = vunpack.c.h.b16 %v4773
    %v5618 = vunpack.c.l.b16 %v4774
    %v5619 = vunpack.c.h.b16 %v4774
    %v5620 = vunpack.c.l.b16 %v4775
    %v5621 = vunpack.c.h.b16 %v4775
    %v5622 = vunpack.c.l.b16 %v4776
    %v5623 = vunpack.c.h.b16 %v4776
    %v5624 = vunpack.c.l.b16 %v4777
    %v5625 = vunpack.c.h.b16 %v4777
    %v5626 = vunpack.c.l.b16 %v4778
    %v5627 = vunpack.c.h.b16 %v4778
    %v5628 = vunpack.c.l.b16 %v4779
    %v5629 = vunpack.c.h.b16 %v4779
    %v5630 = vunpack.c.l.b16 %v4780
    %v5631 = vunpack.c.h.b16 %v4780
    %v5632 = vunpack.c.l.b16 %v4781
    %v5633 = vunpack.c.h.b16 %v4781
    %v5634 = vunpack.c.l.b16 %v4782
    %v5635 = vunpack.c.h.b16 %v4782
    %v5636 = vunpack.c.l.b16 %v4783
    %v5637 = vunpack.c.h.b16 %v4783
    %v5638 = vunpack.c.l.b16 %v4784
    %v5639 = vunpack.c.h.b16 %v4784
    %v5640 = vunpack.c.l.b16 %v4785
    %v5641 = vunpack.c.h.b16 %v4785
    %v5642 = vunpack.c.l.b16 %v4786
    %v5643 = vunpack.c.h.b16 %v4786
    %v5644 = vunpack.c.l.b16 %v4787
    %v5645 = vunpack.c.h.b16 %v4787
    %v5646 = vunpack.c.l.b16 %v4788
    %v5647 = vunpack.c.h.b16 %v4788
    %v5648 = vunpack.c.l.b16 %v4789
    %v5649 = vunpack.c.h.b16 %v4789
    %v5650 = vunpack.c.l.b16 %v4790
    %v5651 = vunpack.c.h.b16 %v4790
    %v5652 = vunpack.c.l.b16 %v4791
    %v5653 = vunpack.c.h.b16 %v4791
    %v5654 = vunpack.c.l.b16 %v4792
    %v5655 = vunpack.c.h.b16 %v4792
    %v5656 = vunpack.c.l.b16 %v4793
    %v5657 = vunpack.c.h.b16 %v4793
    %v5658 = vunpack.c.l.b16 %v4794
    %v5659 = vunpack.c.h.b16 %v4794
    %v5660 = vunpack.c.l.b16 %v4795
    %v5661 = vunpack.c.h.b16 %v4795
    %v5662 = vunpack.c.l.b16 %v4796
    %v5663 = vunpack.c.h.b16 %v4796
    %v5664 = vunpack.c.l.b16 %v4797
    %v5665 = vunpack.c.h.b16 %v4797
    %v5666 = vunpack.c.l.b16 %v4798
    %v5667 = vunpack.c.h.b16 %v4798
    %v5668 = vunpack.c.l.b16 %v4799
    %v5669 = vunpack.c.h.b16 %v4799
    %v5670 = vunpack.c.l.b16 %v4800
    %v5671 = vunpack.c.h.b16 %v4800
    %v5672 = vunpack.c.l.b16 %v4801
    %v5673 = vunpack.c.h.b16 %v4801
    %v5674 = vunpack.c.l.b16 %v4802
    %v5675 = vunpack.c.h.b16 %v4802
    %v5676 = vunpack.c.l.b16 %v4803
    %v5677 = vunpack.c.h.b16 %v4803
    %v5678 = vunpack.c.l.b16 %v4804
    %v5679 = vunpack.c.h.b16 %v4804
    %v5680 = vunpack.c.l.b16 %v4805
    %v5681 = vunpack.c.h.b16 %v4805
    %v5682 = vunpack.c.l.b16 %v4806
    %v5683 = vunpack.c.h.b16 %v4806
    %v5684 = vunpack.c.l.b16 %v4807
    %v5685 = vunpack.c.h.b16 %v4807
    %v5686 = vunpack.c.l.b16 %v4808
    %v5687 = vunpack.c.h.b16 %v4808
    %v5688 = vunpack.c.l.b16 %v4809
    %v5689 = vunpack.c.h.b16 %v4809
    %v5690 = vunpack.c.l.b16 %v4810
    %v5691 = vunpack.c.h.b16 %v4810
    %v5692 = vunpack.c.l.b16 %v4811
    %v5693 = vunpack.c.h.b16 %v4811
    %v5694 = vunpack.c.l.b16 %v4812
    %v5695 = vunpack.c.h.b16 %v4812
    %v5696 = vunpack.c.l.b16 %v4813
    %v5697 = vunpack.c.h.b16 %v4813
    %v5698 = vunpack.c.l.b16 %v4814
    %v5699 = vunpack.c.h.b16 %v4814
    %v5700 = vunpack.c.l.b16 %v4815
    %v5701 = vunpack.c.h.b16 %v4815
    %v5702 = vunpack.c.l.b16 %v4816
    %v5703 = vunpack.c.h.b16 %v4816
    %v5704 = vunpack.c.l.b16 %v4817
    %v5705 = vunpack.c.h.b16 %v4817
    %v5706 = vunpack.c.l.b16 %v4818
    %v5707 = vunpack.c.h.b16 %v4818
    %v5708 = vunpack.c.l.b16 %v4819
    %v5709 = vunpack.c.h.b16 %v4819
    %v5710 = vunpack.c.l.b16 %v4820
    %v5711 = vunpack.c.h.b16 %v4820
    %v5712 = vunpack.c.l.b16 %v4821
    %v5713 = vunpack.c.h.b16 %v4821
    %v5714 = vunpack.c.l.b16 %v4822
    %v5715 = vunpack.c.h.b16 %v4822
    %v5716 = vunpack.c.l.b16 %v4823
    %v5717 = vunpack.c.h.b16 %v4823
    %v5718 = vunpack.c.l.b16 %v4824
    %v5719 = vunpack.c.h.b16 %v4824
    %v5720 = vunpack.c.l.b16 %v4825
    %v5721 = vunpack.c.h.b16 %v4825
    %v5722 = vunpack.c.l.b16 %v4826
    %v5723 = vunpack.c.h.b16 %v4826
    %v5724 = vunpack.c.l.b16 %v4827
    %v5725 = vunpack.c.h.b16 %v4827
    %v5726 = vunpack.c.l.b16 %v4828
    %v5727 = vunpack.c.h.b16 %v4828
    %v5728 = vunpack.c.l.b16 %v4829
    %v5729 = vunpack.c.h.b16 %v4829
    %v5730 = vunpack.c.l.b16 %v4830
    %v5731 = vunpack.c.h.b16 %v4830
    %v5732 = vunpack.c.l.b16 %v4831
    %v5733 = vunpack.c.h.b16 %v4831
    %v5734 = vunpack.c.l.b16 %v4832
    %v5735 = vunpack.c.h.b16 %v4832
    %v5736 = vunpack.c.l.b16 %v4833
    %v5737 = vunpack.c.h.b16 %v4833
    %v5738 = vunpack.c.l.b16 %v4834
    %v5739 = vunpack.c.h.b16 %v4834
    %v5740 = vunpack.c.l.b16 %v4835
    %v5741 = vunpack.c.h.b16 %v4835
    %v5742 = vunpack.c.l.b16 %v4836
    %v5743 = vunpack.c.h.b16 %v4836
    %v5744 = vunpack.c.l.b16 %v4837
    %v5745 = vunpack.c.h.b16 %v4837
    %v5746 = vunpack.c.l.b16 %v4838
    %v5747 = vunpack.c.h.b16 %v4838
    %v5748 = vunpack.c.l.b16 %v4839
    %v5749 = vunpack.c.h.b16 %v4839
    %v5750 = vunpack.c.l.b16 %v4840
    %v5751 = vunpack.c.h.b16 %v4840
    %v5752 = vunpack.c.l.b16 %v4841
    %v5753 = vunpack.c.h.b16 %v4841
    %v5754 = vunpack.c.l.b16 %v4842
    %v5755 = vunpack.c.h.b16 %v4842
    %v5756 = vunpack.c.l.b16 %v4843
    %v5757 = vunpack.c.h.b16 %v4843
    %v5758 = vunpack.c.l.b16 %v4844
    %v5759 = vunpack.c.h.b16 %v4844
    %v5760 = vunpack.c.l.b16 %v4845
    %v5761 = vunpack.c.h.b16 %v4845
    %v5762 = vunpack.c.l.b16 %v4846
    %v5763 = vunpack.c.h.b16 %v4846
    %v5764 = vunpack.c.l.b16 %v4847
    %v5765 = vunpack.c.h.b16 %v4847
    %v5766 = vunpack.c.l.b16 %v4848
    %v5767 = vunpack.c.h.b16 %v4848
    %v5768 = vunpack.c.l.b16 %v4849
    %v5769 = vunpack.c.h.b16 %v4849
    %v5770 = vunpack.c.l.b16 %v4850
    %v5771 = vunpack.c.h.b16 %v4850
    %v5772 = vunpack.c.l.b16 %v4851
    %v5773 = vunpack.c.h.b16 %v4851
    %v5774 = vunpack.c.l.b16 %v4852
    %v5775 = vunpack.c.h.b16 %v4852
    %v5776 = vpack.c.b16 %v5620, %v5616
    %v5777 = vpack.c.b16 %v5621, %v5617
    %v5778 = vpack.c.b16 %v5622, %v5618
    %v5779 = vpack.c.b16 %v5623, %v5619
    %v5780 = vpack.c.b16 %v5628, %v5624
    %v5781 = vpack.c.b16 %v5629, %v5625
    %v5782 = vpack.c.b16 %v5630, %v5626
    %v5783 = vpack.c.b16 %v5631, %v5627
    %v5784 = vpack.c.b16 %v5636, %v5632
    %v5785 = vpack.c.b16 %v5637, %v5633
    %v5786 = vpack.c.b16 %v5638, %v5634
    %v5787 = vpack.c.b16 %v5639, %v5635
    %v5788 = vpack.c.b16 %v5644, %v5640
    %v5789 = vpack.c.b16 %v5645, %v5641
    %v5790 = vpack.c.b16 %v5646, %v5642
    %v5791 = vpack.c.b16 %v5647, %v5643
    %v5792 = vpack.c.b16 %v5652, %v5648
    %v5793 = vpack.c.b16 %v5653, %v5649
    %v5794 = vpack.c.b16 %v5654, %v5650
    %v5795 = vpack.c.b16 %v5655, %v5651
    %v5796 = vpack.c.b16 %v5660, %v5656
    %v5797 = vpack.c.b16 %v5661, %v5657
    %v5798 = vpack.c.b16 %v5662, %v5658
    %v5799 = vpack.c.b16 %v5663, %v5659
    %v5800 = vpack.c.b16 %v5668, %v5664
    %v5801 = vpack.c.b16 %v5669, %v5665
    %v5802 = vpack.c.b16 %v5670, %v5666
    %v5803 = vpack.c.b16 %v5671, %v5667
    %v5804 = vpack.c.b16 %v5676, %v5672
    %v5805 = vpack.c.b16 %v5677, %v5673
    %v5806 = vpack.c.b16 %v5678, %v5674
    %v5807 = vpack.c.b16 %v5679, %v5675
    %v5808 = vpack.c.b16 %v5684, %v5680
    %v5809 = vpack.c.b16 %v5685, %v5681
    %v5810 = vpack.c.b16 %v5686, %v5682
    %v5811 = vpack.c.b16 %v5687, %v5683
    %v5812 = vpack.c.b16 %v5692, %v5688
    %v5813 = vpack.c.b16 %v5693, %v5689
    %v5814 = vpack.c.b16 %v5694, %v5690
    %v5815 = vpack.c.b16 %v5695, %v5691
    %v5816 = vpack.c.b16 %v5700, %v5696
    %v5817 = vpack.c.b16 %v5701, %v5697
    %v5818 = vpack.c.b16 %v5702, %v5698
    %v5819 = vpack.c.b16 %v5703, %v5699
    %v5820 = vpack.c.b16 %v5708, %v5704
    %v5821 = vpack.c.b16 %v5709, %v5705
    %v5822 = vpack.c.b16 %v5710, %v5706
    %v5823 = vpack.c.b16 %v5711, %v5707
    %v5824 = vpack.c.b16 %v5716, %v5712
    %v5825 = vpack.c.b16 %v5717, %v5713
    %v5826 = vpack.c.b16 %v5718, %v5714
    %v5827 = vpack.c.b16 %v5719, %v5715
    %v5828 = vpack.c.b16 %v5724, %v5720
    %v5829 = vpack.c.b16 %v5725, %v5721
    %v5830 = vpack.c.b16 %v5726, %v5722
    %v5831 = vpack.c.b16 %v5727, %v5723
    %v5832 = vpack.c.b16 %v5732, %v5728
    %v5833 = vpack.c.b16 %v5733, %v5729
    %v5834 = vpack.c.b16 %v5734, %v5730
    %v5835 = vpack.c.b16 %v5735, %v5731
    %v5836 = vpack.c.b16 %v5740, %v5736
    %v5837 = vpack.c.b16 %v5741, %v5737
    %v5838 = vpack.c.b16 %v5742, %v5738
    %v5839 = vpack.c.b16 %v5743, %v5739
    %v5840 = vpack.c.b16 %v5748, %v5744
    %v5841 = vpack.c.b16 %v5749, %v5745
    %v5842 = vpack.c.b16 %v5750, %v5746
    %v5843 = vpack.c.b16 %v5751, %v5747
    %v5844 = vpack.c.b16 %v5756, %v5752
    %v5845 = vpack.c.b16 %v5757, %v5753
    %v5846 = vpack.c.b16 %v5758, %v5754
    %v5847 = vpack.c.b16 %v5759, %v5755
    %v5848 = vpack.c.b16 %v5764, %v5760
    %v5849 = vpack.c.b16 %v5765, %v5761
    %v5850 = vpack.c.b16 %v5766, %v5762
    %v5851 = vpack.c.b16 %v5767, %v5763
    %v5852 = vpack.c.b16 %v5772, %v5768
    %v5853 = vpack.c.b16 %v5773, %v5769
    %v5854 = vpack.c.b16 %v5774, %v5770
    %v5855 = vpack.c.b16 %v5775, %v5771
    %v5937 = vsel %vm5349, %v5533, 0
    %5939 = vmatpush.bf16.msra.mxu0 %v5804
    %5940 = vmatpush.bf16.msra.mxu0 %v5800
    %5941 = vmatpush.bf16.msra.mxu0 %v5796
    %5942 = vmatpush.bf16.msra.mxu0 %v5792
    %5943 = vmatpush.bf16.msra.mxu0 %v5788
    %5944 = vmatpush.bf16.msra.mxu0 %v5784
    %5945 = vmatpush.bf16.msra.mxu0 %v5780
    %5946 = vmatpush.bf16.msra.mxu0 %v5776
    %5947 = vmatmul.bf16.gmra.mxu0 %v5531
    %v5948 = vpop.f32.mrf.mxu0
    %v5949 = vadd.f32 %v5391, %v5948
    %v5950 = vpop.f32.mrf.mxu0
    %v5951 = vadd.f32 %v5393, %v5950
    %5952 = vdwg.mxu0
    %5953 = vmatpush.bf16.msra.mxu0 %v5836
    %5954 = vmatpush.bf16.msra.mxu0 %v5832
    %5955 = vmatpush.bf16.msra.mxu0 %v5828
    %5956 = vmatpush.bf16.msra.mxu0 %v5824
    %5957 = vmatpush.bf16.msra.mxu0 %v5820
    %5958 = vmatpush.bf16.msra.mxu0 %v5816
    %5959 = vmatpush.bf16.msra.mxu0 %v5812
    %5960 = vmatpush.bf16.msra.mxu0 %v5808
    %5961 = vmatmul.bf16.gmra.mxu0 %v5532
    %v5962 = vpop.f32.mrf.mxu0
    %v5963 = vadd.f32 %v5949, %v5962
    %v5964 = vpop.f32.mrf.mxu0
    %v5965 = vadd.f32 %v5951, %v5964
    %5966 = vdwg.mxu0
    %5967 = vmatpush.bf16.msra.mxu0 0
    %5968 = vmatpush.bf16.msra.mxu0 0
    %5969 = vmatpush.bf16.msra.mxu0 0
    %5970 = vmatpush.bf16.msra.mxu0 0
    %5971 = vmatpush.bf16.msra.mxu0 %v5852
    %5972 = vmatpush.bf16.msra.mxu0 %v5848
    %5973 = vmatpush.bf16.msra.mxu0 %v5844
    %5974 = vmatpush.bf16.msra.mxu0 %v5840
    %5975 = vmatmul.bf16.gmra.mxu0 %v5937
    %v5976 = vpop.f32.mrf.mxu0
    %v5977 = vadd.f32 %v5963, %v5976
    %v5978 = vpop.f32.mrf.mxu0
    %v5979 = vadd.f32 %v5965, %v5978
    %5980 = vdwg.mxu0
    %5981 = vmatpush.bf16.msra.mxu0 %v5805
    %5982 = vmatpush.bf16.msra.mxu0 %v5801
    %5983 = vmatpush.bf16.msra.mxu0 %v5797
    %5984 = vmatpush.bf16.msra.mxu0 %v5793
    %5985 = vmatpush.bf16.msra.mxu0 %v5789
    %5986 = vmatpush.bf16.msra.mxu0 %v5785
    %5987 = vmatpush.bf16.msra.mxu0 %v5781
    %5988 = vmatpush.bf16.msra.mxu0 %v5777
    %5989 = vmatmul.bf16.gmra.mxu0 %v5531
    %v5990 = vpop.f32.mrf.mxu0
    %v5991 = vadd.f32 %v5433, %v5990
    %v5992 = vpop.f32.mrf.mxu0
    %v5993 = vadd.f32 %v5435, %v5992
    %5994 = vdwg.mxu0
    %5995 = vmatpush.bf16.msra.mxu0 %v5837
    %5996 = vmatpush.bf16.msra.mxu0 %v5833
    %5997 = vmatpush.bf16.msra.mxu0 %v5829
    %5998 = vmatpush.bf16.msra.mxu0 %v5825
    %5999 = vmatpush.bf16.msra.mxu0 %v5821
    %6000 = vmatpush.bf16.msra.mxu0 %v5817
    %6001 = vmatpush.bf16.msra.mxu0 %v5813
    %6002 = vmatpush.bf16.msra.mxu0 %v5809
    %6003 = vmatmul.bf16.gmra.mxu0 %v5532
    %v6004 = vpop.f32.mrf.mxu0
    %v6005 = vadd.f32 %v5991, %v6004
    %v6006 = vpop.f32.mrf.mxu0
    %v6007 = vadd.f32 %v5993, %v6006
    %6008 = vdwg.mxu0
    %6009 = vmatpush.bf16.msra.mxu0 0
    %6010 = vmatpush.bf16.msra.mxu0 0
    %6011 = vmatpush.bf16.msra.mxu0 0
    %6012 = vmatpush.bf16.msra.mxu0 0
    %6013 = vmatpush.bf16.msra.mxu0 %v5853
    %6014 = vmatpush.bf16.msra.mxu0 %v5849
    %6015 = vmatpush.bf16.msra.mxu0 %v5845
    %6016 = vmatpush.bf16.msra.mxu0 %v5841
    %6017 = vmatmul.bf16.gmra.mxu0 %v5937
    %v6018 = vpop.f32.mrf.mxu0
    %v6019 = vadd.f32 %v6005, %v6018
    %v6020 = vpop.f32.mrf.mxu0
    %v6021 = vadd.f32 %v6007, %v6020
    %6022 = vdwg.mxu0
    %6023 = vmatpush.bf16.msra.mxu0 %v5806
    %6024 = vmatpush.bf16.msra.mxu0 %v5802
    %6025 = vmatpush.bf16.msra.mxu0 %v5798
    %6026 = vmatpush.bf16.msra.mxu0 %v5794
    %6027 = vmatpush.bf16.msra.mxu0 %v5790
    %6028 = vmatpush.bf16.msra.mxu0 %v5786
    %6029 = vmatpush.bf16.msra.mxu0 %v5782
    %6030 = vmatpush.bf16.msra.mxu0 %v5778
    %6031 = vmatmul.bf16.gmra.mxu0 %v5531
    %v6032 = vpop.f32.mrf.mxu0
    %v6033 = vadd.f32 %v5475, %v6032
    %v6034 = vpop.f32.mrf.mxu0
    %v6035 = vadd.f32 %v5477, %v6034
    %6036 = vdwg.mxu0
    %6037 = vmatpush.bf16.msra.mxu0 %v5838
    %6038 = vmatpush.bf16.msra.mxu0 %v5834
    %6039 = vmatpush.bf16.msra.mxu0 %v5830
    %6040 = vmatpush.bf16.msra.mxu0 %v5826
    %6041 = vmatpush.bf16.msra.mxu0 %v5822
    %6042 = vmatpush.bf16.msra.mxu0 %v5818
    %6043 = vmatpush.bf16.msra.mxu0 %v5814
    %6044 = vmatpush.bf16.msra.mxu0 %v5810
    %6045 = vmatmul.bf16.gmra.mxu0 %v5532
    %v6046 = vpop.f32.mrf.mxu0
    %v6047 = vadd.f32 %v6033, %v6046
    %v6048 = vpop.f32.mrf.mxu0
    %v6049 = vadd.f32 %v6035, %v6048
    %6050 = vdwg.mxu0
    %6051 = vmatpush.bf16.msra.mxu0 0
    %6052 = vmatpush.bf16.msra.mxu0 0
    %6053 = vmatpush.bf16.msra.mxu0 0
    %6054 = vmatpush.bf16.msra.mxu0 0
    %6055 = vmatpush.bf16.msra.mxu0 %v5854
    %6056 = vmatpush.bf16.msra.mxu0 %v5850
    %6057 = vmatpush.bf16.msra.mxu0 %v5846
    %6058 = vmatpush.bf16.msra.mxu0 %v5842
    %6059 = vmatmul.bf16.gmra.mxu0 %v5937
    %v6060 = vpop.f32.mrf.mxu0
    %v6061 = vadd.f32 %v6047, %v6060
    %v6062 = vpop.f32.mrf.mxu0
    %v6063 = vadd.f32 %v6049, %v6062
    %6064 = vdwg.mxu0
    %6065 = vmatpush.bf16.msra.mxu0 %v5807
    %6066 = vmatpush.bf16.msra.mxu0 %v5803
    %6067 = vmatpush.bf16.msra.mxu0 %v5799
    %6068 = vmatpush.bf16.msra.mxu0 %v5795
    %6069 = vmatpush.bf16.msra.mxu0 %v5791
    %6070 = vmatpush.bf16.msra.mxu0 %v5787
    %6071 = vmatpush.bf16.msra.mxu0 %v5783
    %6072 = vmatpush.bf16.msra.mxu0 %v5779
    %6073 = vmatmul.bf16.gmra.mxu0 %v5531
    %v6074 = vpop.f32.mrf.mxu0
    %v6075 = vadd.f32 %v5517, %v6074
    %v6076 = vpop.f32.mrf.mxu0
    %v6077 = vadd.f32 %v5519, %v6076
    %6078 = vdwg.mxu0
    %6079 = vmatpush.bf16.msra.mxu0 %v5839
    %6080 = vmatpush.bf16.msra.mxu0 %v5835
    %6081 = vmatpush.bf16.msra.mxu0 %v5831
    %6082 = vmatpush.bf16.msra.mxu0 %v5827
    %6083 = vmatpush.bf16.msra.mxu0 %v5823
    %6084 = vmatpush.bf16.msra.mxu0 %v5819
    %6085 = vmatpush.bf16.msra.mxu0 %v5815
    %6086 = vmatpush.bf16.msra.mxu0 %v5811
    %6087 = vmatmul.bf16.gmra.mxu0 %v5532
    %v6088 = vpop.f32.mrf.mxu0
    %v6089 = vadd.f32 %v6075, %v6088
    %v6090 = vpop.f32.mrf.mxu0
    %v6091 = vadd.f32 %v6077, %v6090
    %6092 = vdwg.mxu0
    %6093 = vmatpush.bf16.msra.mxu0 0
    %6094 = vmatpush.bf16.msra.mxu0 0
    %6095 = vmatpush.bf16.msra.mxu0 0
    %6096 = vmatpush.bf16.msra.mxu0 0
    %6097 = vmatpush.bf16.msra.mxu0 %v5855
    %6098 = vmatpush.bf16.msra.mxu0 %v5851
    %6099 = vmatpush.bf16.msra.mxu0 %v5847
    %6100 = vmatpush.bf16.msra.mxu0 %v5843
    %6101 = vmatmul.bf16.gmra.mxu0 %v5937
    %v6102 = vpop.f32.mrf.mxu0
    %v6103 = vadd.f32 %v6089, %v6102
    %v6104 = vpop.f32.mrf.mxu0
    %v6105 = vadd.f32 %v6091, %v6104
    %6106 = vdwg.mxu0
    %s6107 = scalar_lea.vmem [#allocation9], 1280
    %v6108 = vld [vmem:[%s6107] sm:$0xff]
    %v6109 = vld [vmem:[%s6107 + $0x8] sm:$0xff]
    %v6110 = vld [vmem:[%s6107 + $0x10] sm:$0xff]
    %v6111 = vld [vmem:[%s6107 + $0x18] sm:$0xff]
    %v6112 = vld [vmem:[%s6107 + $0x20] sm:$0xff]
    %v6113 = vld [vmem:[%s6107 + $0x28] sm:$0xff]
    %v6114 = vld [vmem:[%s6107 + $0x30] sm:$0xff]
    %v6115 = vld [vmem:[%s6107 + $0x38] sm:$0xff]
    %v6116 = vld [vmem:[%s6107 + $0x40] sm:$0xff]
    %v6117 = vld [vmem:[%s6107 + $0x48] sm:$0xff]
    %v6118 = vld [vmem:[%s6107 + $0x50] sm:$0xff]
    %v6119 = vld [vmem:[%s6107 + $0x58] sm:$0xff]
    %v6120 = vld [vmem:[%s6107 + $0x60] sm:$0xff]
    %v6121 = vld [vmem:[%s6107 + $0x68] sm:$0xff]
    %v6122 = vld [vmem:[%s6107 + $0x70] sm:$0xff]
    %v6123 = vld [vmem:[%s6107 + $0x78] sm:$0xff]
    %v6124 = vld [vmem:[%s6107 + $0x80] sm:$0xff]
    %v6125 = vld [vmem:[%s6107 + $0x88] sm:$0xff]
    %v6126 = vld [vmem:[%s6107 + $0x90] sm:$0xff]
    %v6127 = vld [vmem:[%s6107 + $0x98] sm:$0xff]
    %v6128 = vld [vmem:[%s6107 + $0xa0] sm:$0xff]
    %v6129 = vld [vmem:[%s6107 + $0xa8] sm:$0xff]
    %v6130 = vld [vmem:[%s6107 + $0xb0] sm:$0xff]
    %v6131 = vld [vmem:[%s6107 + $0xb8] sm:$0xff]
    %v6132 = vld [vmem:[%s6107 + $0xc0] sm:$0xff]
    %v6133 = vld [vmem:[%s6107 + $0xc8] sm:$0xff]
    %v6134 = vld [vmem:[%s6107 + $0xd0] sm:$0xff]
    %v6135 = vld [vmem:[%s6107 + $0xd8] sm:$0xff]
    %v6136 = vld [vmem:[%s6107 + $0xe0] sm:$0xff]
    %v6137 = vld [vmem:[%s6107 + $0xe8] sm:$0xff]
    %v6138 = vld [vmem:[%s6107 + $0xf0] sm:$0xff]
    %v6139 = vld [vmem:[%s6107 + $0xf8] sm:$0xff]
    %v6140 = vld [vmem:[%s6107 + $0x100] sm:$0xff]
    %v6141 = vld [vmem:[%s6107 + $0x108] sm:$0xff]
    %v6142 = vld [vmem:[%s6107 + $0x110] sm:$0xff]
    %v6143 = vld [vmem:[%s6107 + $0x118] sm:$0xff]
    %v6144 = vld [vmem:[%s6107 + $0x120] sm:$0xff]
    %v6145 = vld [vmem:[%s6107 + $0x128] sm:$0xff]
    %v6146 = vld [vmem:[%s6107 + $0x130] sm:$0xff]
    %v6147 = vld [vmem:[%s6107 + $0x138] sm:$0xff]
    %v6148 = vld [vmem:[%s6107 + $0x140] sm:$0xff]
    %v6149 = vld [vmem:[%s6107 + $0x148] sm:$0xff]
    %v6150 = vld [vmem:[%s6107 + $0x150] sm:$0xff]
    %v6151 = vld [vmem:[%s6107 + $0x158] sm:$0xff]
    %v6152 = vld [vmem:[%s6107 + $0x160] sm:$0xff]
    %v6153 = vld [vmem:[%s6107 + $0x168] sm:$0xff]
    %v6154 = vld [vmem:[%s6107 + $0x170] sm:$0xff]
    %v6155 = vld [vmem:[%s6107 + $0x178] sm:$0xff]
    %v6156 = vld [vmem:[%s6107 + $0x180] sm:$0xff]
    %v6157 = vld [vmem:[%s6107 + $0x188] sm:$0xff]
    %v6158 = vld [vmem:[%s6107 + $0x190] sm:$0xff]
    %v6159 = vld [vmem:[%s6107 + $0x198] sm:$0xff]
    %v6160 = vld [vmem:[%s6107 + $0x1a0] sm:$0xff]
    %v6161 = vld [vmem:[%s6107 + $0x1a8] sm:$0xff]
    %v6162 = vld [vmem:[%s6107 + $0x1b0] sm:$0xff]
    %v6163 = vld [vmem:[%s6107 + $0x1b8] sm:$0xff]
    %v6164 = vld [vmem:[%s6107 + $0x1c0] sm:$0xff]
    %v6165 = vld [vmem:[%s6107 + $0x1c8] sm:$0xff]
    %v6166 = vld [vmem:[%s6107 + $0x1d0] sm:$0xff]
    %v6167 = vld [vmem:[%s6107 + $0x1d8] sm:$0xff]
    %v6168 = vld [vmem:[%s6107 + $0x1e0] sm:$0xff]
    %v6169 = vld [vmem:[%s6107 + $0x1e8] sm:$0xff]
    %v6170 = vld [vmem:[%s6107 + $0x1f0] sm:$0xff]
    %v6171 = vld [vmem:[%s6107 + $0x1f8] sm:$0xff]
    %v6172 = vld [vmem:[%s6107 + $0x200] sm:$0xff]
    %v6173 = vld [vmem:[%s6107 + $0x208] sm:$0xff]
    %v6174 = vld [vmem:[%s6107 + $0x210] sm:$0xff]
    %v6175 = vld [vmem:[%s6107 + $0x218] sm:$0xff]
    %v6176 = vld [vmem:[%s6107 + $0x220] sm:$0xff]
    %v6177 = vld [vmem:[%s6107 + $0x228] sm:$0xff]
    %v6178 = vld [vmem:[%s6107 + $0x230] sm:$0xff]
    %v6179 = vld [vmem:[%s6107 + $0x238] sm:$0xff]
    %v6180 = vld [vmem:[%s6107 + $0x240] sm:$0xff]
    %v6181 = vld [vmem:[%s6107 + $0x248] sm:$0xff]
    %v6182 = vld [vmem:[%s6107 + $0x250] sm:$0xff]
    %v6183 = vld [vmem:[%s6107 + $0x258] sm:$0xff]
    %v6184 = vld [vmem:[%s6107 + $0x260] sm:$0xff]
    %v6185 = vld [vmem:[%s6107 + $0x268] sm:$0xff]
    %v6186 = vld [vmem:[%s6107 + $0x270] sm:$0xff]
    %v6187 = vld [vmem:[%s6107 + $0x278] sm:$0xff]
    %v6192 = vunpack.c.l.b16 %v4741
    %v6193 = vunpack.c.h.b16 %v4741
    %v6194 = vunpack.c.l.b16 %v4742
    %v6195 = vunpack.c.l.b16 %v4743
    %v6196 = vunpack.c.h.b16 %v4743
    %v6197 = vunpack.c.l.b16 %v4744
    %v6198 = vpack.c.b16 %v6195, %v6192
    %v6199 = vpack.c.b16 %v6196, %v6193
    %v6200 = vpack.c.b16 %v6197, %v6194
    %v6283 = vunpack.c.l.b16 %v6108
    %v6284 = vunpack.c.h.b16 %v6108
    %v6285 = vunpack.c.l.b16 %v6109
    %v6286 = vunpack.c.h.b16 %v6109
    %v6287 = vunpack.c.l.b16 %v6110
    %v6288 = vunpack.c.h.b16 %v6110
    %v6289 = vunpack.c.l.b16 %v6111
    %v6290 = vunpack.c.h.b16 %v6111
    %v6291 = vunpack.c.l.b16 %v6112
    %v6292 = vunpack.c.h.b16 %v6112
    %v6293 = vunpack.c.l.b16 %v6113
    %v6294 = vunpack.c.h.b16 %v6113
    %v6295 = vunpack.c.l.b16 %v6114
    %v6296 = vunpack.c.h.b16 %v6114
    %v6297 = vunpack.c.l.b16 %v6115
    %v6298 = vunpack.c.h.b16 %v6115
    %v6299 = vunpack.c.l.b16 %v6116
    %v6300 = vunpack.c.h.b16 %v6116
    %v6301 = vunpack.c.l.b16 %v6117
    %v6302 = vunpack.c.h.b16 %v6117
    %v6303 = vunpack.c.l.b16 %v6118
    %v6304 = vunpack.c.h.b16 %v6118
    %v6305 = vunpack.c.l.b16 %v6119
    %v6306 = vunpack.c.h.b16 %v6119
    %v6307 = vunpack.c.l.b16 %v6120
    %v6308 = vunpack.c.h.b16 %v6120
    %v6309 = vunpack.c.l.b16 %v6121
    %v6310 = vunpack.c.h.b16 %v6121
    %v6311 = vunpack.c.l.b16 %v6122
    %v6312 = vunpack.c.h.b16 %v6122
    %v6313 = vunpack.c.l.b16 %v6123
    %v6314 = vunpack.c.h.b16 %v6123
    %v6315 = vunpack.c.l.b16 %v6124
    %v6316 = vunpack.c.h.b16 %v6124
    %v6317 = vunpack.c.l.b16 %v6125
    %v6318 = vunpack.c.h.b16 %v6125
    %v6319 = vunpack.c.l.b16 %v6126
    %v6320 = vunpack.c.h.b16 %v6126
    %v6321 = vunpack.c.l.b16 %v6127
    %v6322 = vunpack.c.h.b16 %v6127
    %v6323 = vunpack.c.l.b16 %v6128
    %v6324 = vunpack.c.h.b16 %v6128
    %v6325 = vunpack.c.l.b16 %v6129
    %v6326 = vunpack.c.h.b16 %v6129
    %v6327 = vunpack.c.l.b16 %v6130
    %v6328 = vunpack.c.h.b16 %v6130
    %v6329 = vunpack.c.l.b16 %v6131
    %v6330 = vunpack.c.h.b16 %v6131
    %v6331 = vunpack.c.l.b16 %v6132
    %v6332 = vunpack.c.h.b16 %v6132
    %v6333 = vunpack.c.l.b16 %v6133
    %v6334 = vunpack.c.h.b16 %v6133
    %v6335 = vunpack.c.l.b16 %v6134
    %v6336 = vunpack.c.h.b16 %v6134
    %v6337 = vunpack.c.l.b16 %v6135
    %v6338 = vunpack.c.h.b16 %v6135
    %v6339 = vunpack.c.l.b16 %v6136
    %v6340 = vunpack.c.h.b16 %v6136
    %v6341 = vunpack.c.l.b16 %v6137
    %v6342 = vunpack.c.h.b16 %v6137
    %v6343 = vunpack.c.l.b16 %v6138
    %v6344 = vunpack.c.h.b16 %v6138
    %v6345 = vunpack.c.l.b16 %v6139
    %v6346 = vunpack.c.h.b16 %v6139
    %v6347 = vunpack.c.l.b16 %v6140
    %v6348 = vunpack.c.h.b16 %v6140
    %v6349 = vunpack.c.l.b16 %v6141
    %v6350 = vunpack.c.h.b16 %v6141
    %v6351 = vunpack.c.l.b16 %v6142
    %v6352 = vunpack.c.h.b16 %v6142
    %v6353 = vunpack.c.l.b16 %v6143
    %v6354 = vunpack.c.h.b16 %v6143
    %v6355 = vunpack.c.l.b16 %v6144
    %v6356 = vunpack.c.h.b16 %v6144
    %v6357 = vunpack.c.l.b16 %v6145
    %v6358 = vunpack.c.h.b16 %v6145
    %v6359 = vunpack.c.l.b16 %v6146
    %v6360 = vunpack.c.h.b16 %v6146
    %v6361 = vunpack.c.l.b16 %v6147
    %v6362 = vunpack.c.h.b16 %v6147
    %v6363 = vunpack.c.l.b16 %v6148
    %v6364 = vunpack.c.h.b16 %v6148
    %v6365 = vunpack.c.l.b16 %v6149
    %v6366 = vunpack.c.h.b16 %v6149
    %v6367 = vunpack.c.l.b16 %v6150
    %v6368 = vunpack.c.h.b16 %v6150
    %v6369 = vunpack.c.l.b16 %v6151
    %v6370 = vunpack.c.h.b16 %v6151
    %v6371 = vunpack.c.l.b16 %v6152
    %v6372 = vunpack.c.h.b16 %v6152
    %v6373 = vunpack.c.l.b16 %v6153
    %v6374 = vunpack.c.h.b16 %v6153
    %v6375 = vunpack.c.l.b16 %v6154
    %v6376 = vunpack.c.h.b16 %v6154
    %v6377 = vunpack.c.l.b16 %v6155
    %v6378 = vunpack.c.h.b16 %v6155
    %v6379 = vunpack.c.l.b16 %v6156
    %v6380 = vunpack.c.h.b16 %v6156
    %v6381 = vunpack.c.l.b16 %v6157
    %v6382 = vunpack.c.h.b16 %v6157
    %v6383 = vunpack.c.l.b16 %v6158
    %v6384 = vunpack.c.h.b16 %v6158
    %v6385 = vunpack.c.l.b16 %v6159
    %v6386 = vunpack.c.h.b16 %v6159
    %v6387 = vunpack.c.l.b16 %v6160
    %v6388 = vunpack.c.h.b16 %v6160
    %v6389 = vunpack.c.l.b16 %v6161
    %v6390 = vunpack.c.h.b16 %v6161
    %v6391 = vunpack.c.l.b16 %v6162
    %v6392 = vunpack.c.h.b16 %v6162
    %v6393 = vunpack.c.l.b16 %v6163
    %v6394 = vunpack.c.h.b16 %v6163
    %v6395 = vunpack.c.l.b16 %v6164
    %v6396 = vunpack.c.h.b16 %v6164
    %v6397 = vunpack.c.l.b16 %v6165
    %v6398 = vunpack.c.h.b16 %v6165
    %v6399 = vunpack.c.l.b16 %v6166
    %v6400 = vunpack.c.h.b16 %v6166
    %v6401 = vunpack.c.l.b16 %v6167
    %v6402 = vunpack.c.h.b16 %v6167
    %v6403 = vunpack.c.l.b16 %v6168
    %v6404 = vunpack.c.h.b16 %v6168
    %v6405 = vunpack.c.l.b16 %v6169
    %v6406 = vunpack.c.h.b16 %v6169
    %v6407 = vunpack.c.l.b16 %v6170
    %v6408 = vunpack.c.h.b16 %v6170
    %v6409 = vunpack.c.l.b16 %v6171
    %v6410 = vunpack.c.h.b16 %v6171
    %v6411 = vunpack.c.l.b16 %v6172
    %v6412 = vunpack.c.h.b16 %v6172
    %v6413 = vunpack.c.l.b16 %v6173
    %v6414 = vunpack.c.h.b16 %v6173
    %v6415 = vunpack.c.l.b16 %v6174
    %v6416 = vunpack.c.h.b16 %v6174
    %v6417 = vunpack.c.l.b16 %v6175
    %v6418 = vunpack.c.h.b16 %v6175
    %v6419 = vunpack.c.l.b16 %v6176
    %v6420 = vunpack.c.h.b16 %v6176
    %v6421 = vunpack.c.l.b16 %v6177
    %v6422 = vunpack.c.h.b16 %v6177
    %v6423 = vunpack.c.l.b16 %v6178
    %v6424 = vunpack.c.h.b16 %v6178
    %v6425 = vunpack.c.l.b16 %v6179
    %v6426 = vunpack.c.h.b16 %v6179
    %v6427 = vunpack.c.l.b16 %v6180
    %v6428 = vunpack.c.h.b16 %v6180
    %v6429 = vunpack.c.l.b16 %v6181
    %v6430 = vunpack.c.h.b16 %v6181
    %v6431 = vunpack.c.l.b16 %v6182
    %v6432 = vunpack.c.h.b16 %v6182
    %v6433 = vunpack.c.l.b16 %v6183
    %v6434 = vunpack.c.h.b16 %v6183
    %v6435 = vunpack.c.l.b16 %v6184
    %v6436 = vunpack.c.h.b16 %v6184
    %v6437 = vunpack.c.l.b16 %v6185
    %v6438 = vunpack.c.h.b16 %v6185
    %v6439 = vunpack.c.l.b16 %v6186
    %v6440 = vunpack.c.h.b16 %v6186
    %v6441 = vunpack.c.l.b16 %v6187
    %v6442 = vunpack.c.h.b16 %v6187
    %v6443 = vpack.c.b16 %v6287, %v6283
    %v6444 = vpack.c.b16 %v6288, %v6284
    %v6445 = vpack.c.b16 %v6289, %v6285
    %v6446 = vpack.c.b16 %v6290, %v6286
    %v6447 = vpack.c.b16 %v6295, %v6291
    %v6448 = vpack.c.b16 %v6296, %v6292
    %v6449 = vpack.c.b16 %v6297, %v6293
    %v6450 = vpack.c.b16 %v6298, %v6294
    %v6451 = vpack.c.b16 %v6303, %v6299
    %v6452 = vpack.c.b16 %v6304, %v6300
    %v6453 = vpack.c.b16 %v6305, %v6301
    %v6454 = vpack.c.b16 %v6306, %v6302
    %v6455 = vpack.c.b16 %v6311, %v6307
    %v6456 = vpack.c.b16 %v6312, %v6308
    %v6457 = vpack.c.b16 %v6313, %v6309
    %v6458 = vpack.c.b16 %v6314, %v6310
    %v6459 = vpack.c.b16 %v6319, %v6315
    %v6460 = vpack.c.b16 %v6320, %v6316
    %v6461 = vpack.c.b16 %v6321, %v6317
    %v6462 = vpack.c.b16 %v6322, %v6318
    %v6463 = vpack.c.b16 %v6327, %v6323
    %v6464 = vpack.c.b16 %v6328, %v6324
    %v6465 = vpack.c.b16 %v6329, %v6325
    %v6466 = vpack.c.b16 %v6330, %v6326
    %v6467 = vpack.c.b16 %v6335, %v6331
    %v6468 = vpack.c.b16 %v6336, %v6332
    %v6469 = vpack.c.b16 %v6337, %v6333
    %v6470 = vpack.c.b16 %v6338, %v6334
    %v6471 = vpack.c.b16 %v6343, %v6339
    %v6472 = vpack.c.b16 %v6344, %v6340
    %v6473 = vpack.c.b16 %v6345, %v6341
    %v6474 = vpack.c.b16 %v6346, %v6342
    %v6475 = vpack.c.b16 %v6351, %v6347
    %v6476 = vpack.c.b16 %v6352, %v6348
    %v6477 = vpack.c.b16 %v6353, %v6349
    %v6478 = vpack.c.b16 %v6354, %v6350
    %v6479 = vpack.c.b16 %v6359, %v6355
    %v6480 = vpack.c.b16 %v6360, %v6356
    %v6481 = vpack.c.b16 %v6361, %v6357
    %v6482 = vpack.c.b16 %v6362, %v6358
    %v6483 = vpack.c.b16 %v6367, %v6363
    %v6484 = vpack.c.b16 %v6368, %v6364
    %v6485 = vpack.c.b16 %v6369, %v6365
    %v6486 = vpack.c.b16 %v6370, %v6366
    %v6487 = vpack.c.b16 %v6375, %v6371
    %v6488 = vpack.c.b16 %v6376, %v6372
    %v6489 = vpack.c.b16 %v6377, %v6373
    %v6490 = vpack.c.b16 %v6378, %v6374
    %v6491 = vpack.c.b16 %v6383, %v6379
    %v6492 = vpack.c.b16 %v6384, %v6380
    %v6493 = vpack.c.b16 %v6385, %v6381
    %v6494 = vpack.c.b16 %v6386, %v6382
    %v6495 = vpack.c.b16 %v6391, %v6387
    %v6496 = vpack.c.b16 %v6392, %v6388
    %v6497 = vpack.c.b16 %v6393, %v6389
    %v6498 = vpack.c.b16 %v6394, %v6390
    %v6499 = vpack.c.b16 %v6399, %v6395
    %v6500 = vpack.c.b16 %v6400, %v6396
    %v6501 = vpack.c.b16 %v6401, %v6397
    %v6502 = vpack.c.b16 %v6402, %v6398
    %v6503 = vpack.c.b16 %v6407, %v6403
    %v6504 = vpack.c.b16 %v6408, %v6404
    %v6505 = vpack.c.b16 %v6409, %v6405
    %v6506 = vpack.c.b16 %v6410, %v6406
    %v6507 = vpack.c.b16 %v6415, %v6411
    %v6508 = vpack.c.b16 %v6416, %v6412
    %v6509 = vpack.c.b16 %v6417, %v6413
    %v6510 = vpack.c.b16 %v6418, %v6414
    %v6511 = vpack.c.b16 %v6423, %v6419
    %v6512 = vpack.c.b16 %v6424, %v6420
    %v6513 = vpack.c.b16 %v6425, %v6421
    %v6514 = vpack.c.b16 %v6426, %v6422
    %v6515 = vpack.c.b16 %v6431, %v6427
    %v6516 = vpack.c.b16 %v6432, %v6428
    %v6517 = vpack.c.b16 %v6433, %v6429
    %v6518 = vpack.c.b16 %v6434, %v6430
    %v6519 = vpack.c.b16 %v6439, %v6435
    %v6520 = vpack.c.b16 %v6440, %v6436
    %v6521 = vpack.c.b16 %v6441, %v6437
    %v6522 = vpack.c.b16 %v6442, %v6438
    %v6604 = vsel %vm5349, %v6200, 0
    %6606 = vmatpush.bf16.msra.mxu0 %v6471
    %6607 = vmatpush.bf16.msra.mxu0 %v6467
    %6608 = vmatpush.bf16.msra.mxu0 %v6463
    %6609 = vmatpush.bf16.msra.mxu0 %v6459
    %6610 = vmatpush.bf16.msra.mxu0 %v6455
    %6611 = vmatpush.bf16.msra.mxu0 %v6451
    %6612 = vmatpush.bf16.msra.mxu0 %v6447
    %6613 = vmatpush.bf16.msra.mxu0 %v6443
    %6614 = vmatmul.bf16.gmra.mxu0 %v6198
    %v6615 = vpop.f32.mrf.mxu0
    %v6616 = vadd.f32 0.0, %v6615
    %v6617 = vpop.f32.mrf.mxu0
    %v6618 = vadd.f32 0.0, %v6617
    %6619 = vdwg.mxu0
    %6620 = vmatpush.bf16.msra.mxu0 %v6503
    %6621 = vmatpush.bf16.msra.mxu0 %v6499
    %6622 = vmatpush.bf16.msra.mxu0 %v6495
    %6623 = vmatpush.bf16.msra.mxu0 %v6491
    %6624 = vmatpush.bf16.msra.mxu0 %v6487
    %6625 = vmatpush.bf16.msra.mxu0 %v6483
    %6626 = vmatpush.bf16.msra.mxu0 %v6479
    %6627 = vmatpush.bf16.msra.mxu0 %v6475
    %6628 = vmatmul.bf16.gmra.mxu0 %v6199
    %v6629 = vpop.f32.mrf.mxu0
    %v6630 = vadd.f32 %v6616, %v6629
    %v6631 = vpop.f32.mrf.mxu0
    %v6632 = vadd.f32 %v6618, %v6631
    %6633 = vdwg.mxu0
    %6634 = vmatpush.bf16.msra.mxu0 0
    %6635 = vmatpush.bf16.msra.mxu0 0
    %6636 = vmatpush.bf16.msra.mxu0 0
    %6637 = vmatpush.bf16.msra.mxu0 0
    %6638 = vmatpush.bf16.msra.mxu0 %v6519
    %6639 = vmatpush.bf16.msra.mxu0 %v6515
    %6640 = vmatpush.bf16.msra.mxu0 %v6511
    %6641 = vmatpush.bf16.msra.mxu0 %v6507
    %6642 = vmatmul.bf16.gmra.mxu0 %v6604
    %v6643 = vpop.f32.mrf.mxu0
    %v6644 = vadd.f32 %v6630, %v6643
    %v6645 = vpop.f32.mrf.mxu0
    %v6646 = vadd.f32 %v6632, %v6645
    %6647 = vdwg.mxu0
    %6648 = vmatpush.bf16.msra.mxu0 %v6472
    %6649 = vmatpush.bf16.msra.mxu0 %v6468
    %6650 = vmatpush.bf16.msra.mxu0 %v6464
    %6651 = vmatpush.bf16.msra.mxu0 %v6460
    %6652 = vmatpush.bf16.msra.mxu0 %v6456
    %6653 = vmatpush.bf16.msra.mxu0 %v6452
    %6654 = vmatpush.bf16.msra.mxu0 %v6448
    %6655 = vmatpush.bf16.msra.mxu0 %v6444
    %6656 = vmatmul.bf16.gmra.mxu0 %v6198
    %v6657 = vpop.f32.mrf.mxu0
    %v6658 = vadd.f32 0.0, %v6657
    %v6659 = vpop.f32.mrf.mxu0
    %v6660 = vadd.f32 0.0, %v6659
    %6661 = vdwg.mxu0
    %6662 = vmatpush.bf16.msra.mxu0 %v6504
    %6663 = vmatpush.bf16.msra.mxu0 %v6500
    %6664 = vmatpush.bf16.msra.mxu0 %v6496
    %6665 = vmatpush.bf16.msra.mxu0 %v6492
    %6666 = vmatpush.bf16.msra.mxu0 %v6488
    %6667 = vmatpush.bf16.msra.mxu0 %v6484
    %6668 = vmatpush.bf16.msra.mxu0 %v6480
    %6669 = vmatpush.bf16.msra.mxu0 %v6476
    %6670 = vmatmul.bf16.gmra.mxu0 %v6199
    %v6671 = vpop.f32.mrf.mxu0
    %v6672 = vadd.f32 %v6658, %v6671
    %v6673 = vpop.f32.mrf.mxu0
    %v6674 = vadd.f32 %v6660, %v6673
    %6675 = vdwg.mxu0
    %6676 = vmatpush.bf16.msra.mxu0 0
    %6677 = vmatpush.bf16.msra.mxu0 0
    %6678 = vmatpush.bf16.msra.mxu0 0
    %6679 = vmatpush.bf16.msra.mxu0 0
    %6680 = vmatpush.bf16.msra.mxu0 %v6520
    %6681 = vmatpush.bf16.msra.mxu0 %v6516
    %6682 = vmatpush.bf16.msra.mxu0 %v6512
    %6683 = vmatpush.bf16.msra.mxu0 %v6508
    %6684 = vmatmul.bf16.gmra.mxu0 %v6604
    %v6685 = vpop.f32.mrf.mxu0
    %v6686 = vadd.f32 %v6672, %v6685
    %v6687 = vpop.f32.mrf.mxu0
    %v6688 = vadd.f32 %v6674, %v6687
    %6689 = vdwg.mxu0
    %6690 = vmatpush.bf16.msra.mxu0 %v6473
    %6691 = vmatpush.bf16.msra.mxu0 %v6469
    %6692 = vmatpush.bf16.msra.mxu0 %v6465
    %6693 = vmatpush.bf16.msra.mxu0 %v6461
    %6694 = vmatpush.bf16.msra.mxu0 %v6457
    %6695 = vmatpush.bf16.msra.mxu0 %v6453
    %6696 = vmatpush.bf16.msra.mxu0 %v6449
    %6697 = vmatpush.bf16.msra.mxu0 %v6445
    %6698 = vmatmul.bf16.gmra.mxu0 %v6198
    %v6699 = vpop.f32.mrf.mxu0
    %v6700 = vadd.f32 0.0, %v6699
    %v6701 = vpop.f32.mrf.mxu0
    %v6702 = vadd.f32 0.0, %v6701
    %6703 = vdwg.mxu0
    %6704 = vmatpush.bf16.msra.mxu0 %v6505
    %6705 = vmatpush.bf16.msra.mxu0 %v6501
    %6706 = vmatpush.bf16.msra.mxu0 %v6497
    %6707 = vmatpush.bf16.msra.mxu0 %v6493
    %6708 = vmatpush.bf16.msra.mxu0 %v6489
    %6709 = vmatpush.bf16.msra.mxu0 %v6485
    %6710 = vmatpush.bf16.msra.mxu0 %v6481
    %6711 = vmatpush.bf16.msra.mxu0 %v6477
    %6712 = vmatmul.bf16.gmra.mxu0 %v6199
    %v6713 = vpop.f32.mrf.mxu0
    %v6714 = vadd.f32 %v6700, %v6713
    %v6715 = vpop.f32.mrf.mxu0
    %v6716 = vadd.f32 %v6702, %v6715
    %6717 = vdwg.mxu0
    %6718 = vmatpush.bf16.msra.mxu0 0
    %6719 = vmatpush.bf16.msra.mxu0 0
    %6720 = vmatpush.bf16.msra.mxu0 0
    %6721 = vmatpush.bf16.msra.mxu0 0
    %6722 = vmatpush.bf16.msra.mxu0 %v6521
    %6723 = vmatpush.bf16.msra.mxu0 %v6517
    %6724 = vmatpush.bf16.msra.mxu0 %v6513
    %6725 = vmatpush.bf16.msra.mxu0 %v6509
    %6726 = vmatmul.bf16.gmra.mxu0 %v6604
    %v6727 = vpop.f32.mrf.mxu0
    %v6728 = vadd.f32 %v6714, %v6727
    %v6729 = vpop.f32.mrf.mxu0
    %v6730 = vadd.f32 %v6716, %v6729
    %6731 = vdwg.mxu0
    %6732 = vmatpush.bf16.msra.mxu0 %v6474
    %6733 = vmatpush.bf16.msra.mxu0 %v6470
    %6734 = vmatpush.bf16.msra.mxu0 %v6466
    %6735 = vmatpush.bf16.msra.mxu0 %v6462
    %6736 = vmatpush.bf16.msra.mxu0 %v6458
    %6737 = vmatpush.bf16.msra.mxu0 %v6454
    %6738 = vmatpush.bf16.msra.mxu0 %v6450
    %6739 = vmatpush.bf16.msra.mxu0 %v6446
    %6740 = vmatmul.bf16.gmra.mxu0 %v6198
    %v6741 = vpop.f32.mrf.mxu0
    %v6742 = vadd.f32 0.0, %v6741
    %v6743 = vpop.f32.mrf.mxu0
    %v6744 = vadd.f32 0.0, %v6743
    %6745 = vdwg.mxu0
    %6746 = vmatpush.bf16.msra.mxu0 %v6506
    %6747 = vmatpush.bf16.msra.mxu0 %v6502
    %6748 = vmatpush.bf16.msra.mxu0 %v6498
    %6749 = vmatpush.bf16.msra.mxu0 %v6494
    %6750 = vmatpush.bf16.msra.mxu0 %v6490
    %6751 = vmatpush.bf16.msra.mxu0 %v6486
    %6752 = vmatpush.bf16.msra.mxu0 %v6482
    %6753 = vmatpush.bf16.msra.mxu0 %v6478
    %6754 = vmatmul.bf16.gmra.mxu0 %v6199
    %v6755 = vpop.f32.mrf.mxu0
    %v6756 = vadd.f32 %v6742, %v6755
    %v6757 = vpop.f32.mrf.mxu0
    %v6758 = vadd.f32 %v6744, %v6757
    %6759 = vdwg.mxu0
    %6760 = vmatpush.bf16.msra.mxu0 0
    %6761 = vmatpush.bf16.msra.mxu0 0
    %6762 = vmatpush.bf16.msra.mxu0 0
    %6763 = vmatpush.bf16.msra.mxu0 0
    %6764 = vmatpush.bf16.msra.mxu0 %v6522
    %6765 = vmatpush.bf16.msra.mxu0 %v6518
    %6766 = vmatpush.bf16.msra.mxu0 %v6514
    %6767 = vmatpush.bf16.msra.mxu0 %v6510
    %6768 = vmatmul.bf16.gmra.mxu0 %v6604
    %v6769 = vpop.f32.mrf.mxu0
    %v6770 = vadd.f32 %v6756, %v6769
    %v6771 = vpop.f32.mrf.mxu0
    %v6772 = vadd.f32 %v6758, %v6771
    %6773 = vdwg.mxu0
    %v6774 = vadd.f32 %v5977, %v6644
    %v6775 = vadd.f32 %v6019, %v6686
    %v6776 = vadd.f32 %v6061, %v6728
    %v6777 = vadd.f32 %v6103, %v6770
    %v6778 = vadd.f32 %v5979, %v6646
    %v6779 = vadd.f32 %v6021, %v6688
    %v6780 = vadd.f32 %v6063, %v6730
    %v6781 = vadd.f32 %v6105, %v6772
    %s6782 = scalar_lea.vmem [#allocation9], 1920
    %v6783 = vld [vmem:[%s6782] sm:$0xff]
    %v6784 = vld [vmem:[%s6782 + $0x8] sm:$0xff]
    %v6785 = vld [vmem:[%s6782 + $0x10] sm:$0xff]
    %v6786 = vld [vmem:[%s6782 + $0x18] sm:$0xff]
    %v6787 = vld [vmem:[%s6782 + $0x20] sm:$0xff]
    %v6788 = vld [vmem:[%s6782 + $0x28] sm:$0xff]
    %v6789 = vld [vmem:[%s6782 + $0x30] sm:$0xff]
    %v6790 = vld [vmem:[%s6782 + $0x38] sm:$0xff]
    %v6791 = vld [vmem:[%s6782 + $0x40] sm:$0xff]
    %v6792 = vld [vmem:[%s6782 + $0x48] sm:$0xff]
    %v6793 = vld [vmem:[%s6782 + $0x50] sm:$0xff]
    %v6794 = vld [vmem:[%s6782 + $0x58] sm:$0xff]
    %v6795 = vld [vmem:[%s6782 + $0x60] sm:$0xff]
    %v6796 = vld [vmem:[%s6782 + $0x68] sm:$0xff]
    %v6797 = vld [vmem:[%s6782 + $0x70] sm:$0xff]
    %v6798 = vld [vmem:[%s6782 + $0x78] sm:$0xff]
    %v6799 = vld [vmem:[%s6782 + $0x80] sm:$0xff]
    %v6800 = vld [vmem:[%s6782 + $0x88] sm:$0xff]
    %v6801 = vld [vmem:[%s6782 + $0x90] sm:$0xff]
    %v6802 = vld [vmem:[%s6782 + $0x98] sm:$0xff]
    %v6803 = vld [vmem:[%s6782 + $0xa0] sm:$0xff]
    %v6804 = vld [vmem:[%s6782 + $0xa8] sm:$0xff]
    %v6805 = vld [vmem:[%s6782 + $0xb0] sm:$0xff]
    %v6806 = vld [vmem:[%s6782 + $0xb8] sm:$0xff]
    %v6807 = vld [vmem:[%s6782 + $0xc0] sm:$0xff]
    %v6808 = vld [vmem:[%s6782 + $0xc8] sm:$0xff]
    %v6809 = vld [vmem:[%s6782 + $0xd0] sm:$0xff]
    %v6810 = vld [vmem:[%s6782 + $0xd8] sm:$0xff]
    %v6811 = vld [vmem:[%s6782 + $0xe0] sm:$0xff]
    %v6812 = vld [vmem:[%s6782 + $0xe8] sm:$0xff]
    %v6813 = vld [vmem:[%s6782 + $0xf0] sm:$0xff]
    %v6814 = vld [vmem:[%s6782 + $0xf8] sm:$0xff]
    %v6815 = vld [vmem:[%s6782 + $0x100] sm:$0xff]
    %v6816 = vld [vmem:[%s6782 + $0x108] sm:$0xff]
    %v6817 = vld [vmem:[%s6782 + $0x110] sm:$0xff]
    %v6818 = vld [vmem:[%s6782 + $0x118] sm:$0xff]
    %v6819 = vld [vmem:[%s6782 + $0x120] sm:$0xff]
    %v6820 = vld [vmem:[%s6782 + $0x128] sm:$0xff]
    %v6821 = vld [vmem:[%s6782 + $0x130] sm:$0xff]
    %v6822 = vld [vmem:[%s6782 + $0x138] sm:$0xff]
    %v6823 = vld [vmem:[%s6782 + $0x140] sm:$0xff]
    %v6824 = vld [vmem:[%s6782 + $0x148] sm:$0xff]
    %v6825 = vld [vmem:[%s6782 + $0x150] sm:$0xff]
    %v6826 = vld [vmem:[%s6782 + $0x158] sm:$0xff]
    %v6827 = vld [vmem:[%s6782 + $0x160] sm:$0xff]
    %v6828 = vld [vmem:[%s6782 + $0x168] sm:$0xff]
    %v6829 = vld [vmem:[%s6782 + $0x170] sm:$0xff]
    %v6830 = vld [vmem:[%s6782 + $0x178] sm:$0xff]
    %v6831 = vld [vmem:[%s6782 + $0x180] sm:$0xff]
    %v6832 = vld [vmem:[%s6782 + $0x188] sm:$0xff]
    %v6833 = vld [vmem:[%s6782 + $0x190] sm:$0xff]
    %v6834 = vld [vmem:[%s6782 + $0x198] sm:$0xff]
    %v6835 = vld [vmem:[%s6782 + $0x1a0] sm:$0xff]
    %v6836 = vld [vmem:[%s6782 + $0x1a8] sm:$0xff]
    %v6837 = vld [vmem:[%s6782 + $0x1b0] sm:$0xff]
    %v6838 = vld [vmem:[%s6782 + $0x1b8] sm:$0xff]
    %v6839 = vld [vmem:[%s6782 + $0x1c0] sm:$0xff]
    %v6840 = vld [vmem:[%s6782 + $0x1c8] sm:$0xff]
    %v6841 = vld [vmem:[%s6782 + $0x1d0] sm:$0xff]
    %v6842 = vld [vmem:[%s6782 + $0x1d8] sm:$0xff]
    %v6843 = vld [vmem:[%s6782 + $0x1e0] sm:$0xff]
    %v6844 = vld [vmem:[%s6782 + $0x1e8] sm:$0xff]
    %v6845 = vld [vmem:[%s6782 + $0x1f0] sm:$0xff]
    %v6846 = vld [vmem:[%s6782 + $0x1f8] sm:$0xff]
    %v6847 = vld [vmem:[%s6782 + $0x200] sm:$0xff]
    %v6848 = vld [vmem:[%s6782 + $0x208] sm:$0xff]
    %v6849 = vld [vmem:[%s6782 + $0x210] sm:$0xff]
    %v6850 = vld [vmem:[%s6782 + $0x218] sm:$0xff]
    %v6851 = vld [vmem:[%s6782 + $0x220] sm:$0xff]
    %v6852 = vld [vmem:[%s6782 + $0x228] sm:$0xff]
    %v6853 = vld [vmem:[%s6782 + $0x230] sm:$0xff]
    %v6854 = vld [vmem:[%s6782 + $0x238] sm:$0xff]
    %v6855 = vld [vmem:[%s6782 + $0x240] sm:$0xff]
    %v6856 = vld [vmem:[%s6782 + $0x248] sm:$0xff]
    %v6857 = vld [vmem:[%s6782 + $0x250] sm:$0xff]
    %v6858 = vld [vmem:[%s6782 + $0x258] sm:$0xff]
    %v6859 = vld [vmem:[%s6782 + $0x260] sm:$0xff]
    %v6860 = vld [vmem:[%s6782 + $0x268] sm:$0xff]
    %v6861 = vld [vmem:[%s6782 + $0x270] sm:$0xff]
    %v6862 = vld [vmem:[%s6782 + $0x278] sm:$0xff]
    %v6867 = vunpack.c.l.b16 %v4745
    %v6868 = vunpack.c.h.b16 %v4745
    %v6869 = vunpack.c.l.b16 %v4746
    %v6870 = vunpack.c.l.b16 %v4747
    %v6871 = vunpack.c.h.b16 %v4747
    %v6872 = vunpack.c.l.b16 %v4748
    %v6873 = vpack.c.b16 %v6870, %v6867
    %v6874 = vpack.c.b16 %v6871, %v6868
    %v6875 = vpack.c.b16 %v6872, %v6869
    %v6958 = vunpack.c.l.b16 %v6783
    %v6959 = vunpack.c.h.b16 %v6783
    %v6960 = vunpack.c.l.b16 %v6784
    %v6961 = vunpack.c.h.b16 %v6784
    %v6962 = vunpack.c.l.b16 %v6785
    %v6963 = vunpack.c.h.b16 %v6785
    %v6964 = vunpack.c.l.b16 %v6786
    %v6965 = vunpack.c.h.b16 %v6786
    %v6966 = vunpack.c.l.b16 %v6787
    %v6967 = vunpack.c.h.b16 %v6787
    %v6968 = vunpack.c.l.b16 %v6788
    %v6969 = vunpack.c.h.b16 %v6788
    %v6970 = vunpack.c.l.b16 %v6789
    %v6971 = vunpack.c.h.b16 %v6789
    %v6972 = vunpack.c.l.b16 %v6790
    %v6973 = vunpack.c.h.b16 %v6790
    %v6974 = vunpack.c.l.b16 %v6791
    %v6975 = vunpack.c.h.b16 %v6791
    %v6976 = vunpack.c.l.b16 %v6792
    %v6977 = vunpack.c.h.b16 %v6792
    %v6978 = vunpack.c.l.b16 %v6793
    %v6979 = vunpack.c.h.b16 %v6793
    %v6980 = vunpack.c.l.b16 %v6794
    %v6981 = vunpack.c.h.b16 %v6794
    %v6982 = vunpack.c.l.b16 %v6795
    %v6983 = vunpack.c.h.b16 %v6795
    %v6984 = vunpack.c.l.b16 %v6796
    %v6985 = vunpack.c.h.b16 %v6796
    %v6986 = vunpack.c.l.b16 %v6797
    %v6987 = vunpack.c.h.b16 %v6797
    %v6988 = vunpack.c.l.b16 %v6798
    %v6989 = vunpack.c.h.b16 %v6798
    %v6990 = vunpack.c.l.b16 %v6799
    %v6991 = vunpack.c.h.b16 %v6799
    %v6992 = vunpack.c.l.b16 %v6800
    %v6993 = vunpack.c.h.b16 %v6800
    %v6994 = vunpack.c.l.b16 %v6801
    %v6995 = vunpack.c.h.b16 %v6801
    %v6996 = vunpack.c.l.b16 %v6802
    %v6997 = vunpack.c.h.b16 %v6802
    %v6998 = vunpack.c.l.b16 %v6803
    %v6999 = vunpack.c.h.b16 %v6803
    %v7000 = vunpack.c.l.b16 %v6804
    %v7001 = vunpack.c.h.b16 %v6804
    %v7002 = vunpack.c.l.b16 %v6805
    %v7003 = vunpack.c.h.b16 %v6805
    %v7004 = vunpack.c.l.b16 %v6806
    %v7005 = vunpack.c.h.b16 %v6806
    %v7006 = vunpack.c.l.b16 %v6807
    %v7007 = vunpack.c.h.b16 %v6807
    %v7008 = vunpack.c.l.b16 %v6808
    %v7009 = vunpack.c.h.b16 %v6808
    %v7010 = vunpack.c.l.b16 %v6809
    %v7011 = vunpack.c.h.b16 %v6809
    %v7012 = vunpack.c.l.b16 %v6810
    %v7013 = vunpack.c.h.b16 %v6810
    %v7014 = vunpack.c.l.b16 %v6811
    %v7015 = vunpack.c.h.b16 %v6811
    %v7016 = vunpack.c.l.b16 %v6812
    %v7017 = vunpack.c.h.b16 %v6812
    %v7018 = vunpack.c.l.b16 %v6813
    %v7019 = vunpack.c.h.b16 %v6813
    %v7020 = vunpack.c.l.b16 %v6814
    %v7021 = vunpack.c.h.b16 %v6814
    %v7022 = vunpack.c.l.b16 %v6815
    %v7023 = vunpack.c.h.b16 %v6815
    %v7024 = vunpack.c.l.b16 %v6816
    %v7025 = vunpack.c.h.b16 %v6816
    %v7026 = vunpack.c.l.b16 %v6817
    %v7027 = vunpack.c.h.b16 %v6817
    %v7028 = vunpack.c.l.b16 %v6818
    %v7029 = vunpack.c.h.b16 %v6818
    %v7030 = vunpack.c.l.b16 %v6819
    %v7031 = vunpack.c.h.b16 %v6819
    %v7032 = vunpack.c.l.b16 %v6820
    %v7033 = vunpack.c.h.b16 %v6820
    %v7034 = vunpack.c.l.b16 %v6821
    %v7035 = vunpack.c.h.b16 %v6821
    %v7036 = vunpack.c.l.b16 %v6822
    %v7037 = vunpack.c.h.b16 %v6822
    %v7038 = vunpack.c.l.b16 %v6823
    %v7039 = vunpack.c.h.b16 %v6823
    %v7040 = vunpack.c.l.b16 %v6824
    %v7041 = vunpack.c.h.b16 %v6824
    %v7042 = vunpack.c.l.b16 %v6825
    %v7043 = vunpack.c.h.b16 %v6825
    %v7044 = vunpack.c.l.b16 %v6826
    %v7045 = vunpack.c.h.b16 %v6826
    %v7046 = vunpack.c.l.b16 %v6827
    %v7047 = vunpack.c.h.b16 %v6827
    %v7048 = vunpack.c.l.b16 %v6828
    %v7049 = vunpack.c.h.b16 %v6828
    %v7050 = vunpack.c.l.b16 %v6829
    %v7051 = vunpack.c.h.b16 %v6829
    %v7052 = vunpack.c.l.b16 %v6830
    %v7053 = vunpack.c.h.b16 %v6830
    %v7054 = vunpack.c.l.b16 %v6831
    %v7055 = vunpack.c.h.b16 %v6831
    %v7056 = vunpack.c.l.b16 %v6832
    %v7057 = vunpack.c.h.b16 %v6832
    %v7058 = vunpack.c.l.b16 %v6833
    %v7059 = vunpack.c.h.b16 %v6833
    %v7060 = vunpack.c.l.b16 %v6834
    %v7061 = vunpack.c.h.b16 %v6834
    %v7062 = vunpack.c.l.b16 %v6835
    %v7063 = vunpack.c.h.b16 %v6835
    %v7064 = vunpack.c.l.b16 %v6836
    %v7065 = vunpack.c.h.b16 %v6836
    %v7066 = vunpack.c.l.b16 %v6837
    %v7067 = vunpack.c.h.b16 %v6837
    %v7068 = vunpack.c.l.b16 %v6838
    %v7069 = vunpack.c.h.b16 %v6838
    %v7070 = vunpack.c.l.b16 %v6839
    %v7071 = vunpack.c.h.b16 %v6839
    %v7072 = vunpack.c.l.b16 %v6840
    %v7073 = vunpack.c.h.b16 %v6840
    %v7074 = vunpack.c.l.b16 %v6841
    %v7075 = vunpack.c.h.b16 %v6841
    %v7076 = vunpack.c.l.b16 %v6842
    %v7077 = vunpack.c.h.b16 %v6842
    %v7078 = vunpack.c.l.b16 %v6843
    %v7079 = vunpack.c.h.b16 %v6843
    %v7080 = vunpack.c.l.b16 %v6844
    %v7081 = vunpack.c.h.b16 %v6844
    %v7082 = vunpack.c.l.b16 %v6845
    %v7083 = vunpack.c.h.b16 %v6845
    %v7084 = vunpack.c.l.b16 %v6846
    %v7085 = vunpack.c.h.b16 %v6846
    %v7086 = vunpack.c.l.b16 %v6847
    %v7087 = vunpack.c.h.b16 %v6847
    %v7088 = vunpack.c.l.b16 %v6848
    %v7089 = vunpack.c.h.b16 %v6848
    %v7090 = vunpack.c.l.b16 %v6849
    %v7091 = vunpack.c.h.b16 %v6849
    %v7092 = vunpack.c.l.b16 %v6850
    %v7093 = vunpack.c.h.b16 %v6850
    %v7094 = vunpack.c.l.b16 %v6851
    %v7095 = vunpack.c.h.b16 %v6851
    %v7096 = vunpack.c.l.b16 %v6852
    %v7097 = vunpack.c.h.b16 %v6852
    %v7098 = vunpack.c.l.b16 %v6853
    %v7099 = vunpack.c.h.b16 %v6853
    %v7100 = vunpack.c.l.b16 %v6854
    %v7101 = vunpack.c.h.b16 %v6854
    %v7102 = vunpack.c.l.b16 %v6855
    %v7103 = vunpack.c.h.b16 %v6855
    %v7104 = vunpack.c.l.b16 %v6856
    %v7105 = vunpack.c.h.b16 %v6856
    %v7106 = vunpack.c.l.b16 %v6857
    %v7107 = vunpack.c.h.b16 %v6857
    %v7108 = vunpack.c.l.b16 %v6858
    %v7109 = vunpack.c.h.b16 %v6858
    %v7110 = vunpack.c.l.b16 %v6859
    %v7111 = vunpack.c.h.b16 %v6859
    %v7112 = vunpack.c.l.b16 %v6860
    %v7113 = vunpack.c.h.b16 %v6860
    %v7114 = vunpack.c.l.b16 %v6861
    %v7115 = vunpack.c.h.b16 %v6861
    %v7116 = vunpack.c.l.b16 %v6862
    %v7117 = vunpack.c.h.b16 %v6862
    %v7118 = vpack.c.b16 %v6962, %v6958
    %v7119 = vpack.c.b16 %v6963, %v6959
    %v7120 = vpack.c.b16 %v6964, %v6960
    %v7121 = vpack.c.b16 %v6965, %v6961
    %v7122 = vpack.c.b16 %v6970, %v6966
    %v7123 = vpack.c.b16 %v6971, %v6967
    %v7124 = vpack.c.b16 %v6972, %v6968
    %v7125 = vpack.c.b16 %v6973, %v6969
    %v7126 = vpack.c.b16 %v6978, %v6974
    %v7127 = vpack.c.b16 %v6979, %v6975
    %v7128 = vpack.c.b16 %v6980, %v6976
    %v7129 = vpack.c.b16 %v6981, %v6977
    %v7130 = vpack.c.b16 %v6986, %v6982
    %v7131 = vpack.c.b16 %v6987, %v6983
    %v7132 = vpack.c.b16 %v6988, %v6984
    %v7133 = vpack.c.b16 %v6989, %v6985
    %v7134 = vpack.c.b16 %v6994, %v6990
    %v7135 = vpack.c.b16 %v6995, %v6991
    %v7136 = vpack.c.b16 %v6996, %v6992
    %v7137 = vpack.c.b16 %v6997, %v6993
    %v7138 = vpack.c.b16 %v7002, %v6998
    %v7139 = vpack.c.b16 %v7003, %v6999
    %v7140 = vpack.c.b16 %v7004, %v7000
    %v7141 = vpack.c.b16 %v7005, %v7001
    %v7142 = vpack.c.b16 %v7010, %v7006
    %v7143 = vpack.c.b16 %v7011, %v7007
    %v7144 = vpack.c.b16 %v7012, %v7008
    %v7145 = vpack.c.b16 %v7013, %v7009
    %v7146 = vpack.c.b16 %v7018, %v7014
    %v7147 = vpack.c.b16 %v7019, %v7015
    %v7148 = vpack.c.b16 %v7020, %v7016
    %v7149 = vpack.c.b16 %v7021, %v7017
    %v7150 = vpack.c.b16 %v7026, %v7022
    %v7151 = vpack.c.b16 %v7027, %v7023
    %v7152 = vpack.c.b16 %v7028, %v7024
    %v7153 = vpack.c.b16 %v7029, %v7025
    %v7154 = vpack.c.b16 %v7034, %v7030
    %v7155 = vpack.c.b16 %v7035, %v7031
    %v7156 = vpack.c.b16 %v7036, %v7032
    %v7157 = vpack.c.b16 %v7037, %v7033
    %v7158 = vpack.c.b16 %v7042, %v7038
    %v7159 = vpack.c.b16 %v7043, %v7039
    %v7160 = vpack.c.b16 %v7044, %v7040
    %v7161 = vpack.c.b16 %v7045, %v7041
    %v7162 = vpack.c.b16 %v7050, %v7046
    %v7163 = vpack.c.b16 %v7051, %v7047
    %v7164 = vpack.c.b16 %v7052, %v7048
    %v7165 = vpack.c.b16 %v7053, %v7049
    %v7166 = vpack.c.b16 %v7058, %v7054
    %v7167 = vpack.c.b16 %v7059, %v7055
    %v7168 = vpack.c.b16 %v7060, %v7056
    %v7169 = vpack.c.b16 %v7061, %v7057
    %v7170 = vpack.c.b16 %v7066, %v7062
    %v7171 = vpack.c.b16 %v7067, %v7063
    %v7172 = vpack.c.b16 %v7068, %v7064
    %v7173 = vpack.c.b16 %v7069, %v7065
    %v7174 = vpack.c.b16 %v7074, %v7070
    %v7175 = vpack.c.b16 %v7075, %v7071
    %v7176 = vpack.c.b16 %v7076, %v7072
    %v7177 = vpack.c.b16 %v7077, %v7073
    %v7178 = vpack.c.b16 %v7082, %v7078
    %v7179 = vpack.c.b16 %v7083, %v7079
    %v7180 = vpack.c.b16 %v7084, %v7080
    %v7181 = vpack.c.b16 %v7085, %v7081
    %v7182 = vpack.c.b16 %v7090, %v7086
    %v7183 = vpack.c.b16 %v7091, %v7087
    %v7184 = vpack.c.b16 %v7092, %v7088
    %v7185 = vpack.c.b16 %v7093, %v7089
    %v7186 = vpack.c.b16 %v7098, %v7094
    %v7187 = vpack.c.b16 %v7099, %v7095
    %v7188 = vpack.c.b16 %v7100, %v7096
    %v7189 = vpack.c.b16 %v7101, %v7097
    %v7190 = vpack.c.b16 %v7106, %v7102
    %v7191 = vpack.c.b16 %v7107, %v7103
    %v7192 = vpack.c.b16 %v7108, %v7104
    %v7193 = vpack.c.b16 %v7109, %v7105
    %v7194 = vpack.c.b16 %v7114, %v7110
    %v7195 = vpack.c.b16 %v7115, %v7111
    %v7196 = vpack.c.b16 %v7116, %v7112
    %v7197 = vpack.c.b16 %v7117, %v7113
    %v7279 = vsel %vm5349, %v6875, 0
    %7281 = vmatpush.bf16.msra.mxu0 %v7146
    %7282 = vmatpush.bf16.msra.mxu0 %v7142
    %7283 = vmatpush.bf16.msra.mxu0 %v7138
    %7284 = vmatpush.bf16.msra.mxu0 %v7134
    %7285 = vmatpush.bf16.msra.mxu0 %v7130
    %7286 = vmatpush.bf16.msra.mxu0 %v7126
    %7287 = vmatpush.bf16.msra.mxu0 %v7122
    %7288 = vmatpush.bf16.msra.mxu0 %v7118
    %7289 = vmatmul.bf16.gmra.mxu0 %v6873
    %v7290 = vpop.f32.mrf.mxu0
    %v7291 = vadd.f32 0.0, %v7290
    %v7292 = vpop.f32.mrf.mxu0
    %v7293 = vadd.f32 0.0, %v7292
    %7294 = vdwg.mxu0
    %7295 = vmatpush.bf16.msra.mxu0 %v7178
    %7296 = vmatpush.bf16.msra.mxu0 %v7174
    %7297 = vmatpush.bf16.msra.mxu0 %v7170
    %7298 = vmatpush.bf16.msra.mxu0 %v7166
    %7299 = vmatpush.bf16.msra.mxu0 %v7162
    %7300 = vmatpush.bf16.msra.mxu0 %v7158
    %7301 = vmatpush.bf16.msra.mxu0 %v7154
    %7302 = vmatpush.bf16.msra.mxu0 %v7150
    %7303 = vmatmul.bf16.gmra.mxu0 %v6874
    %v7304 = vpop.f32.mrf.mxu0
    %v7305 = vadd.f32 %v7291, %v7304
    %v7306 = vpop.f32.mrf.mxu0
    %v7307 = vadd.f32 %v7293, %v7306
    %7308 = vdwg.mxu0
    %7309 = vmatpush.bf16.msra.mxu0 0
    %7310 = vmatpush.bf16.msra.mxu0 0
    %7311 = vmatpush.bf16.msra.mxu0 0
    %7312 = vmatpush.bf16.msra.mxu0 0
    %7313 = vmatpush.bf16.msra.mxu0 %v7194
    %7314 = vmatpush.bf16.msra.mxu0 %v7190
    %7315 = vmatpush.bf16.msra.mxu0 %v7186
    %7316 = vmatpush.bf16.msra.mxu0 %v7182
    %7317 = vmatmul.bf16.gmra.mxu0 %v7279
    %v7318 = vpop.f32.mrf.mxu0
    %v7319 = vadd.f32 %v7305, %v7318
    %v7320 = vpop.f32.mrf.mxu0
    %v7321 = vadd.f32 %v7307, %v7320
    %7322 = vdwg.mxu0
    %7323 = vmatpush.bf16.msra.mxu0 %v7147
    %7324 = vmatpush.bf16.msra.mxu0 %v7143
    %7325 = vmatpush.bf16.msra.mxu0 %v7139
    %7326 = vmatpush.bf16.msra.mxu0 %v7135
    %7327 = vmatpush.bf16.msra.mxu0 %v7131
    %7328 = vmatpush.bf16.msra.mxu0 %v7127
    %7329 = vmatpush.bf16.msra.mxu0 %v7123
    %7330 = vmatpush.bf16.msra.mxu0 %v7119
    %7331 = vmatmul.bf16.gmra.mxu0 %v6873
    %v7332 = vpop.f32.mrf.mxu0
    %v7333 = vadd.f32 0.0, %v7332
    %v7334 = vpop.f32.mrf.mxu0
    %v7335 = vadd.f32 0.0, %v7334
    %7336 = vdwg.mxu0
    %7337 = vmatpush.bf16.msra.mxu0 %v7179
    %7338 = vmatpush.bf16.msra.mxu0 %v7175
    %7339 = vmatpush.bf16.msra.mxu0 %v7171
    %7340 = vmatpush.bf16.msra.mxu0 %v7167
    %7341 = vmatpush.bf16.msra.mxu0 %v7163
    %7342 = vmatpush.bf16.msra.mxu0 %v7159
    %7343 = vmatpush.bf16.msra.mxu0 %v7155
    %7344 = vmatpush.bf16.msra.mxu0 %v7151
    %7345 = vmatmul.bf16.gmra.mxu0 %v6874
    %v7346 = vpop.f32.mrf.mxu0
    %v7347 = vadd.f32 %v7333, %v7346
    %v7348 = vpop.f32.mrf.mxu0
    %v7349 = vadd.f32 %v7335, %v7348
    %7350 = vdwg.mxu0
    %7351 = vmatpush.bf16.msra.mxu0 0
    %7352 = vmatpush.bf16.msra.mxu0 0
    %7353 = vmatpush.bf16.msra.mxu0 0
    %7354 = vmatpush.bf16.msra.mxu0 0
    %7355 = vmatpush.bf16.msra.mxu0 %v7195
    %7356 = vmatpush.bf16.msra.mxu0 %v7191
    %7357 = vmatpush.bf16.msra.mxu0 %v7187
    %7358 = vmatpush.bf16.msra.mxu0 %v7183
    %7359 = vmatmul.bf16.gmra.mxu0 %v7279
    %v7360 = vpop.f32.mrf.mxu0
    %v7361 = vadd.f32 %v7347, %v7360
    %v7362 = vpop.f32.mrf.mxu0
    %v7363 = vadd.f32 %v7349, %v7362
    %7364 = vdwg.mxu0
    %7365 = vmatpush.bf16.msra.mxu0 %v7148
    %7366 = vmatpush.bf16.msra.mxu0 %v7144
    %7367 = vmatpush.bf16.msra.mxu0 %v7140
    %7368 = vmatpush.bf16.msra.mxu0 %v7136
    %7369 = vmatpush.bf16.msra.mxu0 %v7132
    %7370 = vmatpush.bf16.msra.mxu0 %v7128
    %7371 = vmatpush.bf16.msra.mxu0 %v7124
    %7372 = vmatpush.bf16.msra.mxu0 %v7120
    %7373 = vmatmul.bf16.gmra.mxu0 %v6873
    %v7374 = vpop.f32.mrf.mxu0
    %v7375 = vadd.f32 0.0, %v7374
    %v7376 = vpop.f32.mrf.mxu0
    %v7377 = vadd.f32 0.0, %v7376
    %7378 = vdwg.mxu0
    %7379 = vmatpush.bf16.msra.mxu0 %v7180
    %7380 = vmatpush.bf16.msra.mxu0 %v7176
    %7381 = vmatpush.bf16.msra.mxu0 %v7172
    %7382 = vmatpush.bf16.msra.mxu0 %v7168
    %7383 = vmatpush.bf16.msra.mxu0 %v7164
    %7384 = vmatpush.bf16.msra.mxu0 %v7160
    %7385 = vmatpush.bf16.msra.mxu0 %v7156
    %7386 = vmatpush.bf16.msra.mxu0 %v7152
    %7387 = vmatmul.bf16.gmra.mxu0 %v6874
    %v7388 = vpop.f32.mrf.mxu0
    %v7389 = vadd.f32 %v7375, %v7388
    %v7390 = vpop.f32.mrf.mxu0
    %v7391 = vadd.f32 %v7377, %v7390
    %7392 = vdwg.mxu0
    %7393 = vmatpush.bf16.msra.mxu0 0
    %7394 = vmatpush.bf16.msra.mxu0 0
    %7395 = vmatpush.bf16.msra.mxu0 0
    %7396 = vmatpush.bf16.msra.mxu0 0
    %7397 = vmatpush.bf16.msra.mxu0 %v7196
    %7398 = vmatpush.bf16.msra.mxu0 %v7192
    %7399 = vmatpush.bf16.msra.mxu0 %v7188
    %7400 = vmatpush.bf16.msra.mxu0 %v7184
    %7401 = vmatmul.bf16.gmra.mxu0 %v7279
    %v7402 = vpop.f32.mrf.mxu0
    %v7403 = vadd.f32 %v7389, %v7402
    %v7404 = vpop.f32.mrf.mxu0
    %v7405 = vadd.f32 %v7391, %v7404
    %7406 = vdwg.mxu0
    %7407 = vmatpush.bf16.msra.mxu0 %v7149
    %7408 = vmatpush.bf16.msra.mxu0 %v7145
    %7409 = vmatpush.bf16.msra.mxu0 %v7141
    %7410 = vmatpush.bf16.msra.mxu0 %v7137
    %7411 = vmatpush.bf16.msra.mxu0 %v7133
    %7412 = vmatpush.bf16.msra.mxu0 %v7129
    %7413 = vmatpush.bf16.msra.mxu0 %v7125
    %7414 = vmatpush.bf16.msra.mxu0 %v7121
    %7415 = vmatmul.bf16.gmra.mxu0 %v6873
    %v7416 = vpop.f32.mrf.mxu0
    %v7417 = vadd.f32 0.0, %v7416
    %v7418 = vpop.f32.mrf.mxu0
    %v7419 = vadd.f32 0.0, %v7418
    %7420 = vdwg.mxu0
    %7421 = vmatpush.bf16.msra.mxu0 %v7181
    %7422 = vmatpush.bf16.msra.mxu0 %v7177
    %7423 = vmatpush.bf16.msra.mxu0 %v7173
    %7424 = vmatpush.bf16.msra.mxu0 %v7169
    %7425 = vmatpush.bf16.msra.mxu0 %v7165
    %7426 = vmatpush.bf16.msra.mxu0 %v7161
    %7427 = vmatpush.bf16.msra.mxu0 %v7157
    %7428 = vmatpush.bf16.msra.mxu0 %v7153
    %7429 = vmatmul.bf16.gmra.mxu0 %v6874
    %v7430 = vpop.f32.mrf.mxu0
    %v7431 = vadd.f32 %v7417, %v7430
    %v7432 = vpop.f32.mrf.mxu0
    %v7433 = vadd.f32 %v7419, %v7432
    %7434 = vdwg.mxu0
    %7435 = vmatpush.bf16.msra.mxu0 0
    %7436 = vmatpush.bf16.msra.mxu0 0
    %7437 = vmatpush.bf16.msra.mxu0 0
    %7438 = vmatpush.bf16.msra.mxu0 0
    %7439 = vmatpush.bf16.msra.mxu0 %v7197
    %7440 = vmatpush.bf16.msra.mxu0 %v7193
    %7441 = vmatpush.bf16.msra.mxu0 %v7189
    %7442 = vmatpush.bf16.msra.mxu0 %v7185
    %7443 = vmatmul.bf16.gmra.mxu0 %v7279
    %v7444 = vpop.f32.mrf.mxu0
    %v7445 = vadd.f32 %v7431, %v7444
    %v7446 = vpop.f32.mrf.mxu0
    %v7447 = vadd.f32 %v7433, %v7446
    %7448 = vdwg.mxu0
    %v7449 = vadd.f32 %v6774, %v7319
    %v7450 = vadd.f32 %v6775, %v7361
    %v7451 = vadd.f32 %v6776, %v7403
    %v7452 = vadd.f32 %v6777, %v7445
    %v7453 = vadd.f32 %v6778, %v7321
    %v7454 = vadd.f32 %v6779, %v7363
    %v7455 = vadd.f32 %v6780, %v7405
    %v7456 = vadd.f32 %v6781, %v7447
    %s7457 = scalar_lea.vmem [#allocation9], 2560
    %v7458 = vld [vmem:[%s7457] sm:$0xff]
    %v7459 = vld [vmem:[%s7457 + $0x8] sm:$0xff]
    %v7460 = vld [vmem:[%s7457 + $0x10] sm:$0xff]
    %v7461 = vld [vmem:[%s7457 + $0x18] sm:$0xff]
    %v7462 = vld [vmem:[%s7457 + $0x20] sm:$0xff]
    %v7463 = vld [vmem:[%s7457 + $0x28] sm:$0xff]
    %v7464 = vld [vmem:[%s7457 + $0x30] sm:$0xff]
    %v7465 = vld [vmem:[%s7457 + $0x38] sm:$0xff]
    %v7466 = vld [vmem:[%s7457 + $0x40] sm:$0xff]
    %v7467 = vld [vmem:[%s7457 + $0x48] sm:$0xff]
    %v7468 = vld [vmem:[%s7457 + $0x50] sm:$0xff]
    %v7469 = vld [vmem:[%s7457 + $0x58] sm:$0xff]
    %v7470 = vld [vmem:[%s7457 + $0x60] sm:$0xff]
    %v7471 = vld [vmem:[%s7457 + $0x68] sm:$0xff]
    %v7472 = vld [vmem:[%s7457 + $0x70] sm:$0xff]
    %v7473 = vld [vmem:[%s7457 + $0x78] sm:$0xff]
    %v7474 = vld [vmem:[%s7457 + $0x80] sm:$0xff]
    %v7475 = vld [vmem:[%s7457 + $0x88] sm:$0xff]
    %v7476 = vld [vmem:[%s7457 + $0x90] sm:$0xff]
    %v7477 = vld [vmem:[%s7457 + $0x98] sm:$0xff]
    %v7478 = vld [vmem:[%s7457 + $0xa0] sm:$0xff]
    %v7479 = vld [vmem:[%s7457 + $0xa8] sm:$0xff]
    %v7480 = vld [vmem:[%s7457 + $0xb0] sm:$0xff]
    %v7481 = vld [vmem:[%s7457 + $0xb8] sm:$0xff]
    %v7482 = vld [vmem:[%s7457 + $0xc0] sm:$0xff]
    %v7483 = vld [vmem:[%s7457 + $0xc8] sm:$0xff]
    %v7484 = vld [vmem:[%s7457 + $0xd0] sm:$0xff]
    %v7485 = vld [vmem:[%s7457 + $0xd8] sm:$0xff]
    %v7486 = vld [vmem:[%s7457 + $0xe0] sm:$0xff]
    %v7487 = vld [vmem:[%s7457 + $0xe8] sm:$0xff]
    %v7488 = vld [vmem:[%s7457 + $0xf0] sm:$0xff]
    %v7489 = vld [vmem:[%s7457 + $0xf8] sm:$0xff]
    %v7490 = vld [vmem:[%s7457 + $0x100] sm:$0xff]
    %v7491 = vld [vmem:[%s7457 + $0x108] sm:$0xff]
    %v7492 = vld [vmem:[%s7457 + $0x110] sm:$0xff]
    %v7493 = vld [vmem:[%s7457 + $0x118] sm:$0xff]
    %v7494 = vld [vmem:[%s7457 + $0x120] sm:$0xff]
    %v7495 = vld [vmem:[%s7457 + $0x128] sm:$0xff]
    %v7496 = vld [vmem:[%s7457 + $0x130] sm:$0xff]
    %v7497 = vld [vmem:[%s7457 + $0x138] sm:$0xff]
    %v7498 = vld [vmem:[%s7457 + $0x140] sm:$0xff]
    %v7499 = vld [vmem:[%s7457 + $0x148] sm:$0xff]
    %v7500 = vld [vmem:[%s7457 + $0x150] sm:$0xff]
    %v7501 = vld [vmem:[%s7457 + $0x158] sm:$0xff]
    %v7502 = vld [vmem:[%s7457 + $0x160] sm:$0xff]
    %v7503 = vld [vmem:[%s7457 + $0x168] sm:$0xff]
    %v7504 = vld [vmem:[%s7457 + $0x170] sm:$0xff]
    %v7505 = vld [vmem:[%s7457 + $0x178] sm:$0xff]
    %v7506 = vld [vmem:[%s7457 + $0x180] sm:$0xff]
    %v7507 = vld [vmem:[%s7457 + $0x188] sm:$0xff]
    %v7508 = vld [vmem:[%s7457 + $0x190] sm:$0xff]
    %v7509 = vld [vmem:[%s7457 + $0x198] sm:$0xff]
    %v7510 = vld [vmem:[%s7457 + $0x1a0] sm:$0xff]
    %v7511 = vld [vmem:[%s7457 + $0x1a8] sm:$0xff]
    %v7512 = vld [vmem:[%s7457 + $0x1b0] sm:$0xff]
    %v7513 = vld [vmem:[%s7457 + $0x1b8] sm:$0xff]
    %v7514 = vld [vmem:[%s7457 + $0x1c0] sm:$0xff]
    %v7515 = vld [vmem:[%s7457 + $0x1c8] sm:$0xff]
    %v7516 = vld [vmem:[%s7457 + $0x1d0] sm:$0xff]
    %v7517 = vld [vmem:[%s7457 + $0x1d8] sm:$0xff]
    %v7518 = vld [vmem:[%s7457 + $0x1e0] sm:$0xff]
    %v7519 = vld [vmem:[%s7457 + $0x1e8] sm:$0xff]
    %v7520 = vld [vmem:[%s7457 + $0x1f0] sm:$0xff]
    %v7521 = vld [vmem:[%s7457 + $0x1f8] sm:$0xff]
    %v7522 = vld [vmem:[%s7457 + $0x200] sm:$0xff]
    %v7523 = vld [vmem:[%s7457 + $0x208] sm:$0xff]
    %v7524 = vld [vmem:[%s7457 + $0x210] sm:$0xff]
    %v7525 = vld [vmem:[%s7457 + $0x218] sm:$0xff]
    %v7526 = vld [vmem:[%s7457 + $0x220] sm:$0xff]
    %v7527 = vld [vmem:[%s7457 + $0x228] sm:$0xff]
    %v7528 = vld [vmem:[%s7457 + $0x230] sm:$0xff]
    %v7529 = vld [vmem:[%s7457 + $0x238] sm:$0xff]
    %v7530 = vld [vmem:[%s7457 + $0x240] sm:$0xff]
    %v7531 = vld [vmem:[%s7457 + $0x248] sm:$0xff]
    %v7532 = vld [vmem:[%s7457 + $0x250] sm:$0xff]
    %v7533 = vld [vmem:[%s7457 + $0x258] sm:$0xff]
    %v7534 = vld [vmem:[%s7457 + $0x260] sm:$0xff]
    %v7535 = vld [vmem:[%s7457 + $0x268] sm:$0xff]
    %v7536 = vld [vmem:[%s7457 + $0x270] sm:$0xff]
    %v7537 = vld [vmem:[%s7457 + $0x278] sm:$0xff]
    %v7542 = vunpack.c.l.b16 %v4749
    %v7543 = vunpack.c.h.b16 %v4749
    %v7544 = vunpack.c.l.b16 %v4750
    %v7545 = vunpack.c.l.b16 %v4751
    %v7546 = vunpack.c.h.b16 %v4751
    %v7547 = vunpack.c.l.b16 %v4752
    %v7548 = vpack.c.b16 %v7545, %v7542
    %v7549 = vpack.c.b16 %v7546, %v7543
    %v7550 = vpack.c.b16 %v7547, %v7544
    %v7633 = vunpack.c.l.b16 %v7458
    %v7634 = vunpack.c.h.b16 %v7458
    %v7635 = vunpack.c.l.b16 %v7459
    %v7636 = vunpack.c.h.b16 %v7459
    %v7637 = vunpack.c.l.b16 %v7460
    %v7638 = vunpack.c.h.b16 %v7460
    %v7639 = vunpack.c.l.b16 %v7461
    %v7640 = vunpack.c.h.b16 %v7461
    %v7641 = vunpack.c.l.b16 %v7462
    %v7642 = vunpack.c.h.b16 %v7462
    %v7643 = vunpack.c.l.b16 %v7463
    %v7644 = vunpack.c.h.b16 %v7463
    %v7645 = vunpack.c.l.b16 %v7464
    %v7646 = vunpack.c.h.b16 %v7464
    %v7647 = vunpack.c.l.b16 %v7465
    %v7648 = vunpack.c.h.b16 %v7465
    %v7649 = vunpack.c.l.b16 %v7466
    %v7650 = vunpack.c.h.b16 %v7466
    %v7651 = vunpack.c.l.b16 %v7467
    %v7652 = vunpack.c.h.b16 %v7467
    %v7653 = vunpack.c.l.b16 %v7468
    %v7654 = vunpack.c.h.b16 %v7468
    %v7655 = vunpack.c.l.b16 %v7469
    %v7656 = vunpack.c.h.b16 %v7469
    %v7657 = vunpack.c.l.b16 %v7470
    %v7658 = vunpack.c.h.b16 %v7470
    %v7659 = vunpack.c.l.b16 %v7471
    %v7660 = vunpack.c.h.b16 %v7471
    %v7661 = vunpack.c.l.b16 %v7472
    %v7662 = vunpack.c.h.b16 %v7472
    %v7663 = vunpack.c.l.b16 %v7473
    %v7664 = vunpack.c.h.b16 %v7473
    %v7665 = vunpack.c.l.b16 %v7474
    %v7666 = vunpack.c.h.b16 %v7474
    %v7667 = vunpack.c.l.b16 %v7475
    %v7668 = vunpack.c.h.b16 %v7475
    %v7669 = vunpack.c.l.b16 %v7476
    %v7670 = vunpack.c.h.b16 %v7476
    %v7671 = vunpack.c.l.b16 %v7477
    %v7672 = vunpack.c.h.b16 %v7477
    %v7673 = vunpack.c.l.b16 %v7478
    %v7674 = vunpack.c.h.b16 %v7478
    %v7675 = vunpack.c.l.b16 %v7479
    %v7676 = vunpack.c.h.b16 %v7479
    %v7677 = vunpack.c.l.b16 %v7480
    %v7678 = vunpack.c.h.b16 %v7480
    %v7679 = vunpack.c.l.b16 %v7481
    %v7680 = vunpack.c.h.b16 %v7481
    %v7681 = vunpack.c.l.b16 %v7482
    %v7682 = vunpack.c.h.b16 %v7482
    %v7683 = vunpack.c.l.b16 %v7483
    %v7684 = vunpack.c.h.b16 %v7483
    %v7685 = vunpack.c.l.b16 %v7484
    %v7686 = vunpack.c.h.b16 %v7484
    %v7687 = vunpack.c.l.b16 %v7485
    %v7688 = vunpack.c.h.b16 %v7485
    %v7689 = vunpack.c.l.b16 %v7486
    %v7690 = vunpack.c.h.b16 %v7486
    %v7691 = vunpack.c.l.b16 %v7487
    %v7692 = vunpack.c.h.b16 %v7487
    %v7693 = vunpack.c.l.b16 %v7488
    %v7694 = vunpack.c.h.b16 %v7488
    %v7695 = vunpack.c.l.b16 %v7489
    %v7696 = vunpack.c.h.b16 %v7489
    %v7697 = vunpack.c.l.b16 %v7490
    %v7698 = vunpack.c.h.b16 %v7490
    %v7699 = vunpack.c.l.b16 %v7491
    %v7700 = vunpack.c.h.b16 %v7491
    %v7701 = vunpack.c.l.b16 %v7492
    %v7702 = vunpack.c.h.b16 %v7492
    %v7703 = vunpack.c.l.b16 %v7493
    %v7704 = vunpack.c.h.b16 %v7493
    %v7705 = vunpack.c.l.b16 %v7494
    %v7706 = vunpack.c.h.b16 %v7494
    %v7707 = vunpack.c.l.b16 %v7495
    %v7708 = vunpack.c.h.b16 %v7495
    %v7709 = vunpack.c.l.b16 %v7496
    %v7710 = vunpack.c.h.b16 %v7496
    %v7711 = vunpack.c.l.b16 %v7497
    %v7712 = vunpack.c.h.b16 %v7497
    %v7713 = vunpack.c.l.b16 %v7498
    %v7714 = vunpack.c.h.b16 %v7498
    %v7715 = vunpack.c.l.b16 %v7499
    %v7716 = vunpack.c.h.b16 %v7499
    %v7717 = vunpack.c.l.b16 %v7500
    %v7718 = vunpack.c.h.b16 %v7500
    %v7719 = vunpack.c.l.b16 %v7501
    %v7720 = vunpack.c.h.b16 %v7501
    %v7721 = vunpack.c.l.b16 %v7502
    %v7722 = vunpack.c.h.b16 %v7502
    %v7723 = vunpack.c.l.b16 %v7503
    %v7724 = vunpack.c.h.b16 %v7503
    %v7725 = vunpack.c.l.b16 %v7504
    %v7726 = vunpack.c.h.b16 %v7504
    %v7727 = vunpack.c.l.b16 %v7505
    %v7728 = vunpack.c.h.b16 %v7505
    %v7729 = vunpack.c.l.b16 %v7506
    %v7730 = vunpack.c.h.b16 %v7506
    %v7731 = vunpack.c.l.b16 %v7507
    %v7732 = vunpack.c.h.b16 %v7507
    %v7733 = vunpack.c.l.b16 %v7508
    %v7734 = vunpack.c.h.b16 %v7508
    %v7735 = vunpack.c.l.b16 %v7509
    %v7736 = vunpack.c.h.b16 %v7509
    %v7737 = vunpack.c.l.b16 %v7510
    %v7738 = vunpack.c.h.b16 %v7510
    %v7739 = vunpack.c.l.b16 %v7511
    %v7740 = vunpack.c.h.b16 %v7511
    %v7741 = vunpack.c.l.b16 %v7512
    %v7742 = vunpack.c.h.b16 %v7512
    %v7743 = vunpack.c.l.b16 %v7513
    %v7744 = vunpack.c.h.b16 %v7513
    %v7745 = vunpack.c.l.b16 %v7514
    %v7746 = vunpack.c.h.b16 %v7514
    %v7747 = vunpack.c.l.b16 %v7515
    %v7748 = vunpack.c.h.b16 %v7515
    %v7749 = vunpack.c.l.b16 %v7516
    %v7750 = vunpack.c.h.b16 %v7516
    %v7751 = vunpack.c.l.b16 %v7517
    %v7752 = vunpack.c.h.b16 %v7517
    %v7753 = vunpack.c.l.b16 %v7518
    %v7754 = vunpack.c.h.b16 %v7518
    %v7755 = vunpack.c.l.b16 %v7519
    %v7756 = vunpack.c.h.b16 %v7519
    %v7757 = vunpack.c.l.b16 %v7520
    %v7758 = vunpack.c.h.b16 %v7520
    %v7759 = vunpack.c.l.b16 %v7521
    %v7760 = vunpack.c.h.b16 %v7521
    %v7761 = vunpack.c.l.b16 %v7522
    %v7762 = vunpack.c.h.b16 %v7522
    %v7763 = vunpack.c.l.b16 %v7523
    %v7764 = vunpack.c.h.b16 %v7523
    %v7765 = vunpack.c.l.b16 %v7524
    %v7766 = vunpack.c.h.b16 %v7524
    %v7767 = vunpack.c.l.b16 %v7525
    %v7768 = vunpack.c.h.b16 %v7525
    %v7769 = vunpack.c.l.b16 %v7526
    %v7770 = vunpack.c.h.b16 %v7526
    %v7771 = vunpack.c.l.b16 %v7527
    %v7772 = vunpack.c.h.b16 %v7527
    %v7773 = vunpack.c.l.b16 %v7528
    %v7774 = vunpack.c.h.b16 %v7528
    %v7775 = vunpack.c.l.b16 %v7529
    %v7776 = vunpack.c.h.b16 %v7529
    %v7777 = vunpack.c.l.b16 %v7530
    %v7778 = vunpack.c.h.b16 %v7530
    %v7779 = vunpack.c.l.b16 %v7531
    %v7780 = vunpack.c.h.b16 %v7531
    %v7781 = vunpack.c.l.b16 %v7532
    %v7782 = vunpack.c.h.b16 %v7532
    %v7783 = vunpack.c.l.b16 %v7533
    %v7784 = vunpack.c.h.b16 %v7533
    %v7785 = vunpack.c.l.b16 %v7534
    %v7786 = vunpack.c.h.b16 %v7534
    %v7787 = vunpack.c.l.b16 %v7535
    %v7788 = vunpack.c.h.b16 %v7535
    %v7789 = vunpack.c.l.b16 %v7536
    %v7790 = vunpack.c.h.b16 %v7536
    %v7791 = vunpack.c.l.b16 %v7537
    %v7792 = vunpack.c.h.b16 %v7537
    %v7793 = vpack.c.b16 %v7637, %v7633
    %v7794 = vpack.c.b16 %v7638, %v7634
    %v7795 = vpack.c.b16 %v7639, %v7635
    %v7796 = vpack.c.b16 %v7640, %v7636
    %v7797 = vpack.c.b16 %v7645, %v7641
    %v7798 = vpack.c.b16 %v7646, %v7642
    %v7799 = vpack.c.b16 %v7647, %v7643
    %v7800 = vpack.c.b16 %v7648, %v7644
    %v7801 = vpack.c.b16 %v7653, %v7649
    %v7802 = vpack.c.b16 %v7654, %v7650
    %v7803 = vpack.c.b16 %v7655, %v7651
    %v7804 = vpack.c.b16 %v7656, %v7652
    %v7805 = vpack.c.b16 %v7661, %v7657
    %v7806 = vpack.c.b16 %v7662, %v7658
    %v7807 = vpack.c.b16 %v7663, %v7659
    %v7808 = vpack.c.b16 %v7664, %v7660
    %v7809 = vpack.c.b16 %v7669, %v7665
    %v7810 = vpack.c.b16 %v7670, %v7666
    %v7811 = vpack.c.b16 %v7671, %v7667
    %v7812 = vpack.c.b16 %v7672, %v7668
    %v7813 = vpack.c.b16 %v7677, %v7673
    %v7814 = vpack.c.b16 %v7678, %v7674
    %v7815 = vpack.c.b16 %v7679, %v7675
    %v7816 = vpack.c.b16 %v7680, %v7676
    %v7817 = vpack.c.b16 %v7685, %v7681
    %v7818 = vpack.c.b16 %v7686, %v7682
    %v7819 = vpack.c.b16 %v7687, %v7683
    %v7820 = vpack.c.b16 %v7688, %v7684
    %v7821 = vpack.c.b16 %v7693, %v7689
    %v7822 = vpack.c.b16 %v7694, %v7690
    %v7823 = vpack.c.b16 %v7695, %v7691
    %v7824 = vpack.c.b16 %v7696, %v7692
    %v7825 = vpack.c.b16 %v7701, %v7697
    %v7826 = vpack.c.b16 %v7702, %v7698
    %v7827 = vpack.c.b16 %v7703, %v7699
    %v7828 = vpack.c.b16 %v7704, %v7700
    %v7829 = vpack.c.b16 %v7709, %v7705
    %v7830 = vpack.c.b16 %v7710, %v7706
    %v7831 = vpack.c.b16 %v7711, %v7707
    %v7832 = vpack.c.b16 %v7712, %v7708
    %v7833 = vpack.c.b16 %v7717, %v7713
    %v7834 = vpack.c.b16 %v7718, %v7714
    %v7835 = vpack.c.b16 %v7719, %v7715
    %v7836 = vpack.c.b16 %v7720, %v7716
    %v7837 = vpack.c.b16 %v7725, %v7721
    %v7838 = vpack.c.b16 %v7726, %v7722
    %v7839 = vpack.c.b16 %v7727, %v7723
    %v7840 = vpack.c.b16 %v7728, %v7724
    %v7841 = vpack.c.b16 %v7733, %v7729
    %v7842 = vpack.c.b16 %v7734, %v7730
    %v7843 = vpack.c.b16 %v7735, %v7731
    %v7844 = vpack.c.b16 %v7736, %v7732
    %v7845 = vpack.c.b16 %v7741, %v7737
    %v7846 = vpack.c.b16 %v7742, %v7738
    %v7847 = vpack.c.b16 %v7743, %v7739
    %v7848 = vpack.c.b16 %v7744, %v7740
    %v7849 = vpack.c.b16 %v7749, %v7745
    %v7850 = vpack.c.b16 %v7750, %v7746
    %v7851 = vpack.c.b16 %v7751, %v7747
    %v7852 = vpack.c.b16 %v7752, %v7748
    %v7853 = vpack.c.b16 %v7757, %v7753
    %v7854 = vpack.c.b16 %v7758, %v7754
    %v7855 = vpack.c.b16 %v7759, %v7755
    %v7856 = vpack.c.b16 %v7760, %v7756
    %v7857 = vpack.c.b16 %v7765, %v7761
    %v7858 = vpack.c.b16 %v7766, %v7762
    %v7859 = vpack.c.b16 %v7767, %v7763
    %v7860 = vpack.c.b16 %v7768, %v7764
    %v7861 = vpack.c.b16 %v7773, %v7769
    %v7862 = vpack.c.b16 %v7774, %v7770
    %v7863 = vpack.c.b16 %v7775, %v7771
    %v7864 = vpack.c.b16 %v7776, %v7772
    %v7865 = vpack.c.b16 %v7781, %v7777
    %v7866 = vpack.c.b16 %v7782, %v7778
    %v7867 = vpack.c.b16 %v7783, %v7779
    %v7868 = vpack.c.b16 %v7784, %v7780
    %v7869 = vpack.c.b16 %v7789, %v7785
    %v7870 = vpack.c.b16 %v7790, %v7786
    %v7871 = vpack.c.b16 %v7791, %v7787
    %v7872 = vpack.c.b16 %v7792, %v7788
    %v7954 = vsel %vm5349, %v7550, 0
    %7956 = vmatpush.bf16.msra.mxu0 %v7821
    %7957 = vmatpush.bf16.msra.mxu0 %v7817
    %7958 = vmatpush.bf16.msra.mxu0 %v7813
    %7959 = vmatpush.bf16.msra.mxu0 %v7809
    %7960 = vmatpush.bf16.msra.mxu0 %v7805
    %7961 = vmatpush.bf16.msra.mxu0 %v7801
    %7962 = vmatpush.bf16.msra.mxu0 %v7797
    %7963 = vmatpush.bf16.msra.mxu0 %v7793
    %7964 = vmatmul.bf16.gmra.mxu0 %v7548
    %v7965 = vpop.f32.mrf.mxu0
    %v7966 = vadd.f32 0.0, %v7965
    %v7967 = vpop.f32.mrf.mxu0
    %v7968 = vadd.f32 0.0, %v7967
    %7969 = vdwg.mxu0
    %7970 = vmatpush.bf16.msra.mxu0 %v7853
    %7971 = vmatpush.bf16.msra.mxu0 %v7849
    %7972 = vmatpush.bf16.msra.mxu0 %v7845
    %7973 = vmatpush.bf16.msra.mxu0 %v7841
    %7974 = vmatpush.bf16.msra.mxu0 %v7837
    %7975 = vmatpush.bf16.msra.mxu0 %v7833
    %7976 = vmatpush.bf16.msra.mxu0 %v7829
    %7977 = vmatpush.bf16.msra.mxu0 %v7825
    %7978 = vmatmul.bf16.gmra.mxu0 %v7549
    %v7979 = vpop.f32.mrf.mxu0
    %v7980 = vadd.f32 %v7966, %v7979
    %v7981 = vpop.f32.mrf.mxu0
    %v7982 = vadd.f32 %v7968, %v7981
    %7983 = vdwg.mxu0
    %7984 = vmatpush.bf16.msra.mxu0 0
    %7985 = vmatpush.bf16.msra.mxu0 0
    %7986 = vmatpush.bf16.msra.mxu0 0
    %7987 = vmatpush.bf16.msra.mxu0 0
    %7988 = vmatpush.bf16.msra.mxu0 %v7869
    %7989 = vmatpush.bf16.msra.mxu0 %v7865
    %7990 = vmatpush.bf16.msra.mxu0 %v7861
    %7991 = vmatpush.bf16.msra.mxu0 %v7857
    %7992 = vmatmul.bf16.gmra.mxu0 %v7954
    %v7993 = vpop.f32.mrf.mxu0
    %v7994 = vadd.f32 %v7980, %v7993
    %v7995 = vpop.f32.mrf.mxu0
    %v7996 = vadd.f32 %v7982, %v7995
    %7997 = vdwg.mxu0
    %7998 = vmatpush.bf16.msra.mxu0 %v7822
    %7999 = vmatpush.bf16.msra.mxu0 %v7818
    %8000 = vmatpush.bf16.msra.mxu0 %v7814
    %8001 = vmatpush.bf16.msra.mxu0 %v7810
    %8002 = vmatpush.bf16.msra.mxu0 %v7806
    %8003 = vmatpush.bf16.msra.mxu0 %v7802
    %8004 = vmatpush.bf16.msra.mxu0 %v7798
    %8005 = vmatpush.bf16.msra.mxu0 %v7794
    %8006 = vmatmul.bf16.gmra.mxu0 %v7548
    %v8007 = vpop.f32.mrf.mxu0
    %v8008 = vadd.f32 0.0, %v8007
    %v8009 = vpop.f32.mrf.mxu0
    %v8010 = vadd.f32 0.0, %v8009
    %8011 = vdwg.mxu0
    %8012 = vmatpush.bf16.msra.mxu0 %v7854
    %8013 = vmatpush.bf16.msra.mxu0 %v7850
    %8014 = vmatpush.bf16.msra.mxu0 %v7846
    %8015 = vmatpush.bf16.msra.mxu0 %v7842
    %8016 = vmatpush.bf16.msra.mxu0 %v7838
    %8017 = vmatpush.bf16.msra.mxu0 %v7834
    %8018 = vmatpush.bf16.msra.mxu0 %v7830
    %8019 = vmatpush.bf16.msra.mxu0 %v7826
    %8020 = vmatmul.bf16.gmra.mxu0 %v7549
    %v8021 = vpop.f32.mrf.mxu0
    %v8022 = vadd.f32 %v8008, %v8021
    %v8023 = vpop.f32.mrf.mxu0
    %v8024 = vadd.f32 %v8010, %v8023
    %8025 = vdwg.mxu0
    %8026 = vmatpush.bf16.msra.mxu0 0
    %8027 = vmatpush.bf16.msra.mxu0 0
    %8028 = vmatpush.bf16.msra.mxu0 0
    %8029 = vmatpush.bf16.msra.mxu0 0
    %8030 = vmatpush.bf16.msra.mxu0 %v7870
    %8031 = vmatpush.bf16.msra.mxu0 %v7866
    %8032 = vmatpush.bf16.msra.mxu0 %v7862
    %8033 = vmatpush.bf16.msra.mxu0 %v7858
    %8034 = vmatmul.bf16.gmra.mxu0 %v7954
    %v8035 = vpop.f32.mrf.mxu0
    %v8036 = vadd.f32 %v8022, %v8035
    %v8037 = vpop.f32.mrf.mxu0
    %v8038 = vadd.f32 %v8024, %v8037
    %8039 = vdwg.mxu0
    %8040 = vmatpush.bf16.msra.mxu0 %v7823
    %8041 = vmatpush.bf16.msra.mxu0 %v7819
    %8042 = vmatpush.bf16.msra.mxu0 %v7815
    %8043 = vmatpush.bf16.msra.mxu0 %v7811
    %8044 = vmatpush.bf16.msra.mxu0 %v7807
    %8045 = vmatpush.bf16.msra.mxu0 %v7803
    %8046 = vmatpush.bf16.msra.mxu0 %v7799
    %8047 = vmatpush.bf16.msra.mxu0 %v7795
    %8048 = vmatmul.bf16.gmra.mxu0 %v7548
    %v8049 = vpop.f32.mrf.mxu0
    %v8050 = vadd.f32 0.0, %v8049
    %v8051 = vpop.f32.mrf.mxu0
    %v8052 = vadd.f32 0.0, %v8051
    %8053 = vdwg.mxu0
    %8054 = vmatpush.bf16.msra.mxu0 %v7855
    %8055 = vmatpush.bf16.msra.mxu0 %v7851
    %8056 = vmatpush.bf16.msra.mxu0 %v7847
    %8057 = vmatpush.bf16.msra.mxu0 %v7843
    %8058 = vmatpush.bf16.msra.mxu0 %v7839
    %8059 = vmatpush.bf16.msra.mxu0 %v7835
    %8060 = vmatpush.bf16.msra.mxu0 %v7831
    %8061 = vmatpush.bf16.msra.mxu0 %v7827
    %8062 = vmatmul.bf16.gmra.mxu0 %v7549
    %v8063 = vpop.f32.mrf.mxu0
    %v8064 = vadd.f32 %v8050, %v8063
    %v8065 = vpop.f32.mrf.mxu0
    %v8066 = vadd.f32 %v8052, %v8065
    %8067 = vdwg.mxu0
    %8068 = vmatpush.bf16.msra.mxu0 0
    %8069 = vmatpush.bf16.msra.mxu0 0
    %8070 = vmatpush.bf16.msra.mxu0 0
    %8071 = vmatpush.bf16.msra.mxu0 0
    %8072 = vmatpush.bf16.msra.mxu0 %v7871
    %8073 = vmatpush.bf16.msra.mxu0 %v7867
    %8074 = vmatpush.bf16.msra.mxu0 %v7863
    %8075 = vmatpush.bf16.msra.mxu0 %v7859
    %8076 = vmatmul.bf16.gmra.mxu0 %v7954
    %v8077 = vpop.f32.mrf.mxu0
    %v8078 = vadd.f32 %v8064, %v8077
    %v8079 = vpop.f32.mrf.mxu0
    %v8080 = vadd.f32 %v8066, %v8079
    %8081 = vdwg.mxu0
    %8082 = vmatpush.bf16.msra.mxu0 %v7824
    %8083 = vmatpush.bf16.msra.mxu0 %v7820
    %8084 = vmatpush.bf16.msra.mxu0 %v7816
    %8085 = vmatpush.bf16.msra.mxu0 %v7812
    %8086 = vmatpush.bf16.msra.mxu0 %v7808
    %8087 = vmatpush.bf16.msra.mxu0 %v7804
    %8088 = vmatpush.bf16.msra.mxu0 %v7800
    %8089 = vmatpush.bf16.msra.mxu0 %v7796
    %8090 = vmatmul.bf16.gmra.mxu0 %v7548
    %v8091 = vpop.f32.mrf.mxu0
    %v8092 = vadd.f32 0.0, %v8091
    %v8093 = vpop.f32.mrf.mxu0
    %v8094 = vadd.f32 0.0, %v8093
    %8095 = vdwg.mxu0
    %8096 = vmatpush.bf16.msra.mxu0 %v7856
    %8097 = vmatpush.bf16.msra.mxu0 %v7852
    %8098 = vmatpush.bf16.msra.mxu0 %v7848
    %8099 = vmatpush.bf16.msra.mxu0 %v7844
    %8100 = vmatpush.bf16.msra.mxu0 %v7840
    %8101 = vmatpush.bf16.msra.mxu0 %v7836
    %8102 = vmatpush.bf16.msra.mxu0 %v7832
    %8103 = vmatpush.bf16.msra.mxu0 %v7828
    %8104 = vmatmul.bf16.gmra.mxu0 %v7549
    %v8105 = vpop.f32.mrf.mxu0
    %v8106 = vadd.f32 %v8092, %v8105
    %v8107 = vpop.f32.mrf.mxu0
    %v8108 = vadd.f32 %v8094, %v8107
    %8109 = vdwg.mxu0
    %8110 = vmatpush.bf16.msra.mxu0 0
    %8111 = vmatpush.bf16.msra.mxu0 0
    %8112 = vmatpush.bf16.msra.mxu0 0
    %8113 = vmatpush.bf16.msra.mxu0 0
    %8114 = vmatpush.bf16.msra.mxu0 %v7872
    %8115 = vmatpush.bf16.msra.mxu0 %v7868
    %8116 = vmatpush.bf16.msra.mxu0 %v7864
    %8117 = vmatpush.bf16.msra.mxu0 %v7860
    %8118 = vmatmul.bf16.gmra.mxu0 %v7954
    %v8119 = vpop.f32.mrf.mxu0
    %v8120 = vadd.f32 %v8106, %v8119
    %v8121 = vpop.f32.mrf.mxu0
    %v8122 = vadd.f32 %v8108, %v8121
    %8123 = vdwg.mxu0
    %v8124 = vadd.f32 %v7449, %v7994
    %v8125 = vadd.f32 %v7450, %v8036
    %v8126 = vadd.f32 %v7451, %v8078
    %v8127 = vadd.f32 %v7452, %v8120
    %v8128 = vadd.f32 %v7453, %v7996
    %v8129 = vadd.f32 %v7454, %v8038
    %v8130 = vadd.f32 %v7455, %v8080
    %v8131 = vadd.f32 %v7456, %v8122
    %s8132 = scalar_lea.vmem [#allocation9], 3200
    %v8133 = vld [vmem:[%s8132] sm:$0xff]
    %v8134 = vld [vmem:[%s8132 + $0x8] sm:$0xff]
    %v8135 = vld [vmem:[%s8132 + $0x10] sm:$0xff]
    %v8136 = vld [vmem:[%s8132 + $0x18] sm:$0xff]
    %v8137 = vld [vmem:[%s8132 + $0x20] sm:$0xff]
    %v8138 = vld [vmem:[%s8132 + $0x28] sm:$0xff]
    %v8139 = vld [vmem:[%s8132 + $0x30] sm:$0xff]
    %v8140 = vld [vmem:[%s8132 + $0x38] sm:$0xff]
    %v8141 = vld [vmem:[%s8132 + $0x40] sm:$0xff]
    %v8142 = vld [vmem:[%s8132 + $0x48] sm:$0xff]
    %v8143 = vld [vmem:[%s8132 + $0x50] sm:$0xff]
    %v8144 = vld [vmem:[%s8132 + $0x58] sm:$0xff]
    %v8145 = vld [vmem:[%s8132 + $0x60] sm:$0xff]
    %v8146 = vld [vmem:[%s8132 + $0x68] sm:$0xff]
    %v8147 = vld [vmem:[%s8132 + $0x70] sm:$0xff]
    %v8148 = vld [vmem:[%s8132 + $0x78] sm:$0xff]
    %v8149 = vld [vmem:[%s8132 + $0x80] sm:$0xff]
    %v8150 = vld [vmem:[%s8132 + $0x88] sm:$0xff]
    %v8151 = vld [vmem:[%s8132 + $0x90] sm:$0xff]
    %v8152 = vld [vmem:[%s8132 + $0x98] sm:$0xff]
    %v8153 = vld [vmem:[%s8132 + $0xa0] sm:$0xff]
    %v8154 = vld [vmem:[%s8132 + $0xa8] sm:$0xff]
    %v8155 = vld [vmem:[%s8132 + $0xb0] sm:$0xff]
    %v8156 = vld [vmem:[%s8132 + $0xb8] sm:$0xff]
    %v8157 = vld [vmem:[%s8132 + $0xc0] sm:$0xff]
    %v8158 = vld [vmem:[%s8132 + $0xc8] sm:$0xff]
    %v8159 = vld [vmem:[%s8132 + $0xd0] sm:$0xff]
    %v8160 = vld [vmem:[%s8132 + $0xd8] sm:$0xff]
    %v8161 = vld [vmem:[%s8132 + $0xe0] sm:$0xff]
    %v8162 = vld [vmem:[%s8132 + $0xe8] sm:$0xff]
    %v8163 = vld [vmem:[%s8132 + $0xf0] sm:$0xff]
    %v8164 = vld [vmem:[%s8132 + $0xf8] sm:$0xff]
    %v8165 = vld [vmem:[%s8132 + $0x100] sm:$0xff]
    %v8166 = vld [vmem:[%s8132 + $0x108] sm:$0xff]
    %v8167 = vld [vmem:[%s8132 + $0x110] sm:$0xff]
    %v8168 = vld [vmem:[%s8132 + $0x118] sm:$0xff]
    %v8169 = vld [vmem:[%s8132 + $0x120] sm:$0xff]
    %v8170 = vld [vmem:[%s8132 + $0x128] sm:$0xff]
    %v8171 = vld [vmem:[%s8132 + $0x130] sm:$0xff]
    %v8172 = vld [vmem:[%s8132 + $0x138] sm:$0xff]
    %v8173 = vld [vmem:[%s8132 + $0x140] sm:$0xff]
    %v8174 = vld [vmem:[%s8132 + $0x148] sm:$0xff]
    %v8175 = vld [vmem:[%s8132 + $0x150] sm:$0xff]
    %v8176 = vld [vmem:[%s8132 + $0x158] sm:$0xff]
    %v8177 = vld [vmem:[%s8132 + $0x160] sm:$0xff]
    %v8178 = vld [vmem:[%s8132 + $0x168] sm:$0xff]
    %v8179 = vld [vmem:[%s8132 + $0x170] sm:$0xff]
    %v8180 = vld [vmem:[%s8132 + $0x178] sm:$0xff]
    %v8181 = vld [vmem:[%s8132 + $0x180] sm:$0xff]
    %v8182 = vld [vmem:[%s8132 + $0x188] sm:$0xff]
    %v8183 = vld [vmem:[%s8132 + $0x190] sm:$0xff]
    %v8184 = vld [vmem:[%s8132 + $0x198] sm:$0xff]
    %v8185 = vld [vmem:[%s8132 + $0x1a0] sm:$0xff]
    %v8186 = vld [vmem:[%s8132 + $0x1a8] sm:$0xff]
    %v8187 = vld [vmem:[%s8132 + $0x1b0] sm:$0xff]
    %v8188 = vld [vmem:[%s8132 + $0x1b8] sm:$0xff]
    %v8189 = vld [vmem:[%s8132 + $0x1c0] sm:$0xff]
    %v8190 = vld [vmem:[%s8132 + $0x1c8] sm:$0xff]
    %v8191 = vld [vmem:[%s8132 + $0x1d0] sm:$0xff]
    %v8192 = vld [vmem:[%s8132 + $0x1d8] sm:$0xff]
    %v8193 = vld [vmem:[%s8132 + $0x1e0] sm:$0xff]
    %v8194 = vld [vmem:[%s8132 + $0x1e8] sm:$0xff]
    %v8195 = vld [vmem:[%s8132 + $0x1f0] sm:$0xff]
    %v8196 = vld [vmem:[%s8132 + $0x1f8] sm:$0xff]
    %v8197 = vld [vmem:[%s8132 + $0x200] sm:$0xff]
    %v8198 = vld [vmem:[%s8132 + $0x208] sm:$0xff]
    %v8199 = vld [vmem:[%s8132 + $0x210] sm:$0xff]
    %v8200 = vld [vmem:[%s8132 + $0x218] sm:$0xff]
    %v8201 = vld [vmem:[%s8132 + $0x220] sm:$0xff]
    %v8202 = vld [vmem:[%s8132 + $0x228] sm:$0xff]
    %v8203 = vld [vmem:[%s8132 + $0x230] sm:$0xff]
    %v8204 = vld [vmem:[%s8132 + $0x238] sm:$0xff]
    %v8205 = vld [vmem:[%s8132 + $0x240] sm:$0xff]
    %v8206 = vld [vmem:[%s8132 + $0x248] sm:$0xff]
    %v8207 = vld [vmem:[%s8132 + $0x250] sm:$0xff]
    %v8208 = vld [vmem:[%s8132 + $0x258] sm:$0xff]
    %v8209 = vld [vmem:[%s8132 + $0x260] sm:$0xff]
    %v8210 = vld [vmem:[%s8132 + $0x268] sm:$0xff]
    %v8211 = vld [vmem:[%s8132 + $0x270] sm:$0xff]
    %v8212 = vld [vmem:[%s8132 + $0x278] sm:$0xff]
    %v8217 = vunpack.c.l.b16 %v4753
    %v8218 = vunpack.c.h.b16 %v4753
    %v8219 = vunpack.c.l.b16 %v4754
    %v8220 = vunpack.c.l.b16 %v4755
    %v8221 = vunpack.c.h.b16 %v4755
    %v8222 = vunpack.c.l.b16 %v4756
    %v8223 = vpack.c.b16 %v8220, %v8217
    %v8224 = vpack.c.b16 %v8221, %v8218
    %v8225 = vpack.c.b16 %v8222, %v8219
    %v8308 = vunpack.c.l.b16 %v8133
    %v8309 = vunpack.c.h.b16 %v8133
    %v8310 = vunpack.c.l.b16 %v8134
    %v8311 = vunpack.c.h.b16 %v8134
    %v8312 = vunpack.c.l.b16 %v8135
    %v8313 = vunpack.c.h.b16 %v8135
    %v8314 = vunpack.c.l.b16 %v8136
    %v8315 = vunpack.c.h.b16 %v8136
    %v8316 = vunpack.c.l.b16 %v8137
    %v8317 = vunpack.c.h.b16 %v8137
    %v8318 = vunpack.c.l.b16 %v8138
    %v8319 = vunpack.c.h.b16 %v8138
    %v8320 = vunpack.c.l.b16 %v8139
    %v8321 = vunpack.c.h.b16 %v8139
    %v8322 = vunpack.c.l.b16 %v8140
    %v8323 = vunpack.c.h.b16 %v8140
    %v8324 = vunpack.c.l.b16 %v8141
    %v8325 = vunpack.c.h.b16 %v8141
    %v8326 = vunpack.c.l.b16 %v8142
    %v8327 = vunpack.c.h.b16 %v8142
    %v8328 = vunpack.c.l.b16 %v8143
    %v8329 = vunpack.c.h.b16 %v8143
    %v8330 = vunpack.c.l.b16 %v8144
    %v8331 = vunpack.c.h.b16 %v8144
    %v8332 = vunpack.c.l.b16 %v8145
    %v8333 = vunpack.c.h.b16 %v8145
    %v8334 = vunpack.c.l.b16 %v8146
    %v8335 = vunpack.c.h.b16 %v8146
    %v8336 = vunpack.c.l.b16 %v8147
    %v8337 = vunpack.c.h.b16 %v8147
    %v8338 = vunpack.c.l.b16 %v8148
    %v8339 = vunpack.c.h.b16 %v8148
    %v8340 = vunpack.c.l.b16 %v8149
    %v8341 = vunpack.c.h.b16 %v8149
    %v8342 = vunpack.c.l.b16 %v8150
    %v8343 = vunpack.c.h.b16 %v8150
    %v8344 = vunpack.c.l.b16 %v8151
    %v8345 = vunpack.c.h.b16 %v8151
    %v8346 = vunpack.c.l.b16 %v8152
    %v8347 = vunpack.c.h.b16 %v8152
    %v8348 = vunpack.c.l.b16 %v8153
    %v8349 = vunpack.c.h.b16 %v8153
    %v8350 = vunpack.c.l.b16 %v8154
    %v8351 = vunpack.c.h.b16 %v8154
    %v8352 = vunpack.c.l.b16 %v8155
    %v8353 = vunpack.c.h.b16 %v8155
    %v8354 = vunpack.c.l.b16 %v8156
    %v8355 = vunpack.c.h.b16 %v8156
    %v8356 = vunpack.c.l.b16 %v8157
    %v8357 = vunpack.c.h.b16 %v8157
    %v8358 = vunpack.c.l.b16 %v8158
    %v8359 = vunpack.c.h.b16 %v8158
    %v8360 = vunpack.c.l.b16 %v8159
    %v8361 = vunpack.c.h.b16 %v8159
    %v8362 = vunpack.c.l.b16 %v8160
    %v8363 = vunpack.c.h.b16 %v8160
    %v8364 = vunpack.c.l.b16 %v8161
    %v8365 = vunpack.c.h.b16 %v8161
    %v8366 = vunpack.c.l.b16 %v8162
    %v8367 = vunpack.c.h.b16 %v8162
    %v8368 = vunpack.c.l.b16 %v8163
    %v8369 = vunpack.c.h.b16 %v8163
    %v8370 = vunpack.c.l.b16 %v8164
    %v8371 = vunpack.c.h.b16 %v8164
    %v8372 = vunpack.c.l.b16 %v8165
    %v8373 = vunpack.c.h.b16 %v8165
    %v8374 = vunpack.c.l.b16 %v8166
    %v8375 = vunpack.c.h.b16 %v8166
    %v8376 = vunpack.c.l.b16 %v8167
    %v8377 = vunpack.c.h.b16 %v8167
    %v8378 = vunpack.c.l.b16 %v8168
    %v8379 = vunpack.c.h.b16 %v8168
    %v8380 = vunpack.c.l.b16 %v8169
    %v8381 = vunpack.c.h.b16 %v8169
    %v8382 = vunpack.c.l.b16 %v8170
    %v8383 = vunpack.c.h.b16 %v8170
    %v8384 = vunpack.c.l.b16 %v8171
    %v8385 = vunpack.c.h.b16 %v8171
    %v8386 = vunpack.c.l.b16 %v8172
    %v8387 = vunpack.c.h.b16 %v8172
    %v8388 = vunpack.c.l.b16 %v8173
    %v8389 = vunpack.c.h.b16 %v8173
    %v8390 = vunpack.c.l.b16 %v8174
    %v8391 = vunpack.c.h.b16 %v8174
    %v8392 = vunpack.c.l.b16 %v8175
    %v8393 = vunpack.c.h.b16 %v8175
    %v8394 = vunpack.c.l.b16 %v8176
    %v8395 = vunpack.c.h.b16 %v8176
    %v8396 = vunpack.c.l.b16 %v8177
    %v8397 = vunpack.c.h.b16 %v8177
    %v8398 = vunpack.c.l.b16 %v8178
    %v8399 = vunpack.c.h.b16 %v8178
    %v8400 = vunpack.c.l.b16 %v8179
    %v8401 = vunpack.c.h.b16 %v8179
    %v8402 = vunpack.c.l.b16 %v8180
    %v8403 = vunpack.c.h.b16 %v8180
    %v8404 = vunpack.c.l.b16 %v8181
    %v8405 = vunpack.c.h.b16 %v8181
    %v8406 = vunpack.c.l.b16 %v8182
    %v8407 = vunpack.c.h.b16 %v8182
    %v8408 = vunpack.c.l.b16 %v8183
    %v8409 = vunpack.c.h.b16 %v8183
    %v8410 = vunpack.c.l.b16 %v8184
    %v8411 = vunpack.c.h.b16 %v8184
    %v8412 = vunpack.c.l.b16 %v8185
    %v8413 = vunpack.c.h.b16 %v8185
    %v8414 = vunpack.c.l.b16 %v8186
    %v8415 = vunpack.c.h.b16 %v8186
    %v8416 = vunpack.c.l.b16 %v8187
    %v8417 = vunpack.c.h.b16 %v8187
    %v8418 = vunpack.c.l.b16 %v8188
    %v8419 = vunpack.c.h.b16 %v8188
    %v8420 = vunpack.c.l.b16 %v8189
    %v8421 = vunpack.c.h.b16 %v8189
    %v8422 = vunpack.c.l.b16 %v8190
    %v8423 = vunpack.c.h.b16 %v8190
    %v8424 = vunpack.c.l.b16 %v8191
    %v8425 = vunpack.c.h.b16 %v8191
    %v8426 = vunpack.c.l.b16 %v8192
    %v8427 = vunpack.c.h.b16 %v8192
    %v8428 = vunpack.c.l.b16 %v8193
    %v8429 = vunpack.c.h.b16 %v8193
    %v8430 = vunpack.c.l.b16 %v8194
    %v8431 = vunpack.c.h.b16 %v8194
    %v8432 = vunpack.c.l.b16 %v8195
    %v8433 = vunpack.c.h.b16 %v8195
    %v8434 = vunpack.c.l.b16 %v8196
    %v8435 = vunpack.c.h.b16 %v8196
    %v8436 = vunpack.c.l.b16 %v8197
    %v8437 = vunpack.c.h.b16 %v8197
    %v8438 = vunpack.c.l.b16 %v8198
    %v8439 = vunpack.c.h.b16 %v8198
    %v8440 = vunpack.c.l.b16 %v8199
    %v8441 = vunpack.c.h.b16 %v8199
    %v8442 = vunpack.c.l.b16 %v8200
    %v8443 = vunpack.c.h.b16 %v8200
    %v8444 = vunpack.c.l.b16 %v8201
    %v8445 = vunpack.c.h.b16 %v8201
    %v8446 = vunpack.c.l.b16 %v8202
    %v8447 = vunpack.c.h.b16 %v8202
    %v8448 = vunpack.c.l.b16 %v8203
    %v8449 = vunpack.c.h.b16 %v8203
    %v8450 = vunpack.c.l.b16 %v8204
    %v8451 = vunpack.c.h.b16 %v8204
    %v8452 = vunpack.c.l.b16 %v8205
    %v8453 = vunpack.c.h.b16 %v8205
    %v8454 = vunpack.c.l.b16 %v8206
    %v8455 = vunpack.c.h.b16 %v8206
    %v8456 = vunpack.c.l.b16 %v8207
    %v8457 = vunpack.c.h.b16 %v8207
    %v8458 = vunpack.c.l.b16 %v8208
    %v8459 = vunpack.c.h.b16 %v8208
    %v8460 = vunpack.c.l.b16 %v8209
    %v8461 = vunpack.c.h.b16 %v8209
    %v8462 = vunpack.c.l.b16 %v8210
    %v8463 = vunpack.c.h.b16 %v8210
    %v8464 = vunpack.c.l.b16 %v8211
    %v8465 = vunpack.c.h.b16 %v8211
    %v8466 = vunpack.c.l.b16 %v8212
    %v8467 = vunpack.c.h.b16 %v8212
    %v8468 = vpack.c.b16 %v8312, %v8308
    %v8469 = vpack.c.b16 %v8313, %v8309
    %v8470 = vpack.c.b16 %v8314, %v8310
    %v8471 = vpack.c.b16 %v8315, %v8311
    %v8472 = vpack.c.b16 %v8320, %v8316
    %v8473 = vpack.c.b16 %v8321, %v8317
    %v8474 = vpack.c.b16 %v8322, %v8318
    %v8475 = vpack.c.b16 %v8323, %v8319
    %v8476 = vpack.c.b16 %v8328, %v8324
    %v8477 = vpack.c.b16 %v8329, %v8325
    %v8478 = vpack.c.b16 %v8330, %v8326
    %v8479 = vpack.c.b16 %v8331, %v8327
    %v8480 = vpack.c.b16 %v8336, %v8332
    %v8481 = vpack.c.b16 %v8337, %v8333
    %v8482 = vpack.c.b16 %v8338, %v8334
    %v8483 = vpack.c.b16 %v8339, %v8335
    %v8484 = vpack.c.b16 %v8344, %v8340
    %v8485 = vpack.c.b16 %v8345, %v8341
    %v8486 = vpack.c.b16 %v8346, %v8342
    %v8487 = vpack.c.b16 %v8347, %v8343
    %v8488 = vpack.c.b16 %v8352, %v8348
    %v8489 = vpack.c.b16 %v8353, %v8349
    %v8490 = vpack.c.b16 %v8354, %v8350
    %v8491 = vpack.c.b16 %v8355, %v8351
    %v8492 = vpack.c.b16 %v8360, %v8356
    %v8493 = vpack.c.b16 %v8361, %v8357
    %v8494 = vpack.c.b16 %v8362, %v8358
    %v8495 = vpack.c.b16 %v8363, %v8359
    %v8496 = vpack.c.b16 %v8368, %v8364
    %v8497 = vpack.c.b16 %v8369, %v8365
    %v8498 = vpack.c.b16 %v8370, %v8366
    %v8499 = vpack.c.b16 %v8371, %v8367
    %v8500 = vpack.c.b16 %v8376, %v8372
    %v8501 = vpack.c.b16 %v8377, %v8373
    %v8502 = vpack.c.b16 %v8378, %v8374
    %v8503 = vpack.c.b16 %v8379, %v8375
    %v8504 = vpack.c.b16 %v8384, %v8380
    %v8505 = vpack.c.b16 %v8385, %v8381
    %v8506 = vpack.c.b16 %v8386, %v8382
    %v8507 = vpack.c.b16 %v8387, %v8383
    %v8508 = vpack.c.b16 %v8392, %v8388
    %v8509 = vpack.c.b16 %v8393, %v8389
    %v8510 = vpack.c.b16 %v8394, %v8390
    %v8511 = vpack.c.b16 %v8395, %v8391
    %v8512 = vpack.c.b16 %v8400, %v8396
    %v8513 = vpack.c.b16 %v8401, %v8397
    %v8514 = vpack.c.b16 %v8402, %v8398
    %v8515 = vpack.c.b16 %v8403, %v8399
    %v8516 = vpack.c.b16 %v8408, %v8404
    %v8517 = vpack.c.b16 %v8409, %v8405
    %v8518 = vpack.c.b16 %v8410, %v8406
    %v8519 = vpack.c.b16 %v8411, %v8407
    %v8520 = vpack.c.b16 %v8416, %v8412
    %v8521 = vpack.c.b16 %v8417, %v8413
    %v8522 = vpack.c.b16 %v8418, %v8414
    %v8523 = vpack.c.b16 %v8419, %v8415
    %v8524 = vpack.c.b16 %v8424, %v8420
    %v8525 = vpack.c.b16 %v8425, %v8421
    %v8526 = vpack.c.b16 %v8426, %v8422
    %v8527 = vpack.c.b16 %v8427, %v8423
    %v8528 = vpack.c.b16 %v8432, %v8428
    %v8529 = vpack.c.b16 %v8433, %v8429
    %v8530 = vpack.c.b16 %v8434, %v8430
    %v8531 = vpack.c.b16 %v8435, %v8431
    %v8532 = vpack.c.b16 %v8440, %v8436
    %v8533 = vpack.c.b16 %v8441, %v8437
    %v8534 = vpack.c.b16 %v8442, %v8438
    %v8535 = vpack.c.b16 %v8443, %v8439
    %v8536 = vpack.c.b16 %v8448, %v8444
    %v8537 = vpack.c.b16 %v8449, %v8445
    %v8538 = vpack.c.b16 %v8450, %v8446
    %v8539 = vpack.c.b16 %v8451, %v8447
    %v8540 = vpack.c.b16 %v8456, %v8452
    %v8541 = vpack.c.b16 %v8457, %v8453
    %v8542 = vpack.c.b16 %v8458, %v8454
    %v8543 = vpack.c.b16 %v8459, %v8455
    %v8544 = vpack.c.b16 %v8464, %v8460
    %v8545 = vpack.c.b16 %v8465, %v8461
    %v8546 = vpack.c.b16 %v8466, %v8462
    %v8547 = vpack.c.b16 %v8467, %v8463
    %v8629 = vsel %vm5349, %v8225, 0
    %8631 = vmatpush.bf16.msra.mxu0 %v8496
    %8632 = vmatpush.bf16.msra.mxu0 %v8492
    %8633 = vmatpush.bf16.msra.mxu0 %v8488
    %8634 = vmatpush.bf16.msra.mxu0 %v8484
    %8635 = vmatpush.bf16.msra.mxu0 %v8480
    %8636 = vmatpush.bf16.msra.mxu0 %v8476
    %8637 = vmatpush.bf16.msra.mxu0 %v8472
    %8638 = vmatpush.bf16.msra.mxu0 %v8468
    %8639 = vmatmul.bf16.gmra.mxu0 %v8223
    %v8640 = vpop.f32.mrf.mxu0
    %v8641 = vadd.f32 0.0, %v8640
    %v8642 = vpop.f32.mrf.mxu0
    %v8643 = vadd.f32 0.0, %v8642
    %8644 = vdwg.mxu0
    %8645 = vmatpush.bf16.msra.mxu0 %v8528
    %8646 = vmatpush.bf16.msra.mxu0 %v8524
    %8647 = vmatpush.bf16.msra.mxu0 %v8520
    %8648 = vmatpush.bf16.msra.mxu0 %v8516
    %8649 = vmatpush.bf16.msra.mxu0 %v8512
    %8650 = vmatpush.bf16.msra.mxu0 %v8508
    %8651 = vmatpush.bf16.msra.mxu0 %v8504
    %8652 = vmatpush.bf16.msra.mxu0 %v8500
    %8653 = vmatmul.bf16.gmra.mxu0 %v8224
    %v8654 = vpop.f32.mrf.mxu0
    %v8655 = vadd.f32 %v8641, %v8654
    %v8656 = vpop.f32.mrf.mxu0
    %v8657 = vadd.f32 %v8643, %v8656
    %8658 = vdwg.mxu0
    %8659 = vmatpush.bf16.msra.mxu0 0
    %8660 = vmatpush.bf16.msra.mxu0 0
    %8661 = vmatpush.bf16.msra.mxu0 0
    %8662 = vmatpush.bf16.msra.mxu0 0
    %8663 = vmatpush.bf16.msra.mxu0 %v8544
    %8664 = vmatpush.bf16.msra.mxu0 %v8540
    %8665 = vmatpush.bf16.msra.mxu0 %v8536
    %8666 = vmatpush.bf16.msra.mxu0 %v8532
    %8667 = vmatmul.bf16.gmra.mxu0 %v8629
    %v8668 = vpop.f32.mrf.mxu0
    %v8669 = vadd.f32 %v8655, %v8668
    %v8670 = vpop.f32.mrf.mxu0
    %v8671 = vadd.f32 %v8657, %v8670
    %8672 = vdwg.mxu0
    %8673 = vmatpush.bf16.msra.mxu0 %v8497
    %8674 = vmatpush.bf16.msra.mxu0 %v8493
    %8675 = vmatpush.bf16.msra.mxu0 %v8489
    %8676 = vmatpush.bf16.msra.mxu0 %v8485
    %8677 = vmatpush.bf16.msra.mxu0 %v8481
    %8678 = vmatpush.bf16.msra.mxu0 %v8477
    %8679 = vmatpush.bf16.msra.mxu0 %v8473
    %8680 = vmatpush.bf16.msra.mxu0 %v8469
    %8681 = vmatmul.bf16.gmra.mxu0 %v8223
    %v8682 = vpop.f32.mrf.mxu0
    %v8683 = vadd.f32 0.0, %v8682
    %v8684 = vpop.f32.mrf.mxu0
    %v8685 = vadd.f32 0.0, %v8684
    %8686 = vdwg.mxu0
    %8687 = vmatpush.bf16.msra.mxu0 %v8529
    %8688 = vmatpush.bf16.msra.mxu0 %v8525
    %8689 = vmatpush.bf16.msra.mxu0 %v8521
    %8690 = vmatpush.bf16.msra.mxu0 %v8517
    %8691 = vmatpush.bf16.msra.mxu0 %v8513
    %8692 = vmatpush.bf16.msra.mxu0 %v8509
    %8693 = vmatpush.bf16.msra.mxu0 %v8505
    %8694 = vmatpush.bf16.msra.mxu0 %v8501
    %8695 = vmatmul.bf16.gmra.mxu0 %v8224
    %v8696 = vpop.f32.mrf.mxu0
    %v8697 = vadd.f32 %v8683, %v8696
    %v8698 = vpop.f32.mrf.mxu0
    %v8699 = vadd.f32 %v8685, %v8698
    %8700 = vdwg.mxu0
    %8701 = vmatpush.bf16.msra.mxu0 0
    %8702 = vmatpush.bf16.msra.mxu0 0
    %8703 = vmatpush.bf16.msra.mxu0 0
    %8704 = vmatpush.bf16.msra.mxu0 0
    %8705 = vmatpush.bf16.msra.mxu0 %v8545
    %8706 = vmatpush.bf16.msra.mxu0 %v8541
    %8707 = vmatpush.bf16.msra.mxu0 %v8537
    %8708 = vmatpush.bf16.msra.mxu0 %v8533
    %8709 = vmatmul.bf16.gmra.mxu0 %v8629
    %v8710 = vpop.f32.mrf.mxu0
    %v8711 = vadd.f32 %v8697, %v8710
    %v8712 = vpop.f32.mrf.mxu0
    %v8713 = vadd.f32 %v8699, %v8712
    %8714 = vdwg.mxu0
    %8715 = vmatpush.bf16.msra.mxu0 %v8498
    %8716 = vmatpush.bf16.msra.mxu0 %v8494
    %8717 = vmatpush.bf16.msra.mxu0 %v8490
    %8718 = vmatpush.bf16.msra.mxu0 %v8486
    %8719 = vmatpush.bf16.msra.mxu0 %v8482
    %8720 = vmatpush.bf16.msra.mxu0 %v8478
    %8721 = vmatpush.bf16.msra.mxu0 %v8474
    %8722 = vmatpush.bf16.msra.mxu0 %v8470
    %8723 = vmatmul.bf16.gmra.mxu0 %v8223
    %v8724 = vpop.f32.mrf.mxu0
    %v8725 = vadd.f32 0.0, %v8724
    %v8726 = vpop.f32.mrf.mxu0
    %v8727 = vadd.f32 0.0, %v8726
    %8728 = vdwg.mxu0
    %8729 = vmatpush.bf16.msra.mxu0 %v8530
    %8730 = vmatpush.bf16.msra.mxu0 %v8526
    %8731 = vmatpush.bf16.msra.mxu0 %v8522
    %8732 = vmatpush.bf16.msra.mxu0 %v8518
    %8733 = vmatpush.bf16.msra.mxu0 %v8514
    %8734 = vmatpush.bf16.msra.mxu0 %v8510
    %8735 = vmatpush.bf16.msra.mxu0 %v8506
    %8736 = vmatpush.bf16.msra.mxu0 %v8502
    %8737 = vmatmul.bf16.gmra.mxu0 %v8224
    %v8738 = vpop.f32.mrf.mxu0
    %v8739 = vadd.f32 %v8725, %v8738
    %v8740 = vpop.f32.mrf.mxu0
    %v8741 = vadd.f32 %v8727, %v8740
    %8742 = vdwg.mxu0
    %8743 = vmatpush.bf16.msra.mxu0 0
    %8744 = vmatpush.bf16.msra.mxu0 0
    %8745 = vmatpush.bf16.msra.mxu0 0
    %8746 = vmatpush.bf16.msra.mxu0 0
    %8747 = vmatpush.bf16.msra.mxu0 %v8546
    %8748 = vmatpush.bf16.msra.mxu0 %v8542
    %8749 = vmatpush.bf16.msra.mxu0 %v8538
    %8750 = vmatpush.bf16.msra.mxu0 %v8534
    %8751 = vmatmul.bf16.gmra.mxu0 %v8629
    %v8752 = vpop.f32.mrf.mxu0
    %v8753 = vadd.f32 %v8739, %v8752
    %v8754 = vpop.f32.mrf.mxu0
    %v8755 = vadd.f32 %v8741, %v8754
    %8756 = vdwg.mxu0
    %8757 = vmatpush.bf16.msra.mxu0 %v8499
    %8758 = vmatpush.bf16.msra.mxu0 %v8495
    %8759 = vmatpush.bf16.msra.mxu0 %v8491
    %8760 = vmatpush.bf16.msra.mxu0 %v8487
    %8761 = vmatpush.bf16.msra.mxu0 %v8483
    %8762 = vmatpush.bf16.msra.mxu0 %v8479
    %8763 = vmatpush.bf16.msra.mxu0 %v8475
    %8764 = vmatpush.bf16.msra.mxu0 %v8471
    %8765 = vmatmul.bf16.gmra.mxu0 %v8223
    %v8766 = vpop.f32.mrf.mxu0
    %v8767 = vadd.f32 0.0, %v8766
    %v8768 = vpop.f32.mrf.mxu0
    %v8769 = vadd.f32 0.0, %v8768
    %8770 = vdwg.mxu0
    %8771 = vmatpush.bf16.msra.mxu0 %v8531
    %8772 = vmatpush.bf16.msra.mxu0 %v8527
    %8773 = vmatpush.bf16.msra.mxu0 %v8523
    %8774 = vmatpush.bf16.msra.mxu0 %v8519
    %8775 = vmatpush.bf16.msra.mxu0 %v8515
    %8776 = vmatpush.bf16.msra.mxu0 %v8511
    %8777 = vmatpush.bf16.msra.mxu0 %v8507
    %8778 = vmatpush.bf16.msra.mxu0 %v8503
    %8779 = vmatmul.bf16.gmra.mxu0 %v8224
    %v8780 = vpop.f32.mrf.mxu0
    %v8781 = vadd.f32 %v8767, %v8780
    %v8782 = vpop.f32.mrf.mxu0
    %v8783 = vadd.f32 %v8769, %v8782
    %8784 = vdwg.mxu0
    %8785 = vmatpush.bf16.msra.mxu0 0
    %8786 = vmatpush.bf16.msra.mxu0 0
    %8787 = vmatpush.bf16.msra.mxu0 0
    %8788 = vmatpush.bf16.msra.mxu0 0
    %8789 = vmatpush.bf16.msra.mxu0 %v8547
    %8790 = vmatpush.bf16.msra.mxu0 %v8543
    %8791 = vmatpush.bf16.msra.mxu0 %v8539
    %8792 = vmatpush.bf16.msra.mxu0 %v8535
    %8793 = vmatmul.bf16.gmra.mxu0 %v8629
    %v8794 = vpop.f32.mrf.mxu0
    %v8795 = vadd.f32 %v8781, %v8794
    %v8796 = vpop.f32.mrf.mxu0
    %v8797 = vadd.f32 %v8783, %v8796
    %8798 = vdwg.mxu0
    %v8799 = vadd.f32 %v8124, %v8669
    %v8800 = vadd.f32 %v8125, %v8711
    %v8801 = vadd.f32 %v8126, %v8753
    %v8802 = vadd.f32 %v8127, %v8795
    %v8803 = vadd.f32 %v8128, %v8671
    %v8804 = vadd.f32 %v8129, %v8713
    %v8805 = vadd.f32 %v8130, %v8755
    %v8806 = vadd.f32 %v8131, %v8797
    %s8807 = scalar_lea.vmem [#allocation9], 3840
    %v8808 = vld [vmem:[%s8807] sm:$0xff]
    %v8809 = vld [vmem:[%s8807 + $0x8] sm:$0xff]
    %v8810 = vld [vmem:[%s8807 + $0x10] sm:$0xff]
    %v8811 = vld [vmem:[%s8807 + $0x18] sm:$0xff]
    %v8812 = vld [vmem:[%s8807 + $0x20] sm:$0xff]
    %v8813 = vld [vmem:[%s8807 + $0x28] sm:$0xff]
    %v8814 = vld [vmem:[%s8807 + $0x30] sm:$0xff]
    %v8815 = vld [vmem:[%s8807 + $0x38] sm:$0xff]
    %v8816 = vld [vmem:[%s8807 + $0x40] sm:$0xff]
    %v8817 = vld [vmem:[%s8807 + $0x48] sm:$0xff]
    %v8818 = vld [vmem:[%s8807 + $0x50] sm:$0xff]
    %v8819 = vld [vmem:[%s8807 + $0x58] sm:$0xff]
    %v8820 = vld [vmem:[%s8807 + $0x60] sm:$0xff]
    %v8821 = vld [vmem:[%s8807 + $0x68] sm:$0xff]
    %v8822 = vld [vmem:[%s8807 + $0x70] sm:$0xff]
    %v8823 = vld [vmem:[%s8807 + $0x78] sm:$0xff]
    %v8824 = vld [vmem:[%s8807 + $0x80] sm:$0xff]
    %v8825 = vld [vmem:[%s8807 + $0x88] sm:$0xff]
    %v8826 = vld [vmem:[%s8807 + $0x90] sm:$0xff]
    %v8827 = vld [vmem:[%s8807 + $0x98] sm:$0xff]
    %v8828 = vld [vmem:[%s8807 + $0xa0] sm:$0xff]
    %v8829 = vld [vmem:[%s8807 + $0xa8] sm:$0xff]
    %v8830 = vld [vmem:[%s8807 + $0xb0] sm:$0xff]
    %v8831 = vld [vmem:[%s8807 + $0xb8] sm:$0xff]
    %v8832 = vld [vmem:[%s8807 + $0xc0] sm:$0xff]
    %v8833 = vld [vmem:[%s8807 + $0xc8] sm:$0xff]
    %v8834 = vld [vmem:[%s8807 + $0xd0] sm:$0xff]
    %v8835 = vld [vmem:[%s8807 + $0xd8] sm:$0xff]
    %v8836 = vld [vmem:[%s8807 + $0xe0] sm:$0xff]
    %v8837 = vld [vmem:[%s8807 + $0xe8] sm:$0xff]
    %v8838 = vld [vmem:[%s8807 + $0xf0] sm:$0xff]
    %v8839 = vld [vmem:[%s8807 + $0xf8] sm:$0xff]
    %v8840 = vld [vmem:[%s8807 + $0x100] sm:$0xff]
    %v8841 = vld [vmem:[%s8807 + $0x108] sm:$0xff]
    %v8842 = vld [vmem:[%s8807 + $0x110] sm:$0xff]
    %v8843 = vld [vmem:[%s8807 + $0x118] sm:$0xff]
    %v8844 = vld [vmem:[%s8807 + $0x120] sm:$0xff]
    %v8845 = vld [vmem:[%s8807 + $0x128] sm:$0xff]
    %v8846 = vld [vmem:[%s8807 + $0x130] sm:$0xff]
    %v8847 = vld [vmem:[%s8807 + $0x138] sm:$0xff]
    %v8848 = vld [vmem:[%s8807 + $0x140] sm:$0xff]
    %v8849 = vld [vmem:[%s8807 + $0x148] sm:$0xff]
    %v8850 = vld [vmem:[%s8807 + $0x150] sm:$0xff]
    %v8851 = vld [vmem:[%s8807 + $0x158] sm:$0xff]
    %v8852 = vld [vmem:[%s8807 + $0x160] sm:$0xff]
    %v8853 = vld [vmem:[%s8807 + $0x168] sm:$0xff]
    %v8854 = vld [vmem:[%s8807 + $0x170] sm:$0xff]
    %v8855 = vld [vmem:[%s8807 + $0x178] sm:$0xff]
    %v8856 = vld [vmem:[%s8807 + $0x180] sm:$0xff]
    %v8857 = vld [vmem:[%s8807 + $0x188] sm:$0xff]
    %v8858 = vld [vmem:[%s8807 + $0x190] sm:$0xff]
    %v8859 = vld [vmem:[%s8807 + $0x198] sm:$0xff]
    %v8860 = vld [vmem:[%s8807 + $0x1a0] sm:$0xff]
    %v8861 = vld [vmem:[%s8807 + $0x1a8] sm:$0xff]
    %v8862 = vld [vmem:[%s8807 + $0x1b0] sm:$0xff]
    %v8863 = vld [vmem:[%s8807 + $0x1b8] sm:$0xff]
    %v8864 = vld [vmem:[%s8807 + $0x1c0] sm:$0xff]
    %v8865 = vld [vmem:[%s8807 + $0x1c8] sm:$0xff]
    %v8866 = vld [vmem:[%s8807 + $0x1d0] sm:$0xff]
    %v8867 = vld [vmem:[%s8807 + $0x1d8] sm:$0xff]
    %v8868 = vld [vmem:[%s8807 + $0x1e0] sm:$0xff]
    %v8869 = vld [vmem:[%s8807 + $0x1e8] sm:$0xff]
    %v8870 = vld [vmem:[%s8807 + $0x1f0] sm:$0xff]
    %v8871 = vld [vmem:[%s8807 + $0x1f8] sm:$0xff]
    %v8872 = vld [vmem:[%s8807 + $0x200] sm:$0xff]
    %v8873 = vld [vmem:[%s8807 + $0x208] sm:$0xff]
    %v8874 = vld [vmem:[%s8807 + $0x210] sm:$0xff]
    %v8875 = vld [vmem:[%s8807 + $0x218] sm:$0xff]
    %v8876 = vld [vmem:[%s8807 + $0x220] sm:$0xff]
    %v8877 = vld [vmem:[%s8807 + $0x228] sm:$0xff]
    %v8878 = vld [vmem:[%s8807 + $0x230] sm:$0xff]
    %v8879 = vld [vmem:[%s8807 + $0x238] sm:$0xff]
    %v8880 = vld [vmem:[%s8807 + $0x240] sm:$0xff]
    %v8881 = vld [vmem:[%s8807 + $0x248] sm:$0xff]
    %v8882 = vld [vmem:[%s8807 + $0x250] sm:$0xff]
    %v8883 = vld [vmem:[%s8807 + $0x258] sm:$0xff]
    %v8884 = vld [vmem:[%s8807 + $0x260] sm:$0xff]
    %v8885 = vld [vmem:[%s8807 + $0x268] sm:$0xff]
    %v8886 = vld [vmem:[%s8807 + $0x270] sm:$0xff]
    %v8887 = vld [vmem:[%s8807 + $0x278] sm:$0xff]
    %v8892 = vunpack.c.l.b16 %v4757
    %v8893 = vunpack.c.h.b16 %v4757
    %v8894 = vunpack.c.l.b16 %v4758
    %v8895 = vunpack.c.l.b16 %v4759
    %v8896 = vunpack.c.h.b16 %v4759
    %v8897 = vunpack.c.l.b16 %v4760
    %v8898 = vpack.c.b16 %v8895, %v8892
    %v8899 = vpack.c.b16 %v8896, %v8893
    %v8900 = vpack.c.b16 %v8897, %v8894
    %v8983 = vunpack.c.l.b16 %v8808
    %v8984 = vunpack.c.h.b16 %v8808
    %v8985 = vunpack.c.l.b16 %v8809
    %v8986 = vunpack.c.h.b16 %v8809
    %v8987 = vunpack.c.l.b16 %v8810
    %v8988 = vunpack.c.h.b16 %v8810
    %v8989 = vunpack.c.l.b16 %v8811
    %v8990 = vunpack.c.h.b16 %v8811
    %v8991 = vunpack.c.l.b16 %v8812
    %v8992 = vunpack.c.h.b16 %v8812
    %v8993 = vunpack.c.l.b16 %v8813
    %v8994 = vunpack.c.h.b16 %v8813
    %v8995 = vunpack.c.l.b16 %v8814
    %v8996 = vunpack.c.h.b16 %v8814
    %v8997 = vunpack.c.l.b16 %v8815
    %v8998 = vunpack.c.h.b16 %v8815
    %v8999 = vunpack.c.l.b16 %v8816
    %v9000 = vunpack.c.h.b16 %v8816
    %v9001 = vunpack.c.l.b16 %v8817
    %v9002 = vunpack.c.h.b16 %v8817
    %v9003 = vunpack.c.l.b16 %v8818
    %v9004 = vunpack.c.h.b16 %v8818
    %v9005 = vunpack.c.l.b16 %v8819
    %v9006 = vunpack.c.h.b16 %v8819
    %v9007 = vunpack.c.l.b16 %v8820
    %v9008 = vunpack.c.h.b16 %v8820
    %v9009 = vunpack.c.l.b16 %v8821
    %v9010 = vunpack.c.h.b16 %v8821
    %v9011 = vunpack.c.l.b16 %v8822
    %v9012 = vunpack.c.h.b16 %v8822
    %v9013 = vunpack.c.l.b16 %v8823
    %v9014 = vunpack.c.h.b16 %v8823
    %v9015 = vunpack.c.l.b16 %v8824
    %v9016 = vunpack.c.h.b16 %v8824
    %v9017 = vunpack.c.l.b16 %v8825
    %v9018 = vunpack.c.h.b16 %v8825
    %v9019 = vunpack.c.l.b16 %v8826
    %v9020 = vunpack.c.h.b16 %v8826
    %v9021 = vunpack.c.l.b16 %v8827
    %v9022 = vunpack.c.h.b16 %v8827
    %v9023 = vunpack.c.l.b16 %v8828
    %v9024 = vunpack.c.h.b16 %v8828
    %v9025 = vunpack.c.l.b16 %v8829
    %v9026 = vunpack.c.h.b16 %v8829
    %v9027 = vunpack.c.l.b16 %v8830
    %v9028 = vunpack.c.h.b16 %v8830
    %v9029 = vunpack.c.l.b16 %v8831
    %v9030 = vunpack.c.h.b16 %v8831
    %v9031 = vunpack.c.l.b16 %v8832
    %v9032 = vunpack.c.h.b16 %v8832
    %v9033 = vunpack.c.l.b16 %v8833
    %v9034 = vunpack.c.h.b16 %v8833
    %v9035 = vunpack.c.l.b16 %v8834
    %v9036 = vunpack.c.h.b16 %v8834
    %v9037 = vunpack.c.l.b16 %v8835
    %v9038 = vunpack.c.h.b16 %v8835
    %v9039 = vunpack.c.l.b16 %v8836
    %v9040 = vunpack.c.h.b16 %v8836
    %v9041 = vunpack.c.l.b16 %v8837
    %v9042 = vunpack.c.h.b16 %v8837
    %v9043 = vunpack.c.l.b16 %v8838
    %v9044 = vunpack.c.h.b16 %v8838
    %v9045 = vunpack.c.l.b16 %v8839
    %v9046 = vunpack.c.h.b16 %v8839
    %v9047 = vunpack.c.l.b16 %v8840
    %v9048 = vunpack.c.h.b16 %v8840
    %v9049 = vunpack.c.l.b16 %v8841
    %v9050 = vunpack.c.h.b16 %v8841
    %v9051 = vunpack.c.l.b16 %v8842
    %v9052 = vunpack.c.h.b16 %v8842
    %v9053 = vunpack.c.l.b16 %v8843
    %v9054 = vunpack.c.h.b16 %v8843
    %v9055 = vunpack.c.l.b16 %v8844
    %v9056 = vunpack.c.h.b16 %v8844
    %v9057 = vunpack.c.l.b16 %v8845
    %v9058 = vunpack.c.h.b16 %v8845
    %v9059 = vunpack.c.l.b16 %v8846
    %v9060 = vunpack.c.h.b16 %v8846
    %v9061 = vunpack.c.l.b16 %v8847
    %v9062 = vunpack.c.h.b16 %v8847
    %v9063 = vunpack.c.l.b16 %v8848
    %v9064 = vunpack.c.h.b16 %v8848
    %v9065 = vunpack.c.l.b16 %v8849
    %v9066 = vunpack.c.h.b16 %v8849
    %v9067 = vunpack.c.l.b16 %v8850
    %v9068 = vunpack.c.h.b16 %v8850
    %v9069 = vunpack.c.l.b16 %v8851
    %v9070 = vunpack.c.h.b16 %v8851
    %v9071 = vunpack.c.l.b16 %v8852
    %v9072 = vunpack.c.h.b16 %v8852
    %v9073 = vunpack.c.l.b16 %v8853
    %v9074 = vunpack.c.h.b16 %v8853
    %v9075 = vunpack.c.l.b16 %v8854
    %v9076 = vunpack.c.h.b16 %v8854
    %v9077 = vunpack.c.l.b16 %v8855
    %v9078 = vunpack.c.h.b16 %v8855
    %v9079 = vunpack.c.l.b16 %v8856
    %v9080 = vunpack.c.h.b16 %v8856
    %v9081 = vunpack.c.l.b16 %v8857
    %v9082 = vunpack.c.h.b16 %v8857
    %v9083 = vunpack.c.l.b16 %v8858
    %v9084 = vunpack.c.h.b16 %v8858
    %v9085 = vunpack.c.l.b16 %v8859
    %v9086 = vunpack.c.h.b16 %v8859
    %v9087 = vunpack.c.l.b16 %v8860
    %v9088 = vunpack.c.h.b16 %v8860
    %v9089 = vunpack.c.l.b16 %v8861
    %v9090 = vunpack.c.h.b16 %v8861
    %v9091 = vunpack.c.l.b16 %v8862
    %v9092 = vunpack.c.h.b16 %v8862
    %v9093 = vunpack.c.l.b16 %v8863
    %v9094 = vunpack.c.h.b16 %v8863
    %v9095 = vunpack.c.l.b16 %v8864
    %v9096 = vunpack.c.h.b16 %v8864
    %v9097 = vunpack.c.l.b16 %v8865
    %v9098 = vunpack.c.h.b16 %v8865
    %v9099 = vunpack.c.l.b16 %v8866
    %v9100 = vunpack.c.h.b16 %v8866
    %v9101 = vunpack.c.l.b16 %v8867
    %v9102 = vunpack.c.h.b16 %v8867
    %v9103 = vunpack.c.l.b16 %v8868
    %v9104 = vunpack.c.h.b16 %v8868
    %v9105 = vunpack.c.l.b16 %v8869
    %v9106 = vunpack.c.h.b16 %v8869
    %v9107 = vunpack.c.l.b16 %v8870
    %v9108 = vunpack.c.h.b16 %v8870
    %v9109 = vunpack.c.l.b16 %v8871
    %v9110 = vunpack.c.h.b16 %v8871
    %v9111 = vunpack.c.l.b16 %v8872
    %v9112 = vunpack.c.h.b16 %v8872
    %v9113 = vunpack.c.l.b16 %v8873
    %v9114 = vunpack.c.h.b16 %v8873
    %v9115 = vunpack.c.l.b16 %v8874
    %v9116 = vunpack.c.h.b16 %v8874
    %v9117 = vunpack.c.l.b16 %v8875
    %v9118 = vunpack.c.h.b16 %v8875
    %v9119 = vunpack.c.l.b16 %v8876
    %v9120 = vunpack.c.h.b16 %v8876
    %v9121 = vunpack.c.l.b16 %v8877
    %v9122 = vunpack.c.h.b16 %v8877
    %v9123 = vunpack.c.l.b16 %v8878
    %v9124 = vunpack.c.h.b16 %v8878
    %v9125 = vunpack.c.l.b16 %v8879
    %v9126 = vunpack.c.h.b16 %v8879
    %v9127 = vunpack.c.l.b16 %v8880
    %v9128 = vunpack.c.h.b16 %v8880
    %v9129 = vunpack.c.l.b16 %v8881
    %v9130 = vunpack.c.h.b16 %v8881
    %v9131 = vunpack.c.l.b16 %v8882
    %v9132 = vunpack.c.h.b16 %v8882
    %v9133 = vunpack.c.l.b16 %v8883
    %v9134 = vunpack.c.h.b16 %v8883
    %v9135 = vunpack.c.l.b16 %v8884
    %v9136 = vunpack.c.h.b16 %v8884
    %v9137 = vunpack.c.l.b16 %v8885
    %v9138 = vunpack.c.h.b16 %v8885
    %v9139 = vunpack.c.l.b16 %v8886
    %v9140 = vunpack.c.h.b16 %v8886
    %v9141 = vunpack.c.l.b16 %v8887
    %v9142 = vunpack.c.h.b16 %v8887
    %v9143 = vpack.c.b16 %v8987, %v8983
    %v9144 = vpack.c.b16 %v8988, %v8984
    %v9145 = vpack.c.b16 %v8989, %v8985
    %v9146 = vpack.c.b16 %v8990, %v8986
    %v9147 = vpack.c.b16 %v8995, %v8991
    %v9148 = vpack.c.b16 %v8996, %v8992
    %v9149 = vpack.c.b16 %v8997, %v8993
    %v9150 = vpack.c.b16 %v8998, %v8994
    %v9151 = vpack.c.b16 %v9003, %v8999
    %v9152 = vpack.c.b16 %v9004, %v9000
    %v9153 = vpack.c.b16 %v9005, %v9001
    %v9154 = vpack.c.b16 %v9006, %v9002
    %v9155 = vpack.c.b16 %v9011, %v9007
    %v9156 = vpack.c.b16 %v9012, %v9008
    %v9157 = vpack.c.b16 %v9013, %v9009
    %v9158 = vpack.c.b16 %v9014, %v9010
    %v9159 = vpack.c.b16 %v9019, %v9015
    %v9160 = vpack.c.b16 %v9020, %v9016
    %v9161 = vpack.c.b16 %v9021, %v9017
    %v9162 = vpack.c.b16 %v9022, %v9018
    %v9163 = vpack.c.b16 %v9027, %v9023
    %v9164 = vpack.c.b16 %v9028, %v9024
    %v9165 = vpack.c.b16 %v9029, %v9025
    %v9166 = vpack.c.b16 %v9030, %v9026
    %v9167 = vpack.c.b16 %v9035, %v9031
    %v9168 = vpack.c.b16 %v9036, %v9032
    %v9169 = vpack.c.b16 %v9037, %v9033
    %v9170 = vpack.c.b16 %v9038, %v9034
    %v9171 = vpack.c.b16 %v9043, %v9039
    %v9172 = vpack.c.b16 %v9044, %v9040
    %v9173 = vpack.c.b16 %v9045, %v9041
    %v9174 = vpack.c.b16 %v9046, %v9042
    %v9175 = vpack.c.b16 %v9051, %v9047
    %v9176 = vpack.c.b16 %v9052, %v9048
    %v9177 = vpack.c.b16 %v9053, %v9049
    %v9178 = vpack.c.b16 %v9054, %v9050
    %v9179 = vpack.c.b16 %v9059, %v9055
    %v9180 = vpack.c.b16 %v9060, %v9056
    %v9181 = vpack.c.b16 %v9061, %v9057
    %v9182 = vpack.c.b16 %v9062, %v9058
    %v9183 = vpack.c.b16 %v9067, %v9063
    %v9184 = vpack.c.b16 %v9068, %v9064
    %v9185 = vpack.c.b16 %v9069, %v9065
    %v9186 = vpack.c.b16 %v9070, %v9066
    %v9187 = vpack.c.b16 %v9075, %v9071
    %v9188 = vpack.c.b16 %v9076, %v9072
    %v9189 = vpack.c.b16 %v9077, %v9073
    %v9190 = vpack.c.b16 %v9078, %v9074
    %v9191 = vpack.c.b16 %v9083, %v9079
    %v9192 = vpack.c.b16 %v9084, %v9080
    %v9193 = vpack.c.b16 %v9085, %v9081
    %v9194 = vpack.c.b16 %v9086, %v9082
    %v9195 = vpack.c.b16 %v9091, %v9087
    %v9196 = vpack.c.b16 %v9092, %v9088
    %v9197 = vpack.c.b16 %v9093, %v9089
    %v9198 = vpack.c.b16 %v9094, %v9090
    %v9199 = vpack.c.b16 %v9099, %v9095
    %v9200 = vpack.c.b16 %v9100, %v9096
    %v9201 = vpack.c.b16 %v9101, %v9097
    %v9202 = vpack.c.b16 %v9102, %v9098
    %v9203 = vpack.c.b16 %v9107, %v9103
    %v9204 = vpack.c.b16 %v9108, %v9104
    %v9205 = vpack.c.b16 %v9109, %v9105
    %v9206 = vpack.c.b16 %v9110, %v9106
    %v9207 = vpack.c.b16 %v9115, %v9111
    %v9208 = vpack.c.b16 %v9116, %v9112
    %v9209 = vpack.c.b16 %v9117, %v9113
    %v9210 = vpack.c.b16 %v9118, %v9114
    %v9211 = vpack.c.b16 %v9123, %v9119
    %v9212 = vpack.c.b16 %v9124, %v9120
    %v9213 = vpack.c.b16 %v9125, %v9121
    %v9214 = vpack.c.b16 %v9126, %v9122
    %v9215 = vpack.c.b16 %v9131, %v9127
    %v9216 = vpack.c.b16 %v9132, %v9128
    %v9217 = vpack.c.b16 %v9133, %v9129
    %v9218 = vpack.c.b16 %v9134, %v9130
    %v9219 = vpack.c.b16 %v9139, %v9135
    %v9220 = vpack.c.b16 %v9140, %v9136
    %v9221 = vpack.c.b16 %v9141, %v9137
    %v9222 = vpack.c.b16 %v9142, %v9138
    %v9304 = vsel %vm5349, %v8900, 0
    %9306 = vmatpush.bf16.msra.mxu0 %v9171
    %9307 = vmatpush.bf16.msra.mxu0 %v9167
    %9308 = vmatpush.bf16.msra.mxu0 %v9163
    %9309 = vmatpush.bf16.msra.mxu0 %v9159
    %9310 = vmatpush.bf16.msra.mxu0 %v9155
    %9311 = vmatpush.bf16.msra.mxu0 %v9151
    %9312 = vmatpush.bf16.msra.mxu0 %v9147
    %9313 = vmatpush.bf16.msra.mxu0 %v9143
    %9314 = vmatmul.bf16.gmra.mxu0 %v8898
    %v9315 = vpop.f32.mrf.mxu0
    %v9316 = vadd.f32 0.0, %v9315
    %v9317 = vpop.f32.mrf.mxu0
    %v9318 = vadd.f32 0.0, %v9317
    %9319 = vdwg.mxu0
    %9320 = vmatpush.bf16.msra.mxu0 %v9203
    %9321 = vmatpush.bf16.msra.mxu0 %v9199
    %9322 = vmatpush.bf16.msra.mxu0 %v9195
    %9323 = vmatpush.bf16.msra.mxu0 %v9191
    %9324 = vmatpush.bf16.msra.mxu0 %v9187
    %9325 = vmatpush.bf16.msra.mxu0 %v9183
    %9326 = vmatpush.bf16.msra.mxu0 %v9179
    %9327 = vmatpush.bf16.msra.mxu0 %v9175
    %9328 = vmatmul.bf16.gmra.mxu0 %v8899
    %v9329 = vpop.f32.mrf.mxu0
    %v9330 = vadd.f32 %v9316, %v9329
    %v9331 = vpop.f32.mrf.mxu0
    %v9332 = vadd.f32 %v9318, %v9331
    %9333 = vdwg.mxu0
    %9334 = vmatpush.bf16.msra.mxu0 0
    %9335 = vmatpush.bf16.msra.mxu0 0
    %9336 = vmatpush.bf16.msra.mxu0 0
    %9337 = vmatpush.bf16.msra.mxu0 0
    %9338 = vmatpush.bf16.msra.mxu0 %v9219
    %9339 = vmatpush.bf16.msra.mxu0 %v9215
    %9340 = vmatpush.bf16.msra.mxu0 %v9211
    %9341 = vmatpush.bf16.msra.mxu0 %v9207
    %9342 = vmatmul.bf16.gmra.mxu0 %v9304
    %v9343 = vpop.f32.mrf.mxu0
    %v9344 = vadd.f32 %v9330, %v9343
    %v9345 = vpop.f32.mrf.mxu0
    %v9346 = vadd.f32 %v9332, %v9345
    %9347 = vdwg.mxu0
    %9348 = vmatpush.bf16.msra.mxu0 %v9172
    %9349 = vmatpush.bf16.msra.mxu0 %v9168
    %9350 = vmatpush.bf16.msra.mxu0 %v9164
    %9351 = vmatpush.bf16.msra.mxu0 %v9160
    %9352 = vmatpush.bf16.msra.mxu0 %v9156
    %9353 = vmatpush.bf16.msra.mxu0 %v9152
    %9354 = vmatpush.bf16.msra.mxu0 %v9148
    %9355 = vmatpush.bf16.msra.mxu0 %v9144
    %9356 = vmatmul.bf16.gmra.mxu0 %v8898
    %v9357 = vpop.f32.mrf.mxu0
    %v9358 = vadd.f32 0.0, %v9357
    %v9359 = vpop.f32.mrf.mxu0
    %v9360 = vadd.f32 0.0, %v9359
    %9361 = vdwg.mxu0
    %9362 = vmatpush.bf16.msra.mxu0 %v9204
    %9363 = vmatpush.bf16.msra.mxu0 %v9200
    %9364 = vmatpush.bf16.msra.mxu0 %v9196
    %9365 = vmatpush.bf16.msra.mxu0 %v9192
    %9366 = vmatpush.bf16.msra.mxu0 %v9188
    %9367 = vmatpush.bf16.msra.mxu0 %v9184
    %9368 = vmatpush.bf16.msra.mxu0 %v9180
    %9369 = vmatpush.bf16.msra.mxu0 %v9176
    %9370 = vmatmul.bf16.gmra.mxu0 %v8899
    %v9371 = vpop.f32.mrf.mxu0
    %v9372 = vadd.f32 %v9358, %v9371
    %v9373 = vpop.f32.mrf.mxu0
    %v9374 = vadd.f32 %v9360, %v9373
    %9375 = vdwg.mxu0
    %9376 = vmatpush.bf16.msra.mxu0 0
    %9377 = vmatpush.bf16.msra.mxu0 0
    %9378 = vmatpush.bf16.msra.mxu0 0
    %9379 = vmatpush.bf16.msra.mxu0 0
    %9380 = vmatpush.bf16.msra.mxu0 %v9220
    %9381 = vmatpush.bf16.msra.mxu0 %v9216
    %9382 = vmatpush.bf16.msra.mxu0 %v9212
    %9383 = vmatpush.bf16.msra.mxu0 %v9208
    %9384 = vmatmul.bf16.gmra.mxu0 %v9304
    %v9385 = vpop.f32.mrf.mxu0
    %v9386 = vadd.f32 %v9372, %v9385
    %v9387 = vpop.f32.mrf.mxu0
    %v9388 = vadd.f32 %v9374, %v9387
    %9389 = vdwg.mxu0
    %9390 = vmatpush.bf16.msra.mxu0 %v9173
    %9391 = vmatpush.bf16.msra.mxu0 %v9169
    %9392 = vmatpush.bf16.msra.mxu0 %v9165
    %9393 = vmatpush.bf16.msra.mxu0 %v9161
    %9394 = vmatpush.bf16.msra.mxu0 %v9157
    %9395 = vmatpush.bf16.msra.mxu0 %v9153
    %9396 = vmatpush.bf16.msra.mxu0 %v9149
    %9397 = vmatpush.bf16.msra.mxu0 %v9145
    %9398 = vmatmul.bf16.gmra.mxu0 %v8898
    %v9399 = vpop.f32.mrf.mxu0
    %v9400 = vadd.f32 0.0, %v9399
    %v9401 = vpop.f32.mrf.mxu0
    %v9402 = vadd.f32 0.0, %v9401
    %9403 = vdwg.mxu0
    %9404 = vmatpush.bf16.msra.mxu0 %v9205
    %9405 = vmatpush.bf16.msra.mxu0 %v9201
    %9406 = vmatpush.bf16.msra.mxu0 %v9197
    %9407 = vmatpush.bf16.msra.mxu0 %v9193
    %9408 = vmatpush.bf16.msra.mxu0 %v9189
    %9409 = vmatpush.bf16.msra.mxu0 %v9185
    %9410 = vmatpush.bf16.msra.mxu0 %v9181
    %9411 = vmatpush.bf16.msra.mxu0 %v9177
    %9412 = vmatmul.bf16.gmra.mxu0 %v8899
    %v9413 = vpop.f32.mrf.mxu0
    %v9414 = vadd.f32 %v9400, %v9413
    %v9415 = vpop.f32.mrf.mxu0
    %v9416 = vadd.f32 %v9402, %v9415
    %9417 = vdwg.mxu0
    %9418 = vmatpush.bf16.msra.mxu0 0
    %9419 = vmatpush.bf16.msra.mxu0 0
    %9420 = vmatpush.bf16.msra.mxu0 0
    %9421 = vmatpush.bf16.msra.mxu0 0
    %9422 = vmatpush.bf16.msra.mxu0 %v9221
    %9423 = vmatpush.bf16.msra.mxu0 %v9217
    %9424 = vmatpush.bf16.msra.mxu0 %v9213
    %9425 = vmatpush.bf16.msra.mxu0 %v9209
    %9426 = vmatmul.bf16.gmra.mxu0 %v9304
    %v9427 = vpop.f32.mrf.mxu0
    %v9428 = vadd.f32 %v9414, %v9427
    %v9429 = vpop.f32.mrf.mxu0
    %v9430 = vadd.f32 %v9416, %v9429
    %9431 = vdwg.mxu0
    %9432 = vmatpush.bf16.msra.mxu0 %v9174
    %9433 = vmatpush.bf16.msra.mxu0 %v9170
    %9434 = vmatpush.bf16.msra.mxu0 %v9166
    %9435 = vmatpush.bf16.msra.mxu0 %v9162
    %9436 = vmatpush.bf16.msra.mxu0 %v9158
    %9437 = vmatpush.bf16.msra.mxu0 %v9154
    %9438 = vmatpush.bf16.msra.mxu0 %v9150
    %9439 = vmatpush.bf16.msra.mxu0 %v9146
    %9440 = vmatmul.bf16.gmra.mxu0 %v8898
    %v9441 = vpop.f32.mrf.mxu0
    %v9442 = vadd.f32 0.0, %v9441
    %v9443 = vpop.f32.mrf.mxu0
    %v9444 = vadd.f32 0.0, %v9443
    %9445 = vdwg.mxu0
    %9446 = vmatpush.bf16.msra.mxu0 %v9206
    %9447 = vmatpush.bf16.msra.mxu0 %v9202
    %9448 = vmatpush.bf16.msra.mxu0 %v9198
    %9449 = vmatpush.bf16.msra.mxu0 %v9194
    %9450 = vmatpush.bf16.msra.mxu0 %v9190
    %9451 = vmatpush.bf16.msra.mxu0 %v9186
    %9452 = vmatpush.bf16.msra.mxu0 %v9182
    %9453 = vmatpush.bf16.msra.mxu0 %v9178
    %9454 = vmatmul.bf16.gmra.mxu0 %v8899
    %v9455 = vpop.f32.mrf.mxu0
    %v9456 = vadd.f32 %v9442, %v9455
    %v9457 = vpop.f32.mrf.mxu0
    %v9458 = vadd.f32 %v9444, %v9457
    %9459 = vdwg.mxu0
    %9460 = vmatpush.bf16.msra.mxu0 0
    %9461 = vmatpush.bf16.msra.mxu0 0
    %9462 = vmatpush.bf16.msra.mxu0 0
    %9463 = vmatpush.bf16.msra.mxu0 0
    %9464 = vmatpush.bf16.msra.mxu0 %v9222
    %9465 = vmatpush.bf16.msra.mxu0 %v9218
    %9466 = vmatpush.bf16.msra.mxu0 %v9214
    %9467 = vmatpush.bf16.msra.mxu0 %v9210
    %9468 = vmatmul.bf16.gmra.mxu0 %v9304
    %v9469 = vpop.f32.mrf.mxu0
    %v9470 = vadd.f32 %v9456, %v9469
    %v9471 = vpop.f32.mrf.mxu0
    %v9472 = vadd.f32 %v9458, %v9471
    %9473 = vdwg.mxu0
    %v9474 = vadd.f32 %v8799, %v9344
    %v9475 = vadd.f32 %v8800, %v9386
    %v9476 = vadd.f32 %v8801, %v9428
    %v9477 = vadd.f32 %v8802, %v9470
    %v9478 = vadd.f32 %v8803, %v9346
    %v9479 = vadd.f32 %v8804, %v9388
    %v9480 = vadd.f32 %v8805, %v9430
    %v9481 = vadd.f32 %v8806, %v9472
    %s9482 = scalar_lea.vmem [#allocation9], 4480
    %v9483 = vld [vmem:[%s9482] sm:$0xff]
    %v9484 = vld [vmem:[%s9482 + $0x8] sm:$0xff]
    %v9485 = vld [vmem:[%s9482 + $0x10] sm:$0xff]
    %v9486 = vld [vmem:[%s9482 + $0x18] sm:$0xff]
    %v9487 = vld [vmem:[%s9482 + $0x20] sm:$0xff]
    %v9488 = vld [vmem:[%s9482 + $0x28] sm:$0xff]
    %v9489 = vld [vmem:[%s9482 + $0x30] sm:$0xff]
    %v9490 = vld [vmem:[%s9482 + $0x38] sm:$0xff]
    %v9491 = vld [vmem:[%s9482 + $0x40] sm:$0xff]
    %v9492 = vld [vmem:[%s9482 + $0x48] sm:$0xff]
    %v9493 = vld [vmem:[%s9482 + $0x50] sm:$0xff]
    %v9494 = vld [vmem:[%s9482 + $0x58] sm:$0xff]
    %v9495 = vld [vmem:[%s9482 + $0x60] sm:$0xff]
    %v9496 = vld [vmem:[%s9482 + $0x68] sm:$0xff]
    %v9497 = vld [vmem:[%s9482 + $0x70] sm:$0xff]
    %v9498 = vld [vmem:[%s9482 + $0x78] sm:$0xff]
    %v9499 = vld [vmem:[%s9482 + $0x80] sm:$0xff]
    %v9500 = vld [vmem:[%s9482 + $0x88] sm:$0xff]
    %v9501 = vld [vmem:[%s9482 + $0x90] sm:$0xff]
    %v9502 = vld [vmem:[%s9482 + $0x98] sm:$0xff]
    %v9503 = vld [vmem:[%s9482 + $0xa0] sm:$0xff]
    %v9504 = vld [vmem:[%s9482 + $0xa8] sm:$0xff]
    %v9505 = vld [vmem:[%s9482 + $0xb0] sm:$0xff]
    %v9506 = vld [vmem:[%s9482 + $0xb8] sm:$0xff]
    %v9507 = vld [vmem:[%s9482 + $0xc0] sm:$0xff]
    %v9508 = vld [vmem:[%s9482 + $0xc8] sm:$0xff]
    %v9509 = vld [vmem:[%s9482 + $0xd0] sm:$0xff]
    %v9510 = vld [vmem:[%s9482 + $0xd8] sm:$0xff]
    %v9511 = vld [vmem:[%s9482 + $0xe0] sm:$0xff]
    %v9512 = vld [vmem:[%s9482 + $0xe8] sm:$0xff]
    %v9513 = vld [vmem:[%s9482 + $0xf0] sm:$0xff]
    %v9514 = vld [vmem:[%s9482 + $0xf8] sm:$0xff]
    %v9515 = vld [vmem:[%s9482 + $0x100] sm:$0xff]
    %v9516 = vld [vmem:[%s9482 + $0x108] sm:$0xff]
    %v9517 = vld [vmem:[%s9482 + $0x110] sm:$0xff]
    %v9518 = vld [vmem:[%s9482 + $0x118] sm:$0xff]
    %v9519 = vld [vmem:[%s9482 + $0x120] sm:$0xff]
    %v9520 = vld [vmem:[%s9482 + $0x128] sm:$0xff]
    %v9521 = vld [vmem:[%s9482 + $0x130] sm:$0xff]
    %v9522 = vld [vmem:[%s9482 + $0x138] sm:$0xff]
    %v9523 = vld [vmem:[%s9482 + $0x140] sm:$0xff]
    %v9524 = vld [vmem:[%s9482 + $0x148] sm:$0xff]
    %v9525 = vld [vmem:[%s9482 + $0x150] sm:$0xff]
    %v9526 = vld [vmem:[%s9482 + $0x158] sm:$0xff]
    %v9527 = vld [vmem:[%s9482 + $0x160] sm:$0xff]
    %v9528 = vld [vmem:[%s9482 + $0x168] sm:$0xff]
    %v9529 = vld [vmem:[%s9482 + $0x170] sm:$0xff]
    %v9530 = vld [vmem:[%s9482 + $0x178] sm:$0xff]
    %v9531 = vld [vmem:[%s9482 + $0x180] sm:$0xff]
    %v9532 = vld [vmem:[%s9482 + $0x188] sm:$0xff]
    %v9533 = vld [vmem:[%s9482 + $0x190] sm:$0xff]
    %v9534 = vld [vmem:[%s9482 + $0x198] sm:$0xff]
    %v9535 = vld [vmem:[%s9482 + $0x1a0] sm:$0xff]
    %v9536 = vld [vmem:[%s9482 + $0x1a8] sm:$0xff]
    %v9537 = vld [vmem:[%s9482 + $0x1b0] sm:$0xff]
    %v9538 = vld [vmem:[%s9482 + $0x1b8] sm:$0xff]
    %v9539 = vld [vmem:[%s9482 + $0x1c0] sm:$0xff]
    %v9540 = vld [vmem:[%s9482 + $0x1c8] sm:$0xff]
    %v9541 = vld [vmem:[%s9482 + $0x1d0] sm:$0xff]
    %v9542 = vld [vmem:[%s9482 + $0x1d8] sm:$0xff]
    %v9543 = vld [vmem:[%s9482 + $0x1e0] sm:$0xff]
    %v9544 = vld [vmem:[%s9482 + $0x1e8] sm:$0xff]
    %v9545 = vld [vmem:[%s9482 + $0x1f0] sm:$0xff]
    %v9546 = vld [vmem:[%s9482 + $0x1f8] sm:$0xff]
    %v9547 = vld [vmem:[%s9482 + $0x200] sm:$0xff]
    %v9548 = vld [vmem:[%s9482 + $0x208] sm:$0xff]
    %v9549 = vld [vmem:[%s9482 + $0x210] sm:$0xff]
    %v9550 = vld [vmem:[%s9482 + $0x218] sm:$0xff]
    %v9551 = vld [vmem:[%s9482 + $0x220] sm:$0xff]
    %v9552 = vld [vmem:[%s9482 + $0x228] sm:$0xff]
    %v9553 = vld [vmem:[%s9482 + $0x230] sm:$0xff]
    %v9554 = vld [vmem:[%s9482 + $0x238] sm:$0xff]
    %v9555 = vld [vmem:[%s9482 + $0x240] sm:$0xff]
    %v9556 = vld [vmem:[%s9482 + $0x248] sm:$0xff]
    %v9557 = vld [vmem:[%s9482 + $0x250] sm:$0xff]
    %v9558 = vld [vmem:[%s9482 + $0x258] sm:$0xff]
    %v9559 = vld [vmem:[%s9482 + $0x260] sm:$0xff]
    %v9560 = vld [vmem:[%s9482 + $0x268] sm:$0xff]
    %v9561 = vld [vmem:[%s9482 + $0x270] sm:$0xff]
    %v9562 = vld [vmem:[%s9482 + $0x278] sm:$0xff]
    %v9567 = vunpack.c.l.b16 %v4761
    %v9568 = vunpack.c.h.b16 %v4761
    %v9569 = vunpack.c.l.b16 %v4762
    %v9570 = vunpack.c.l.b16 %v4763
    %v9571 = vunpack.c.h.b16 %v4763
    %v9572 = vunpack.c.l.b16 %v4764
    %v9573 = vpack.c.b16 %v9570, %v9567
    %v9574 = vpack.c.b16 %v9571, %v9568
    %v9575 = vpack.c.b16 %v9572, %v9569
    %v9658 = vunpack.c.l.b16 %v9483
    %v9659 = vunpack.c.h.b16 %v9483
    %v9660 = vunpack.c.l.b16 %v9484
    %v9661 = vunpack.c.h.b16 %v9484
    %v9662 = vunpack.c.l.b16 %v9485
    %v9663 = vunpack.c.h.b16 %v9485
    %v9664 = vunpack.c.l.b16 %v9486
    %v9665 = vunpack.c.h.b16 %v9486
    %v9666 = vunpack.c.l.b16 %v9487
    %v9667 = vunpack.c.h.b16 %v9487
    %v9668 = vunpack.c.l.b16 %v9488
    %v9669 = vunpack.c.h.b16 %v9488
    %v9670 = vunpack.c.l.b16 %v9489
    %v9671 = vunpack.c.h.b16 %v9489
    %v9672 = vunpack.c.l.b16 %v9490
    %v9673 = vunpack.c.h.b16 %v9490
    %v9674 = vunpack.c.l.b16 %v9491
    %v9675 = vunpack.c.h.b16 %v9491
    %v9676 = vunpack.c.l.b16 %v9492
    %v9677 = vunpack.c.h.b16 %v9492
    %v9678 = vunpack.c.l.b16 %v9493
    %v9679 = vunpack.c.h.b16 %v9493
    %v9680 = vunpack.c.l.b16 %v9494
    %v9681 = vunpack.c.h.b16 %v9494
    %v9682 = vunpack.c.l.b16 %v9495
    %v9683 = vunpack.c.h.b16 %v9495
    %v9684 = vunpack.c.l.b16 %v9496
    %v9685 = vunpack.c.h.b16 %v9496
    %v9686 = vunpack.c.l.b16 %v9497
    %v9687 = vunpack.c.h.b16 %v9497
    %v9688 = vunpack.c.l.b16 %v9498
    %v9689 = vunpack.c.h.b16 %v9498
    %v9690 = vunpack.c.l.b16 %v9499
    %v9691 = vunpack.c.h.b16 %v9499
    %v9692 = vunpack.c.l.b16 %v9500
    %v9693 = vunpack.c.h.b16 %v9500
    %v9694 = vunpack.c.l.b16 %v9501
    %v9695 = vunpack.c.h.b16 %v9501
    %v9696 = vunpack.c.l.b16 %v9502
    %v9697 = vunpack.c.h.b16 %v9502
    %v9698 = vunpack.c.l.b16 %v9503
    %v9699 = vunpack.c.h.b16 %v9503
    %v9700 = vunpack.c.l.b16 %v9504
    %v9701 = vunpack.c.h.b16 %v9504
    %v9702 = vunpack.c.l.b16 %v9505
    %v9703 = vunpack.c.h.b16 %v9505
    %v9704 = vunpack.c.l.b16 %v9506
    %v9705 = vunpack.c.h.b16 %v9506
    %v9706 = vunpack.c.l.b16 %v9507
    %v9707 = vunpack.c.h.b16 %v9507
    %v9708 = vunpack.c.l.b16 %v9508
    %v9709 = vunpack.c.h.b16 %v9508
    %v9710 = vunpack.c.l.b16 %v9509
    %v9711 = vunpack.c.h.b16 %v9509
    %v9712 = vunpack.c.l.b16 %v9510
    %v9713 = vunpack.c.h.b16 %v9510
    %v9714 = vunpack.c.l.b16 %v9511
    %v9715 = vunpack.c.h.b16 %v9511
    %v9716 = vunpack.c.l.b16 %v9512
    %v9717 = vunpack.c.h.b16 %v9512
    %v9718 = vunpack.c.l.b16 %v9513
    %v9719 = vunpack.c.h.b16 %v9513
    %v9720 = vunpack.c.l.b16 %v9514
    %v9721 = vunpack.c.h.b16 %v9514
    %v9722 = vunpack.c.l.b16 %v9515
    %v9723 = vunpack.c.h.b16 %v9515
    %v9724 = vunpack.c.l.b16 %v9516
    %v9725 = vunpack.c.h.b16 %v9516
    %v9726 = vunpack.c.l.b16 %v9517
    %v9727 = vunpack.c.h.b16 %v9517
    %v9728 = vunpack.c.l.b16 %v9518
    %v9729 = vunpack.c.h.b16 %v9518
    %v9730 = vunpack.c.l.b16 %v9519
    %v9731 = vunpack.c.h.b16 %v9519
    %v9732 = vunpack.c.l.b16 %v9520
    %v9733 = vunpack.c.h.b16 %v9520
    %v9734 = vunpack.c.l.b16 %v9521
    %v9735 = vunpack.c.h.b16 %v9521
    %v9736 = vunpack.c.l.b16 %v9522
    %v9737 = vunpack.c.h.b16 %v9522
    %v9738 = vunpack.c.l.b16 %v9523
    %v9739 = vunpack.c.h.b16 %v9523
    %v9740 = vunpack.c.l.b16 %v9524
    %v9741 = vunpack.c.h.b16 %v9524
    %v9742 = vunpack.c.l.b16 %v9525
    %v9743 = vunpack.c.h.b16 %v9525
    %v9744 = vunpack.c.l.b16 %v9526
    %v9745 = vunpack.c.h.b16 %v9526
    %v9746 = vunpack.c.l.b16 %v9527
    %v9747 = vunpack.c.h.b16 %v9527
    %v9748 = vunpack.c.l.b16 %v9528
    %v9749 = vunpack.c.h.b16 %v9528
    %v9750 = vunpack.c.l.b16 %v9529
    %v9751 = vunpack.c.h.b16 %v9529
    %v9752 = vunpack.c.l.b16 %v9530
    %v9753 = vunpack.c.h.b16 %v9530
    %v9754 = vunpack.c.l.b16 %v9531
    %v9755 = vunpack.c.h.b16 %v9531
    %v9756 = vunpack.c.l.b16 %v9532
    %v9757 = vunpack.c.h.b16 %v9532
    %v9758 = vunpack.c.l.b16 %v9533
    %v9759 = vunpack.c.h.b16 %v9533
    %v9760 = vunpack.c.l.b16 %v9534
    %v9761 = vunpack.c.h.b16 %v9534
    %v9762 = vunpack.c.l.b16 %v9535
    %v9763 = vunpack.c.h.b16 %v9535
    %v9764 = vunpack.c.l.b16 %v9536
    %v9765 = vunpack.c.h.b16 %v9536
    %v9766 = vunpack.c.l.b16 %v9537
    %v9767 = vunpack.c.h.b16 %v9537
    %v9768 = vunpack.c.l.b16 %v9538
    %v9769 = vunpack.c.h.b16 %v9538
    %v9770 = vunpack.c.l.b16 %v9539
    %v9771 = vunpack.c.h.b16 %v9539
    %v9772 = vunpack.c.l.b16 %v9540
    %v9773 = vunpack.c.h.b16 %v9540
    %v9774 = vunpack.c.l.b16 %v9541
    %v9775 = vunpack.c.h.b16 %v9541
    %v9776 = vunpack.c.l.b16 %v9542
    %v9777 = vunpack.c.h.b16 %v9542
    %v9778 = vunpack.c.l.b16 %v9543
    %v9779 = vunpack.c.h.b16 %v9543
    %v9780 = vunpack.c.l.b16 %v9544
    %v9781 = vunpack.c.h.b16 %v9544
    %v9782 = vunpack.c.l.b16 %v9545
    %v9783 = vunpack.c.h.b16 %v9545
    %v9784 = vunpack.c.l.b16 %v9546
    %v9785 = vunpack.c.h.b16 %v9546
    %v9786 = vunpack.c.l.b16 %v9547
    %v9787 = vunpack.c.h.b16 %v9547
    %v9788 = vunpack.c.l.b16 %v9548
    %v9789 = vunpack.c.h.b16 %v9548
    %v9790 = vunpack.c.l.b16 %v9549
    %v9791 = vunpack.c.h.b16 %v9549
    %v9792 = vunpack.c.l.b16 %v9550
    %v9793 = vunpack.c.h.b16 %v9550
    %v9794 = vunpack.c.l.b16 %v9551
    %v9795 = vunpack.c.h.b16 %v9551
    %v9796 = vunpack.c.l.b16 %v9552
    %v9797 = vunpack.c.h.b16 %v9552
    %v9798 = vunpack.c.l.b16 %v9553
    %v9799 = vunpack.c.h.b16 %v9553
    %v9800 = vunpack.c.l.b16 %v9554
    %v9801 = vunpack.c.h.b16 %v9554
    %v9802 = vunpack.c.l.b16 %v9555
    %v9803 = vunpack.c.h.b16 %v9555
    %v9804 = vunpack.c.l.b16 %v9556
    %v9805 = vunpack.c.h.b16 %v9556
    %v9806 = vunpack.c.l.b16 %v9557
    %v9807 = vunpack.c.h.b16 %v9557
    %v9808 = vunpack.c.l.b16 %v9558
    %v9809 = vunpack.c.h.b16 %v9558
    %v9810 = vunpack.c.l.b16 %v9559
    %v9811 = vunpack.c.h.b16 %v9559
    %v9812 = vunpack.c.l.b16 %v9560
    %v9813 = vunpack.c.h.b16 %v9560
    %v9814 = vunpack.c.l.b16 %v9561
    %v9815 = vunpack.c.h.b16 %v9561
    %v9816 = vunpack.c.l.b16 %v9562
    %v9817 = vunpack.c.h.b16 %v9562
    %v9818 = vpack.c.b16 %v9662, %v9658
    %v9819 = vpack.c.b16 %v9663, %v9659
    %v9820 = vpack.c.b16 %v9664, %v9660
    %v9821 = vpack.c.b16 %v9665, %v9661
    %v9822 = vpack.c.b16 %v9670, %v9666
    %v9823 = vpack.c.b16 %v9671, %v9667
    %v9824 = vpack.c.b16 %v9672, %v9668
    %v9825 = vpack.c.b16 %v9673, %v9669
    %v9826 = vpack.c.b16 %v9678, %v9674
    %v9827 = vpack.c.b16 %v9679, %v9675
    %v9828 = vpack.c.b16 %v9680, %v9676
    %v9829 = vpack.c.b16 %v9681, %v9677
    %v9830 = vpack.c.b16 %v9686, %v9682
    %v9831 = vpack.c.b16 %v9687, %v9683
    %v9832 = vpack.c.b16 %v9688, %v9684
    %v9833 = vpack.c.b16 %v9689, %v9685
    %v9834 = vpack.c.b16 %v9694, %v9690
    %v9835 = vpack.c.b16 %v9695, %v9691
    %v9836 = vpack.c.b16 %v9696, %v9692
    %v9837 = vpack.c.b16 %v9697, %v9693
    %v9838 = vpack.c.b16 %v9702, %v9698
    %v9839 = vpack.c.b16 %v9703, %v9699
    %v9840 = vpack.c.b16 %v9704, %v9700
    %v9841 = vpack.c.b16 %v9705, %v9701
    %v9842 = vpack.c.b16 %v9710, %v9706
    %v9843 = vpack.c.b16 %v9711, %v9707
    %v9844 = vpack.c.b16 %v9712, %v9708
    %v9845 = vpack.c.b16 %v9713, %v9709
    %v9846 = vpack.c.b16 %v9718, %v9714
    %v9847 = vpack.c.b16 %v9719, %v9715
    %v9848 = vpack.c.b16 %v9720, %v9716
    %v9849 = vpack.c.b16 %v9721, %v9717
    %v9850 = vpack.c.b16 %v9726, %v9722
    %v9851 = vpack.c.b16 %v9727, %v9723
    %v9852 = vpack.c.b16 %v9728, %v9724
    %v9853 = vpack.c.b16 %v9729, %v9725
    %v9854 = vpack.c.b16 %v9734, %v9730
    %v9855 = vpack.c.b16 %v9735, %v9731
    %v9856 = vpack.c.b16 %v9736, %v9732
    %v9857 = vpack.c.b16 %v9737, %v9733
    %v9858 = vpack.c.b16 %v9742, %v9738
    %v9859 = vpack.c.b16 %v9743, %v9739
    %v9860 = vpack.c.b16 %v9744, %v9740
    %v9861 = vpack.c.b16 %v9745, %v9741
    %v9862 = vpack.c.b16 %v9750, %v9746
    %v9863 = vpack.c.b16 %v9751, %v9747
    %v9864 = vpack.c.b16 %v9752, %v9748
    %v9865 = vpack.c.b16 %v9753, %v9749
    %v9866 = vpack.c.b16 %v9758, %v9754
    %v9867 = vpack.c.b16 %v9759, %v9755
    %v9868 = vpack.c.b16 %v9760, %v9756
    %v9869 = vpack.c.b16 %v9761, %v9757
    %v9870 = vpack.c.b16 %v9766, %v9762
    %v9871 = vpack.c.b16 %v9767, %v9763
    %v9872 = vpack.c.b16 %v9768, %v9764
    %v9873 = vpack.c.b16 %v9769, %v9765
    %v9874 = vpack.c.b16 %v9774, %v9770
    %v9875 = vpack.c.b16 %v9775, %v9771
    %v9876 = vpack.c.b16 %v9776, %v9772
    %v9877 = vpack.c.b16 %v9777, %v9773
    %v9878 = vpack.c.b16 %v9782, %v9778
    %v9879 = vpack.c.b16 %v9783, %v9779
    %v9880 = vpack.c.b16 %v9784, %v9780
    %v9881 = vpack.c.b16 %v9785, %v9781
    %v9882 = vpack.c.b16 %v9790, %v9786
    %v9883 = vpack.c.b16 %v9791, %v9787
    %v9884 = vpack.c.b16 %v9792, %v9788
    %v9885 = vpack.c.b16 %v9793, %v9789
    %v9886 = vpack.c.b16 %v9798, %v9794
    %v9887 = vpack.c.b16 %v9799, %v9795
    %v9888 = vpack.c.b16 %v9800, %v9796
    %v9889 = vpack.c.b16 %v9801, %v9797
    %v9890 = vpack.c.b16 %v9806, %v9802
    %v9891 = vpack.c.b16 %v9807, %v9803
    %v9892 = vpack.c.b16 %v9808, %v9804
    %v9893 = vpack.c.b16 %v9809, %v9805
    %v9894 = vpack.c.b16 %v9814, %v9810
    %v9895 = vpack.c.b16 %v9815, %v9811
    %v9896 = vpack.c.b16 %v9816, %v9812
    %v9897 = vpack.c.b16 %v9817, %v9813
    %v9979 = vsel %vm5349, %v9575, 0
    %9981 = vmatpush.bf16.msra.mxu0 %v9846
    %9982 = vmatpush.bf16.msra.mxu0 %v9842
    %9983 = vmatpush.bf16.msra.mxu0 %v9838
    %9984 = vmatpush.bf16.msra.mxu0 %v9834
    %9985 = vmatpush.bf16.msra.mxu0 %v9830
    %9986 = vmatpush.bf16.msra.mxu0 %v9826
    %9987 = vmatpush.bf16.msra.mxu0 %v9822
    %9988 = vmatpush.bf16.msra.mxu0 %v9818
    %9989 = vmatmul.bf16.gmra.mxu0 %v9573
    %v9990 = vpop.f32.mrf.mxu0
    %v9991 = vadd.f32 0.0, %v9990
    %v9992 = vpop.f32.mrf.mxu0
    %v9993 = vadd.f32 0.0, %v9992
    %9994 = vdwg.mxu0
    %9995 = vmatpush.bf16.msra.mxu0 %v9878
    %9996 = vmatpush.bf16.msra.mxu0 %v9874
    %9997 = vmatpush.bf16.msra.mxu0 %v9870
    %9998 = vmatpush.bf16.msra.mxu0 %v9866
    %9999 = vmatpush.bf16.msra.mxu0 %v9862
    %10000 = vmatpush.bf16.msra.mxu0 %v9858
    %10001 = vmatpush.bf16.msra.mxu0 %v9854
    %10002 = vmatpush.bf16.msra.mxu0 %v9850
    %10003 = vmatmul.bf16.gmra.mxu0 %v9574
    %v10004 = vpop.f32.mrf.mxu0
    %v10005 = vadd.f32 %v9991, %v10004
    %v10006 = vpop.f32.mrf.mxu0
    %v10007 = vadd.f32 %v9993, %v10006
    %10008 = vdwg.mxu0
    %10009 = vmatpush.bf16.msra.mxu0 0
    %10010 = vmatpush.bf16.msra.mxu0 0
    %10011 = vmatpush.bf16.msra.mxu0 0
    %10012 = vmatpush.bf16.msra.mxu0 0
    %10013 = vmatpush.bf16.msra.mxu0 %v9894
    %10014 = vmatpush.bf16.msra.mxu0 %v9890
    %10015 = vmatpush.bf16.msra.mxu0 %v9886
    %10016 = vmatpush.bf16.msra.mxu0 %v9882
    %10017 = vmatmul.bf16.gmra.mxu0 %v9979
    %v10018 = vpop.f32.mrf.mxu0
    %v10019 = vadd.f32 %v10005, %v10018
    %v10020 = vpop.f32.mrf.mxu0
    %v10021 = vadd.f32 %v10007, %v10020
    %10022 = vdwg.mxu0
    %10023 = vmatpush.bf16.msra.mxu0 %v9847
    %10024 = vmatpush.bf16.msra.mxu0 %v9843
    %10025 = vmatpush.bf16.msra.mxu0 %v9839
    %10026 = vmatpush.bf16.msra.mxu0 %v9835
    %10027 = vmatpush.bf16.msra.mxu0 %v9831
    %10028 = vmatpush.bf16.msra.mxu0 %v9827
    %10029 = vmatpush.bf16.msra.mxu0 %v9823
    %10030 = vmatpush.bf16.msra.mxu0 %v9819
    %10031 = vmatmul.bf16.gmra.mxu0 %v9573
    %v10032 = vpop.f32.mrf.mxu0
    %v10033 = vadd.f32 0.0, %v10032
    %v10034 = vpop.f32.mrf.mxu0
    %v10035 = vadd.f32 0.0, %v10034
    %10036 = vdwg.mxu0
    %10037 = vmatpush.bf16.msra.mxu0 %v9879
    %10038 = vmatpush.bf16.msra.mxu0 %v9875
    %10039 = vmatpush.bf16.msra.mxu0 %v9871
    %10040 = vmatpush.bf16.msra.mxu0 %v9867
    %10041 = vmatpush.bf16.msra.mxu0 %v9863
    %10042 = vmatpush.bf16.msra.mxu0 %v9859
    %10043 = vmatpush.bf16.msra.mxu0 %v9855
    %10044 = vmatpush.bf16.msra.mxu0 %v9851
    %10045 = vmatmul.bf16.gmra.mxu0 %v9574
    %v10046 = vpop.f32.mrf.mxu0
    %v10047 = vadd.f32 %v10033, %v10046
    %v10048 = vpop.f32.mrf.mxu0
    %v10049 = vadd.f32 %v10035, %v10048
    %10050 = vdwg.mxu0
    %10051 = vmatpush.bf16.msra.mxu0 0
    %10052 = vmatpush.bf16.msra.mxu0 0
    %10053 = vmatpush.bf16.msra.mxu0 0
    %10054 = vmatpush.bf16.msra.mxu0 0
    %10055 = vmatpush.bf16.msra.mxu0 %v9895
    %10056 = vmatpush.bf16.msra.mxu0 %v9891
    %10057 = vmatpush.bf16.msra.mxu0 %v9887
    %10058 = vmatpush.bf16.msra.mxu0 %v9883
    %10059 = vmatmul.bf16.gmra.mxu0 %v9979
    %v10060 = vpop.f32.mrf.mxu0
    %v10061 = vadd.f32 %v10047, %v10060
    %v10062 = vpop.f32.mrf.mxu0
    %v10063 = vadd.f32 %v10049, %v10062
    %10064 = vdwg.mxu0
    %10065 = vmatpush.bf16.msra.mxu0 %v9848
    %10066 = vmatpush.bf16.msra.mxu0 %v9844
    %10067 = vmatpush.bf16.msra.mxu0 %v9840
    %10068 = vmatpush.bf16.msra.mxu0 %v9836
    %10069 = vmatpush.bf16.msra.mxu0 %v9832
    %10070 = vmatpush.bf16.msra.mxu0 %v9828
    %10071 = vmatpush.bf16.msra.mxu0 %v9824
    %10072 = vmatpush.bf16.msra.mxu0 %v9820
    %10073 = vmatmul.bf16.gmra.mxu0 %v9573
    %v10074 = vpop.f32.mrf.mxu0
    %v10075 = vadd.f32 0.0, %v10074
    %v10076 = vpop.f32.mrf.mxu0
    %v10077 = vadd.f32 0.0, %v10076
    %10078 = vdwg.mxu0
    %10079 = vmatpush.bf16.msra.mxu0 %v9880
    %10080 = vmatpush.bf16.msra.mxu0 %v9876
    %10081 = vmatpush.bf16.msra.mxu0 %v9872
    %10082 = vmatpush.bf16.msra.mxu0 %v9868
    %10083 = vmatpush.bf16.msra.mxu0 %v9864
    %10084 = vmatpush.bf16.msra.mxu0 %v9860
    %10085 = vmatpush.bf16.msra.mxu0 %v9856
    %10086 = vmatpush.bf16.msra.mxu0 %v9852
    %10087 = vmatmul.bf16.gmra.mxu0 %v9574
    %v10088 = vpop.f32.mrf.mxu0
    %v10089 = vadd.f32 %v10075, %v10088
    %v10090 = vpop.f32.mrf.mxu0
    %v10091 = vadd.f32 %v10077, %v10090
    %10092 = vdwg.mxu0
    %10093 = vmatpush.bf16.msra.mxu0 0
    %10094 = vmatpush.bf16.msra.mxu0 0
    %10095 = vmatpush.bf16.msra.mxu0 0
    %10096 = vmatpush.bf16.msra.mxu0 0
    %10097 = vmatpush.bf16.msra.mxu0 %v9896
    %10098 = vmatpush.bf16.msra.mxu0 %v9892
    %10099 = vmatpush.bf16.msra.mxu0 %v9888
    %10100 = vmatpush.bf16.msra.mxu0 %v9884
    %10101 = vmatmul.bf16.gmra.mxu0 %v9979
    %v10102 = vpop.f32.mrf.mxu0
    %v10103 = vadd.f32 %v10089, %v10102
    %v10104 = vpop.f32.mrf.mxu0
    %v10105 = vadd.f32 %v10091, %v10104
    %10106 = vdwg.mxu0
    %10107 = vmatpush.bf16.msra.mxu0 %v9849
    %10108 = vmatpush.bf16.msra.mxu0 %v9845
    %10109 = vmatpush.bf16.msra.mxu0 %v9841
    %10110 = vmatpush.bf16.msra.mxu0 %v9837
    %10111 = vmatpush.bf16.msra.mxu0 %v9833
    %10112 = vmatpush.bf16.msra.mxu0 %v9829
    %10113 = vmatpush.bf16.msra.mxu0 %v9825
    %10114 = vmatpush.bf16.msra.mxu0 %v9821
    %10115 = vmatmul.bf16.gmra.mxu0 %v9573
    %v10116 = vpop.f32.mrf.mxu0
    %v10117 = vadd.f32 0.0, %v10116
    %v10118 = vpop.f32.mrf.mxu0
    %v10119 = vadd.f32 0.0, %v10118
    %10120 = vdwg.mxu0
    %10121 = vmatpush.bf16.msra.mxu0 %v9881
    %10122 = vmatpush.bf16.msra.mxu0 %v9877
    %10123 = vmatpush.bf16.msra.mxu0 %v9873
    %10124 = vmatpush.bf16.msra.mxu0 %v9869
    %10125 = vmatpush.bf16.msra.mxu0 %v9865
    %10126 = vmatpush.bf16.msra.mxu0 %v9861
    %10127 = vmatpush.bf16.msra.mxu0 %v9857
    %10128 = vmatpush.bf16.msra.mxu0 %v9853
    %10129 = vmatmul.bf16.gmra.mxu0 %v9574
    %v10130 = vpop.f32.mrf.mxu0
    %v10131 = vadd.f32 %v10117, %v10130
    %v10132 = vpop.f32.mrf.mxu0
    %v10133 = vadd.f32 %v10119, %v10132
    %10134 = vdwg.mxu0
    %10135 = vmatpush.bf16.msra.mxu0 0
    %10136 = vmatpush.bf16.msra.mxu0 0
    %10137 = vmatpush.bf16.msra.mxu0 0
    %10138 = vmatpush.bf16.msra.mxu0 0
    %10139 = vmatpush.bf16.msra.mxu0 %v9897
    %10140 = vmatpush.bf16.msra.mxu0 %v9893
    %10141 = vmatpush.bf16.msra.mxu0 %v9889
    %10142 = vmatpush.bf16.msra.mxu0 %v9885
    %10143 = vmatmul.bf16.gmra.mxu0 %v9979
    %v10144 = vpop.f32.mrf.mxu0
    %v10145 = vadd.f32 %v10131, %v10144
    %v10146 = vpop.f32.mrf.mxu0
    %v10147 = vadd.f32 %v10133, %v10146
    %10148 = vdwg.mxu0
    %v10149 = vadd.f32 %v9474, %v10019
    %v10150 = vadd.f32 %v9475, %v10061
    %v10151 = vadd.f32 %v9476, %v10103
    %v10152 = vadd.f32 %v9477, %v10145
    %v10153 = vadd.f32 %v9478, %v10021
    %v10154 = vadd.f32 %v9479, %v10063
    %v10155 = vadd.f32 %v9480, %v10105
    %v10156 = vadd.f32 %v9481, %v10147
    %s10157 = scalar_lea.vmem [#allocation9], 5120
    %v10158 = vld [vmem:[%s10157] sm:$0xff]
    %v10159 = vld [vmem:[%s10157 + $0x8] sm:$0xff]
    %v10160 = vld [vmem:[%s10157 + $0x10] sm:$0xff]
    %v10161 = vld [vmem:[%s10157 + $0x18] sm:$0xff]
    %v10162 = vld [vmem:[%s10157 + $0x20] sm:$0xff]
    %v10163 = vld [vmem:[%s10157 + $0x28] sm:$0xff]
    %v10164 = vld [vmem:[%s10157 + $0x30] sm:$0xff]
    %v10165 = vld [vmem:[%s10157 + $0x38] sm:$0xff]
    %v10166 = vld [vmem:[%s10157 + $0x40] sm:$0xff]
    %v10167 = vld [vmem:[%s10157 + $0x48] sm:$0xff]
    %v10168 = vld [vmem:[%s10157 + $0x50] sm:$0xff]
    %v10169 = vld [vmem:[%s10157 + $0x58] sm:$0xff]
    %v10170 = vld [vmem:[%s10157 + $0x60] sm:$0xff]
    %v10171 = vld [vmem:[%s10157 + $0x68] sm:$0xff]
    %v10172 = vld [vmem:[%s10157 + $0x70] sm:$0xff]
    %v10173 = vld [vmem:[%s10157 + $0x78] sm:$0xff]
    %v10174 = vld [vmem:[%s10157 + $0x80] sm:$0xff]
    %v10175 = vld [vmem:[%s10157 + $0x88] sm:$0xff]
    %v10176 = vld [vmem:[%s10157 + $0x90] sm:$0xff]
    %v10177 = vld [vmem:[%s10157 + $0x98] sm:$0xff]
    %v10178 = vld [vmem:[%s10157 + $0xa0] sm:$0xff]
    %v10179 = vld [vmem:[%s10157 + $0xa8] sm:$0xff]
    %v10180 = vld [vmem:[%s10157 + $0xb0] sm:$0xff]
    %v10181 = vld [vmem:[%s10157 + $0xb8] sm:$0xff]
    %v10182 = vld [vmem:[%s10157 + $0xc0] sm:$0xff]
    %v10183 = vld [vmem:[%s10157 + $0xc8] sm:$0xff]
    %v10184 = vld [vmem:[%s10157 + $0xd0] sm:$0xff]
    %v10185 = vld [vmem:[%s10157 + $0xd8] sm:$0xff]
    %v10186 = vld [vmem:[%s10157 + $0xe0] sm:$0xff]
    %v10187 = vld [vmem:[%s10157 + $0xe8] sm:$0xff]
    %v10188 = vld [vmem:[%s10157 + $0xf0] sm:$0xff]
    %v10189 = vld [vmem:[%s10157 + $0xf8] sm:$0xff]
    %v10190 = vld [vmem:[%s10157 + $0x100] sm:$0xff]
    %v10191 = vld [vmem:[%s10157 + $0x108] sm:$0xff]
    %v10192 = vld [vmem:[%s10157 + $0x110] sm:$0xff]
    %v10193 = vld [vmem:[%s10157 + $0x118] sm:$0xff]
    %v10194 = vld [vmem:[%s10157 + $0x120] sm:$0xff]
    %v10195 = vld [vmem:[%s10157 + $0x128] sm:$0xff]
    %v10196 = vld [vmem:[%s10157 + $0x130] sm:$0xff]
    %v10197 = vld [vmem:[%s10157 + $0x138] sm:$0xff]
    %v10198 = vld [vmem:[%s10157 + $0x140] sm:$0xff]
    %v10199 = vld [vmem:[%s10157 + $0x148] sm:$0xff]
    %v10200 = vld [vmem:[%s10157 + $0x150] sm:$0xff]
    %v10201 = vld [vmem:[%s10157 + $0x158] sm:$0xff]
    %v10202 = vld [vmem:[%s10157 + $0x160] sm:$0xff]
    %v10203 = vld [vmem:[%s10157 + $0x168] sm:$0xff]
    %v10204 = vld [vmem:[%s10157 + $0x170] sm:$0xff]
    %v10205 = vld [vmem:[%s10157 + $0x178] sm:$0xff]
    %v10206 = vld [vmem:[%s10157 + $0x180] sm:$0xff]
    %v10207 = vld [vmem:[%s10157 + $0x188] sm:$0xff]
    %v10208 = vld [vmem:[%s10157 + $0x190] sm:$0xff]
    %v10209 = vld [vmem:[%s10157 + $0x198] sm:$0xff]
    %v10210 = vld [vmem:[%s10157 + $0x1a0] sm:$0xff]
    %v10211 = vld [vmem:[%s10157 + $0x1a8] sm:$0xff]
    %v10212 = vld [vmem:[%s10157 + $0x1b0] sm:$0xff]
    %v10213 = vld [vmem:[%s10157 + $0x1b8] sm:$0xff]
    %v10214 = vld [vmem:[%s10157 + $0x1c0] sm:$0xff]
    %v10215 = vld [vmem:[%s10157 + $0x1c8] sm:$0xff]
    %v10216 = vld [vmem:[%s10157 + $0x1d0] sm:$0xff]
    %v10217 = vld [vmem:[%s10157 + $0x1d8] sm:$0xff]
    %v10218 = vld [vmem:[%s10157 + $0x1e0] sm:$0xff]
    %v10219 = vld [vmem:[%s10157 + $0x1e8] sm:$0xff]
    %v10220 = vld [vmem:[%s10157 + $0x1f0] sm:$0xff]
    %v10221 = vld [vmem:[%s10157 + $0x1f8] sm:$0xff]
    %v10222 = vld [vmem:[%s10157 + $0x200] sm:$0xff]
    %v10223 = vld [vmem:[%s10157 + $0x208] sm:$0xff]
    %v10224 = vld [vmem:[%s10157 + $0x210] sm:$0xff]
    %v10225 = vld [vmem:[%s10157 + $0x218] sm:$0xff]
    %v10226 = vld [vmem:[%s10157 + $0x220] sm:$0xff]
    %v10227 = vld [vmem:[%s10157 + $0x228] sm:$0xff]
    %v10228 = vld [vmem:[%s10157 + $0x230] sm:$0xff]
    %v10229 = vld [vmem:[%s10157 + $0x238] sm:$0xff]
    %v10230 = vld [vmem:[%s10157 + $0x240] sm:$0xff]
    %v10231 = vld [vmem:[%s10157 + $0x248] sm:$0xff]
    %v10232 = vld [vmem:[%s10157 + $0x250] sm:$0xff]
    %v10233 = vld [vmem:[%s10157 + $0x258] sm:$0xff]
    %v10234 = vld [vmem:[%s10157 + $0x260] sm:$0xff]
    %v10235 = vld [vmem:[%s10157 + $0x268] sm:$0xff]
    %v10236 = vld [vmem:[%s10157 + $0x270] sm:$0xff]
    %v10237 = vld [vmem:[%s10157 + $0x278] sm:$0xff]
    %v10242 = vunpack.c.l.b16 %v4765
    %v10243 = vunpack.c.h.b16 %v4765
    %v10244 = vunpack.c.l.b16 %v4766
    %v10245 = vunpack.c.l.b16 %v4767
    %v10246 = vunpack.c.h.b16 %v4767
    %v10247 = vunpack.c.l.b16 %v4768
    %v10248 = vpack.c.b16 %v10245, %v10242
    %v10249 = vpack.c.b16 %v10246, %v10243
    %v10250 = vpack.c.b16 %v10247, %v10244
    %v10333 = vunpack.c.l.b16 %v10158
    %v10334 = vunpack.c.h.b16 %v10158
    %v10335 = vunpack.c.l.b16 %v10159
    %v10336 = vunpack.c.h.b16 %v10159
    %v10337 = vunpack.c.l.b16 %v10160
    %v10338 = vunpack.c.h.b16 %v10160
    %v10339 = vunpack.c.l.b16 %v10161
    %v10340 = vunpack.c.h.b16 %v10161
    %v10341 = vunpack.c.l.b16 %v10162
    %v10342 = vunpack.c.h.b16 %v10162
    %v10343 = vunpack.c.l.b16 %v10163
    %v10344 = vunpack.c.h.b16 %v10163
    %v10345 = vunpack.c.l.b16 %v10164
    %v10346 = vunpack.c.h.b16 %v10164
    %v10347 = vunpack.c.l.b16 %v10165
    %v10348 = vunpack.c.h.b16 %v10165
    %v10349 = vunpack.c.l.b16 %v10166
    %v10350 = vunpack.c.h.b16 %v10166
    %v10351 = vunpack.c.l.b16 %v10167
    %v10352 = vunpack.c.h.b16 %v10167
    %v10353 = vunpack.c.l.b16 %v10168
    %v10354 = vunpack.c.h.b16 %v10168
    %v10355 = vunpack.c.l.b16 %v10169
    %v10356 = vunpack.c.h.b16 %v10169
    %v10357 = vunpack.c.l.b16 %v10170
    %v10358 = vunpack.c.h.b16 %v10170
    %v10359 = vunpack.c.l.b16 %v10171
    %v10360 = vunpack.c.h.b16 %v10171
    %v10361 = vunpack.c.l.b16 %v10172
    %v10362 = vunpack.c.h.b16 %v10172
    %v10363 = vunpack.c.l.b16 %v10173
    %v10364 = vunpack.c.h.b16 %v10173
    %v10365 = vunpack.c.l.b16 %v10174
    %v10366 = vunpack.c.h.b16 %v10174
    %v10367 = vunpack.c.l.b16 %v10175
    %v10368 = vunpack.c.h.b16 %v10175
    %v10369 = vunpack.c.l.b16 %v10176
    %v10370 = vunpack.c.h.b16 %v10176
    %v10371 = vunpack.c.l.b16 %v10177
    %v10372 = vunpack.c.h.b16 %v10177
    %v10373 = vunpack.c.l.b16 %v10178
    %v10374 = vunpack.c.h.b16 %v10178
    %v10375 = vunpack.c.l.b16 %v10179
    %v10376 = vunpack.c.h.b16 %v10179
    %v10377 = vunpack.c.l.b16 %v10180
    %v10378 = vunpack.c.h.b16 %v10180
    %v10379 = vunpack.c.l.b16 %v10181
    %v10380 = vunpack.c.h.b16 %v10181
    %v10381 = vunpack.c.l.b16 %v10182
    %v10382 = vunpack.c.h.b16 %v10182
    %v10383 = vunpack.c.l.b16 %v10183
    %v10384 = vunpack.c.h.b16 %v10183
    %v10385 = vunpack.c.l.b16 %v10184
    %v10386 = vunpack.c.h.b16 %v10184
    %v10387 = vunpack.c.l.b16 %v10185
    %v10388 = vunpack.c.h.b16 %v10185
    %v10389 = vunpack.c.l.b16 %v10186
    %v10390 = vunpack.c.h.b16 %v10186
    %v10391 = vunpack.c.l.b16 %v10187
    %v10392 = vunpack.c.h.b16 %v10187
    %v10393 = vunpack.c.l.b16 %v10188
    %v10394 = vunpack.c.h.b16 %v10188
    %v10395 = vunpack.c.l.b16 %v10189
    %v10396 = vunpack.c.h.b16 %v10189
    %v10397 = vunpack.c.l.b16 %v10190
    %v10398 = vunpack.c.h.b16 %v10190
    %v10399 = vunpack.c.l.b16 %v10191
    %v10400 = vunpack.c.h.b16 %v10191
    %v10401 = vunpack.c.l.b16 %v10192
    %v10402 = vunpack.c.h.b16 %v10192
    %v10403 = vunpack.c.l.b16 %v10193
    %v10404 = vunpack.c.h.b16 %v10193
    %v10405 = vunpack.c.l.b16 %v10194
    %v10406 = vunpack.c.h.b16 %v10194
    %v10407 = vunpack.c.l.b16 %v10195
    %v10408 = vunpack.c.h.b16 %v10195
    %v10409 = vunpack.c.l.b16 %v10196
    %v10410 = vunpack.c.h.b16 %v10196
    %v10411 = vunpack.c.l.b16 %v10197
    %v10412 = vunpack.c.h.b16 %v10197
    %v10413 = vunpack.c.l.b16 %v10198
    %v10414 = vunpack.c.h.b16 %v10198
    %v10415 = vunpack.c.l.b16 %v10199
    %v10416 = vunpack.c.h.b16 %v10199
    %v10417 = vunpack.c.l.b16 %v10200
    %v10418 = vunpack.c.h.b16 %v10200
    %v10419 = vunpack.c.l.b16 %v10201
    %v10420 = vunpack.c.h.b16 %v10201
    %v10421 = vunpack.c.l.b16 %v10202
    %v10422 = vunpack.c.h.b16 %v10202
    %v10423 = vunpack.c.l.b16 %v10203
    %v10424 = vunpack.c.h.b16 %v10203
    %v10425 = vunpack.c.l.b16 %v10204
    %v10426 = vunpack.c.h.b16 %v10204
    %v10427 = vunpack.c.l.b16 %v10205
    %v10428 = vunpack.c.h.b16 %v10205
    %v10429 = vunpack.c.l.b16 %v10206
    %v10430 = vunpack.c.h.b16 %v10206
    %v10431 = vunpack.c.l.b16 %v10207
    %v10432 = vunpack.c.h.b16 %v10207
    %v10433 = vunpack.c.l.b16 %v10208
    %v10434 = vunpack.c.h.b16 %v10208
    %v10435 = vunpack.c.l.b16 %v10209
    %v10436 = vunpack.c.h.b16 %v10209
    %v10437 = vunpack.c.l.b16 %v10210
    %v10438 = vunpack.c.h.b16 %v10210
    %v10439 = vunpack.c.l.b16 %v10211
    %v10440 = vunpack.c.h.b16 %v10211
    %v10441 = vunpack.c.l.b16 %v10212
    %v10442 = vunpack.c.h.b16 %v10212
    %v10443 = vunpack.c.l.b16 %v10213
    %v10444 = vunpack.c.h.b16 %v10213
    %v10445 = vunpack.c.l.b16 %v10214
    %v10446 = vunpack.c.h.b16 %v10214
    %v10447 = vunpack.c.l.b16 %v10215
    %v10448 = vunpack.c.h.b16 %v10215
    %v10449 = vunpack.c.l.b16 %v10216
    %v10450 = vunpack.c.h.b16 %v10216
    %v10451 = vunpack.c.l.b16 %v10217
    %v10452 = vunpack.c.h.b16 %v10217
    %v10453 = vunpack.c.l.b16 %v10218
    %v10454 = vunpack.c.h.b16 %v10218
    %v10455 = vunpack.c.l.b16 %v10219
    %v10456 = vunpack.c.h.b16 %v10219
    %v10457 = vunpack.c.l.b16 %v10220
    %v10458 = vunpack.c.h.b16 %v10220
    %v10459 = vunpack.c.l.b16 %v10221
    %v10460 = vunpack.c.h.b16 %v10221
    %v10461 = vunpack.c.l.b16 %v10222
    %v10462 = vunpack.c.h.b16 %v10222
    %v10463 = vunpack.c.l.b16 %v10223
    %v10464 = vunpack.c.h.b16 %v10223
    %v10465 = vunpack.c.l.b16 %v10224
    %v10466 = vunpack.c.h.b16 %v10224
    %v10467 = vunpack.c.l.b16 %v10225
    %v10468 = vunpack.c.h.b16 %v10225
    %v10469 = vunpack.c.l.b16 %v10226
    %v10470 = vunpack.c.h.b16 %v10226
    %v10471 = vunpack.c.l.b16 %v10227
    %v10472 = vunpack.c.h.b16 %v10227
    %v10473 = vunpack.c.l.b16 %v10228
    %v10474 = vunpack.c.h.b16 %v10228
    %v10475 = vunpack.c.l.b16 %v10229
    %v10476 = vunpack.c.h.b16 %v10229
    %v10477 = vunpack.c.l.b16 %v10230
    %v10478 = vunpack.c.h.b16 %v10230
    %v10479 = vunpack.c.l.b16 %v10231
    %v10480 = vunpack.c.h.b16 %v10231
    %v10481 = vunpack.c.l.b16 %v10232
    %v10482 = vunpack.c.h.b16 %v10232
    %v10483 = vunpack.c.l.b16 %v10233
    %v10484 = vunpack.c.h.b16 %v10233
    %v10485 = vunpack.c.l.b16 %v10234
    %v10486 = vunpack.c.h.b16 %v10234
    %v10487 = vunpack.c.l.b16 %v10235
    %v10488 = vunpack.c.h.b16 %v10235
    %v10489 = vunpack.c.l.b16 %v10236
    %v10490 = vunpack.c.h.b16 %v10236
    %v10491 = vunpack.c.l.b16 %v10237
    %v10492 = vunpack.c.h.b16 %v10237
    %v10493 = vpack.c.b16 %v10337, %v10333
    %v10494 = vpack.c.b16 %v10338, %v10334
    %v10495 = vpack.c.b16 %v10339, %v10335
    %v10496 = vpack.c.b16 %v10340, %v10336
    %v10497 = vpack.c.b16 %v10345, %v10341
    %v10498 = vpack.c.b16 %v10346, %v10342
    %v10499 = vpack.c.b16 %v10347, %v10343
    %v10500 = vpack.c.b16 %v10348, %v10344
    %v10501 = vpack.c.b16 %v10353, %v10349
    %v10502 = vpack.c.b16 %v10354, %v10350
    %v10503 = vpack.c.b16 %v10355, %v10351
    %v10504 = vpack.c.b16 %v10356, %v10352
    %v10505 = vpack.c.b16 %v10361, %v10357
    %v10506 = vpack.c.b16 %v10362, %v10358
    %v10507 = vpack.c.b16 %v10363, %v10359
    %v10508 = vpack.c.b16 %v10364, %v10360
    %v10509 = vpack.c.b16 %v10369, %v10365
    %v10510 = vpack.c.b16 %v10370, %v10366
    %v10511 = vpack.c.b16 %v10371, %v10367
    %v10512 = vpack.c.b16 %v10372, %v10368
    %v10513 = vpack.c.b16 %v10377, %v10373
    %v10514 = vpack.c.b16 %v10378, %v10374
    %v10515 = vpack.c.b16 %v10379, %v10375
    %v10516 = vpack.c.b16 %v10380, %v10376
    %v10517 = vpack.c.b16 %v10385, %v10381
    %v10518 = vpack.c.b16 %v10386, %v10382
    %v10519 = vpack.c.b16 %v10387, %v10383
    %v10520 = vpack.c.b16 %v10388, %v10384
    %v10521 = vpack.c.b16 %v10393, %v10389
    %v10522 = vpack.c.b16 %v10394, %v10390
    %v10523 = vpack.c.b16 %v10395, %v10391
    %v10524 = vpack.c.b16 %v10396, %v10392
    %v10525 = vpack.c.b16 %v10401, %v10397
    %v10526 = vpack.c.b16 %v10402, %v10398
    %v10527 = vpack.c.b16 %v10403, %v10399
    %v10528 = vpack.c.b16 %v10404, %v10400
    %v10529 = vpack.c.b16 %v10409, %v10405
    %v10530 = vpack.c.b16 %v10410, %v10406
    %v10531 = vpack.c.b16 %v10411, %v10407
    %v10532 = vpack.c.b16 %v10412, %v10408
    %v10533 = vpack.c.b16 %v10417, %v10413
    %v10534 = vpack.c.b16 %v10418, %v10414
    %v10535 = vpack.c.b16 %v10419, %v10415
    %v10536 = vpack.c.b16 %v10420, %v10416
    %v10537 = vpack.c.b16 %v10425, %v10421
    %v10538 = vpack.c.b16 %v10426, %v10422
    %v10539 = vpack.c.b16 %v10427, %v10423
    %v10540 = vpack.c.b16 %v10428, %v10424
    %v10541 = vpack.c.b16 %v10433, %v10429
    %v10542 = vpack.c.b16 %v10434, %v10430
    %v10543 = vpack.c.b16 %v10435, %v10431
    %v10544 = vpack.c.b16 %v10436, %v10432
    %v10545 = vpack.c.b16 %v10441, %v10437
    %v10546 = vpack.c.b16 %v10442, %v10438
    %v10547 = vpack.c.b16 %v10443, %v10439
    %v10548 = vpack.c.b16 %v10444, %v10440
    %v10549 = vpack.c.b16 %v10449, %v10445
    %v10550 = vpack.c.b16 %v10450, %v10446
    %v10551 = vpack.c.b16 %v10451, %v10447
    %v10552 = vpack.c.b16 %v10452, %v10448
    %v10553 = vpack.c.b16 %v10457, %v10453
    %v10554 = vpack.c.b16 %v10458, %v10454
    %v10555 = vpack.c.b16 %v10459, %v10455
    %v10556 = vpack.c.b16 %v10460, %v10456
    %v10557 = vpack.c.b16 %v10465, %v10461
    %v10558 = vpack.c.b16 %v10466, %v10462
    %v10559 = vpack.c.b16 %v10467, %v10463
    %v10560 = vpack.c.b16 %v10468, %v10464
    %v10561 = vpack.c.b16 %v10473, %v10469
    %v10562 = vpack.c.b16 %v10474, %v10470
    %v10563 = vpack.c.b16 %v10475, %v10471
    %v10564 = vpack.c.b16 %v10476, %v10472
    %v10565 = vpack.c.b16 %v10481, %v10477
    %v10566 = vpack.c.b16 %v10482, %v10478
    %v10567 = vpack.c.b16 %v10483, %v10479
    %v10568 = vpack.c.b16 %v10484, %v10480
    %v10569 = vpack.c.b16 %v10489, %v10485
    %v10570 = vpack.c.b16 %v10490, %v10486
    %v10571 = vpack.c.b16 %v10491, %v10487
    %v10572 = vpack.c.b16 %v10492, %v10488
    %v10654 = vsel %vm5349, %v10250, 0
    %10656 = vmatpush.bf16.msra.mxu0 %v10521
    %10657 = vmatpush.bf16.msra.mxu0 %v10517
    %10658 = vmatpush.bf16.msra.mxu0 %v10513
    %10659 = vmatpush.bf16.msra.mxu0 %v10509
    %10660 = vmatpush.bf16.msra.mxu0 %v10505
    %10661 = vmatpush.bf16.msra.mxu0 %v10501
    %10662 = vmatpush.bf16.msra.mxu0 %v10497
    %10663 = vmatpush.bf16.msra.mxu0 %v10493
    %10664 = vmatmul.bf16.gmra.mxu0 %v10248
    %v10665 = vpop.f32.mrf.mxu0
    %v10666 = vadd.f32 0.0, %v10665
    %v10667 = vpop.f32.mrf.mxu0
    %v10668 = vadd.f32 0.0, %v10667
    %10669 = vdwg.mxu0
    %10670 = vmatpush.bf16.msra.mxu0 %v10553
    %10671 = vmatpush.bf16.msra.mxu0 %v10549
    %10672 = vmatpush.bf16.msra.mxu0 %v10545
    %10673 = vmatpush.bf16.msra.mxu0 %v10541
    %10674 = vmatpush.bf16.msra.mxu0 %v10537
    %10675 = vmatpush.bf16.msra.mxu0 %v10533
    %10676 = vmatpush.bf16.msra.mxu0 %v10529
    %10677 = vmatpush.bf16.msra.mxu0 %v10525
    %10678 = vmatmul.bf16.gmra.mxu0 %v10249
    %v10679 = vpop.f32.mrf.mxu0
    %v10680 = vadd.f32 %v10666, %v10679
    %v10681 = vpop.f32.mrf.mxu0
    %v10682 = vadd.f32 %v10668, %v10681
    %10683 = vdwg.mxu0
    %10684 = vmatpush.bf16.msra.mxu0 0
    %10685 = vmatpush.bf16.msra.mxu0 0
    %10686 = vmatpush.bf16.msra.mxu0 0
    %10687 = vmatpush.bf16.msra.mxu0 0
    %10688 = vmatpush.bf16.msra.mxu0 %v10569
    %10689 = vmatpush.bf16.msra.mxu0 %v10565
    %10690 = vmatpush.bf16.msra.mxu0 %v10561
    %10691 = vmatpush.bf16.msra.mxu0 %v10557
    %10692 = vmatmul.bf16.gmra.mxu0 %v10654
    %v10693 = vpop.f32.mrf.mxu0
    %v10694 = vadd.f32 %v10680, %v10693
    %v10695 = vpop.f32.mrf.mxu0
    %v10696 = vadd.f32 %v10682, %v10695
    %10697 = vdwg.mxu0
    %10698 = vmatpush.bf16.msra.mxu0 %v10522
    %10699 = vmatpush.bf16.msra.mxu0 %v10518
    %10700 = vmatpush.bf16.msra.mxu0 %v10514
    %10701 = vmatpush.bf16.msra.mxu0 %v10510
    %10702 = vmatpush.bf16.msra.mxu0 %v10506
    %10703 = vmatpush.bf16.msra.mxu0 %v10502
    %10704 = vmatpush.bf16.msra.mxu0 %v10498
    %10705 = vmatpush.bf16.msra.mxu0 %v10494
    %10706 = vmatmul.bf16.gmra.mxu0 %v10248
    %v10707 = vpop.f32.mrf.mxu0
    %v10708 = vadd.f32 0.0, %v10707
    %v10709 = vpop.f32.mrf.mxu0
    %v10710 = vadd.f32 0.0, %v10709
    %10711 = vdwg.mxu0
    %10712 = vmatpush.bf16.msra.mxu0 %v10554
    %10713 = vmatpush.bf16.msra.mxu0 %v10550
    %10714 = vmatpush.bf16.msra.mxu0 %v10546
    %10715 = vmatpush.bf16.msra.mxu0 %v10542
    %10716 = vmatpush.bf16.msra.mxu0 %v10538
    %10717 = vmatpush.bf16.msra.mxu0 %v10534
    %10718 = vmatpush.bf16.msra.mxu0 %v10530
    %10719 = vmatpush.bf16.msra.mxu0 %v10526
    %10720 = vmatmul.bf16.gmra.mxu0 %v10249
    %v10721 = vpop.f32.mrf.mxu0
    %v10722 = vadd.f32 %v10708, %v10721
    %v10723 = vpop.f32.mrf.mxu0
    %v10724 = vadd.f32 %v10710, %v10723
    %10725 = vdwg.mxu0
    %10726 = vmatpush.bf16.msra.mxu0 0
    %10727 = vmatpush.bf16.msra.mxu0 0
    %10728 = vmatpush.bf16.msra.mxu0 0
    %10729 = vmatpush.bf16.msra.mxu0 0
    %10730 = vmatpush.bf16.msra.mxu0 %v10570
    %10731 = vmatpush.bf16.msra.mxu0 %v10566
    %10732 = vmatpush.bf16.msra.mxu0 %v10562
    %10733 = vmatpush.bf16.msra.mxu0 %v10558
    %10734 = vmatmul.bf16.gmra.mxu0 %v10654
    %v10735 = vpop.f32.mrf.mxu0
    %v10736 = vadd.f32 %v10722, %v10735
    %v10737 = vpop.f32.mrf.mxu0
    %v10738 = vadd.f32 %v10724, %v10737
    %10739 = vdwg.mxu0
    %10740 = vmatpush.bf16.msra.mxu0 %v10523
    %10741 = vmatpush.bf16.msra.mxu0 %v10519
    %10742 = vmatpush.bf16.msra.mxu0 %v10515
    %10743 = vmatpush.bf16.msra.mxu0 %v10511
    %10744 = vmatpush.bf16.msra.mxu0 %v10507
    %10745 = vmatpush.bf16.msra.mxu0 %v10503
    %10746 = vmatpush.bf16.msra.mxu0 %v10499
    %10747 = vmatpush.bf16.msra.mxu0 %v10495
    %10748 = vmatmul.bf16.gmra.mxu0 %v10248
    %v10749 = vpop.f32.mrf.mxu0
    %v10750 = vadd.f32 0.0, %v10749
    %v10751 = vpop.f32.mrf.mxu0
    %v10752 = vadd.f32 0.0, %v10751
    %10753 = vdwg.mxu0
    %10754 = vmatpush.bf16.msra.mxu0 %v10555
    %10755 = vmatpush.bf16.msra.mxu0 %v10551
    %10756 = vmatpush.bf16.msra.mxu0 %v10547
    %10757 = vmatpush.bf16.msra.mxu0 %v10543
    %10758 = vmatpush.bf16.msra.mxu0 %v10539
    %10759 = vmatpush.bf16.msra.mxu0 %v10535
    %10760 = vmatpush.bf16.msra.mxu0 %v10531
    %10761 = vmatpush.bf16.msra.mxu0 %v10527
    %10762 = vmatmul.bf16.gmra.mxu0 %v10249
    %v10763 = vpop.f32.mrf.mxu0
    %v10764 = vadd.f32 %v10750, %v10763
    %v10765 = vpop.f32.mrf.mxu0
    %v10766 = vadd.f32 %v10752, %v10765
    %10767 = vdwg.mxu0
    %10768 = vmatpush.bf16.msra.mxu0 0
    %10769 = vmatpush.bf16.msra.mxu0 0
    %10770 = vmatpush.bf16.msra.mxu0 0
    %10771 = vmatpush.bf16.msra.mxu0 0
    %10772 = vmatpush.bf16.msra.mxu0 %v10571
    %10773 = vmatpush.bf16.msra.mxu0 %v10567
    %10774 = vmatpush.bf16.msra.mxu0 %v10563
    %10775 = vmatpush.bf16.msra.mxu0 %v10559
    %10776 = vmatmul.bf16.gmra.mxu0 %v10654
    %v10777 = vpop.f32.mrf.mxu0
    %v10778 = vadd.f32 %v10764, %v10777
    %v10779 = vpop.f32.mrf.mxu0
    %v10780 = vadd.f32 %v10766, %v10779
    %10781 = vdwg.mxu0
    %10782 = vmatpush.bf16.msra.mxu0 %v10524
    %10783 = vmatpush.bf16.msra.mxu0 %v10520
    %10784 = vmatpush.bf16.msra.mxu0 %v10516
    %10785 = vmatpush.bf16.msra.mxu0 %v10512
    %10786 = vmatpush.bf16.msra.mxu0 %v10508
    %10787 = vmatpush.bf16.msra.mxu0 %v10504
    %10788 = vmatpush.bf16.msra.mxu0 %v10500
    %10789 = vmatpush.bf16.msra.mxu0 %v10496
    %10790 = vmatmul.bf16.gmra.mxu0 %v10248
    %v10791 = vpop.f32.mrf.mxu0
    %v10792 = vadd.f32 0.0, %v10791
    %v10793 = vpop.f32.mrf.mxu0
    %v10794 = vadd.f32 0.0, %v10793
    %10795 = vdwg.mxu0
    %10796 = vmatpush.bf16.msra.mxu0 %v10556
    %10797 = vmatpush.bf16.msra.mxu0 %v10552
    %10798 = vmatpush.bf16.msra.mxu0 %v10548
    %10799 = vmatpush.bf16.msra.mxu0 %v10544
    %10800 = vmatpush.bf16.msra.mxu0 %v10540
    %10801 = vmatpush.bf16.msra.mxu0 %v10536
    %10802 = vmatpush.bf16.msra.mxu0 %v10532
    %10803 = vmatpush.bf16.msra.mxu0 %v10528
    %10804 = vmatmul.bf16.gmra.mxu0 %v10249
    %v10805 = vpop.f32.mrf.mxu0
    %v10806 = vadd.f32 %v10792, %v10805
    %v10807 = vpop.f32.mrf.mxu0
    %v10808 = vadd.f32 %v10794, %v10807
    %10809 = vdwg.mxu0
    %10810 = vmatpush.bf16.msra.mxu0 0
    %10811 = vmatpush.bf16.msra.mxu0 0
    %10812 = vmatpush.bf16.msra.mxu0 0
    %10813 = vmatpush.bf16.msra.mxu0 0
    %10814 = vmatpush.bf16.msra.mxu0 %v10572
    %10815 = vmatpush.bf16.msra.mxu0 %v10568
    %10816 = vmatpush.bf16.msra.mxu0 %v10564
    %10817 = vmatpush.bf16.msra.mxu0 %v10560
    %10818 = vmatmul.bf16.gmra.mxu0 %v10654
    %v10819 = vpop.f32.mrf.mxu0
    %v10820 = vadd.f32 %v10806, %v10819
    %v10821 = vpop.f32.mrf.mxu0
    %v10822 = vadd.f32 %v10808, %v10821
    %10823 = vdwg.mxu0
    %v10824 = vadd.f32 %v10149, %v10694
    %v10825 = vadd.f32 %v10150, %v10736
    %v10826 = vadd.f32 %v10151, %v10778
    %v10827 = vadd.f32 %v10152, %v10820
    %v10828 = vadd.f32 %v10153, %v10696
    %v10829 = vadd.f32 %v10154, %v10738
    %v10830 = vadd.f32 %v10155, %v10780
    %v10831 = vadd.f32 %v10156, %v10822
    %s10832 = scalar_lea.vmem [#allocation9], 5760
    %v10833 = vld [vmem:[%s10832] sm:$0xff]
    %v10834 = vld [vmem:[%s10832 + $0x8] sm:$0xff]
    %v10835 = vld [vmem:[%s10832 + $0x10] sm:$0xff]
    %v10836 = vld [vmem:[%s10832 + $0x18] sm:$0xff]
    %v10837 = vld [vmem:[%s10832 + $0x20] sm:$0xff]
    %v10838 = vld [vmem:[%s10832 + $0x28] sm:$0xff]
    %v10839 = vld [vmem:[%s10832 + $0x30] sm:$0xff]
    %v10840 = vld [vmem:[%s10832 + $0x38] sm:$0xff]
    %v10841 = vld [vmem:[%s10832 + $0x40] sm:$0xff]
    %v10842 = vld [vmem:[%s10832 + $0x48] sm:$0xff]
    %v10843 = vld [vmem:[%s10832 + $0x50] sm:$0xff]
    %v10844 = vld [vmem:[%s10832 + $0x58] sm:$0xff]
    %v10845 = vld [vmem:[%s10832 + $0x60] sm:$0xff]
    %v10846 = vld [vmem:[%s10832 + $0x68] sm:$0xff]
    %v10847 = vld [vmem:[%s10832 + $0x70] sm:$0xff]
    %v10848 = vld [vmem:[%s10832 + $0x78] sm:$0xff]
    %v10849 = vld [vmem:[%s10832 + $0x80] sm:$0xff]
    %v10850 = vld [vmem:[%s10832 + $0x88] sm:$0xff]
    %v10851 = vld [vmem:[%s10832 + $0x90] sm:$0xff]
    %v10852 = vld [vmem:[%s10832 + $0x98] sm:$0xff]
    %v10853 = vld [vmem:[%s10832 + $0xa0] sm:$0xff]
    %v10854 = vld [vmem:[%s10832 + $0xa8] sm:$0xff]
    %v10855 = vld [vmem:[%s10832 + $0xb0] sm:$0xff]
    %v10856 = vld [vmem:[%s10832 + $0xb8] sm:$0xff]
    %v10857 = vld [vmem:[%s10832 + $0xc0] sm:$0xff]
    %v10858 = vld [vmem:[%s10832 + $0xc8] sm:$0xff]
    %v10859 = vld [vmem:[%s10832 + $0xd0] sm:$0xff]
    %v10860 = vld [vmem:[%s10832 + $0xd8] sm:$0xff]
    %v10861 = vld [vmem:[%s10832 + $0xe0] sm:$0xff]
    %v10862 = vld [vmem:[%s10832 + $0xe8] sm:$0xff]
    %v10863 = vld [vmem:[%s10832 + $0xf0] sm:$0xff]
    %v10864 = vld [vmem:[%s10832 + $0xf8] sm:$0xff]
    %v10865 = vld [vmem:[%s10832 + $0x100] sm:$0xff]
    %v10866 = vld [vmem:[%s10832 + $0x108] sm:$0xff]
    %v10867 = vld [vmem:[%s10832 + $0x110] sm:$0xff]
    %v10868 = vld [vmem:[%s10832 + $0x118] sm:$0xff]
    %v10869 = vld [vmem:[%s10832 + $0x120] sm:$0xff]
    %v10870 = vld [vmem:[%s10832 + $0x128] sm:$0xff]
    %v10871 = vld [vmem:[%s10832 + $0x130] sm:$0xff]
    %v10872 = vld [vmem:[%s10832 + $0x138] sm:$0xff]
    %v10873 = vld [vmem:[%s10832 + $0x140] sm:$0xff]
    %v10874 = vld [vmem:[%s10832 + $0x148] sm:$0xff]
    %v10875 = vld [vmem:[%s10832 + $0x150] sm:$0xff]
    %v10876 = vld [vmem:[%s10832 + $0x158] sm:$0xff]
    %v10877 = vld [vmem:[%s10832 + $0x160] sm:$0xff]
    %v10878 = vld [vmem:[%s10832 + $0x168] sm:$0xff]
    %v10879 = vld [vmem:[%s10832 + $0x170] sm:$0xff]
    %v10880 = vld [vmem:[%s10832 + $0x178] sm:$0xff]
    %v10881 = vld [vmem:[%s10832 + $0x180] sm:$0xff]
    %v10882 = vld [vmem:[%s10832 + $0x188] sm:$0xff]
    %v10883 = vld [vmem:[%s10832 + $0x190] sm:$0xff]
    %v10884 = vld [vmem:[%s10832 + $0x198] sm:$0xff]
    %v10885 = vld [vmem:[%s10832 + $0x1a0] sm:$0xff]
    %v10886 = vld [vmem:[%s10832 + $0x1a8] sm:$0xff]
    %v10887 = vld [vmem:[%s10832 + $0x1b0] sm:$0xff]
    %v10888 = vld [vmem:[%s10832 + $0x1b8] sm:$0xff]
    %v10889 = vld [vmem:[%s10832 + $0x1c0] sm:$0xff]
    %v10890 = vld [vmem:[%s10832 + $0x1c8] sm:$0xff]
    %v10891 = vld [vmem:[%s10832 + $0x1d0] sm:$0xff]
    %v10892 = vld [vmem:[%s10832 + $0x1d8] sm:$0xff]
    %v10893 = vld [vmem:[%s10832 + $0x1e0] sm:$0xff]
    %v10894 = vld [vmem:[%s10832 + $0x1e8] sm:$0xff]
    %v10895 = vld [vmem:[%s10832 + $0x1f0] sm:$0xff]
    %v10896 = vld [vmem:[%s10832 + $0x1f8] sm:$0xff]
    %v10897 = vld [vmem:[%s10832 + $0x200] sm:$0xff]
    %v10898 = vld [vmem:[%s10832 + $0x208] sm:$0xff]
    %v10899 = vld [vmem:[%s10832 + $0x210] sm:$0xff]
    %v10900 = vld [vmem:[%s10832 + $0x218] sm:$0xff]
    %v10901 = vld [vmem:[%s10832 + $0x220] sm:$0xff]
    %v10902 = vld [vmem:[%s10832 + $0x228] sm:$0xff]
    %v10903 = vld [vmem:[%s10832 + $0x230] sm:$0xff]
    %v10904 = vld [vmem:[%s10832 + $0x238] sm:$0xff]
    %v10905 = vld [vmem:[%s10832 + $0x240] sm:$0xff]
    %v10906 = vld [vmem:[%s10832 + $0x248] sm:$0xff]
    %v10907 = vld [vmem:[%s10832 + $0x250] sm:$0xff]
    %v10908 = vld [vmem:[%s10832 + $0x258] sm:$0xff]
    %v10909 = vld [vmem:[%s10832 + $0x260] sm:$0xff]
    %v10910 = vld [vmem:[%s10832 + $0x268] sm:$0xff]
    %v10911 = vld [vmem:[%s10832 + $0x270] sm:$0xff]
    %v10912 = vld [vmem:[%s10832 + $0x278] sm:$0xff]
    %v10917 = vunpack.c.l.b16 %v4769
    %v10918 = vunpack.c.h.b16 %v4769
    %v10919 = vunpack.c.l.b16 %v4770
    %v10920 = vunpack.c.l.b16 %v4771
    %v10921 = vunpack.c.h.b16 %v4771
    %v10922 = vunpack.c.l.b16 %v4772
    %v10923 = vpack.c.b16 %v10920, %v10917
    %v10924 = vpack.c.b16 %v10921, %v10918
    %v10925 = vpack.c.b16 %v10922, %v10919
    %v11008 = vunpack.c.l.b16 %v10833
    %v11009 = vunpack.c.h.b16 %v10833
    %v11010 = vunpack.c.l.b16 %v10834
    %v11011 = vunpack.c.h.b16 %v10834
    %v11012 = vunpack.c.l.b16 %v10835
    %v11013 = vunpack.c.h.b16 %v10835
    %v11014 = vunpack.c.l.b16 %v10836
    %v11015 = vunpack.c.h.b16 %v10836
    %v11016 = vunpack.c.l.b16 %v10837
    %v11017 = vunpack.c.h.b16 %v10837
    %v11018 = vunpack.c.l.b16 %v10838
    %v11019 = vunpack.c.h.b16 %v10838
    %v11020 = vunpack.c.l.b16 %v10839
    %v11021 = vunpack.c.h.b16 %v10839
    %v11022 = vunpack.c.l.b16 %v10840
    %v11023 = vunpack.c.h.b16 %v10840
    %v11024 = vunpack.c.l.b16 %v10841
    %v11025 = vunpack.c.h.b16 %v10841
    %v11026 = vunpack.c.l.b16 %v10842
    %v11027 = vunpack.c.h.b16 %v10842
    %v11028 = vunpack.c.l.b16 %v10843
    %v11029 = vunpack.c.h.b16 %v10843
    %v11030 = vunpack.c.l.b16 %v10844
    %v11031 = vunpack.c.h.b16 %v10844
    %v11032 = vunpack.c.l.b16 %v10845
    %v11033 = vunpack.c.h.b16 %v10845
    %v11034 = vunpack.c.l.b16 %v10846
    %v11035 = vunpack.c.h.b16 %v10846
    %v11036 = vunpack.c.l.b16 %v10847
    %v11037 = vunpack.c.h.b16 %v10847
    %v11038 = vunpack.c.l.b16 %v10848
    %v11039 = vunpack.c.h.b16 %v10848
    %v11040 = vunpack.c.l.b16 %v10849
    %v11041 = vunpack.c.h.b16 %v10849
    %v11042 = vunpack.c.l.b16 %v10850
    %v11043 = vunpack.c.h.b16 %v10850
    %v11044 = vunpack.c.l.b16 %v10851
    %v11045 = vunpack.c.h.b16 %v10851
    %v11046 = vunpack.c.l.b16 %v10852
    %v11047 = vunpack.c.h.b16 %v10852
    %v11048 = vunpack.c.l.b16 %v10853
    %v11049 = vunpack.c.h.b16 %v10853
    %v11050 = vunpack.c.l.b16 %v10854
    %v11051 = vunpack.c.h.b16 %v10854
    %v11052 = vunpack.c.l.b16 %v10855
    %v11053 = vunpack.c.h.b16 %v10855
    %v11054 = vunpack.c.l.b16 %v10856
    %v11055 = vunpack.c.h.b16 %v10856
    %v11056 = vunpack.c.l.b16 %v10857
    %v11057 = vunpack.c.h.b16 %v10857
    %v11058 = vunpack.c.l.b16 %v10858
    %v11059 = vunpack.c.h.b16 %v10858
    %v11060 = vunpack.c.l.b16 %v10859
    %v11061 = vunpack.c.h.b16 %v10859
    %v11062 = vunpack.c.l.b16 %v10860
    %v11063 = vunpack.c.h.b16 %v10860
    %v11064 = vunpack.c.l.b16 %v10861
    %v11065 = vunpack.c.h.b16 %v10861
    %v11066 = vunpack.c.l.b16 %v10862
    %v11067 = vunpack.c.h.b16 %v10862
    %v11068 = vunpack.c.l.b16 %v10863
    %v11069 = vunpack.c.h.b16 %v10863
    %v11070 = vunpack.c.l.b16 %v10864
    %v11071 = vunpack.c.h.b16 %v10864
    %v11072 = vunpack.c.l.b16 %v10865
    %v11073 = vunpack.c.h.b16 %v10865
    %v11074 = vunpack.c.l.b16 %v10866
    %v11075 = vunpack.c.h.b16 %v10866
    %v11076 = vunpack.c.l.b16 %v10867
    %v11077 = vunpack.c.h.b16 %v10867
    %v11078 = vunpack.c.l.b16 %v10868
    %v11079 = vunpack.c.h.b16 %v10868
    %v11080 = vunpack.c.l.b16 %v10869
    %v11081 = vunpack.c.h.b16 %v10869
    %v11082 = vunpack.c.l.b16 %v10870
    %v11083 = vunpack.c.h.b16 %v10870
    %v11084 = vunpack.c.l.b16 %v10871
    %v11085 = vunpack.c.h.b16 %v10871
    %v11086 = vunpack.c.l.b16 %v10872
    %v11087 = vunpack.c.h.b16 %v10872
    %v11088 = vunpack.c.l.b16 %v10873
    %v11089 = vunpack.c.h.b16 %v10873
    %v11090 = vunpack.c.l.b16 %v10874
    %v11091 = vunpack.c.h.b16 %v10874
    %v11092 = vunpack.c.l.b16 %v10875
    %v11093 = vunpack.c.h.b16 %v10875
    %v11094 = vunpack.c.l.b16 %v10876
    %v11095 = vunpack.c.h.b16 %v10876
    %v11096 = vunpack.c.l.b16 %v10877
    %v11097 = vunpack.c.h.b16 %v10877
    %v11098 = vunpack.c.l.b16 %v10878
    %v11099 = vunpack.c.h.b16 %v10878
    %v11100 = vunpack.c.l.b16 %v10879
    %v11101 = vunpack.c.h.b16 %v10879
    %v11102 = vunpack.c.l.b16 %v10880
    %v11103 = vunpack.c.h.b16 %v10880
    %v11104 = vunpack.c.l.b16 %v10881
    %v11105 = vunpack.c.h.b16 %v10881
    %v11106 = vunpack.c.l.b16 %v10882
    %v11107 = vunpack.c.h.b16 %v10882
    %v11108 = vunpack.c.l.b16 %v10883
    %v11109 = vunpack.c.h.b16 %v10883
    %v11110 = vunpack.c.l.b16 %v10884
    %v11111 = vunpack.c.h.b16 %v10884
    %v11112 = vunpack.c.l.b16 %v10885
    %v11113 = vunpack.c.h.b16 %v10885
    %v11114 = vunpack.c.l.b16 %v10886
    %v11115 = vunpack.c.h.b16 %v10886
    %v11116 = vunpack.c.l.b16 %v10887
    %v11117 = vunpack.c.h.b16 %v10887
    %v11118 = vunpack.c.l.b16 %v10888
    %v11119 = vunpack.c.h.b16 %v10888
    %v11120 = vunpack.c.l.b16 %v10889
    %v11121 = vunpack.c.h.b16 %v10889
    %v11122 = vunpack.c.l.b16 %v10890
    %v11123 = vunpack.c.h.b16 %v10890
    %v11124 = vunpack.c.l.b16 %v10891
    %v11125 = vunpack.c.h.b16 %v10891
    %v11126 = vunpack.c.l.b16 %v10892
    %v11127 = vunpack.c.h.b16 %v10892
    %v11128 = vunpack.c.l.b16 %v10893
    %v11129 = vunpack.c.h.b16 %v10893
    %v11130 = vunpack.c.l.b16 %v10894
    %v11131 = vunpack.c.h.b16 %v10894
    %v11132 = vunpack.c.l.b16 %v10895
    %v11133 = vunpack.c.h.b16 %v10895
    %v11134 = vunpack.c.l.b16 %v10896
    %v11135 = vunpack.c.h.b16 %v10896
    %v11136 = vunpack.c.l.b16 %v10897
    %v11137 = vunpack.c.h.b16 %v10897
    %v11138 = vunpack.c.l.b16 %v10898
    %v11139 = vunpack.c.h.b16 %v10898
    %v11140 = vunpack.c.l.b16 %v10899
    %v11141 = vunpack.c.h.b16 %v10899
    %v11142 = vunpack.c.l.b16 %v10900
    %v11143 = vunpack.c.h.b16 %v10900
    %v11144 = vunpack.c.l.b16 %v10901
    %v11145 = vunpack.c.h.b16 %v10901
    %v11146 = vunpack.c.l.b16 %v10902
    %v11147 = vunpack.c.h.b16 %v10902
    %v11148 = vunpack.c.l.b16 %v10903
    %v11149 = vunpack.c.h.b16 %v10903
    %v11150 = vunpack.c.l.b16 %v10904
    %v11151 = vunpack.c.h.b16 %v10904
    %v11152 = vunpack.c.l.b16 %v10905
    %v11153 = vunpack.c.h.b16 %v10905
    %v11154 = vunpack.c.l.b16 %v10906
    %v11155 = vunpack.c.h.b16 %v10906
    %v11156 = vunpack.c.l.b16 %v10907
    %v11157 = vunpack.c.h.b16 %v10907
    %v11158 = vunpack.c.l.b16 %v10908
    %v11159 = vunpack.c.h.b16 %v10908
    %v11160 = vunpack.c.l.b16 %v10909
    %v11161 = vunpack.c.h.b16 %v10909
    %v11162 = vunpack.c.l.b16 %v10910
    %v11163 = vunpack.c.h.b16 %v10910
    %v11164 = vunpack.c.l.b16 %v10911
    %v11165 = vunpack.c.h.b16 %v10911
    %v11166 = vunpack.c.l.b16 %v10912
    %v11167 = vunpack.c.h.b16 %v10912
    %v11168 = vpack.c.b16 %v11012, %v11008
    %v11169 = vpack.c.b16 %v11013, %v11009
    %v11170 = vpack.c.b16 %v11014, %v11010
    %v11171 = vpack.c.b16 %v11015, %v11011
    %v11172 = vpack.c.b16 %v11020, %v11016
    %v11173 = vpack.c.b16 %v11021, %v11017
    %v11174 = vpack.c.b16 %v11022, %v11018
    %v11175 = vpack.c.b16 %v11023, %v11019
    %v11176 = vpack.c.b16 %v11028, %v11024
    %v11177 = vpack.c.b16 %v11029, %v11025
    %v11178 = vpack.c.b16 %v11030, %v11026
    %v11179 = vpack.c.b16 %v11031, %v11027
    %v11180 = vpack.c.b16 %v11036, %v11032
    %v11181 = vpack.c.b16 %v11037, %v11033
    %v11182 = vpack.c.b16 %v11038, %v11034
    %v11183 = vpack.c.b16 %v11039, %v11035
    %v11184 = vpack.c.b16 %v11044, %v11040
    %v11185 = vpack.c.b16 %v11045, %v11041
    %v11186 = vpack.c.b16 %v11046, %v11042
    %v11187 = vpack.c.b16 %v11047, %v11043
    %v11188 = vpack.c.b16 %v11052, %v11048
    %v11189 = vpack.c.b16 %v11053, %v11049
    %v11190 = vpack.c.b16 %v11054, %v11050
    %v11191 = vpack.c.b16 %v11055, %v11051
    %v11192 = vpack.c.b16 %v11060, %v11056
    %v11193 = vpack.c.b16 %v11061, %v11057
    %v11194 = vpack.c.b16 %v11062, %v11058
    %v11195 = vpack.c.b16 %v11063, %v11059
    %v11196 = vpack.c.b16 %v11068, %v11064
    %v11197 = vpack.c.b16 %v11069, %v11065
    %v11198 = vpack.c.b16 %v11070, %v11066
    %v11199 = vpack.c.b16 %v11071, %v11067
    %v11200 = vpack.c.b16 %v11076, %v11072
    %v11201 = vpack.c.b16 %v11077, %v11073
    %v11202 = vpack.c.b16 %v11078, %v11074
    %v11203 = vpack.c.b16 %v11079, %v11075
    %v11204 = vpack.c.b16 %v11084, %v11080
    %v11205 = vpack.c.b16 %v11085, %v11081
    %v11206 = vpack.c.b16 %v11086, %v11082
    %v11207 = vpack.c.b16 %v11087, %v11083
    %v11208 = vpack.c.b16 %v11092, %v11088
    %v11209 = vpack.c.b16 %v11093, %v11089
    %v11210 = vpack.c.b16 %v11094, %v11090
    %v11211 = vpack.c.b16 %v11095, %v11091
    %v11212 = vpack.c.b16 %v11100, %v11096
    %v11213 = vpack.c.b16 %v11101, %v11097
    %v11214 = vpack.c.b16 %v11102, %v11098
    %v11215 = vpack.c.b16 %v11103, %v11099
    %v11216 = vpack.c.b16 %v11108, %v11104
    %v11217 = vpack.c.b16 %v11109, %v11105
    %v11218 = vpack.c.b16 %v11110, %v11106
    %v11219 = vpack.c.b16 %v11111, %v11107
    %v11220 = vpack.c.b16 %v11116, %v11112
    %v11221 = vpack.c.b16 %v11117, %v11113
    %v11222 = vpack.c.b16 %v11118, %v11114
    %v11223 = vpack.c.b16 %v11119, %v11115
    %v11224 = vpack.c.b16 %v11124, %v11120
    %v11225 = vpack.c.b16 %v11125, %v11121
    %v11226 = vpack.c.b16 %v11126, %v11122
    %v11227 = vpack.c.b16 %v11127, %v11123
    %v11228 = vpack.c.b16 %v11132, %v11128
    %v11229 = vpack.c.b16 %v11133, %v11129
    %v11230 = vpack.c.b16 %v11134, %v11130
    %v11231 = vpack.c.b16 %v11135, %v11131
    %v11232 = vpack.c.b16 %v11140, %v11136
    %v11233 = vpack.c.b16 %v11141, %v11137
    %v11234 = vpack.c.b16 %v11142, %v11138
    %v11235 = vpack.c.b16 %v11143, %v11139
    %v11236 = vpack.c.b16 %v11148, %v11144
    %v11237 = vpack.c.b16 %v11149, %v11145
    %v11238 = vpack.c.b16 %v11150, %v11146
    %v11239 = vpack.c.b16 %v11151, %v11147
    %v11240 = vpack.c.b16 %v11156, %v11152
    %v11241 = vpack.c.b16 %v11157, %v11153
    %v11242 = vpack.c.b16 %v11158, %v11154
    %v11243 = vpack.c.b16 %v11159, %v11155
    %v11244 = vpack.c.b16 %v11164, %v11160
    %v11245 = vpack.c.b16 %v11165, %v11161
    %v11246 = vpack.c.b16 %v11166, %v11162
    %v11247 = vpack.c.b16 %v11167, %v11163
    %v11329 = vsel %vm5349, %v10925, 0
    %11331 = vmatpush.bf16.msra.mxu0 %v11196
    %11332 = vmatpush.bf16.msra.mxu0 %v11192
    %11333 = vmatpush.bf16.msra.mxu0 %v11188
    %11334 = vmatpush.bf16.msra.mxu0 %v11184
    %11335 = vmatpush.bf16.msra.mxu0 %v11180
    %11336 = vmatpush.bf16.msra.mxu0 %v11176
    %11337 = vmatpush.bf16.msra.mxu0 %v11172
    %11338 = vmatpush.bf16.msra.mxu0 %v11168
    %11339 = vmatmul.bf16.gmra.mxu0 %v10923
    %v11340 = vpop.f32.mrf.mxu0
    %v11341 = vadd.f32 0.0, %v11340
    %v11342 = vpop.f32.mrf.mxu0
    %v11343 = vadd.f32 0.0, %v11342
    %11344 = vdwg.mxu0
    %11345 = vmatpush.bf16.msra.mxu0 %v11228
    %11346 = vmatpush.bf16.msra.mxu0 %v11224
    %11347 = vmatpush.bf16.msra.mxu0 %v11220
    %11348 = vmatpush.bf16.msra.mxu0 %v11216
    %11349 = vmatpush.bf16.msra.mxu0 %v11212
    %11350 = vmatpush.bf16.msra.mxu0 %v11208
    %11351 = vmatpush.bf16.msra.mxu0 %v11204
    %11352 = vmatpush.bf16.msra.mxu0 %v11200
    %11353 = vmatmul.bf16.gmra.mxu0 %v10924
    %v11354 = vpop.f32.mrf.mxu0
    %v11355 = vadd.f32 %v11341, %v11354
    %v11356 = vpop.f32.mrf.mxu0
    %v11357 = vadd.f32 %v11343, %v11356
    %11358 = vdwg.mxu0
    %11359 = vmatpush.bf16.msra.mxu0 0
    %11360 = vmatpush.bf16.msra.mxu0 0
    %11361 = vmatpush.bf16.msra.mxu0 0
    %11362 = vmatpush.bf16.msra.mxu0 0
    %11363 = vmatpush.bf16.msra.mxu0 %v11244
    %11364 = vmatpush.bf16.msra.mxu0 %v11240
    %11365 = vmatpush.bf16.msra.mxu0 %v11236
    %11366 = vmatpush.bf16.msra.mxu0 %v11232
    %11367 = vmatmul.bf16.gmra.mxu0 %v11329
    %v11368 = vpop.f32.mrf.mxu0
    %v11369 = vadd.f32 %v11355, %v11368
    %v11370 = vpop.f32.mrf.mxu0
    %v11371 = vadd.f32 %v11357, %v11370
    %11372 = vdwg.mxu0
    %11373 = vmatpush.bf16.msra.mxu0 %v11197
    %11374 = vmatpush.bf16.msra.mxu0 %v11193
    %11375 = vmatpush.bf16.msra.mxu0 %v11189
    %11376 = vmatpush.bf16.msra.mxu0 %v11185
    %11377 = vmatpush.bf16.msra.mxu0 %v11181
    %11378 = vmatpush.bf16.msra.mxu0 %v11177
    %11379 = vmatpush.bf16.msra.mxu0 %v11173
    %11380 = vmatpush.bf16.msra.mxu0 %v11169
    %11381 = vmatmul.bf16.gmra.mxu0 %v10923
    %v11382 = vpop.f32.mrf.mxu0
    %v11383 = vadd.f32 0.0, %v11382
    %v11384 = vpop.f32.mrf.mxu0
    %v11385 = vadd.f32 0.0, %v11384
    %11386 = vdwg.mxu0
    %11387 = vmatpush.bf16.msra.mxu0 %v11229
    %11388 = vmatpush.bf16.msra.mxu0 %v11225
    %11389 = vmatpush.bf16.msra.mxu0 %v11221
    %11390 = vmatpush.bf16.msra.mxu0 %v11217
    %11391 = vmatpush.bf16.msra.mxu0 %v11213
    %11392 = vmatpush.bf16.msra.mxu0 %v11209
    %11393 = vmatpush.bf16.msra.mxu0 %v11205
    %11394 = vmatpush.bf16.msra.mxu0 %v11201
    %11395 = vmatmul.bf16.gmra.mxu0 %v10924
    %v11396 = vpop.f32.mrf.mxu0
    %v11397 = vadd.f32 %v11383, %v11396
    %v11398 = vpop.f32.mrf.mxu0
    %v11399 = vadd.f32 %v11385, %v11398
    %11400 = vdwg.mxu0
    %11401 = vmatpush.bf16.msra.mxu0 0
    %11402 = vmatpush.bf16.msra.mxu0 0
    %11403 = vmatpush.bf16.msra.mxu0 0
    %11404 = vmatpush.bf16.msra.mxu0 0
    %11405 = vmatpush.bf16.msra.mxu0 %v11245
    %11406 = vmatpush.bf16.msra.mxu0 %v11241
    %11407 = vmatpush.bf16.msra.mxu0 %v11237
    %11408 = vmatpush.bf16.msra.mxu0 %v11233
    %11409 = vmatmul.bf16.gmra.mxu0 %v11329
    %v11410 = vpop.f32.mrf.mxu0
    %v11411 = vadd.f32 %v11397, %v11410
    %v11412 = vpop.f32.mrf.mxu0
    %v11413 = vadd.f32 %v11399, %v11412
    %11414 = vdwg.mxu0
    %11415 = vmatpush.bf16.msra.mxu0 %v11198
    %11416 = vmatpush.bf16.msra.mxu0 %v11194
    %11417 = vmatpush.bf16.msra.mxu0 %v11190
    %11418 = vmatpush.bf16.msra.mxu0 %v11186
    %11419 = vmatpush.bf16.msra.mxu0 %v11182
    %11420 = vmatpush.bf16.msra.mxu0 %v11178
    %11421 = vmatpush.bf16.msra.mxu0 %v11174
    %11422 = vmatpush.bf16.msra.mxu0 %v11170
    %11423 = vmatmul.bf16.gmra.mxu0 %v10923
    %v11424 = vpop.f32.mrf.mxu0
    %v11425 = vadd.f32 0.0, %v11424
    %v11426 = vpop.f32.mrf.mxu0
    %v11427 = vadd.f32 0.0, %v11426
    %11428 = vdwg.mxu0
    %11429 = vmatpush.bf16.msra.mxu0 %v11230
    %11430 = vmatpush.bf16.msra.mxu0 %v11226
    %11431 = vmatpush.bf16.msra.mxu0 %v11222
    %11432 = vmatpush.bf16.msra.mxu0 %v11218
    %11433 = vmatpush.bf16.msra.mxu0 %v11214
    %11434 = vmatpush.bf16.msra.mxu0 %v11210
    %11435 = vmatpush.bf16.msra.mxu0 %v11206
    %11436 = vmatpush.bf16.msra.mxu0 %v11202
    %11437 = vmatmul.bf16.gmra.mxu0 %v10924
    %v11438 = vpop.f32.mrf.mxu0
    %v11439 = vadd.f32 %v11425, %v11438
    %v11440 = vpop.f32.mrf.mxu0
    %v11441 = vadd.f32 %v11427, %v11440
    %11442 = vdwg.mxu0
    %11443 = vmatpush.bf16.msra.mxu0 0
    %11444 = vmatpush.bf16.msra.mxu0 0
    %11445 = vmatpush.bf16.msra.mxu0 0
    %11446 = vmatpush.bf16.msra.mxu0 0
    %11447 = vmatpush.bf16.msra.mxu0 %v11246
    %11448 = vmatpush.bf16.msra.mxu0 %v11242
    %11449 = vmatpush.bf16.msra.mxu0 %v11238
    %11450 = vmatpush.bf16.msra.mxu0 %v11234
    %11451 = vmatmul.bf16.gmra.mxu0 %v11329
    %v11452 = vpop.f32.mrf.mxu0
    %v11453 = vadd.f32 %v11439, %v11452
    %v11454 = vpop.f32.mrf.mxu0
    %v11455 = vadd.f32 %v11441, %v11454
    %11456 = vdwg.mxu0
    %11457 = vmatpush.bf16.msra.mxu0 %v11199
    %11458 = vmatpush.bf16.msra.mxu0 %v11195
    %11459 = vmatpush.bf16.msra.mxu0 %v11191
    %11460 = vmatpush.bf16.msra.mxu0 %v11187
    %11461 = vmatpush.bf16.msra.mxu0 %v11183
    %11462 = vmatpush.bf16.msra.mxu0 %v11179
    %11463 = vmatpush.bf16.msra.mxu0 %v11175
    %11464 = vmatpush.bf16.msra.mxu0 %v11171
    %11465 = vmatmul.bf16.gmra.mxu0 %v10923
    %v11466 = vpop.f32.mrf.mxu0
    %v11467 = vadd.f32 0.0, %v11466
    %v11468 = vpop.f32.mrf.mxu0
    %v11469 = vadd.f32 0.0, %v11468
    %11470 = vdwg.mxu0
    %11471 = vmatpush.bf16.msra.mxu0 %v11231
    %11472 = vmatpush.bf16.msra.mxu0 %v11227
    %11473 = vmatpush.bf16.msra.mxu0 %v11223
    %11474 = vmatpush.bf16.msra.mxu0 %v11219
    %11475 = vmatpush.bf16.msra.mxu0 %v11215
    %11476 = vmatpush.bf16.msra.mxu0 %v11211
    %11477 = vmatpush.bf16.msra.mxu0 %v11207
    %11478 = vmatpush.bf16.msra.mxu0 %v11203
    %11479 = vmatmul.bf16.gmra.mxu0 %v10924
    %v11480 = vpop.f32.mrf.mxu0
    %v11481 = vadd.f32 %v11467, %v11480
    %v11482 = vpop.f32.mrf.mxu0
    %v11483 = vadd.f32 %v11469, %v11482
    %11484 = vdwg.mxu0
    %11485 = vmatpush.bf16.msra.mxu0 0
    %11486 = vmatpush.bf16.msra.mxu0 0
    %11487 = vmatpush.bf16.msra.mxu0 0
    %11488 = vmatpush.bf16.msra.mxu0 0
    %11489 = vmatpush.bf16.msra.mxu0 %v11247
    %11490 = vmatpush.bf16.msra.mxu0 %v11243
    %11491 = vmatpush.bf16.msra.mxu0 %v11239
    %11492 = vmatpush.bf16.msra.mxu0 %v11235
    %11493 = vmatmul.bf16.gmra.mxu0 %v11329
    %v11494 = vpop.f32.mrf.mxu0
    %v11495 = vadd.f32 %v11481, %v11494
    %v11496 = vpop.f32.mrf.mxu0
    %v11497 = vadd.f32 %v11483, %v11496
    %11498 = vdwg.mxu0
    %v11499 = vadd.f32 %v10824, %v11369
    %v11500 = vadd.f32 %v10825, %v11411
    %v11501 = vadd.f32 %v10826, %v11453
    %v11502 = vadd.f32 %v10827, %v11495
    %v11503 = vadd.f32 %v10828, %v11371
    %v11504 = vadd.f32 %v10829, %v11413
    %v11505 = vadd.f32 %v10830, %v11455
    %v11506 = vadd.f32 %v10831, %v11497
    %v11507 = vld [vmem:[#allocation10] sm:$0xf]
    %v11509 = vperm.slane %v11507, 0
    %v11510 = vperm.slane %v11507, 1
    %v11511 = vperm.slane %v11507, 2
    %v11512 = vperm.slane %v11507, 3
    %v11517 = vadd.f32 %v11499, %v11509
    %v11518 = vadd.f32 %v11500, %v11510
    %v11519 = vadd.f32 %v11501, %v11511
    %v11520 = vadd.f32 %v11502, %v11512
    %v11521 = vadd.f32 %v11503, %v11509
    %v11522 = vadd.f32 %v11504, %v11510
    %v11523 = vadd.f32 %v11505, %v11511
    %v11524 = vadd.f32 %v11506, %v11512
    %v11525 = vmax.f32 %v11517, 0.0
    %v11526 = vmax.f32 %v11518, 0.0
    %v11527 = vmax.f32 %v11519, 0.0
    %v11528 = vmax.f32 %v11520, 0.0
    %v11529 = vmax.f32 %v11521, 0.0
    %v11530 = vmax.f32 %v11522, 0.0
    %v11531 = vmax.f32 %v11523, 0.0
    %v11532 = vmax.f32 %v11524, 0.0
    %v11533 = vpack.c.bf16 %v11529, %v11525
    %v11534 = vpack.c.bf16 %v11530, %v11526
    %v11535 = vpack.c.bf16 %v11531, %v11527
    %v11536 = vpack.c.bf16 %v11532, %v11528
    %v11537 = vld [vmem:[#allocation12] sm:$0xf]
    %v11538 = vld [vmem:[#allocation12 + $0x4] sm:$0xf]
    %v11539 = vld [vmem:[#allocation12 + $0x8] sm:$0xf]
    %v11540 = vld [vmem:[#allocation12 + $0xc] sm:$0xf]
    %v11541 = vld [vmem:[#allocation12 + $0x10] sm:$0xf]
    %v11542 = vld [vmem:[#allocation12 + $0x14] sm:$0xf]
    %v11543 = vld [vmem:[#allocation12 + $0x18] sm:$0xf]
    %v11544 = vld [vmem:[#allocation12 + $0x1c] sm:$0xf]
    %v11545 = vld [vmem:[#allocation12 + $0x20] sm:$0xf]
    %v11546 = vld [vmem:[#allocation12 + $0x24] sm:$0xf]
    %v11547 = vld [vmem:[#allocation12 + $0x28] sm:$0xf]
    %v11548 = vld [vmem:[#allocation12 + $0x2c] sm:$0xf]
    %v11549 = vld [vmem:[#allocation12 + $0x30] sm:$0xf]
    %v11550 = vld [vmem:[#allocation12 + $0x34] sm:$0xf]
    %v11551 = vld [vmem:[#allocation12 + $0x38] sm:$0xf]
    %v11552 = vld [vmem:[#allocation12 + $0x3c] sm:$0xf]
    %v11553 = vld [vmem:[#allocation12 + $0x40] sm:$0xf]
    %v11554 = vld [vmem:[#allocation12 + $0x44] sm:$0xf]
    %v11555 = vld [vmem:[#allocation12 + $0x48] sm:$0xf]
    %v11556 = vld [vmem:[#allocation12 + $0x4c] sm:$0xf]
    %v11557 = vld [vmem:[#allocation12 + $0x50] sm:$0xf]
    %v11558 = vld [vmem:[#allocation12 + $0x54] sm:$0xf]
    %v11559 = vld [vmem:[#allocation12 + $0x58] sm:$0xf]
    %v11560 = vld [vmem:[#allocation12 + $0x5c] sm:$0xf]
    %v11561 = vld [vmem:[#allocation12 + $0x60] sm:$0xf]
    %v11562 = vld [vmem:[#allocation12 + $0x64] sm:$0xf]
    %v11563 = vld [vmem:[#allocation12 + $0x68] sm:$0xf]
    %v11564 = vld [vmem:[#allocation12 + $0x6c] sm:$0xf]
    %v11565 = vld [vmem:[#allocation12 + $0x70] sm:$0xf]
    %v11566 = vld [vmem:[#allocation12 + $0x74] sm:$0xf]
    %v11567 = vld [vmem:[#allocation12 + $0x78] sm:$0xf]
    %v11568 = vld [vmem:[#allocation12 + $0x7c] sm:$0xf]
    %v11569 = vld [vmem:[#allocation12 + $0x80] sm:$0xf]
    %v11570 = vld [vmem:[#allocation12 + $0x84] sm:$0xf]
    %v11571 = vld [vmem:[#allocation12 + $0x88] sm:$0xf]
    %v11572 = vld [vmem:[#allocation12 + $0x8c] sm:$0xf]
    %v11573 = vld [vmem:[#allocation12 + $0x90] sm:$0xf]
    %v11574 = vld [vmem:[#allocation12 + $0x94] sm:$0xf]
    %v11575 = vld [vmem:[#allocation12 + $0x98] sm:$0xf]
    %v11576 = vld [vmem:[#allocation12 + $0x9c] sm:$0xf]
    %v11577 = vld [vmem:[#allocation12 + $0xa0] sm:$0xf]
    %v11578 = vld [vmem:[#allocation12 + $0xa4] sm:$0xf]
    %v11579 = vld [vmem:[#allocation12 + $0xa8] sm:$0xf]
    %v11580 = vld [vmem:[#allocation12 + $0xac] sm:$0xf]
    %v11581 = vld [vmem:[#allocation12 + $0xb0] sm:$0xf]
    %v11582 = vld [vmem:[#allocation12 + $0xb4] sm:$0xf]
    %v11583 = vld [vmem:[#allocation12 + $0xb8] sm:$0xf]
    %v11584 = vld [vmem:[#allocation12 + $0xbc] sm:$0xf]
    %v11585 = vld [vmem:[#allocation12 + $0xc0] sm:$0xf]
    %v11586 = vld [vmem:[#allocation12 + $0xc4] sm:$0xf]
    %v11587 = vld [vmem:[#allocation12 + $0xc8] sm:$0xf]
    %v11588 = vld [vmem:[#allocation12 + $0xcc] sm:$0xf]
    %v11589 = vld [vmem:[#allocation12 + $0xd0] sm:$0xf]
    %v11590 = vld [vmem:[#allocation12 + $0xd4] sm:$0xf]
    %v11591 = vld [vmem:[#allocation12 + $0xd8] sm:$0xf]
    %v11592 = vld [vmem:[#allocation12 + $0xdc] sm:$0xf]
    %v11593 = vld [vmem:[#allocation12 + $0xe0] sm:$0xf]
    %v11594 = vld [vmem:[#allocation12 + $0xe4] sm:$0xf]
    %v11595 = vld [vmem:[#allocation12 + $0xe8] sm:$0xf]
    %v11596 = vld [vmem:[#allocation12 + $0xec] sm:$0xf]
    %v11597 = vld [vmem:[#allocation12 + $0xf0] sm:$0xf]
    %v11598 = vld [vmem:[#allocation12 + $0xf4] sm:$0xf]
    %v11599 = vld [vmem:[#allocation12 + $0xf8] sm:$0xf]
    %v11600 = vld [vmem:[#allocation12 + $0xfc] sm:$0xf]
    %v11601 = vld [vmem:[#allocation13] sm:$0x1]
    %v11603 = vperm.slane %v11601, 0
    %v11669 = vunpack.c.l.b16 %v11537
    %v11670 = vunpack.c.l.b16 %v11538
    %v11671 = vunpack.c.l.b16 %v11539
    %v11672 = vunpack.c.l.b16 %v11540
    %v11673 = vunpack.c.l.b16 %v11541
    %v11674 = vunpack.c.l.b16 %v11542
    %v11675 = vunpack.c.l.b16 %v11543
    %v11676 = vunpack.c.l.b16 %v11544
    %v11677 = vunpack.c.l.b16 %v11545
    %v11678 = vunpack.c.l.b16 %v11546
    %v11679 = vunpack.c.l.b16 %v11547
    %v11680 = vunpack.c.l.b16 %v11548
    %v11681 = vunpack.c.l.b16 %v11549
    %v11682 = vunpack.c.l.b16 %v11550
    %v11683 = vunpack.c.l.b16 %v11551
    %v11684 = vunpack.c.l.b16 %v11552
    %v11685 = vunpack.c.l.b16 %v11553
    %v11686 = vunpack.c.l.b16 %v11554
    %v11687 = vunpack.c.l.b16 %v11555
    %v11688 = vunpack.c.l.b16 %v11556
    %v11689 = vunpack.c.l.b16 %v11557
    %v11690 = vunpack.c.l.b16 %v11558
    %v11691 = vunpack.c.l.b16 %v11559
    %v11692 = vunpack.c.l.b16 %v11560
    %v11693 = vunpack.c.l.b16 %v11561
    %v11694 = vunpack.c.l.b16 %v11562
    %v11695 = vunpack.c.l.b16 %v11563
    %v11696 = vunpack.c.l.b16 %v11564
    %v11697 = vunpack.c.l.b16 %v11565
    %v11698 = vunpack.c.l.b16 %v11566
    %v11699 = vunpack.c.l.b16 %v11567
    %v11700 = vunpack.c.l.b16 %v11568
    %v11701 = vunpack.c.l.b16 %v11569
    %v11702 = vunpack.c.l.b16 %v11570
    %v11703 = vunpack.c.l.b16 %v11571
    %v11704 = vunpack.c.l.b16 %v11572
    %v11705 = vunpack.c.l.b16 %v11573
    %v11706 = vunpack.c.l.b16 %v11574
    %v11707 = vunpack.c.l.b16 %v11575
    %v11708 = vunpack.c.l.b16 %v11576
    %v11709 = vunpack.c.l.b16 %v11577
    %v11710 = vunpack.c.l.b16 %v11578
    %v11711 = vunpack.c.l.b16 %v11579
    %v11712 = vunpack.c.l.b16 %v11580
    %v11713 = vunpack.c.l.b16 %v11581
    %v11714 = vunpack.c.l.b16 %v11582
    %v11715 = vunpack.c.l.b16 %v11583
    %v11716 = vunpack.c.l.b16 %v11584
    %v11717 = vunpack.c.l.b16 %v11585
    %v11718 = vunpack.c.l.b16 %v11586
    %v11719 = vunpack.c.l.b16 %v11587
    %v11720 = vunpack.c.l.b16 %v11588
    %v11721 = vunpack.c.l.b16 %v11589
    %v11722 = vunpack.c.l.b16 %v11590
    %v11723 = vunpack.c.l.b16 %v11591
    %v11724 = vunpack.c.l.b16 %v11592
    %v11725 = vunpack.c.l.b16 %v11593
    %v11726 = vunpack.c.l.b16 %v11594
    %v11727 = vunpack.c.l.b16 %v11595
    %v11728 = vunpack.c.l.b16 %v11596
    %v11729 = vunpack.c.l.b16 %v11597
    %v11730 = vunpack.c.l.b16 %v11598
    %v11731 = vunpack.c.l.b16 %v11599
    %v11732 = vunpack.c.l.b16 %v11600
    %v11733 = vpack.c.b16 %v11670, %v11669
    %v11734 = vpack.c.b16 %v11672, %v11671
    %v11735 = vpack.c.b16 %v11674, %v11673
    %v11736 = vpack.c.b16 %v11676, %v11675
    %v11737 = vpack.c.b16 %v11678, %v11677
    %v11738 = vpack.c.b16 %v11680, %v11679
    %v11739 = vpack.c.b16 %v11682, %v11681
    %v11740 = vpack.c.b16 %v11684, %v11683
    %v11741 = vpack.c.b16 %v11686, %v11685
    %v11742 = vpack.c.b16 %v11688, %v11687
    %v11743 = vpack.c.b16 %v11690, %v11689
    %v11744 = vpack.c.b16 %v11692, %v11691
    %v11745 = vpack.c.b16 %v11694, %v11693
    %v11746 = vpack.c.b16 %v11696, %v11695
    %v11747 = vpack.c.b16 %v11698, %v11697
    %v11748 = vpack.c.b16 %v11700, %v11699
    %v11749 = vpack.c.b16 %v11702, %v11701
    %v11750 = vpack.c.b16 %v11704, %v11703
    %v11751 = vpack.c.b16 %v11706, %v11705
    %v11752 = vpack.c.b16 %v11708, %v11707
    %v11753 = vpack.c.b16 %v11710, %v11709
    %v11754 = vpack.c.b16 %v11712, %v11711
    %v11755 = vpack.c.b16 %v11714, %v11713
    %v11756 = vpack.c.b16 %v11716, %v11715
    %v11757 = vpack.c.b16 %v11718, %v11717
    %v11758 = vpack.c.b16 %v11720, %v11719
    %v11759 = vpack.c.b16 %v11722, %v11721
    %v11760 = vpack.c.b16 %v11724, %v11723
    %v11761 = vpack.c.b16 %v11726, %v11725
    %v11762 = vpack.c.b16 %v11728, %v11727
    %v11763 = vpack.c.b16 %v11730, %v11729
    %v11764 = vpack.c.b16 %v11732, %v11731
    %11797 = vmatpush.bf16.msra.mxu0 %v11740
    %11798 = vmatpush.bf16.msra.mxu0 %v11739
    %11799 = vmatpush.bf16.msra.mxu0 %v11738
    %11800 = vmatpush.bf16.msra.mxu0 %v11737
    %11801 = vmatpush.bf16.msra.mxu0 %v11736
    %11802 = vmatpush.bf16.msra.mxu0 %v11735
    %11803 = vmatpush.bf16.msra.mxu0 %v11734
    %11804 = vmatpush.bf16.msra.mxu0 %v11733
    %11805 = vmatmul.bf16.gmra.mxu0 %v11533
    %v11806 = vpop.f32.mrf.mxu0
    %v11807 = vadd.f32 %v11603, %v11806
    %v11808 = vpop.f32.mrf.mxu0
    %v11809 = vadd.f32 %v11603, %v11808
    %11810 = vdwg.mxu0
    %11811 = vmatpush.bf16.msra.mxu0 %v11748
    %11812 = vmatpush.bf16.msra.mxu0 %v11747
    %11813 = vmatpush.bf16.msra.mxu0 %v11746
    %11814 = vmatpush.bf16.msra.mxu0 %v11745
    %11815 = vmatpush.bf16.msra.mxu0 %v11744
    %11816 = vmatpush.bf16.msra.mxu0 %v11743
    %11817 = vmatpush.bf16.msra.mxu0 %v11742
    %11818 = vmatpush.bf16.msra.mxu0 %v11741
    %11819 = vmatmul.bf16.gmra.mxu0 %v11534
    %v11820 = vpop.f32.mrf.mxu0
    %v11821 = vadd.f32 %v11807, %v11820
    %v11822 = vpop.f32.mrf.mxu0
    %v11823 = vadd.f32 %v11809, %v11822
    %11824 = vdwg.mxu0
    %11825 = vmatpush.bf16.msra.mxu0 %v11756
    %11826 = vmatpush.bf16.msra.mxu0 %v11755
    %11827 = vmatpush.bf16.msra.mxu0 %v11754
    %11828 = vmatpush.bf16.msra.mxu0 %v11753
    %11829 = vmatpush.bf16.msra.mxu0 %v11752
    %11830 = vmatpush.bf16.msra.mxu0 %v11751
    %11831 = vmatpush.bf16.msra.mxu0 %v11750
    %11832 = vmatpush.bf16.msra.mxu0 %v11749
    %11833 = vmatmul.bf16.gmra.mxu0 %v11535
    %v11834 = vpop.f32.mrf.mxu0
    %v11835 = vadd.f32 %v11821, %v11834
    %v11836 = vpop.f32.mrf.mxu0
    %v11837 = vadd.f32 %v11823, %v11836
    %11838 = vdwg.mxu0
    %11839 = vmatpush.bf16.msra.mxu0 %v11764
    %11840 = vmatpush.bf16.msra.mxu0 %v11763
    %11841 = vmatpush.bf16.msra.mxu0 %v11762
    %11842 = vmatpush.bf16.msra.mxu0 %v11761
    %11843 = vmatpush.bf16.msra.mxu0 %v11760
    %11844 = vmatpush.bf16.msra.mxu0 %v11759
    %11845 = vmatpush.bf16.msra.mxu0 %v11758
    %11846 = vmatpush.bf16.msra.mxu0 %v11757
    %11847 = vmatmul.bf16.gmra.mxu0 %v11536
    %v11848 = vpop.f32.mrf.mxu0
    %v11849 = vadd.f32 %v11835, %v11848
    %v11850 = vpop.f32.mrf.mxu0
    %v11851 = vadd.f32 %v11837, %v11850
    %11852 = vdwg.mxu0
    %11853 = vst [vmem:[%s10] sm:$0xff] %v11849
    %11854 = vst [vmem:[%s10 + $0x8] sm:$0xff] %v11851
    // Predicated region
    $region74: #{cnn_forward.1} parent=1 // pred_check
      _
    $region75: #{cnn_forward.1} parent=1 // pred_check_branch
      %11856 = sbr.rel (0) target = $region77
    $region76: #{cnn_forward.1} parent=1 // pred_region
      _
    $region77: #{cnn_forward.1} parent=1 // pred_fallthru
      _
    // Predicated region
    $region78: #{cnn_forward.1} parent=1 // pred_check
      _
    $region79: #{cnn_forward.1} parent=1 // pred_check_branch
      %11858 = sbr.rel (0) target = $region81
    $region80: #{cnn_forward.1} parent=1 // pred_region
      _
    $region81: #{cnn_forward.1} parent=1 // pred_fallthru
      _
    %11859 = vsyncpa [#allocation3], 1
    %11860 = vsyncpa [#allocation5], 1
    %11861 = vsyncpa [#allocation8], 1
    %11862 = vsyncpa [#allocation11], 1
    %11863 = vsyncpa [#allocation14], 1

</llo_original>
